<compile_context>
chip_gen: v7x
topology: tpu7x:2x2x1
jax: 0.10.0
libtpu: 0.0.40
codegen_flags: <defaults>
</compile_context>

<pallas_src>
import functools

import jax
import jax.numpy as jnp
from jax import lax
from jax.experimental import pallas as pl
from jax.experimental.pallas import tpu as pltpu

FEAT = 1280                  # EfficientNet-B1 classifier in_features
H1, H2, H3, OUT = 512, 256, 128, 2
OUT_PAD = 128                # final layer padded to 128 rows; wrapper slices [:OUT]
LANES = 128                  # vreg lane width


def _fused_kernel(x_ref, wh_ref, bh_ref,
                  w1_ref, b1_ref, w2_ref, b2_ref, w3_ref, b3_ref, w4_ref, b4_ref,
                  o_ref, acc_ref, *, inv_hw, n_pad, feat_chunk, use_mxu):
    """Fused 1x1 conv head + SiLU + global-avg-pool + classifier MLP.

    Grid = (batch, spatial-tile); the spatial axis is the last ("arbitrary")
    reduction axis.  acc_ref (FEAT, 128) holds per-image lane-group partial sums of
    the SiLU features; the classifier runs once, at the last spatial tile.
    """
    k = pl.program_id(1)
    n_chunks = FEAT // feat_chunk

    @pl.when(k == 0)
    def _init():
        acc_ref[...] = jnp.zeros_like(acc_ref)

    x = x_ref[0]                                   # (C, T) bf16, T % 128 == 0
    t = x.shape[-1]
    x_f32 = None if use_mxu else x.astype(jnp.float32)

    def conv_chunk(ci, carry):
        off = pl.multiple_of(ci * feat_chunk, feat_chunk)
        w_c = wh_ref[pl.ds(off, feat_chunk), :]    # (FC, C) bf16
        b_c = bh_ref[pl.ds(off, feat_chunk), :]    # (FC, 1) f32
        if use_mxu:
            # K=C(=3) matmul: underutilizes the MXU K dim, but runs on the MXU slot
            # instead of the VALU (v6e/v7x recommendation).
            y = jnp.dot(w_c, x, preferred_element_type=jnp.float32)       # (FC, T)
        else:
            # v5e path: per-channel outer-product FMAs on the VPU.
            w_f = w_c.astype(jnp.float32)
            y = w_f[:, 0:1] * x_f32[0:1, :]
            for c in range(1, x_f32.shape[0]):
                y = y + w_f[:, c:c + 1] * x_f32[c:c + 1, :]
        y = y + b_c                                # bias (broadcast over lanes)
        y = y * jax.nn.sigmoid(y)                  # SiLU (sigmoid on the EUP)
        # Lane-group partial sums: pure VALU adds; no per-step XLU collapse.
        p = y[:, 0:LANES]
        for g in range(1, t // LANES):
            p = p + y[:, g * LANES:(g + 1) * LANES]
        acc_ref[pl.ds(off, feat_chunk), :] += p
        return carry

    lax.fori_loop(0, n_chunks, conv_chunk, 0, unroll=True)

    # ---- finalize: mean pool + classifier (Dropout(0.4) = identity at eval) ----
    @pl.when(k == pl.num_programs(1) - 1)
    def _finalize():
        s = jnp.sum(acc_ref[...], axis=1, keepdims=True)           # (FEAT, 1) f32
        if n_pad:   # remove the silu(bias) contributed by zero-padded spatial slots
            b = bh_ref[...]
            s = s - n_pad * (b * jax.nn.sigmoid(b))
        f = (s * inv_hw).astype(jnp.bfloat16)                       # pooled (FEAT, 1)
        # Column-oriented classifier (weights kept in native (out, in) layout) —
        # no transposes needed anywhere in the kernel.
        h = jnp.dot(w1_ref[...], f, preferred_element_type=jnp.float32) + b1_ref[...]
        h = jnp.maximum(h, 0.0).astype(jnp.bfloat16)
        h = jnp.dot(w2_ref[...], h, preferred_element_type=jnp.float32) + b2_ref[...]
        h = jnp.maximum(h, 0.0).astype(jnp.bfloat16)
        h = jnp.dot(w3_ref[...], h, preferred_element_type=jnp.float32) + b3_ref[...]
        h = jnp.maximum(h, 0.0).astype(jnp.bfloat16)
        out = jnp.dot(w4_ref[...], h, preferred_element_type=jnp.float32) + b4_ref[...]
        o_ref[...] = out[None].astype(o_ref.dtype)                  # (1, OUT_PAD, 1)


def angle_predictor_forward(x_nchw, params, *, tile_hw=2048, feat_chunk=256,
                            head_on_mxu=True):
    """Forward pass. x_nchw: (N, C, H, W) image batch -> (N, 2) logits."""
    N, C, H, W = x_nchw.shape
    HW = H * W

    # Channels-first streaming layout: a free reshape of NCHW (no transpose, no
    # extra HBM round trip); spatial lands dense in the lane dimension.
    x = x_nchw.reshape(N, C, HW).astype(jnp.bfloat16)

    # Pad the spatial axis to a multiple of 128 lanes; padded zeros contribute
    # exactly silu(bias) per feature and are corrected in the kernel finalize.
    hw_pad = pl.cdiv(HW, LANES) * LANES
    n_pad = hw_pad - HW
    if n_pad:
        x = jnp.pad(x, ((0, 0), (0, 0), (0, n_pad)))

    # Largest multiple-of-128 divisor of hw_pad that is <= tile_hw (128 always works).
    t = max(LANES, min(tile_hw, hw_pad) // LANES * LANES)
    while hw_pad % t:
        t -= LANES
    n_k = hw_pad // t

    if FEAT % feat_chunk:
        feat_chunk = FEAT

    const = lambda b, k: (0, 0)        # weights/biases: same block every step
    kernel = functools.partial(_fused_kernel, inv_hw=1.0 / HW, n_pad=n_pad,
                               feat_chunk=feat_chunk, use_mxu=head_on_mxu)
    # NOTE: with N == 1 on v7x one TensorCore idles; a 2-wide spatial-split
    # "parallel" axis with a cross-core combine would recover it.
    logits_col = pl.pallas_call(
        kernel,
        out_shape=jax.ShapeDtypeStruct((N, OUT_PAD, 1), jnp.float32),
        grid=(N, n_k),
        in_specs=[
            pl.BlockSpec((1, C, t), lambda b, k: (b, 0, k)),        # streamed input
            # Constant weight/bias blocks (~1.7 MiB bf16 total), fetched once.
            pl.BlockSpec((FEAT, C), const),
            pl.BlockSpec((FEAT, 1), const),
            pl.BlockSpec((H1, FEAT), const), pl.BlockSpec((H1, 1), const),
            pl.BlockSpec((H2, H1), const),   pl.BlockSpec((H2, 1), const),
            pl.BlockSpec((H3, H2), const),   pl.BlockSpec((H3, 1), const),
            pl.BlockSpec((OUT_PAD, H3), const), pl.BlockSpec((OUT_PAD, 1), const),
        ],
        out_specs=pl.BlockSpec((1, OUT_PAD, 1), lambda b, k: (b, 0, 0)),
        scratch_shapes=[pltpu.VMEM((FEAT, LANES), jnp.float32)],
        compiler_params=pltpu.CompilerParams(
            dimension_semantics=("parallel", "arbitrary"),
            vmem_limit_bytes=32 * 1024 * 1024),
    )(x, params["w_head"], params["b_head"],
      params["w1"], params["b1"], params["w2"], params["b2"],
      params["w3"], params["b3"], params["w4p"], params["b4p"])

    return logits_col[:, :OUT, 0]


def init_params(key, c_in):
    ks = jax.random.split(key, 5)

    def lin_init(k, fan_in, fan_out):
        kw, kb = jax.random.split(k)
        s = 1.0 / jnp.sqrt(jnp.float32(fan_in))
        w = jax.random.uniform(kw, (fan_out, fan_in), jnp.float32, -s, s)  # (out, in)
        b = jax.random.uniform(kb, (fan_out, 1), jnp.float32, -s, s)       # (out, 1)
        return w, b

    w_head, b_head = lin_init(ks[0], c_in, FEAT)
    w1, b1 = lin_init(ks[1], FEAT, H1)
    w2, b2 = lin_init(ks[2], H1, H2)
    w3, b3 = lin_init(ks[3], H2, H3)
    w4, b4 = lin_init(ks[4], H3, OUT)

    # Pad the 2-row final layer to 128 rows (zeros beyond OUT); wrapper slices [:OUT].
    w4p = jnp.zeros((OUT_PAD, H3), jnp.float32).at[:OUT].set(w4)
    b4p = jnp.zeros((OUT_PAD, 1), jnp.float32).at[:OUT].set(b4)

    # Weights stored bf16 (halves HBM/VMEM traffic); biases stay f32; kernel
    # accumulates in f32.
    return dict(
        w_head=w_head.astype(jnp.bfloat16), b_head=b_head,
        w1=w1.astype(jnp.bfloat16), b1=b1,
        w2=w2.astype(jnp.bfloat16), b2=b2,
        w3=w3.astype(jnp.bfloat16), b3=b3,
        w4p=w4p.astype(jnp.bfloat16), b4p=b4p,
    )


if __name__ == "__main__":
    key = jax.random.PRNGKey(0)
    k_x, k_p = jax.random.split(key)

    N, C, H, W = 2, 3, 16, 16                  # small RGB image batch (NCHW)
    x = jax.random.normal(k_x, (N, C, H, W), jnp.float32)
    params = init_params(k_p, C)

    fwd_mxu = jax.jit(angle_predictor_forward)                                        # v6e/v7x default
    fwd_vpu = jax.jit(functools.partial(angle_predictor_forward, head_on_mxu=False))  # v5e variant

    out = fwd_mxu(x, params)
    jax.block_until_ready(out)
    out_vpu = fwd_vpu(x, params)
    jax.block_until_ready(out_vpu)
    assert out.shape == (N, OUT), out.shape

    # ---- plain-JAX reference (mirrors the kernel's bf16/f32 dtype flow) ----
    xr = x.reshape(N, C, H * W).astype(jnp.bfloat16).astype(jnp.float32)
    wh = params["w_head"].astype(jnp.float32)                      # (FEAT, C)
    y = jnp.einsum("fc,nch->nfh", wh, xr) + params["b_head"][None, :, :]
    y = y * jax.nn.sigmoid(y)                                      # SiLU
    f = jnp.mean(y, axis=2)                                        # (N, FEAT) f32

    def lin(h, w, b):                                              # w (out,in) bf16, b (out,1) f32
        return (jnp.dot(h.astype(jnp.bfloat16), w.T,
                        preferred_element_type=jnp.float32) + b[:, 0][None, :])

    h = jnp.maximum(lin(f, params["w1"], params["b1"]), 0.0)
    h = jnp.maximum(lin(h, params["w2"], params["b2"]), 0.0)
    h = jnp.maximum(lin(h, params["w3"], params["b3"]), 0.0)
    ref = lin(h, params["w4p"], params["b4p"])[:, :OUT]

    assert jnp.allclose(out, ref, atol=1e-2, rtol=1e-2), (out, ref)
    assert jnp.allclose(out_vpu, ref, atol=1e-2, rtol=1e-2), (out_vpu, ref)
    print("KERNEL_OK")
</pallas_src>

<mosaic_0001>
module attributes {stable_mosaic.version = 11 : i64} {
  func.func @_fused_kernel(%arg0: i32, %arg1: i32, %arg2: memref<1x3x256xbf16, #tpu.memory_space<vmem>>, %arg3: memref<1280x3xbf16, #tpu.memory_space<vmem>>, %arg4: memref<1280x1xf32, #tpu.memory_space<vmem>>, %arg5: memref<512x1280xbf16, #tpu.memory_space<vmem>>, %arg6: memref<512x1xf32, #tpu.memory_space<vmem>>, %arg7: memref<256x512xbf16, #tpu.memory_space<vmem>>, %arg8: memref<256x1xf32, #tpu.memory_space<vmem>>, %arg9: memref<128x256xbf16, #tpu.memory_space<vmem>>, %arg10: memref<128x1xf32, #tpu.memory_space<vmem>>, %arg11: memref<128x128xbf16, #tpu.memory_space<vmem>>, %arg12: memref<128x1xf32, #tpu.memory_space<vmem>>, %arg13: memref<1x128x1xf32, #tpu.memory_space<vmem>>, %arg14: memref<1280x128xf32, #tpu.memory_space<vmem>>) attributes {dimension_semantics = [#tpu.dimension_semantics<parallel>, #tpu.dimension_semantics<arbitrary>], iteration_bounds = array<i64: 2, 1>, scalar_prefetch = 0 : i64, scratch_operands = 1 : i64, tpu.core_type = #tpu.core_type<tc>, window_params = [{transform_indices = @transform_0, window_bounds = array<i64: 1, 3, 256>}, {pipeline_mode = #tpu.pipeline_mode<synchronous>, transform_indices = @transform_1, window_bounds = array<i64: 1280, 3>}, {pipeline_mode = #tpu.pipeline_mode<synchronous>, transform_indices = @transform_2, window_bounds = array<i64: 1280, 1>}, {pipeline_mode = #tpu.pipeline_mode<synchronous>, transform_indices = @transform_3, window_bounds = array<i64: 512, 1280>}, {pipeline_mode = #tpu.pipeline_mode<synchronous>, transform_indices = @transform_4, window_bounds = array<i64: 512, 1>}, {pipeline_mode = #tpu.pipeline_mode<synchronous>, transform_indices = @transform_5, window_bounds = array<i64: 256, 512>}, {pipeline_mode = #tpu.pipeline_mode<synchronous>, transform_indices = @transform_6, window_bounds = array<i64: 256, 1>}, {pipeline_mode = #tpu.pipeline_mode<synchronous>, transform_indices = @transform_7, window_bounds = array<i64: 128, 256>}, {pipeline_mode = #tpu.pipeline_mode<synchronous>, transform_indices = @transform_8, window_bounds = array<i64: 128, 1>}, {pipeline_mode = #tpu.pipeline_mode<synchronous>, transform_indices = @transform_9, window_bounds = array<i64: 128, 128>}, {pipeline_mode = #tpu.pipeline_mode<synchronous>, transform_indices = @transform_10, window_bounds = array<i64: 128, 1>}, {transform_indices = @transform_11, window_bounds = array<i64: 1, 128, 1>}]} {
    %c0_i32 = arith.constant 0 : i32
    %0 = arith.cmpi eq, %arg1, %c0_i32 : i32
    %1 = arith.extui %0 : i1 to i32
    %c0_i32_0 = arith.constant 0 : i32
    %2 = arith.cmpi ne, %1, %c0_i32_0 : i32
    scf.if %2 {
      %cst_39 = arith.constant 0.000000e+00 : f32
      %123 = vector.broadcast %cst_39 : f32 to vector<1280x128xf32>
      %c0_40 = arith.constant 0 : index
      %c0_41 = arith.constant 0 : index
      %124 = vector.load %arg14[%c0_40, %c0_41] : memref<1280x128xf32, #tpu.memory_space<vmem>>, vector<1280x128xf32>
      tpu.vector_store %arg14[%c0_40, %c0_41], %123 {strides = array<i32>} : memref<1280x128xf32, #tpu.memory_space<vmem>>, vector<1280x128xf32>,
    } else {
    }
    %c0 = arith.constant 0 : index
    %c0_1 = arith.constant 0 : index
    %c0_2 = arith.constant 0 : index
    %3 = vector.load %arg2[%c0, %c0_1, %c0_2] : memref<1x3x256xbf16, #tpu.memory_space<vmem>>, vector<1x3x256xbf16>
    %4 = vector.shape_cast %3 : vector<1x3x256xbf16> to vector<3x256xbf16>
    %c0_i32_3 = arith.constant 0 : i32
    %c256_i32 = arith.constant 256 : i32
    %5 = arith.muli %c0_i32_3, %c256_i32 : i32
    %6 = tpu.assume_multiple %5, 256 : i32
    %7 = arith.index_cast %6 : i32 to index
    %c0_4 = arith.constant 0 : index
    %8 = vector.load %arg3[%7, %c0_4] : memref<1280x3xbf16, #tpu.memory_space<vmem>>, vector<256x3xbf16>
    %9 = arith.index_cast %6 : i32 to index
    %c0_5 = arith.constant 0 : index
    %10 = vector.load %arg4[%9, %c0_5] : memref<1280x1xf32, #tpu.memory_space<vmem>>, vector<256x1xf32>
    %cst = arith.constant dense<0.000000e+00> : vector<256x256xf32>
    %11 = tpu.matmul %8, %4, %cst {dimension_numbers = #tpu.dot_dimension_numbers<[1], [0], [0], [1], [0, 0, 1, 1], [], []>} : vector<256x3xbf16>, vector<3x256xbf16>, vector<256x256xf32> -> vector<256x256xf32>
    %12 = vector.broadcast %10 : vector<256x1xf32> to vector<256x256xf32>
    %13 = arith.addf %11, %12 : vector<256x256xf32>
    %14 = arith.negf %13 : vector<256x256xf32>
    %15 = math.exp %14 : vector<256x256xf32>
    %cst_6 = arith.constant 1.000000e+00 : f32
    %16 = vector.broadcast %cst_6 : f32 to vector<256x256xf32>
    %17 = arith.addf %16, %15 : vector<256x256xf32>
    %18 = arith.divf %16, %17 : vector<256x256xf32>
    %19 = arith.mulf %13, %18 : vector<256x256xf32>
    %20 = vector.extract_strided_slice %19 {offsets = [0, 0], sizes = [256, 128], strides = [1, 1]} : vector<256x256xf32> to vector<256x128xf32>
    %21 = vector.extract_strided_slice %19 {offsets = [0, 128], sizes = [256, 128], strides = [1, 1]} : vector<256x256xf32> to vector<256x128xf32>
    %22 = arith.addf %20, %21 : vector<256x128xf32>
    %23 = arith.index_cast %6 : i32 to index
    %c0_7 = arith.constant 0 : index
    %24 = vector.load %arg14[%23, %c0_7] : memref<1280x128xf32, #tpu.memory_space<vmem>>, vector<256x128xf32>
    %25 = arith.addf %24, %22 : vector<256x128xf32>
    %26 = arith.index_cast %6 : i32 to index
    %c0_8 = arith.constant 0 : index
    %27 = vector.load %arg14[%26, %c0_8] : memref<1280x128xf32, #tpu.memory_space<vmem>>, vector<256x128xf32>
    tpu.vector_store %arg14[%26, %c0_8], %25 {strides = array<i32>} : memref<1280x128xf32, #tpu.memory_space<vmem>>, vector<256x128xf32>,
    %c1_i32 = arith.constant 1 : i32
    %c256_i32_9 = arith.constant 256 : i32
    %28 = arith.muli %c1_i32, %c256_i32_9 : i32
    %29 = tpu.assume_multiple %28, 256 : i32
    %30 = arith.index_cast %29 : i32 to index
    %c0_10 = arith.constant 0 : index
    %31 = vector.load %arg3[%30, %c0_10] : memref<1280x3xbf16, #tpu.memory_space<vmem>>, vector<256x3xbf16>
    %32 = arith.index_cast %29 : i32 to index
    %c0_11 = arith.constant 0 : index
    %33 = vector.load %arg4[%32, %c0_11] : memref<1280x1xf32, #tpu.memory_space<vmem>>, vector<256x1xf32>
    %cst_12 = arith.constant dense<0.000000e+00> : vector<256x256xf32>
    %34 = tpu.matmul %31, %4, %cst_12 {dimension_numbers = #tpu.dot_dimension_numbers<[1], [0], [0], [1], [0, 0, 1, 1], [], []>} : vector<256x3xbf16>, vector<3x256xbf16>, vector<256x256xf32> -> vector<256x256xf32>
    %35 = vector.broadcast %33 : vector<256x1xf32> to vector<256x256xf32>
    %36 = arith.addf %34, %35 : vector<256x256xf32>
    %37 = arith.negf %36 : vector<256x256xf32>
    %38 = math.exp %37 : vector<256x256xf32>
    %cst_13 = arith.constant 1.000000e+00 : f32
    %39 = vector.broadcast %cst_13 : f32 to vector<256x256xf32>
    %40 = arith.addf %39, %38 : vector<256x256xf32>
    %41 = arith.divf %39, %40 : vector<256x256xf32>
    %42 = arith.mulf %36, %41 : vector<256x256xf32>
    %43 = vector.extract_strided_slice %42 {offsets = [0, 0], sizes = [256, 128], strides = [1, 1]} : vector<256x256xf32> to vector<256x128xf32>
    %44 = vector.extract_strided_slice %42 {offsets = [0, 128], sizes = [256, 128], strides = [1, 1]} : vector<256x256xf32> to vector<256x128xf32>
    %45 = arith.addf %43, %44 : vector<256x128xf32>
    %46 = arith.index_cast %29 : i32 to index
    %c0_14 = arith.constant 0 : index
    %47 = vector.load %arg14[%46, %c0_14] : memref<1280x128xf32, #tpu.memory_space<vmem>>, vector<256x128xf32>
    %48 = arith.addf %47, %45 : vector<256x128xf32>
    %49 = arith.index_cast %29 : i32 to index
    %c0_15 = arith.constant 0 : index
    %50 = vector.load %arg14[%49, %c0_15] : memref<1280x128xf32, #tpu.memory_space<vmem>>, vector<256x128xf32>
    tpu.vector_store %arg14[%49, %c0_15], %48 {strides = array<i32>} : memref<1280x128xf32, #tpu.memory_space<vmem>>, vector<256x128xf32>,
    %c2_i32 = arith.constant 2 : i32
    %c256_i32_16 = arith.constant 256 : i32
    %51 = arith.muli %c2_i32, %c256_i32_16 : i32
    %52 = tpu.assume_multiple %51, 256 : i32
    %53 = arith.index_cast %52 : i32 to index
    %c0_17 = arith.constant 0 : index
    %54 = vector.load %arg3[%53, %c0_17] : memref<1280x3xbf16, #tpu.memory_space<vmem>>, vector<256x3xbf16>
    %55 = arith.index_cast %52 : i32 to index
    %c0_18 = arith.constant 0 : index
    %56 = vector.load %arg4[%55, %c0_18] : memref<1280x1xf32, #tpu.memory_space<vmem>>, vector<256x1xf32>
    %cst_19 = arith.constant dense<0.000000e+00> : vector<256x256xf32>
    %57 = tpu.matmul %54, %4, %cst_19 {dimension_numbers = #tpu.dot_dimension_numbers<[1], [0], [0], [1], [0, 0, 1, 1], [], []>} : vector<256x3xbf16>, vector<3x256xbf16>, vector<256x256xf32> -> vector<256x256xf32>
    %58 = vector.broadcast %56 : vector<256x1xf32> to vector<256x256xf32>
    %59 = arith.addf %57, %58 : vector<256x256xf32>
    %60 = arith.negf %59 : vector<256x256xf32>
    %61 = math.exp %60 : vector<256x256xf32>
    %cst_20 = arith.constant 1.000000e+00 : f32
    %62 = vector.broadcast %cst_20 : f32 to vector<256x256xf32>
    %63 = arith.addf %62, %61 : vector<256x256xf32>
    %64 = arith.divf %62, %63 : vector<256x256xf32>
    %65 = arith.mulf %59, %64 : vector<256x256xf32>
    %66 = vector.extract_strided_slice %65 {offsets = [0, 0], sizes = [256, 128], strides = [1, 1]} : vector<256x256xf32> to vector<256x128xf32>
    %67 = vector.extract_strided_slice %65 {offsets = [0, 128], sizes = [256, 128], strides = [1, 1]} : vector<256x256xf32> to vector<256x128xf32>
    %68 = arith.addf %66, %67 : vector<256x128xf32>
    %69 = arith.index_cast %52 : i32 to index
    %c0_21 = arith.constant 0 : index
    %70 = vector.load %arg14[%69, %c0_21] : memref<1280x128xf32, #tpu.memory_space<vmem>>, vector<256x128xf32>
    %71 = arith.addf %70, %68 : vector<256x128xf32>
    %72 = arith.index_cast %52 : i32 to index
    %c0_22 = arith.constant 0 : index
    %73 = vector.load %arg14[%72, %c0_22] : memref<1280x128xf32, #tpu.memory_space<vmem>>, vector<256x128xf32>
    tpu.vector_store %arg14[%72, %c0_22], %71 {strides = array<i32>} : memref<1280x128xf32, #tpu.memory_space<vmem>>, vector<256x128xf32>,
    %c3_i32 = arith.constant 3 : i32
    %c256_i32_23 = arith.constant 256 : i32
    %74 = arith.muli %c3_i32, %c256_i32_23 : i32
    %75 = tpu.assume_multiple %74, 256 : i32
    %76 = arith.index_cast %75 : i32 to index
    %c0_24 = arith.constant 0 : index
    %77 = vector.load %arg3[%76, %c0_24] : memref<1280x3xbf16, #tpu.memory_space<vmem>>, vector<256x3xbf16>
    %78 = arith.index_cast %75 : i32 to index
    %c0_25 = arith.constant 0 : index
    %79 = vector.load %arg4[%78, %c0_25] : memref<1280x1xf32, #tpu.memory_space<vmem>>, vector<256x1xf32>
    %cst_26 = arith.constant dense<0.000000e+00> : vector<256x256xf32>
    %80 = tpu.matmul %77, %4, %cst_26 {dimension_numbers = #tpu.dot_dimension_numbers<[1], [0], [0], [1], [0, 0, 1, 1], [], []>} : vector<256x3xbf16>, vector<3x256xbf16>, vector<256x256xf32> -> vector<256x256xf32>
    %81 = vector.broadcast %79 : vector<256x1xf32> to vector<256x256xf32>
    %82 = arith.addf %80, %81 : vector<256x256xf32>
    %83 = arith.negf %82 : vector<256x256xf32>
    %84 = math.exp %83 : vector<256x256xf32>
    %cst_27 = arith.constant 1.000000e+00 : f32
    %85 = vector.broadcast %cst_27 : f32 to vector<256x256xf32>
    %86 = arith.addf %85, %84 : vector<256x256xf32>
    %87 = arith.divf %85, %86 : vector<256x256xf32>
    %88 = arith.mulf %82, %87 : vector<256x256xf32>
    %89 = vector.extract_strided_slice %88 {offsets = [0, 0], sizes = [256, 128], strides = [1, 1]} : vector<256x256xf32> to vector<256x128xf32>
    %90 = vector.extract_strided_slice %88 {offsets = [0, 128], sizes = [256, 128], strides = [1, 1]} : vector<256x256xf32> to vector<256x128xf32>
    %91 = arith.addf %89, %90 : vector<256x128xf32>
    %92 = arith.index_cast %75 : i32 to index
    %c0_28 = arith.constant 0 : index
    %93 = vector.load %arg14[%92, %c0_28] : memref<1280x128xf32, #tpu.memory_space<vmem>>, vector<256x128xf32>
    %94 = arith.addf %93, %91 : vector<256x128xf32>
    %95 = arith.index_cast %75 : i32 to index
    %c0_29 = arith.constant 0 : index
    %96 = vector.load %arg14[%95, %c0_29] : memref<1280x128xf32, #tpu.memory_space<vmem>>, vector<256x128xf32>
    tpu.vector_store %arg14[%95, %c0_29], %94 {strides = array<i32>} : memref<1280x128xf32, #tpu.memory_space<vmem>>, vector<256x128xf32>,
    %c4_i32 = arith.constant 4 : i32
    %c256_i32_30 = arith.constant 256 : i32
    %97 = arith.muli %c4_i32, %c256_i32_30 : i32
    %98 = tpu.assume_multiple %97, 256 : i32
    %99 = arith.index_cast %98 : i32 to index
    %c0_31 = arith.constant 0 : index
    %100 = vector.load %arg3[%99, %c0_31] : memref<1280x3xbf16, #tpu.memory_space<vmem>>, vector<256x3xbf16>
    %101 = arith.index_cast %98 : i32 to index
    %c0_32 = arith.constant 0 : index
    %102 = vector.load %arg4[%101, %c0_32] : memref<1280x1xf32, #tpu.memory_space<vmem>>, vector<256x1xf32>
    %cst_33 = arith.constant dense<0.000000e+00> : vector<256x256xf32>
    %103 = tpu.matmul %100, %4, %cst_33 {dimension_numbers = #tpu.dot_dimension_numbers<[1], [0], [0], [1], [0, 0, 1, 1], [], []>} : vector<256x3xbf16>, vector<3x256xbf16>, vector<256x256xf32> -> vector<256x256xf32>
    %104 = vector.broadcast %102 : vector<256x1xf32> to vector<256x256xf32>
    %105 = arith.addf %103, %104 : vector<256x256xf32>
    %106 = arith.negf %105 : vector<256x256xf32>
    %107 = math.exp %106 : vector<256x256xf32>
    %cst_34 = arith.constant 1.000000e+00 : f32
    %108 = vector.broadcast %cst_34 : f32 to vector<256x256xf32>
    %109 = arith.addf %108, %107 : vector<256x256xf32>
    %110 = arith.divf %108, %109 : vector<256x256xf32>
    %111 = arith.mulf %105, %110 : vector<256x256xf32>
    %112 = vector.extract_strided_slice %111 {offsets = [0, 0], sizes = [256, 128], strides = [1, 1]} : vector<256x256xf32> to vector<256x128xf32>
    %113 = vector.extract_strided_slice %111 {offsets = [0, 128], sizes = [256, 128], strides = [1, 1]} : vector<256x256xf32> to vector<256x128xf32>
    %114 = arith.addf %112, %113 : vector<256x128xf32>
    %115 = arith.index_cast %98 : i32 to index
    %c0_35 = arith.constant 0 : index
    %116 = vector.load %arg14[%115, %c0_35] : memref<1280x128xf32, #tpu.memory_space<vmem>>, vector<256x128xf32>
    %117 = arith.addf %116, %114 : vector<256x128xf32>
    %118 = arith.index_cast %98 : i32 to index
    %c0_36 = arith.constant 0 : index
    %119 = vector.load %arg14[%118, %c0_36] : memref<1280x128xf32, #tpu.memory_space<vmem>>, vector<256x128xf32>
    tpu.vector_store %arg14[%118, %c0_36], %117 {strides = array<i32>} : memref<1280x128xf32, #tpu.memory_space<vmem>>, vector<256x128xf32>,
    %c5_i32 = arith.constant 5 : i32
    %c0_i32_37 = arith.constant 0 : i32
    %120 = arith.cmpi eq, %arg1, %c0_i32_37 : i32
    %121 = arith.extui %120 : i1 to i32
    %c0_i32_38 = arith.constant 0 : i32
    %122 = arith.cmpi ne, %121, %c0_i32_38 : i32
    scf.if %122 {
      %c0_39 = arith.constant 0 : index
      %c0_40 = arith.constant 0 : index
      %123 = vector.load %arg14[%c0_39, %c0_40] : memref<1280x128xf32, #tpu.memory_space<vmem>>, vector<1280x128xf32>
      %cst_41 = arith.constant dense<0.000000e+00> : vector<1280xf32>
      %124 = vector.multi_reduction <add>, %123, %cst_41 [1] : vector<1280x128xf32> to vector<1280xf32>
      %125 = vector.shape_cast %124 : vector<1280xf32> to vector<1280x1xf32>
      %cst_42 = arith.constant 3.906250e-03 : f32
      %126 = vector.broadcast %cst_42 : f32 to vector<1280x1xf32>
      %127 = arith.mulf %125, %126 : vector<1280x1xf32>
      %128 = arith.truncf %127 : vector<1280x1xf32> to vector<1280x1xbf16>
      %c0_43 = arith.constant 0 : index
      %c0_44 = arith.constant 0 : index
      %129 = vector.load %arg5[%c0_43, %c0_44] : memref<512x1280xbf16, #tpu.memory_space<vmem>>, vector<512x1280xbf16>
      %cst_45 = arith.constant dense<0.000000e+00> : vector<512x1xf32>
      %130 = tpu.matmul %129, %128, %cst_45 {dimension_numbers = #tpu.dot_dimension_numbers<[1], [0], [0], [1], [0, 0, 1, 1], [], []>} : vector<512x1280xbf16>, vector<1280x1xbf16>, vector<512x1xf32> -> vector<512x1xf32>
      %c0_46 = arith.constant 0 : index
      %c0_47 = arith.constant 0 : index
      %131 = vector.load %arg6[%c0_46, %c0_47] : memref<512x1xf32, #tpu.memory_space<vmem>>, vector<512x1xf32>
      %132 = arith.addf %130, %131 : vector<512x1xf32>
      %cst_48 = arith.constant 0.000000e+00 : f32
      %133 = vector.broadcast %cst_48 : f32 to vector<512x1xf32>
      %134 = arith.maximumf %132, %133 : vector<512x1xf32>
      %135 = arith.truncf %134 : vector<512x1xf32> to vector<512x1xbf16>
      %c0_49 = arith.constant 0 : index
      %c0_50 = arith.constant 0 : index
      %136 = vector.load %arg7[%c0_49, %c0_50] : memref<256x512xbf16, #tpu.memory_space<vmem>>, vector<256x512xbf16>
      %cst_51 = arith.constant dense<0.000000e+00> : vector<256x1xf32>
      %137 = tpu.matmul %136, %135, %cst_51 {dimension_numbers = #tpu.dot_dimension_numbers<[1], [0], [0], [1], [0, 0, 1, 1], [], []>} : vector<256x512xbf16>, vector<512x1xbf16>, vector<256x1xf32> -> vector<256x1xf32>
      %c0_52 = arith.constant 0 : index
      %c0_53 = arith.constant 0 : index
      %138 = vector.load %arg8[%c0_52, %c0_53] : memref<256x1xf32, #tpu.memory_space<vmem>>, vector<256x1xf32>
      %139 = arith.addf %137, %138 : vector<256x1xf32>
      %cst_54 = arith.constant 0.000000e+00 : f32
      %140 = vector.broadcast %cst_54 : f32 to vector<256x1xf32>
      %141 = arith.maximumf %139, %140 : vector<256x1xf32>
      %142 = arith.truncf %141 : vector<256x1xf32> to vector<256x1xbf16>
      %c0_55 = arith.constant 0 : index
      %c0_56 = arith.constant 0 : index
      %143 = vector.load %arg9[%c0_55, %c0_56] : memref<128x256xbf16, #tpu.memory_space<vmem>>, vector<128x256xbf16>
      %cst_57 = arith.constant dense<0.000000e+00> : vector<128x1xf32>
      %144 = tpu.matmul %143, %142, %cst_57 {dimension_numbers = #tpu.dot_dimension_numbers<[1], [0], [0], [1], [0, 0, 1, 1], [], []>} : vector<128x256xbf16>, vector<256x1xbf16>, vector<128x1xf32> -> vector<128x1xf32>
      %c0_58 = arith.constant 0 : index
      %c0_59 = arith.constant 0 : index
      %145 = vector.load %arg10[%c0_58, %c0_59] : memref<128x1xf32, #tpu.memory_space<vmem>>, vector<128x1xf32>
      %146 = arith.addf %144, %145 : vector<128x1xf32>
      %cst_60 = arith.constant 0.000000e+00 : f32
      %147 = vector.broadcast %cst_60 : f32 to vector<128x1xf32>
      %148 = arith.maximumf %146, %147 : vector<128x1xf32>
      %149 = arith.truncf %148 : vector<128x1xf32> to vector<128x1xbf16>
      %c0_61 = arith.constant 0 : index
      %c0_62 = arith.constant 0 : index
      %150 = vector.load %arg11[%c0_61, %c0_62] : memref<128x128xbf16, #tpu.memory_space<vmem>>, vector<128x128xbf16>
      %cst_63 = arith.constant dense<0.000000e+00> : vector<128x1xf32>
      %151 = tpu.matmul %150, %149, %cst_63 {dimension_numbers = #tpu.dot_dimension_numbers<[1], [0], [0], [1], [0, 0, 1, 1], [], []>} : vector<128x128xbf16>, vector<128x1xbf16>, vector<128x1xf32> -> vector<128x1xf32>
      %c0_64 = arith.constant 0 : index
      %c0_65 = arith.constant 0 : index
      %152 = vector.load %arg12[%c0_64, %c0_65] : memref<128x1xf32, #tpu.memory_space<vmem>>, vector<128x1xf32>
      %153 = arith.addf %151, %152 : vector<128x1xf32>
      %154 = vector.shape_cast %153 : vector<128x1xf32> to vector<1x128x1xf32>
      %c0_66 = arith.constant 0 : index
      %c0_67 = arith.constant 0 : index
      %c0_68 = arith.constant 0 : index
      %155 = vector.load %arg13[%c0_66, %c0_67, %c0_68] : memref<1x128x1xf32, #tpu.memory_space<vmem>>, vector<1x128x1xf32>
      tpu.vector_store %arg13[%c0_66, %c0_67, %c0_68], %154 {strides = array<i32>} : memref<1x128x1xf32, #tpu.memory_space<vmem>>, vector<1x128x1xf32>,
    } else {
    }
    return
  }
  func.func @transform_0(%arg0: i32, %arg1: i32) -> (i32, i32, i32) {
    %c0_i32 = arith.constant 0 : i32
    %c0_i32_0 = arith.constant 0 : i32
    return %arg0, %c0_i32, %arg1 : i32, i32, i32
  }
  func.func @transform_1(%arg0: i32, %arg1: i32) -> (i32, i32) {
    %c0_i32 = arith.constant 0 : i32
    %c0_i32_0 = arith.constant 0 : i32
    %c0_i32_1 = arith.constant 0 : i32
    return %c0_i32, %c0_i32_0 : i32, i32
  }
  func.func @transform_2(%arg0: i32, %arg1: i32) -> (i32, i32) {
    %c0_i32 = arith.constant 0 : i32
    %c0_i32_0 = arith.constant 0 : i32
    %c0_i32_1 = arith.constant 0 : i32
    return %c0_i32, %c0_i32_0 : i32, i32
  }
  func.func @transform_3(%arg0: i32, %arg1: i32) -> (i32, i32) {
    %c0_i32 = arith.constant 0 : i32
    %c0_i32_0 = arith.constant 0 : i32
    %c0_i32_1 = arith.constant 0 : i32
    return %c0_i32, %c0_i32_0 : i32, i32
  }
  func.func @transform_4(%arg0: i32, %arg1: i32) -> (i32, i32) {
    %c0_i32 = arith.constant 0 : i32
    %c0_i32_0 = arith.constant 0 : i32
    %c0_i32_1 = arith.constant 0 : i32
    return %c0_i32, %c0_i32_0 : i32, i32
  }
  func.func @transform_5(%arg0: i32, %arg1: i32) -> (i32, i32) {
    %c0_i32 = arith.constant 0 : i32
    %c0_i32_0 = arith.constant 0 : i32
    %c0_i32_1 = arith.constant 0 : i32
    return %c0_i32, %c0_i32_0 : i32, i32
  }
  func.func @transform_6(%arg0: i32, %arg1: i32) -> (i32, i32) {
    %c0_i32 = arith.constant 0 : i32
    %c0_i32_0 = arith.constant 0 : i32
    %c0_i32_1 = arith.constant 0 : i32
    return %c0_i32, %c0_i32_0 : i32, i32
  }
  func.func @transform_7(%arg0: i32, %arg1: i32) -> (i32, i32) {
    %c0_i32 = arith.constant 0 : i32
    %c0_i32_0 = arith.constant 0 : i32
    %c0_i32_1 = arith.constant 0 : i32
    return %c0_i32, %c0_i32_0 : i32, i32
  }
  func.func @transform_8(%arg0: i32, %arg1: i32) -> (i32, i32) {
    %c0_i32 = arith.constant 0 : i32
    %c0_i32_0 = arith.constant 0 : i32
    %c0_i32_1 = arith.constant 0 : i32
    return %c0_i32, %c0_i32_0 : i32, i32
  }
  func.func @transform_9(%arg0: i32, %arg1: i32) -> (i32, i32) {
    %c0_i32 = arith.constant 0 : i32
    %c0_i32_0 = arith.constant 0 : i32
    %c0_i32_1 = arith.constant 0 : i32
    return %c0_i32, %c0_i32_0 : i32, i32
  }
  func.func @transform_10(%arg0: i32, %arg1: i32) -> (i32, i32) {
    %c0_i32 = arith.constant 0 : i32
    %c0_i32_0 = arith.constant 0 : i32
    %c0_i32_1 = arith.constant 0 : i32
    return %c0_i32, %c0_i32_0 : i32, i32
  }
  func.func @transform_11(%arg0: i32, %arg1: i32) -> (i32, i32, i32) {
    %c0_i32 = arith.constant 0 : i32
    %c0_i32_0 = arith.constant 0 : i32
    %c0_i32_1 = arith.constant 0 : i32
    return %arg0, %c0_i32, %c0_i32_0 : i32, i32, i32
  }
}

</mosaic_0001>

<llo_original>
// kernel: angle_predictor_forward.1
$region0: #{angle_predictor_forward.1}
  #allocation0 [shape = 'u32[]', space=smem, size = 0x4, offset = 0x4, fixed_abs, tag = 'smem constant byte address 0x4 - core index']
  #allocation1 [shape = 'u32[144,128]{1,0:T(1,128)}', space=vmem, size = 0x12000, scoped, tag = 'internal scratch']
  #allocation2 [shape = 'f32[1280,128]{1,0:T(8,128)}', space=vmem, size = 0xa0000, scoped, tag = 'scratch operand']
  %s0 = inlined_call_operand.vmem [shape: bf16[2,3,256], index: 0, kind: input, shape index: {}]
  %s1 = inlined_call_operand.vmem [shape: bf16[1280,3], index: 1, kind: input, shape index: {}]
  %s2 = inlined_call_operand.vmem [shape: f32[1280,1], index: 2, kind: input, shape index: {}]
  %s3 = inlined_call_operand.vmem [shape: bf16[512,1280], index: 3, kind: input, shape index: {}]
  %s4 = inlined_call_operand.vmem [shape: f32[512,1], index: 4, kind: input, shape index: {}]
  %s5 = inlined_call_operand.vmem [shape: bf16[256,512], index: 5, kind: input, shape index: {}]
  %s6 = inlined_call_operand.vmem [shape: f32[256,1], index: 6, kind: input, shape index: {}]
  %s7 = inlined_call_operand.vmem [shape: bf16[128,256], index: 7, kind: input, shape index: {}]
  %s8 = inlined_call_operand.vmem [shape: f32[128,1], index: 8, kind: input, shape index: {}]
  %s9 = inlined_call_operand.hbm [shape: bf16[128,128], index: 9, kind: input, shape index: {}]
  %s10 = inlined_call_operand.vmem [shape: f32[128,1], index: 10, kind: input, shape index: {}]
  %s11 = inlined_call_operand.vmem [shape: f32[2,128,1], index: 11, kind: output, shape index: {}]
  %s12 = sld [smem:[#allocation0]]
  $region89: #{angle_predictor_forward.1} parent=0
    _
  %s14 = ssub.s32 1, %s12
  %s15 = scalar_select 0, %s14, %s12
  $region1: #{angle_predictor_forward.1} parent=0
    #allocation3 [shape = 'u8[32768]{0}', space=vmem, size = 0x8000, scoped, tag = 'input window, operand 9, single buffered']
    #allocation4 [shape = 's32[2]{0}', space=sflag, size = 0x8, scoped, tag = 'scoped memory for angle_predictor_forward.1']
    %16 = vsyncpa [#allocation4], 0
    loop: start=0, step=1, limit=4
    $region2: #{angle_predictor_forward.1} parent=1 // loop_pre_header
      _
    $region3: #{angle_predictor_forward.1} parent=1 // loop_header
      %s18 = sphi 0, %s22
      %p19 = scmp.ge.s32.totalorder %s18, 4
      %s25 = sphi 0, %s37
      %s26 = sphi 0, %s33
      %s27 = sphi 0, %s25
      %s28 = sphi 0, %s26
      %s29 = sphi 0, %s27
      %s30 = sphi 0, %s28
      %s42 = sphi 0, %s44
      %s45 = sphi 0, %s42
      %s46 = sphi 0, %s45
      %s62 = sphi 0, %s46
      %s66 = sphi 0, %s66
      %s68 = sphi 0, %s66
      %s69 = sphi 0, %s68
      %s83 = sphi 0, %s69
      %s87 = sphi 0, %s87
      %s89 = sphi 0, %s87
      %s90 = sphi 0, %s89
      %s104 = sphi 0, %s90
      %s108 = sphi 0, %s108
      %s110 = sphi 0, %s108
      %s111 = sphi 0, %s110
      %s125 = sphi 0, %s111
      %s129 = sphi 0, %s129
      %s131 = sphi 0, %s129
      %s132 = sphi 0, %s131
      %s146 = sphi 0, %s132
      %s150 = sphi 0, %s150
      %s152 = sphi 0, %s150
      %s153 = sphi 0, %s152
      %s167 = sphi 0, %s153
      %s171 = sphi 0, %s171
      %s173 = sphi 0, %s171
      %s174 = sphi 0, %s173
      %s188 = sphi 0, %s174
      %s192 = sphi 0, %s192
      %s194 = sphi 0, %s192
      %s195 = sphi 0, %s194
      %s209 = sphi 0, %s195
      %s213 = sphi 0, %s213
      %s215 = sphi 0, %s213
      %s216 = sphi 0, %s215
      %s230 = sphi 0, %s216
      %s234 = sphi 0, %s234
      %s236 = sphi 0, %s234
      %s237 = sphi 0, %s236
      %s251 = sphi 0, %s237
      %s255 = sphi 0, %s255
      %s257 = sphi 0, %s255
      %s258 = sphi 0, %s257
      %s272 = sphi 0, %s258
      %s278 = sphi 0, %s280
      %s281 = sphi 0, %s278
      %s282 = sphi 0, %s281
      %s298 = sphi 0, %s282
    $region4: #{angle_predictor_forward.1} parent=1 // loop_header_branch
      %21 = sbr.rel (%p19) target = $region8
    $region5: #{angle_predictor_forward.1} parent=1 // loop_body
      %s23 = ssub.s32 %s18, 1
      %s24 = ssub.s32 %s18, 2
      %s31 = sadd.s32 1, %s26
      %p32 = scmp.ge.s32.totalorder %s31, 1
      %s33 = scalar_select %p32, 0, %s31
      %s34 = sadd.s32 1, %s25
      %s35 = scalar_select %p32, %s34, %s25
      %p36 = scmp.ge.s32.totalorder %s35, 2
      %s37 = scalar_select %p36, 0, %s35
      %s38 = ssub.s32 %s25, %s37
      %s39 = ssub.s32 %s26, %s33
      %s40 = sor.u32 %s38, %s39
      %p41 = scmp.eq.s32.totalorder %s40, 0
      %s43 = sadd.s32 %s42, 1
      %s44 = scalar_select %p41, %s42, %s43
      %p47 = pneg %p41
      %p48 = scmp.eq.s32.totalorder %s18, 1
      %p49 = por %p47, %p48
      %p50 = scmp.ne.s32.totalorder %s42, %s45
      %p51 = scmp.eq.s32.totalorder %s18, 0
      %p52 = por %p50, %p51
      %p53 = scmp.ne.s32.totalorder %s42, %s45
      %p54 = scmp.eq.s32.totalorder %s23, 1
      %p55 = por %p53, %p54
      %p56 = scmp.ne.s32.totalorder %s45, %s46
      %p57 = scmp.eq.s32.totalorder %s23, 0
      %p58 = por %p56, %p57
      %p59 = scmp.ne.s32.totalorder %s45, %s46
      %p60 = scmp.eq.s32.totalorder %s24, 1
      %p61 = por %p59, %p60
      %p63 = scmp.ne.s32.totalorder %s46, %s62
      %p64 = scmp.eq.s32.totalorder %s24, 0
      %p65 = por %p63, %p64
      %s67 = sadd.s32 %s66, 1
      %p70 = scmp.eq.s32.totalorder %s18, 1
      %p71 = scmp.ne.s32.totalorder %s66, %s68
      %p72 = scmp.eq.s32.totalorder %s18, 0
      %p73 = por %p71, %p72
      %p74 = scmp.ne.s32.totalorder %s66, %s68
      %p75 = scmp.eq.s32.totalorder %s23, 1
      %p76 = por %p74, %p75
      %p77 = scmp.ne.s32.totalorder %s68, %s69
      %p78 = scmp.eq.s32.totalorder %s23, 0
      %p79 = por %p77, %p78
      %p80 = scmp.ne.s32.totalorder %s68, %s69
      %p81 = scmp.eq.s32.totalorder %s24, 1
      %p82 = por %p80, %p81
      %p84 = scmp.ne.s32.totalorder %s69, %s83
      %p85 = scmp.eq.s32.totalorder %s24, 0
      %p86 = por %p84, %p85
      %s88 = sadd.s32 %s87, 1
      %p91 = scmp.eq.s32.totalorder %s18, 1
      %p92 = scmp.ne.s32.totalorder %s87, %s89
      %p93 = scmp.eq.s32.totalorder %s18, 0
      %p94 = por %p92, %p93
      %p95 = scmp.ne.s32.totalorder %s87, %s89
      %p96 = scmp.eq.s32.totalorder %s23, 1
      %p97 = por %p95, %p96
      %p98 = scmp.ne.s32.totalorder %s89, %s90
      %p99 = scmp.eq.s32.totalorder %s23, 0
      %p100 = por %p98, %p99
      %p101 = scmp.ne.s32.totalorder %s89, %s90
      %p102 = scmp.eq.s32.totalorder %s24, 1
      %p103 = por %p101, %p102
      %p105 = scmp.ne.s32.totalorder %s90, %s104
      %p106 = scmp.eq.s32.totalorder %s24, 0
      %p107 = por %p105, %p106
      %s109 = sadd.s32 %s108, 1
      %p112 = scmp.eq.s32.totalorder %s18, 1
      %p113 = scmp.ne.s32.totalorder %s108, %s110
      %p114 = scmp.eq.s32.totalorder %s18, 0
      %p115 = por %p113, %p114
      %p116 = scmp.ne.s32.totalorder %s108, %s110
      %p117 = scmp.eq.s32.totalorder %s23, 1
      %p118 = por %p116, %p117
      %p119 = scmp.ne.s32.totalorder %s110, %s111
      %p120 = scmp.eq.s32.totalorder %s23, 0
      %p121 = por %p119, %p120
      %p122 = scmp.ne.s32.totalorder %s110, %s111
      %p123 = scmp.eq.s32.totalorder %s24, 1
      %p124 = por %p122, %p123
      %p126 = scmp.ne.s32.totalorder %s111, %s125
      %p127 = scmp.eq.s32.totalorder %s24, 0
      %p128 = por %p126, %p127
      %s130 = sadd.s32 %s129, 1
      %p133 = scmp.eq.s32.totalorder %s18, 1
      %p134 = scmp.ne.s32.totalorder %s129, %s131
      %p135 = scmp.eq.s32.totalorder %s18, 0
      %p136 = por %p134, %p135
      %p137 = scmp.ne.s32.totalorder %s129, %s131
      %p138 = scmp.eq.s32.totalorder %s23, 1
      %p139 = por %p137, %p138
      %p140 = scmp.ne.s32.totalorder %s131, %s132
      %p141 = scmp.eq.s32.totalorder %s23, 0
      %p142 = por %p140, %p141
      %p143 = scmp.ne.s32.totalorder %s131, %s132
      %p144 = scmp.eq.s32.totalorder %s24, 1
      %p145 = por %p143, %p144
      %p147 = scmp.ne.s32.totalorder %s132, %s146
      %p148 = scmp.eq.s32.totalorder %s24, 0
      %p149 = por %p147, %p148
      %s151 = sadd.s32 %s150, 1
      %p154 = scmp.eq.s32.totalorder %s18, 1
      %p155 = scmp.ne.s32.totalorder %s150, %s152
      %p156 = scmp.eq.s32.totalorder %s18, 0
      %p157 = por %p155, %p156
      %p158 = scmp.ne.s32.totalorder %s150, %s152
      %p159 = scmp.eq.s32.totalorder %s23, 1
      %p160 = por %p158, %p159
      %p161 = scmp.ne.s32.totalorder %s152, %s153
      %p162 = scmp.eq.s32.totalorder %s23, 0
      %p163 = por %p161, %p162
      %p164 = scmp.ne.s32.totalorder %s152, %s153
      %p165 = scmp.eq.s32.totalorder %s24, 1
      %p166 = por %p164, %p165
      %p168 = scmp.ne.s32.totalorder %s153, %s167
      %p169 = scmp.eq.s32.totalorder %s24, 0
      %p170 = por %p168, %p169
      %s172 = sadd.s32 %s171, 1
      %p175 = scmp.eq.s32.totalorder %s18, 1
      %p176 = scmp.ne.s32.totalorder %s171, %s173
      %p177 = scmp.eq.s32.totalorder %s18, 0
      %p178 = por %p176, %p177
      %p179 = scmp.ne.s32.totalorder %s171, %s173
      %p180 = scmp.eq.s32.totalorder %s23, 1
      %p181 = por %p179, %p180
      %p182 = scmp.ne.s32.totalorder %s173, %s174
      %p183 = scmp.eq.s32.totalorder %s23, 0
      %p184 = por %p182, %p183
      %p185 = scmp.ne.s32.totalorder %s173, %s174
      %p186 = scmp.eq.s32.totalorder %s24, 1
      %p187 = por %p185, %p186
      %p189 = scmp.ne.s32.totalorder %s174, %s188
      %p190 = scmp.eq.s32.totalorder %s24, 0
      %p191 = por %p189, %p190
      %s193 = sadd.s32 %s192, 1
      %p196 = scmp.eq.s32.totalorder %s18, 1
      %p197 = scmp.ne.s32.totalorder %s192, %s194
      %p198 = scmp.eq.s32.totalorder %s18, 0
      %p199 = por %p197, %p198
      %p200 = scmp.ne.s32.totalorder %s192, %s194
      %p201 = scmp.eq.s32.totalorder %s23, 1
      %p202 = por %p200, %p201
      %p203 = scmp.ne.s32.totalorder %s194, %s195
      %p204 = scmp.eq.s32.totalorder %s23, 0
      %p205 = por %p203, %p204
      %p206 = scmp.ne.s32.totalorder %s194, %s195
      %p207 = scmp.eq.s32.totalorder %s24, 1
      %p208 = por %p206, %p207
      %p210 = scmp.ne.s32.totalorder %s195, %s209
      %p211 = scmp.eq.s32.totalorder %s24, 0
      %p212 = por %p210, %p211
      %s214 = sadd.s32 %s213, 1
      %p217 = scmp.eq.s32.totalorder %s18, 1
      %p218 = scmp.ne.s32.totalorder %s213, %s215
      %p219 = scmp.eq.s32.totalorder %s18, 0
      %p220 = por %p218, %p219
      %p221 = scmp.ne.s32.totalorder %s213, %s215
      %p222 = scmp.eq.s32.totalorder %s23, 1
      %p223 = por %p221, %p222
      %p224 = scmp.ne.s32.totalorder %s215, %s216
      %p225 = scmp.eq.s32.totalorder %s23, 0
      %p226 = por %p224, %p225
      %p227 = scmp.ne.s32.totalorder %s215, %s216
      %p228 = scmp.eq.s32.totalorder %s24, 1
      %p229 = por %p227, %p228
      %p231 = scmp.ne.s32.totalorder %s216, %s230
      %p232 = scmp.eq.s32.totalorder %s24, 0
      %p233 = por %p231, %p232
      %s235 = sadd.s32 %s234, 1
      %p238 = scmp.eq.s32.totalorder %s18, 1
      %p239 = scmp.ne.s32.totalorder %s234, %s236
      %p240 = scmp.eq.s32.totalorder %s18, 0
      %p241 = por %p239, %p240
      %p242 = scmp.ne.s32.totalorder %s234, %s236
      %p243 = scmp.eq.s32.totalorder %s23, 1
      %p244 = por %p242, %p243
      %p245 = scmp.ne.s32.totalorder %s236, %s237
      %p246 = scmp.eq.s32.totalorder %s23, 0
      %p247 = por %p245, %p246
      %p248 = scmp.ne.s32.totalorder %s236, %s237
      %p249 = scmp.eq.s32.totalorder %s24, 1
      %p250 = por %p248, %p249
      %p252 = scmp.ne.s32.totalorder %s237, %s251
      %p253 = scmp.eq.s32.totalorder %s24, 0
      %p254 = por %p252, %p253
      %s256 = sadd.s32 %s255, 1
      %p259 = scmp.eq.s32.totalorder %s18, 1
      %p260 = scmp.ne.s32.totalorder %s255, %s257
      %p261 = scmp.eq.s32.totalorder %s18, 0
      %p262 = por %p260, %p261
      %p263 = scmp.ne.s32.totalorder %s255, %s257
      %p264 = scmp.eq.s32.totalorder %s23, 1
      %p265 = por %p263, %p264
      %p266 = scmp.ne.s32.totalorder %s257, %s258
      %p267 = scmp.eq.s32.totalorder %s23, 0
      %p268 = por %p266, %p267
      %p269 = scmp.ne.s32.totalorder %s257, %s258
      %p270 = scmp.eq.s32.totalorder %s24, 1
      %p271 = por %p269, %p270
      %p273 = scmp.ne.s32.totalorder %s258, %s272
      %p274 = scmp.eq.s32.totalorder %s24, 0
      %p275 = por %p273, %p274
      %s276 = ssub.s32 %s25, %s37
      %p277 = scmp.eq.s32.totalorder %s276, 0
      %s279 = sadd.s32 %s278, 1
      %s280 = scalar_select %p277, %s278, %s279
      %p283 = pneg %p277
      %p284 = scmp.eq.s32.totalorder %s18, 1
      %p285 = por %p283, %p284
      %p286 = scmp.ne.s32.totalorder %s278, %s281
      %p287 = scmp.eq.s32.totalorder %s18, 0
      %p288 = por %p286, %p287
      %p289 = scmp.ne.s32.totalorder %s278, %s281
      %p290 = scmp.eq.s32.totalorder %s23, 1
      %p291 = por %p289, %p290
      %p292 = scmp.ne.s32.totalorder %s281, %s282
      %p293 = scmp.eq.s32.totalorder %s23, 0
      %p294 = por %p292, %p293
      %p295 = scmp.ne.s32.totalorder %s281, %s282
      %p296 = scmp.eq.s32.totalorder %s24, 1
      %p297 = por %p295, %p296
      %p299 = scmp.ne.s32.totalorder %s282, %s298
      %p300 = scmp.eq.s32.totalorder %s24, 0
      %p301 = por %p299, %p300
      %p302 = scmp.le.s32.totalorder 1, %s18
      %p303 = scmp.lt.s32.totalorder %s18, 3
      %p304 = pnand %p302, %p303
      %p305 = pneg %p304
      // Predicated region
      $region9: #{angle_predictor_forward.1} parent=5 // pred_check
        _
      $region10: #{angle_predictor_forward.1} parent=5 // pred_check_branch
        %307 = sbr.rel (%p304) target = $region12
      $region11: #{angle_predictor_forward.1} parent=5 // pred_region
        %s308 = ssub.s32 %s18, 1
        // Predicated region
        $region13: #{angle_predictor_forward.1} parent=11 // pred_check
          %p309 = pneg %p79
        $region14: #{angle_predictor_forward.1} parent=11 // pred_check_branch
          %311 = sbr.rel (%p309) target = $region16
        $region15: #{angle_predictor_forward.1} parent=11 // pred_region
          _
        $region16: #{angle_predictor_forward.1} parent=11 // pred_fallthru
          _
        // Predicated region
        $region17: #{angle_predictor_forward.1} parent=11 // pred_check
          %p312 = pneg %p100
        $region18: #{angle_predictor_forward.1} parent=11 // pred_check_branch
          %314 = sbr.rel (%p312) target = $region20
        $region19: #{angle_predictor_forward.1} parent=11 // pred_region
          _
        $region20: #{angle_predictor_forward.1} parent=11 // pred_fallthru
          _
        // Predicated region
        $region21: #{angle_predictor_forward.1} parent=11 // pred_check
          %p315 = pneg %p121
        $region22: #{angle_predictor_forward.1} parent=11 // pred_check_branch
          %317 = sbr.rel (%p315) target = $region24
        $region23: #{angle_predictor_forward.1} parent=11 // pred_region
          _
        $region24: #{angle_predictor_forward.1} parent=11 // pred_fallthru
          _
        // Predicated region
        $region25: #{angle_predictor_forward.1} parent=11 // pred_check
          %p318 = pneg %p142
        $region26: #{angle_predictor_forward.1} parent=11 // pred_check_branch
          %320 = sbr.rel (%p318) target = $region28
        $region27: #{angle_predictor_forward.1} parent=11 // pred_region
          _
        $region28: #{angle_predictor_forward.1} parent=11 // pred_fallthru
          _
        // Predicated region
        $region29: #{angle_predictor_forward.1} parent=11 // pred_check
          %p321 = pneg %p163
        $region30: #{angle_predictor_forward.1} parent=11 // pred_check_branch
          %323 = sbr.rel (%p321) target = $region32
        $region31: #{angle_predictor_forward.1} parent=11 // pred_region
          _
        $region32: #{angle_predictor_forward.1} parent=11 // pred_fallthru
          _
        // Predicated region
        $region33: #{angle_predictor_forward.1} parent=11 // pred_check
          %p324 = pneg %p184
        $region34: #{angle_predictor_forward.1} parent=11 // pred_check_branch
          %326 = sbr.rel (%p324) target = $region36
        $region35: #{angle_predictor_forward.1} parent=11 // pred_region
          _
        $region36: #{angle_predictor_forward.1} parent=11 // pred_fallthru
          _
        // Predicated region
        $region37: #{angle_predictor_forward.1} parent=11 // pred_check
          %p327 = pneg %p205
        $region38: #{angle_predictor_forward.1} parent=11 // pred_check_branch
          %329 = sbr.rel (%p327) target = $region40
        $region39: #{angle_predictor_forward.1} parent=11 // pred_region
          _
        $region40: #{angle_predictor_forward.1} parent=11 // pred_fallthru
          _
        // Predicated region
        $region41: #{angle_predictor_forward.1} parent=11 // pred_check
          %p330 = pneg %p226
        $region42: #{angle_predictor_forward.1} parent=11 // pred_check_branch
          %332 = sbr.rel (%p330) target = $region44
        $region43: #{angle_predictor_forward.1} parent=11 // pred_region
          _
        $region44: #{angle_predictor_forward.1} parent=11 // pred_fallthru
          _
        // Predicated region
        $region45: #{angle_predictor_forward.1} parent=11 // pred_check
          %p333 = pneg %p247
        $region46: #{angle_predictor_forward.1} parent=11 // pred_check_branch
          %335 = sbr.rel (%p333) target = $region48
        $region47: #{angle_predictor_forward.1} parent=11 // pred_region
          %s337 = ssub.s32 1024, 1024
          %338 = vsyncadd [#allocation4], %s337
          %s339 = sshll.u32 [#allocation3], 4
          %s340 = int_to_ptr.vmem [resolvable:$true] %s339
          %345 = dma.hbm_to_vmem [thread:$0]  %s9, 1024, %s340, [#allocation4], 64, 64, 4
        $region48: #{angle_predictor_forward.1} parent=11 // pred_fallthru
          _
        // Predicated region
        $region49: #{angle_predictor_forward.1} parent=11 // pred_check
          %p346 = pneg %p268
        $region50: #{angle_predictor_forward.1} parent=11 // pred_check_branch
          %348 = sbr.rel (%p346) target = $region52
        $region51: #{angle_predictor_forward.1} parent=11 // pred_region
          _
        $region52: #{angle_predictor_forward.1} parent=11 // pred_fallthru
          _
      $region12: #{angle_predictor_forward.1} parent=5 // pred_fallthru
        _
      %p349 = scmp.lt.s32.totalorder %s18, 2
      // Predicated region
      $region53: #{angle_predictor_forward.1} parent=5 // pred_check
        %p350 = pneg %p349
      $region54: #{angle_predictor_forward.1} parent=5 // pred_check_branch
        %352 = sbr.rel (%p350) target = $region56
      $region55: #{angle_predictor_forward.1} parent=5 // pred_region
        // Predicated region
        $region57: #{angle_predictor_forward.1} parent=55 // pred_check
          %p353 = pneg %p52
        $region58: #{angle_predictor_forward.1} parent=55 // pred_check_branch
          %355 = sbr.rel (%p353) target = $region60
        $region59: #{angle_predictor_forward.1} parent=55 // pred_region
          %s356 = smul.u32 2, %s26
          %p357 = scmp.lt.s32.totalorder %s25, 1
          %s358 = scalar_select %p357, %s25, 1
          %p359 = scmp.lt.s32.totalorder %s356, 1
          %s360 = scalar_select %p359, %s356, 1
          %s361 = smul.addr %s358, 2
          %s362 = sadd.s32 %s360, %s361
          %s363 = smul.addr %s362, 2
          %s364 = scalar_lea.vmem %s0, %s363
          %s365 = smul.u32 2, %s26
        $region60: #{angle_predictor_forward.1} parent=55 // pred_fallthru
          _
      $region56: #{angle_predictor_forward.1} parent=5 // pred_fallthru
        _
      %p366 = scmp.le.s32.totalorder 1, %s18
      %p367 = scmp.lt.s32.totalorder %s18, 3
      %p368 = pnand %p366, %p367
      %p369 = pneg %p368
      // Predicated region
      $region61: #{angle_predictor_forward.1} parent=5 // pred_check
        _
      $region62: #{angle_predictor_forward.1} parent=5 // pred_check_branch
        %371 = sbr.rel (%p368) target = $region64
      $region63: #{angle_predictor_forward.1} parent=5 // pred_region
        %s372 = ssub.s32 %s18, 1
        // Predicated region
        $region65: #{angle_predictor_forward.1} parent=63 // pred_check
          %p373 = pneg %p247
        $region66: #{angle_predictor_forward.1} parent=63 // pred_check_branch
          %375 = sbr.rel (%p373) target = $region68
        $region67: #{angle_predictor_forward.1} parent=63 // pred_region
          %376 = dma.done [#allocation4], 1024
        $region68: #{angle_predictor_forward.1} parent=63 // pred_fallthru
          _
        %s377 = smul.u32 2, %s28
        %p378 = scmp.lt.s32.totalorder %s27, 1
        %s379 = scalar_select %p378, %s27, 1
        %p380 = scmp.lt.s32.totalorder %s377, 1
        %s381 = scalar_select %p380, %s377, 1
        %s382 = smul.addr %s379, 2
        %s383 = sadd.s32 %s381, %s382
        %s384 = smul.addr %s383, 2
        %s385 = scalar_lea.vmem %s0, %s384
        %p386 = pneg %p58
        %p387 = pneg %p55
        %p388 = pneg %p79
        %p389 = pneg %p76
        %p390 = pneg %p100
        %p391 = pneg %p97
        %p392 = pneg %p121
        %p393 = pneg %p118
        %p394 = pneg %p142
        %p395 = pneg %p139
        %p396 = pneg %p163
        %p397 = pneg %p160
        %p398 = pneg %p184
        %p399 = pneg %p181
        %p400 = pneg %p205
        %p401 = pneg %p202
        %p402 = pneg %p226
        %p403 = pneg %p223
        %p404 = pneg %p247
        %p405 = pneg %p244
        %p406 = pneg %p268
        %p407 = pneg %p265
        %p408 = pneg %p294
        %p409 = pneg %p291
        %p410 = scmp.lt.s32.totalorder %s27, 1
        %s411 = scalar_select %p410, %s27, 1
        %s412 = smul.addr %s411, 16
        %s413 = smul.addr %s412, 8
        %s414 = scalar_lea.vmem %s11, %s413
        %s415 = smul.u32 2, %s28
        %p416 = scmp.lt.s32.totalorder %s27, 1
        %s417 = scalar_select %p416, %s27, 1
        %p418 = scmp.lt.s32.totalorder %s415, 1
        %s419 = scalar_select %p418, %s415, 1
        %s420 = smul.addr %s417, 2
        %s421 = sadd.s32 %s419, %s420
        %s422 = smul.addr %s421, 2
        %s423 = scalar_lea.vmem %s0, %s422
        %s424 = smul.u32 2, %s28
        %p425 = scmp.lt.s32.totalorder %s27, 1
        %s426 = scalar_select %p425, %s27, 1
        %s427 = smul.addr %s426, 16
        %s428 = smul.addr %s427, 8
        %s429 = scalar_lea.vmem %s11, %s428
        %p431 = scmp.eq.s32.totalorder %s28, 0
        // Predicated region
        $region69: #{angle_predictor_forward.1} parent=63 // pred_check
          %p432 = pneg %p431
        $region70: #{angle_predictor_forward.1} parent=63 // pred_check_branch
          %434 = sbr.rel (%p432) target = $region72
        $region71: #{angle_predictor_forward.1} parent=63 // pred_region
          %435 = vst [vmem:[#allocation2] sm:$0xff] 0.0
          %436 = vst [vmem:[#allocation2 + $0x8] sm:$0xff] 0.0
          %437 = vst [vmem:[#allocation2 + $0x10] sm:$0xff] 0.0
          %438 = vst [vmem:[#allocation2 + $0x18] sm:$0xff] 0.0
          %439 = vst [vmem:[#allocation2 + $0x20] sm:$0xff] 0.0
          %440 = vst [vmem:[#allocation2 + $0x28] sm:$0xff] 0.0
          %441 = vst [vmem:[#allocation2 + $0x30] sm:$0xff] 0.0
          %442 = vst [vmem:[#allocation2 + $0x38] sm:$0xff] 0.0
          %443 = vst [vmem:[#allocation2 + $0x40] sm:$0xff] 0.0
          %444 = vst [vmem:[#allocation2 + $0x48] sm:$0xff] 0.0
          %445 = vst [vmem:[#allocation2 + $0x50] sm:$0xff] 0.0
          %446 = vst [vmem:[#allocation2 + $0x58] sm:$0xff] 0.0
          %447 = vst [vmem:[#allocation2 + $0x60] sm:$0xff] 0.0
          %448 = vst [vmem:[#allocation2 + $0x68] sm:$0xff] 0.0
          %449 = vst [vmem:[#allocation2 + $0x70] sm:$0xff] 0.0
          %450 = vst [vmem:[#allocation2 + $0x78] sm:$0xff] 0.0
          %451 = vst [vmem:[#allocation2 + $0x80] sm:$0xff] 0.0
          %452 = vst [vmem:[#allocation2 + $0x88] sm:$0xff] 0.0
          %453 = vst [vmem:[#allocation2 + $0x90] sm:$0xff] 0.0
          %454 = vst [vmem:[#allocation2 + $0x98] sm:$0xff] 0.0
          %455 = vst [vmem:[#allocation2 + $0xa0] sm:$0xff] 0.0
          %456 = vst [vmem:[#allocation2 + $0xa8] sm:$0xff] 0.0
          %457 = vst [vmem:[#allocation2 + $0xb0] sm:$0xff] 0.0
          %458 = vst [vmem:[#allocation2 + $0xb8] sm:$0xff] 0.0
          %459 = vst [vmem:[#allocation2 + $0xc0] sm:$0xff] 0.0
          %460 = vst [vmem:[#allocation2 + $0xc8] sm:$0xff] 0.0
          %461 = vst [vmem:[#allocation2 + $0xd0] sm:$0xff] 0.0
          %462 = vst [vmem:[#allocation2 + $0xd8] sm:$0xff] 0.0
          %463 = vst [vmem:[#allocation2 + $0xe0] sm:$0xff] 0.0
          %464 = vst [vmem:[#allocation2 + $0xe8] sm:$0xff] 0.0
          %465 = vst [vmem:[#allocation2 + $0xf0] sm:$0xff] 0.0
          %466 = vst [vmem:[#allocation2 + $0xf8] sm:$0xff] 0.0
          %467 = vst [vmem:[#allocation2 + $0x100] sm:$0xff] 0.0
          %468 = vst [vmem:[#allocation2 + $0x108] sm:$0xff] 0.0
          %469 = vst [vmem:[#allocation2 + $0x110] sm:$0xff] 0.0
          %470 = vst [vmem:[#allocation2 + $0x118] sm:$0xff] 0.0
          %471 = vst [vmem:[#allocation2 + $0x120] sm:$0xff] 0.0
          %472 = vst [vmem:[#allocation2 + $0x128] sm:$0xff] 0.0
          %473 = vst [vmem:[#allocation2 + $0x130] sm:$0xff] 0.0
          %474 = vst [vmem:[#allocation2 + $0x138] sm:$0xff] 0.0
          %475 = vst [vmem:[#allocation2 + $0x140] sm:$0xff] 0.0
          %476 = vst [vmem:[#allocation2 + $0x148] sm:$0xff] 0.0
          %477 = vst [vmem:[#allocation2 + $0x150] sm:$0xff] 0.0
          %478 = vst [vmem:[#allocation2 + $0x158] sm:$0xff] 0.0
          %479 = vst [vmem:[#allocation2 + $0x160] sm:$0xff] 0.0
          %480 = vst [vmem:[#allocation2 + $0x168] sm:$0xff] 0.0
          %481 = vst [vmem:[#allocation2 + $0x170] sm:$0xff] 0.0
          %482 = vst [vmem:[#allocation2 + $0x178] sm:$0xff] 0.0
          %483 = vst [vmem:[#allocation2 + $0x180] sm:$0xff] 0.0
          %484 = vst [vmem:[#allocation2 + $0x188] sm:$0xff] 0.0
          %485 = vst [vmem:[#allocation2 + $0x190] sm:$0xff] 0.0
          %486 = vst [vmem:[#allocation2 + $0x198] sm:$0xff] 0.0
          %487 = vst [vmem:[#allocation2 + $0x1a0] sm:$0xff] 0.0
          %488 = vst [vmem:[#allocation2 + $0x1a8] sm:$0xff] 0.0
          %489 = vst [vmem:[#allocation2 + $0x1b0] sm:$0xff] 0.0
          %490 = vst [vmem:[#allocation2 + $0x1b8] sm:$0xff] 0.0
          %491 = vst [vmem:[#allocation2 + $0x1c0] sm:$0xff] 0.0
          %492 = vst [vmem:[#allocation2 + $0x1c8] sm:$0xff] 0.0
          %493 = vst [vmem:[#allocation2 + $0x1d0] sm:$0xff] 0.0
          %494 = vst [vmem:[#allocation2 + $0x1d8] sm:$0xff] 0.0
          %495 = vst [vmem:[#allocation2 + $0x1e0] sm:$0xff] 0.0
          %496 = vst [vmem:[#allocation2 + $0x1e8] sm:$0xff] 0.0
          %497 = vst [vmem:[#allocation2 + $0x1f0] sm:$0xff] 0.0
          %498 = vst [vmem:[#allocation2 + $0x1f8] sm:$0xff] 0.0
          %499 = vst [vmem:[#allocation2 + $0x200] sm:$0xff] 0.0
          %500 = vst [vmem:[#allocation2 + $0x208] sm:$0xff] 0.0
          %501 = vst [vmem:[#allocation2 + $0x210] sm:$0xff] 0.0
          %502 = vst [vmem:[#allocation2 + $0x218] sm:$0xff] 0.0
          %503 = vst [vmem:[#allocation2 + $0x220] sm:$0xff] 0.0
          %504 = vst [vmem:[#allocation2 + $0x228] sm:$0xff] 0.0
          %505 = vst [vmem:[#allocation2 + $0x230] sm:$0xff] 0.0
          %506 = vst [vmem:[#allocation2 + $0x238] sm:$0xff] 0.0
          %507 = vst [vmem:[#allocation2 + $0x240] sm:$0xff] 0.0
          %508 = vst [vmem:[#allocation2 + $0x248] sm:$0xff] 0.0
          %509 = vst [vmem:[#allocation2 + $0x250] sm:$0xff] 0.0
          %510 = vst [vmem:[#allocation2 + $0x258] sm:$0xff] 0.0
          %511 = vst [vmem:[#allocation2 + $0x260] sm:$0xff] 0.0
          %512 = vst [vmem:[#allocation2 + $0x268] sm:$0xff] 0.0
          %513 = vst [vmem:[#allocation2 + $0x270] sm:$0xff] 0.0
          %514 = vst [vmem:[#allocation2 + $0x278] sm:$0xff] 0.0
          %515 = vst [vmem:[#allocation2 + $0x280] sm:$0xff] 0.0
          %516 = vst [vmem:[#allocation2 + $0x288] sm:$0xff] 0.0
          %517 = vst [vmem:[#allocation2 + $0x290] sm:$0xff] 0.0
          %518 = vst [vmem:[#allocation2 + $0x298] sm:$0xff] 0.0
          %519 = vst [vmem:[#allocation2 + $0x2a0] sm:$0xff] 0.0
          %520 = vst [vmem:[#allocation2 + $0x2a8] sm:$0xff] 0.0
          %521 = vst [vmem:[#allocation2 + $0x2b0] sm:$0xff] 0.0
          %522 = vst [vmem:[#allocation2 + $0x2b8] sm:$0xff] 0.0
          %523 = vst [vmem:[#allocation2 + $0x2c0] sm:$0xff] 0.0
          %524 = vst [vmem:[#allocation2 + $0x2c8] sm:$0xff] 0.0
          %525 = vst [vmem:[#allocation2 + $0x2d0] sm:$0xff] 0.0
          %526 = vst [vmem:[#allocation2 + $0x2d8] sm:$0xff] 0.0
          %527 = vst [vmem:[#allocation2 + $0x2e0] sm:$0xff] 0.0
          %528 = vst [vmem:[#allocation2 + $0x2e8] sm:$0xff] 0.0
          %529 = vst [vmem:[#allocation2 + $0x2f0] sm:$0xff] 0.0
          %530 = vst [vmem:[#allocation2 + $0x2f8] sm:$0xff] 0.0
          %531 = vst [vmem:[#allocation2 + $0x300] sm:$0xff] 0.0
          %532 = vst [vmem:[#allocation2 + $0x308] sm:$0xff] 0.0
          %533 = vst [vmem:[#allocation2 + $0x310] sm:$0xff] 0.0
          %534 = vst [vmem:[#allocation2 + $0x318] sm:$0xff] 0.0
          %535 = vst [vmem:[#allocation2 + $0x320] sm:$0xff] 0.0
          %536 = vst [vmem:[#allocation2 + $0x328] sm:$0xff] 0.0
          %537 = vst [vmem:[#allocation2 + $0x330] sm:$0xff] 0.0
          %538 = vst [vmem:[#allocation2 + $0x338] sm:$0xff] 0.0
          %539 = vst [vmem:[#allocation2 + $0x340] sm:$0xff] 0.0
          %540 = vst [vmem:[#allocation2 + $0x348] sm:$0xff] 0.0
          %541 = vst [vmem:[#allocation2 + $0x350] sm:$0xff] 0.0
          %542 = vst [vmem:[#allocation2 + $0x358] sm:$0xff] 0.0
          %543 = vst [vmem:[#allocation2 + $0x360] sm:$0xff] 0.0
          %544 = vst [vmem:[#allocation2 + $0x368] sm:$0xff] 0.0
          %545 = vst [vmem:[#allocation2 + $0x370] sm:$0xff] 0.0
          %546 = vst [vmem:[#allocation2 + $0x378] sm:$0xff] 0.0
          %547 = vst [vmem:[#allocation2 + $0x380] sm:$0xff] 0.0
          %548 = vst [vmem:[#allocation2 + $0x388] sm:$0xff] 0.0
          %549 = vst [vmem:[#allocation2 + $0x390] sm:$0xff] 0.0
          %550 = vst [vmem:[#allocation2 + $0x398] sm:$0xff] 0.0
          %551 = vst [vmem:[#allocation2 + $0x3a0] sm:$0xff] 0.0
          %552 = vst [vmem:[#allocation2 + $0x3a8] sm:$0xff] 0.0
          %553 = vst [vmem:[#allocation2 + $0x3b0] sm:$0xff] 0.0
          %554 = vst [vmem:[#allocation2 + $0x3b8] sm:$0xff] 0.0
          %555 = vst [vmem:[#allocation2 + $0x3c0] sm:$0xff] 0.0
          %556 = vst [vmem:[#allocation2 + $0x3c8] sm:$0xff] 0.0
          %557 = vst [vmem:[#allocation2 + $0x3d0] sm:$0xff] 0.0
          %558 = vst [vmem:[#allocation2 + $0x3d8] sm:$0xff] 0.0
          %559 = vst [vmem:[#allocation2 + $0x3e0] sm:$0xff] 0.0
          %560 = vst [vmem:[#allocation2 + $0x3e8] sm:$0xff] 0.0
          %561 = vst [vmem:[#allocation2 + $0x3f0] sm:$0xff] 0.0
          %562 = vst [vmem:[#allocation2 + $0x3f8] sm:$0xff] 0.0
          %563 = vst [vmem:[#allocation2 + $0x400] sm:$0xff] 0.0
          %564 = vst [vmem:[#allocation2 + $0x408] sm:$0xff] 0.0
          %565 = vst [vmem:[#allocation2 + $0x410] sm:$0xff] 0.0
          %566 = vst [vmem:[#allocation2 + $0x418] sm:$0xff] 0.0
          %567 = vst [vmem:[#allocation2 + $0x420] sm:$0xff] 0.0
          %568 = vst [vmem:[#allocation2 + $0x428] sm:$0xff] 0.0
          %569 = vst [vmem:[#allocation2 + $0x430] sm:$0xff] 0.0
          %570 = vst [vmem:[#allocation2 + $0x438] sm:$0xff] 0.0
          %571 = vst [vmem:[#allocation2 + $0x440] sm:$0xff] 0.0
          %572 = vst [vmem:[#allocation2 + $0x448] sm:$0xff] 0.0
          %573 = vst [vmem:[#allocation2 + $0x450] sm:$0xff] 0.0
          %574 = vst [vmem:[#allocation2 + $0x458] sm:$0xff] 0.0
          %575 = vst [vmem:[#allocation2 + $0x460] sm:$0xff] 0.0
          %576 = vst [vmem:[#allocation2 + $0x468] sm:$0xff] 0.0
          %577 = vst [vmem:[#allocation2 + $0x470] sm:$0xff] 0.0
          %578 = vst [vmem:[#allocation2 + $0x478] sm:$0xff] 0.0
          %579 = vst [vmem:[#allocation2 + $0x480] sm:$0xff] 0.0
          %580 = vst [vmem:[#allocation2 + $0x488] sm:$0xff] 0.0
          %581 = vst [vmem:[#allocation2 + $0x490] sm:$0xff] 0.0
          %582 = vst [vmem:[#allocation2 + $0x498] sm:$0xff] 0.0
          %583 = vst [vmem:[#allocation2 + $0x4a0] sm:$0xff] 0.0
          %584 = vst [vmem:[#allocation2 + $0x4a8] sm:$0xff] 0.0
          %585 = vst [vmem:[#allocation2 + $0x4b0] sm:$0xff] 0.0
          %586 = vst [vmem:[#allocation2 + $0x4b8] sm:$0xff] 0.0
          %587 = vst [vmem:[#allocation2 + $0x4c0] sm:$0xff] 0.0
          %588 = vst [vmem:[#allocation2 + $0x4c8] sm:$0xff] 0.0
          %589 = vst [vmem:[#allocation2 + $0x4d0] sm:$0xff] 0.0
          %590 = vst [vmem:[#allocation2 + $0x4d8] sm:$0xff] 0.0
          %591 = vst [vmem:[#allocation2 + $0x4e0] sm:$0xff] 0.0
          %592 = vst [vmem:[#allocation2 + $0x4e8] sm:$0xff] 0.0
          %593 = vst [vmem:[#allocation2 + $0x4f0] sm:$0xff] 0.0
          %594 = vst [vmem:[#allocation2 + $0x4f8] sm:$0xff] 0.0
        $region72: #{angle_predictor_forward.1} parent=63 // pred_fallthru
          _
        %v595 = vld [vmem:[%s423] sm:$0xf]
        %v596 = vld [vmem:[%s1] sm:$0xf]
        %v597 = vld [vmem:[%s1 + $0x4] sm:$0xf]
        %v598 = vld [vmem:[%s1 + $0x8] sm:$0xf]
        %v599 = vld [vmem:[%s1 + $0xc] sm:$0xf]
        %v600 = vld [vmem:[%s1 + $0x10] sm:$0xf]
        %v601 = vld [vmem:[%s1 + $0x14] sm:$0xf]
        %v602 = vld [vmem:[%s1 + $0x18] sm:$0xf]
        %v603 = vld [vmem:[%s1 + $0x1c] sm:$0xf]
        %v604 = vld [vmem:[%s1 + $0x20] sm:$0xf]
        %v605 = vld [vmem:[%s1 + $0x24] sm:$0xf]
        %v606 = vld [vmem:[%s1 + $0x28] sm:$0xf]
        %v607 = vld [vmem:[%s1 + $0x2c] sm:$0xf]
        %v608 = vld [vmem:[%s1 + $0x30] sm:$0xf]
        %v609 = vld [vmem:[%s1 + $0x34] sm:$0xf]
        %v610 = vld [vmem:[%s1 + $0x38] sm:$0xf]
        %v611 = vld [vmem:[%s1 + $0x3c] sm:$0xf]
        %v612 = vld [vmem:[%s1 + $0x40] sm:$0xf]
        %v613 = vld [vmem:[%s1 + $0x44] sm:$0xf]
        %v614 = vld [vmem:[%s1 + $0x48] sm:$0xf]
        %v615 = vld [vmem:[%s1 + $0x4c] sm:$0xf]
        %v616 = vld [vmem:[%s1 + $0x50] sm:$0xf]
        %v617 = vld [vmem:[%s1 + $0x54] sm:$0xf]
        %v618 = vld [vmem:[%s1 + $0x58] sm:$0xf]
        %v619 = vld [vmem:[%s1 + $0x5c] sm:$0xf]
        %v620 = vld [vmem:[%s1 + $0x60] sm:$0xf]
        %v621 = vld [vmem:[%s1 + $0x64] sm:$0xf]
        %v622 = vld [vmem:[%s1 + $0x68] sm:$0xf]
        %v623 = vld [vmem:[%s1 + $0x6c] sm:$0xf]
        %v624 = vld [vmem:[%s1 + $0x70] sm:$0xf]
        %v625 = vld [vmem:[%s1 + $0x74] sm:$0xf]
        %v626 = vld [vmem:[%s1 + $0x78] sm:$0xf]
        %v627 = vld [vmem:[%s1 + $0x7c] sm:$0xf]
        %v628 = vld [vmem:[%s2] sm:$0xff]
        %v629 = vld [vmem:[%s2 + $0x8] sm:$0xff]
        %v630 = vld [vmem:[%s2 + $0x10] sm:$0xff]
        %v631 = vld [vmem:[%s2 + $0x18] sm:$0xff]
        %v632 = vld [vmem:[%s2 + $0x20] sm:$0xff]
        %v633 = vld [vmem:[%s2 + $0x28] sm:$0xff]
        %v634 = vld [vmem:[%s2 + $0x30] sm:$0xff]
        %v635 = vld [vmem:[%s2 + $0x38] sm:$0xff]
        %v636 = vld [vmem:[%s2 + $0x40] sm:$0xff]
        %v637 = vld [vmem:[%s2 + $0x48] sm:$0xff]
        %v638 = vld [vmem:[%s2 + $0x50] sm:$0xff]
        %v639 = vld [vmem:[%s2 + $0x58] sm:$0xff]
        %v640 = vld [vmem:[%s2 + $0x60] sm:$0xff]
        %v641 = vld [vmem:[%s2 + $0x68] sm:$0xff]
        %v642 = vld [vmem:[%s2 + $0x70] sm:$0xff]
        %v643 = vld [vmem:[%s2 + $0x78] sm:$0xff]
        %v644 = vld [vmem:[%s2 + $0x80] sm:$0xff]
        %v645 = vld [vmem:[%s2 + $0x88] sm:$0xff]
        %v646 = vld [vmem:[%s2 + $0x90] sm:$0xff]
        %v647 = vld [vmem:[%s2 + $0x98] sm:$0xff]
        %v648 = vld [vmem:[%s2 + $0xa0] sm:$0xff]
        %v649 = vld [vmem:[%s2 + $0xa8] sm:$0xff]
        %v650 = vld [vmem:[%s2 + $0xb0] sm:$0xff]
        %v651 = vld [vmem:[%s2 + $0xb8] sm:$0xff]
        %v652 = vld [vmem:[%s2 + $0xc0] sm:$0xff]
        %v653 = vld [vmem:[%s2 + $0xc8] sm:$0xff]
        %v654 = vld [vmem:[%s2 + $0xd0] sm:$0xff]
        %v655 = vld [vmem:[%s2 + $0xd8] sm:$0xff]
        %v656 = vld [vmem:[%s2 + $0xe0] sm:$0xff]
        %v657 = vld [vmem:[%s2 + $0xe8] sm:$0xff]
        %v658 = vld [vmem:[%s2 + $0xf0] sm:$0xff]
        %v659 = vld [vmem:[%s2 + $0xf8] sm:$0xff]
        %661 = vset.pattern.permute.xlu0 0
        %662 = vperm.xlu0 %661, %v628
        %v663 = vpop.permute.xlu0 %662
        %666 = vset.pattern.permute.xlu0 0
        %667 = vperm.xlu0 %666, %v629
        %v668 = vpop.permute.xlu0 %667
        %671 = vset.pattern.permute.xlu0 0
        %672 = vperm.xlu0 %671, %v630
        %v673 = vpop.permute.xlu0 %672
        %676 = vset.pattern.permute.xlu0 0
        %677 = vperm.xlu0 %676, %v631
        %v678 = vpop.permute.xlu0 %677
        %681 = vset.pattern.permute.xlu0 0
        %682 = vperm.xlu0 %681, %v632
        %v683 = vpop.permute.xlu0 %682
        %686 = vset.pattern.permute.xlu0 0
        %687 = vperm.xlu0 %686, %v633
        %v688 = vpop.permute.xlu0 %687
        %691 = vset.pattern.permute.xlu0 0
        %692 = vperm.xlu0 %691, %v634
        %v693 = vpop.permute.xlu0 %692
        %696 = vset.pattern.permute.xlu0 0
        %697 = vperm.xlu0 %696, %v635
        %v698 = vpop.permute.xlu0 %697
        %701 = vset.pattern.permute.xlu0 0
        %702 = vperm.xlu0 %701, %v636
        %v703 = vpop.permute.xlu0 %702
        %706 = vset.pattern.permute.xlu0 0
        %707 = vperm.xlu0 %706, %v637
        %v708 = vpop.permute.xlu0 %707
        %711 = vset.pattern.permute.xlu0 0
        %712 = vperm.xlu0 %711, %v638
        %v713 = vpop.permute.xlu0 %712
        %716 = vset.pattern.permute.xlu0 0
        %717 = vperm.xlu0 %716, %v639
        %v718 = vpop.permute.xlu0 %717
        %721 = vset.pattern.permute.xlu0 0
        %722 = vperm.xlu0 %721, %v640
        %v723 = vpop.permute.xlu0 %722
        %726 = vset.pattern.permute.xlu0 0
        %727 = vperm.xlu0 %726, %v641
        %v728 = vpop.permute.xlu0 %727
        %731 = vset.pattern.permute.xlu0 0
        %732 = vperm.xlu0 %731, %v642
        %v733 = vpop.permute.xlu0 %732
        %736 = vset.pattern.permute.xlu0 0
        %737 = vperm.xlu0 %736, %v643
        %v738 = vpop.permute.xlu0 %737
        %741 = vset.pattern.permute.xlu0 0
        %742 = vperm.xlu0 %741, %v644
        %v743 = vpop.permute.xlu0 %742
        %746 = vset.pattern.permute.xlu0 0
        %747 = vperm.xlu0 %746, %v645
        %v748 = vpop.permute.xlu0 %747
        %751 = vset.pattern.permute.xlu0 0
        %752 = vperm.xlu0 %751, %v646
        %v753 = vpop.permute.xlu0 %752
        %756 = vset.pattern.permute.xlu0 0
        %757 = vperm.xlu0 %756, %v647
        %v758 = vpop.permute.xlu0 %757
        %761 = vset.pattern.permute.xlu0 0
        %762 = vperm.xlu0 %761, %v648
        %v763 = vpop.permute.xlu0 %762
        %766 = vset.pattern.permute.xlu0 0
        %767 = vperm.xlu0 %766, %v649
        %v768 = vpop.permute.xlu0 %767
        %771 = vset.pattern.permute.xlu0 0
        %772 = vperm.xlu0 %771, %v650
        %v773 = vpop.permute.xlu0 %772
        %776 = vset.pattern.permute.xlu0 0
        %777 = vperm.xlu0 %776, %v651
        %v778 = vpop.permute.xlu0 %777
        %781 = vset.pattern.permute.xlu0 0
        %782 = vperm.xlu0 %781, %v652
        %v783 = vpop.permute.xlu0 %782
        %786 = vset.pattern.permute.xlu0 0
        %787 = vperm.xlu0 %786, %v653
        %v788 = vpop.permute.xlu0 %787
        %791 = vset.pattern.permute.xlu0 0
        %792 = vperm.xlu0 %791, %v654
        %v793 = vpop.permute.xlu0 %792
        %796 = vset.pattern.permute.xlu0 0
        %797 = vperm.xlu0 %796, %v655
        %v798 = vpop.permute.xlu0 %797
        %801 = vset.pattern.permute.xlu0 0
        %802 = vperm.xlu0 %801, %v656
        %v803 = vpop.permute.xlu0 %802
        %806 = vset.pattern.permute.xlu0 0
        %807 = vperm.xlu0 %806, %v657
        %v808 = vpop.permute.xlu0 %807
        %811 = vset.pattern.permute.xlu0 0
        %812 = vperm.xlu0 %811, %v658
        %v813 = vpop.permute.xlu0 %812
        %816 = vset.pattern.permute.xlu0 0
        %817 = vperm.xlu0 %816, %v659
        %v818 = vpop.permute.xlu0 %817
        %v852 = vunpack.c.l.b16 %v596
        %v853 = vunpack.c.l.b16 %v597
        %v854 = vunpack.c.l.b16 %v598
        %v855 = vunpack.c.l.b16 %v599
        %v856 = vunpack.c.l.b16 %v600
        %v857 = vunpack.c.l.b16 %v601
        %v858 = vunpack.c.l.b16 %v602
        %v859 = vunpack.c.l.b16 %v603
        %v860 = vunpack.c.l.b16 %v604
        %v861 = vunpack.c.l.b16 %v605
        %v862 = vunpack.c.l.b16 %v606
        %v863 = vunpack.c.l.b16 %v607
        %v864 = vunpack.c.l.b16 %v608
        %v865 = vunpack.c.l.b16 %v609
        %v866 = vunpack.c.l.b16 %v610
        %v867 = vunpack.c.l.b16 %v611
        %v868 = vunpack.c.l.b16 %v612
        %v869 = vunpack.c.l.b16 %v613
        %v870 = vunpack.c.l.b16 %v614
        %v871 = vunpack.c.l.b16 %v615
        %v872 = vunpack.c.l.b16 %v616
        %v873 = vunpack.c.l.b16 %v617
        %v874 = vunpack.c.l.b16 %v618
        %v875 = vunpack.c.l.b16 %v619
        %v876 = vunpack.c.l.b16 %v620
        %v877 = vunpack.c.l.b16 %v621
        %v878 = vunpack.c.l.b16 %v622
        %v879 = vunpack.c.l.b16 %v623
        %v880 = vunpack.c.l.b16 %v624
        %v881 = vunpack.c.l.b16 %v625
        %v882 = vunpack.c.l.b16 %v626
        %v883 = vunpack.c.l.b16 %v627
        %v884 = vpack.c.b16 %v853, %v852
        %v885 = vpack.c.b16 %v855, %v854
        %v886 = vpack.c.b16 %v857, %v856
        %v887 = vpack.c.b16 %v859, %v858
        %v888 = vpack.c.b16 %v861, %v860
        %v889 = vpack.c.b16 %v863, %v862
        %v890 = vpack.c.b16 %v865, %v864
        %v891 = vpack.c.b16 %v867, %v866
        %v892 = vpack.c.b16 %v869, %v868
        %v893 = vpack.c.b16 %v871, %v870
        %v894 = vpack.c.b16 %v873, %v872
        %v895 = vpack.c.b16 %v875, %v874
        %v896 = vpack.c.b16 %v877, %v876
        %v897 = vpack.c.b16 %v879, %v878
        %v898 = vpack.c.b16 %v881, %v880
        %v899 = vpack.c.b16 %v883, %v882
        %v902 = vunpack.c.l.s4 1983009808
        %v903 = vunpack.c.0.s8 %v902
        %v904 = vlaneseq
        %v905 = vshrl.u32 %v904, 7
        %v906 = vsub.s32 %v903, %v905
        %v907 = vrot.slane %v595, %v906
        %v908 = vcombine.high %v907, %v907
        %vm909 = vcmask 23552
        %v911 = vsel %vm909, %v884, 0
        %v914 = vsel %vm909, %v885, 0
        %v917 = vsel %vm909, %v886, 0
        %v920 = vsel %vm909, %v887, 0
        %v923 = vsel %vm909, %v888, 0
        %v926 = vsel %vm909, %v889, 0
        %v929 = vsel %vm909, %v890, 0
        %v932 = vsel %vm909, %v891, 0
        %v935 = vsel %vm909, %v892, 0
        %v938 = vsel %vm909, %v893, 0
        %v941 = vsel %vm909, %v894, 0
        %v944 = vsel %vm909, %v895, 0
        %v947 = vsel %vm909, %v896, 0
        %v950 = vsel %vm909, %v897, 0
        %v953 = vsel %vm909, %v898, 0
        %v956 = vsel %vm909, %v899, 0
        %vm958 = vcmask 1040384
        %vm959 = vcmask 1041408
        %v960 = vsel %vm958, 4294967295, 65535
        %v961 = vsel %vm959, %v960, 0
        %v963 = vand.u32 %v907, %v961
        %v966 = vand.u32 %v908, %v961
        %968 = vmatprep.subr.bf16.mxu0 %v966
        %969 = vmatpush1.bf16.msra.mxu0 %v963
        %970 = vmatprep.subr.bf16.mxu0 0
        %971 = vmatpush1.bf16.msra.mxu0 0
        %972 = vmatprep.subr.bf16.mxu0 0
        %973 = vmatpush1.bf16.msra.mxu0 0
        %974 = vmatprep.subr.bf16.mxu0 0
        %975 = vmatpush1.bf16.msra.mxu0 0
        %976 = vmatprep.subr.bf16.mxu0 0
        %977 = vmatpush1.bf16.msra.mxu0 0
        %978 = vmatprep.subr.bf16.mxu0 0
        %979 = vmatpush1.bf16.msra.mxu0 0
        %980 = vmatprep.subr.bf16.mxu0 0
        %981 = vmatpush1.bf16.msra.mxu0 0
        %982 = vmatprep.subr.bf16.mxu0 0
        %983 = vmatpush1.bf16.msra.mxu0 0
        %984 = vmatprep.subr.bf16.mxu0 0
        %985 = vmatpush1.bf16.msra.mxu0 0
        %986 = vmatprep.subr.bf16.mxu0 0
        %987 = vmatpush1.bf16.msra.mxu0 0
        %988 = vmatprep.subr.bf16.mxu0 0
        %989 = vmatpush1.bf16.msra.mxu0 0
        %990 = vmatprep.subr.bf16.mxu0 0
        %991 = vmatpush1.bf16.msra.mxu0 0
        %992 = vmatprep.subr.bf16.mxu0 0
        %993 = vmatpush1.bf16.msra.mxu0 0
        %994 = vmatprep.subr.bf16.mxu0 0
        %995 = vmatpush1.bf16.msra.mxu0 0
        %996 = vmatprep.subr.bf16.mxu0 0
        %997 = vmatpush1.bf16.msra.mxu0 0
        %998 = vmatprep.subr.bf16.mxu0 0
        %999 = vmatpush1.bf16.msra.mxu0 0
        %1000 = vmatprep.mubr.bf16.mxu0 0
        %1001 = vmatmul.mubr.bf16.gmra.mrb[0].mxu0 %v911
        %v1002 = vpop.f32.mrb[0].mxu0
        %v1003 = vadd.f32 %v663, %v1002
        %v1004 = vpop.f32.mrb[0].mxu0
        %v1005 = vadd.f32 %v663, %v1004
        %v1006 = vpop.f32.mrb[0].mxu0
        %v1007 = vadd.f32 %v668, %v1006
        %v1008 = vpop.f32.mrb[0].mxu0
        %v1009 = vadd.f32 %v668, %v1008
        %1010 = vmatprep.mubr.bf16.mxu0 0
        %1011 = vmatmul.mubr.bf16.gmra.mrb[0].mxu0 %v914
        %v1012 = vpop.f32.mrb[0].mxu0
        %v1013 = vadd.f32 %v673, %v1012
        %v1014 = vpop.f32.mrb[0].mxu0
        %v1015 = vadd.f32 %v673, %v1014
        %v1016 = vpop.f32.mrb[0].mxu0
        %v1017 = vadd.f32 %v678, %v1016
        %v1018 = vpop.f32.mrb[0].mxu0
        %v1019 = vadd.f32 %v678, %v1018
        %1020 = vmatprep.mubr.bf16.mxu0 0
        %1021 = vmatmul.mubr.bf16.gmra.mrb[0].mxu0 %v917
        %v1022 = vpop.f32.mrb[0].mxu0
        %v1023 = vadd.f32 %v683, %v1022
        %v1024 = vpop.f32.mrb[0].mxu0
        %v1025 = vadd.f32 %v683, %v1024
        %v1026 = vpop.f32.mrb[0].mxu0
        %v1027 = vadd.f32 %v688, %v1026
        %v1028 = vpop.f32.mrb[0].mxu0
        %v1029 = vadd.f32 %v688, %v1028
        %1030 = vmatprep.mubr.bf16.mxu0 0
        %1031 = vmatmul.mubr.bf16.gmra.mrb[0].mxu0 %v920
        %v1032 = vpop.f32.mrb[0].mxu0
        %v1033 = vadd.f32 %v693, %v1032
        %v1034 = vpop.f32.mrb[0].mxu0
        %v1035 = vadd.f32 %v693, %v1034
        %v1036 = vpop.f32.mrb[0].mxu0
        %v1037 = vadd.f32 %v698, %v1036
        %v1038 = vpop.f32.mrb[0].mxu0
        %v1039 = vadd.f32 %v698, %v1038
        %1040 = vmatprep.mubr.bf16.mxu0 0
        %1041 = vmatmul.mubr.bf16.gmra.mrb[0].mxu0 %v923
        %v1042 = vpop.f32.mrb[0].mxu0
        %v1043 = vadd.f32 %v703, %v1042
        %v1044 = vpop.f32.mrb[0].mxu0
        %v1045 = vadd.f32 %v703, %v1044
        %v1046 = vpop.f32.mrb[0].mxu0
        %v1047 = vadd.f32 %v708, %v1046
        %v1048 = vpop.f32.mrb[0].mxu0
        %v1049 = vadd.f32 %v708, %v1048
        %1050 = vmatprep.mubr.bf16.mxu0 0
        %1051 = vmatmul.mubr.bf16.gmra.mrb[0].mxu0 %v926
        %v1052 = vpop.f32.mrb[0].mxu0
        %v1053 = vadd.f32 %v713, %v1052
        %v1054 = vpop.f32.mrb[0].mxu0
        %v1055 = vadd.f32 %v713, %v1054
        %v1056 = vpop.f32.mrb[0].mxu0
        %v1057 = vadd.f32 %v718, %v1056
        %v1058 = vpop.f32.mrb[0].mxu0
        %v1059 = vadd.f32 %v718, %v1058
        %1060 = vmatprep.mubr.bf16.mxu0 0
        %1061 = vmatmul.mubr.bf16.gmra.mrb[0].mxu0 %v929
        %v1062 = vpop.f32.mrb[0].mxu0
        %v1063 = vadd.f32 %v723, %v1062
        %v1064 = vpop.f32.mrb[0].mxu0
        %v1065 = vadd.f32 %v723, %v1064
        %v1066 = vpop.f32.mrb[0].mxu0
        %v1067 = vadd.f32 %v728, %v1066
        %v1068 = vpop.f32.mrb[0].mxu0
        %v1069 = vadd.f32 %v728, %v1068
        %1070 = vmatprep.mubr.bf16.mxu0 0
        %1071 = vmatmul.mubr.bf16.gmra.mrb[0].mxu0 %v932
        %v1072 = vpop.f32.mrb[0].mxu0
        %v1073 = vadd.f32 %v733, %v1072
        %v1074 = vpop.f32.mrb[0].mxu0
        %v1075 = vadd.f32 %v733, %v1074
        %v1076 = vpop.f32.mrb[0].mxu0
        %v1077 = vadd.f32 %v738, %v1076
        %v1078 = vpop.f32.mrb[0].mxu0
        %v1079 = vadd.f32 %v738, %v1078
        %1080 = vmatprep.mubr.bf16.mxu0 0
        %1081 = vmatmul.mubr.bf16.gmra.mrb[0].mxu0 %v935
        %v1082 = vpop.f32.mrb[0].mxu0
        %v1083 = vadd.f32 %v743, %v1082
        %v1084 = vpop.f32.mrb[0].mxu0
        %v1085 = vadd.f32 %v743, %v1084
        %v1086 = vpop.f32.mrb[0].mxu0
        %v1087 = vadd.f32 %v748, %v1086
        %v1088 = vpop.f32.mrb[0].mxu0
        %v1089 = vadd.f32 %v748, %v1088
        %1090 = vmatprep.mubr.bf16.mxu0 0
        %1091 = vmatmul.mubr.bf16.gmra.mrb[0].mxu0 %v938
        %v1092 = vpop.f32.mrb[0].mxu0
        %v1093 = vadd.f32 %v753, %v1092
        %v1094 = vpop.f32.mrb[0].mxu0
        %v1095 = vadd.f32 %v753, %v1094
        %v1096 = vpop.f32.mrb[0].mxu0
        %v1097 = vadd.f32 %v758, %v1096
        %v1098 = vpop.f32.mrb[0].mxu0
        %v1099 = vadd.f32 %v758, %v1098
        %1100 = vmatprep.mubr.bf16.mxu0 0
        %1101 = vmatmul.mubr.bf16.gmra.mrb[0].mxu0 %v941
        %v1102 = vpop.f32.mrb[0].mxu0
        %v1103 = vadd.f32 %v763, %v1102
        %v1104 = vpop.f32.mrb[0].mxu0
        %v1105 = vadd.f32 %v763, %v1104
        %v1106 = vpop.f32.mrb[0].mxu0
        %v1107 = vadd.f32 %v768, %v1106
        %v1108 = vpop.f32.mrb[0].mxu0
        %v1109 = vadd.f32 %v768, %v1108
        %1110 = vmatprep.mubr.bf16.mxu0 0
        %1111 = vmatmul.mubr.bf16.gmra.mrb[0].mxu0 %v944
        %v1112 = vpop.f32.mrb[0].mxu0
        %v1113 = vadd.f32 %v773, %v1112
        %v1114 = vpop.f32.mrb[0].mxu0
        %v1115 = vadd.f32 %v773, %v1114
        %v1116 = vpop.f32.mrb[0].mxu0
        %v1117 = vadd.f32 %v778, %v1116
        %v1118 = vpop.f32.mrb[0].mxu0
        %v1119 = vadd.f32 %v778, %v1118
        %1120 = vmatprep.mubr.bf16.mxu0 0
        %1121 = vmatmul.mubr.bf16.gmra.mrb[0].mxu0 %v947
        %v1122 = vpop.f32.mrb[0].mxu0
        %v1123 = vadd.f32 %v783, %v1122
        %v1124 = vpop.f32.mrb[0].mxu0
        %v1125 = vadd.f32 %v783, %v1124
        %v1126 = vpop.f32.mrb[0].mxu0
        %v1127 = vadd.f32 %v788, %v1126
        %v1128 = vpop.f32.mrb[0].mxu0
        %v1129 = vadd.f32 %v788, %v1128
        %1130 = vmatprep.mubr.bf16.mxu0 0
        %1131 = vmatmul.mubr.bf16.gmra.mrb[0].mxu0 %v950
        %v1132 = vpop.f32.mrb[0].mxu0
        %v1133 = vadd.f32 %v793, %v1132
        %v1134 = vpop.f32.mrb[0].mxu0
        %v1135 = vadd.f32 %v793, %v1134
        %v1136 = vpop.f32.mrb[0].mxu0
        %v1137 = vadd.f32 %v798, %v1136
        %v1138 = vpop.f32.mrb[0].mxu0
        %v1139 = vadd.f32 %v798, %v1138
        %1140 = vmatprep.mubr.bf16.mxu0 0
        %1141 = vmatmul.mubr.bf16.gmra.mrb[0].mxu0 %v953
        %v1142 = vpop.f32.mrb[0].mxu0
        %v1143 = vadd.f32 %v803, %v1142
        %v1144 = vpop.f32.mrb[0].mxu0
        %v1145 = vadd.f32 %v803, %v1144
        %v1146 = vpop.f32.mrb[0].mxu0
        %v1147 = vadd.f32 %v808, %v1146
        %v1148 = vpop.f32.mrb[0].mxu0
        %v1149 = vadd.f32 %v808, %v1148
        %1150 = vmatprep.mubr.bf16.mxu0 0
        %1151 = vmatmul.mubr.bf16.gmra.mrb[0].mxu0 %v956
        %v1152 = vpop.f32.mrb[0].mxu0
        %v1153 = vadd.f32 %v813, %v1152
        %v1154 = vpop.f32.mrb[0].mxu0
        %v1155 = vadd.f32 %v813, %v1154
        %v1156 = vpop.f32.mrb[0].mxu0
        %v1157 = vadd.f32 %v818, %v1156
        %v1158 = vpop.f32.mrb[0].mxu0
        %v1159 = vadd.f32 %v818, %v1158
        %1160 = vdwg.mxu0
        %v1161 = vxor.u32 %v1003, 2147483648
        %v1162 = vxor.u32 %v1005, 2147483648
        %v1163 = vxor.u32 %v1007, 2147483648
        %v1164 = vxor.u32 %v1009, 2147483648
        %v1165 = vxor.u32 %v1013, 2147483648
        %v1166 = vxor.u32 %v1015, 2147483648
        %v1167 = vxor.u32 %v1017, 2147483648
        %v1168 = vxor.u32 %v1019, 2147483648
        %v1169 = vxor.u32 %v1023, 2147483648
        %v1170 = vxor.u32 %v1025, 2147483648
        %v1171 = vxor.u32 %v1027, 2147483648
        %v1172 = vxor.u32 %v1029, 2147483648
        %v1173 = vxor.u32 %v1033, 2147483648
        %v1174 = vxor.u32 %v1035, 2147483648
        %v1175 = vxor.u32 %v1037, 2147483648
        %v1176 = vxor.u32 %v1039, 2147483648
        %v1177 = vxor.u32 %v1043, 2147483648
        %v1178 = vxor.u32 %v1045, 2147483648
        %v1179 = vxor.u32 %v1047, 2147483648
        %v1180 = vxor.u32 %v1049, 2147483648
        %v1181 = vxor.u32 %v1053, 2147483648
        %v1182 = vxor.u32 %v1055, 2147483648
        %v1183 = vxor.u32 %v1057, 2147483648
        %v1184 = vxor.u32 %v1059, 2147483648
        %v1185 = vxor.u32 %v1063, 2147483648
        %v1186 = vxor.u32 %v1065, 2147483648
        %v1187 = vxor.u32 %v1067, 2147483648
        %v1188 = vxor.u32 %v1069, 2147483648
        %v1189 = vxor.u32 %v1073, 2147483648
        %v1190 = vxor.u32 %v1075, 2147483648
        %v1191 = vxor.u32 %v1077, 2147483648
        %v1192 = vxor.u32 %v1079, 2147483648
        %v1193 = vxor.u32 %v1083, 2147483648
        %v1194 = vxor.u32 %v1085, 2147483648
        %v1195 = vxor.u32 %v1087, 2147483648
        %v1196 = vxor.u32 %v1089, 2147483648
        %v1197 = vxor.u32 %v1093, 2147483648
        %v1198 = vxor.u32 %v1095, 2147483648
        %v1199 = vxor.u32 %v1097, 2147483648
        %v1200 = vxor.u32 %v1099, 2147483648
        %v1201 = vxor.u32 %v1103, 2147483648
        %v1202 = vxor.u32 %v1105, 2147483648
        %v1203 = vxor.u32 %v1107, 2147483648
        %v1204 = vxor.u32 %v1109, 2147483648
        %v1205 = vxor.u32 %v1113, 2147483648
        %v1206 = vxor.u32 %v1115, 2147483648
        %v1207 = vxor.u32 %v1117, 2147483648
        %v1208 = vxor.u32 %v1119, 2147483648
        %v1209 = vxor.u32 %v1123, 2147483648
        %v1210 = vxor.u32 %v1125, 2147483648
        %v1211 = vxor.u32 %v1127, 2147483648
        %v1212 = vxor.u32 %v1129, 2147483648
        %v1213 = vxor.u32 %v1133, 2147483648
        %v1214 = vxor.u32 %v1135, 2147483648
        %v1215 = vxor.u32 %v1137, 2147483648
        %v1216 = vxor.u32 %v1139, 2147483648
        %v1217 = vxor.u32 %v1143, 2147483648
        %v1218 = vxor.u32 %v1145, 2147483648
        %v1219 = vxor.u32 %v1147, 2147483648
        %v1220 = vxor.u32 %v1149, 2147483648
        %v1221 = vxor.u32 %v1153, 2147483648
        %v1222 = vxor.u32 %v1155, 2147483648
        %v1223 = vxor.u32 %v1157, 2147483648
        %v1224 = vxor.u32 %v1159, 2147483648
        %v1225 = vmul.f32 %v1161, 1.442695
        %v1226 = vpow.pop %v1225
        %v1227 = vmul.f32 %v1162, 1.442695
        %v1228 = vpow.pop %v1227
        %v1229 = vmul.f32 %v1163, 1.442695
        %v1230 = vpow.pop %v1229
        %v1231 = vmul.f32 %v1164, 1.442695
        %v1232 = vpow.pop %v1231
        %v1233 = vmul.f32 %v1165, 1.442695
        %v1234 = vpow.pop %v1233
        %v1235 = vmul.f32 %v1166, 1.442695
        %v1236 = vpow.pop %v1235
        %v1237 = vmul.f32 %v1167, 1.442695
        %v1238 = vpow.pop %v1237
        %v1239 = vmul.f32 %v1168, 1.442695
        %v1240 = vpow.pop %v1239
        %v1241 = vmul.f32 %v1169, 1.442695
        %v1242 = vpow.pop %v1241
        %v1243 = vmul.f32 %v1170, 1.442695
        %v1244 = vpow.pop %v1243
        %v1245 = vmul.f32 %v1171, 1.442695
        %v1246 = vpow.pop %v1245
        %v1247 = vmul.f32 %v1172, 1.442695
        %v1248 = vpow.pop %v1247
        %v1249 = vmul.f32 %v1173, 1.442695
        %v1250 = vpow.pop %v1249
        %v1251 = vmul.f32 %v1174, 1.442695
        %v1252 = vpow.pop %v1251
        %v1253 = vmul.f32 %v1175, 1.442695
        %v1254 = vpow.pop %v1253
        %v1255 = vmul.f32 %v1176, 1.442695
        %v1256 = vpow.pop %v1255
        %v1257 = vmul.f32 %v1177, 1.442695
        %v1258 = vpow.pop %v1257
        %v1259 = vmul.f32 %v1178, 1.442695
        %v1260 = vpow.pop %v1259
        %v1261 = vmul.f32 %v1179, 1.442695
        %v1262 = vpow.pop %v1261
        %v1263 = vmul.f32 %v1180, 1.442695
        %v1264 = vpow.pop %v1263
        %v1265 = vmul.f32 %v1181, 1.442695
        %v1266 = vpow.pop %v1265
        %v1267 = vmul.f32 %v1182, 1.442695
        %v1268 = vpow.pop %v1267
        %v1269 = vmul.f32 %v1183, 1.442695
        %v1270 = vpow.pop %v1269
        %v1271 = vmul.f32 %v1184, 1.442695
        %v1272 = vpow.pop %v1271
        %v1273 = vmul.f32 %v1185, 1.442695
        %v1274 = vpow.pop %v1273
        %v1275 = vmul.f32 %v1186, 1.442695
        %v1276 = vpow.pop %v1275
        %v1277 = vmul.f32 %v1187, 1.442695
        %v1278 = vpow.pop %v1277
        %v1279 = vmul.f32 %v1188, 1.442695
        %v1280 = vpow.pop %v1279
        %v1281 = vmul.f32 %v1189, 1.442695
        %v1282 = vpow.pop %v1281
        %v1283 = vmul.f32 %v1190, 1.442695
        %v1284 = vpow.pop %v1283
        %v1285 = vmul.f32 %v1191, 1.442695
        %v1286 = vpow.pop %v1285
        %v1287 = vmul.f32 %v1192, 1.442695
        %v1288 = vpow.pop %v1287
        %v1289 = vmul.f32 %v1193, 1.442695
        %v1290 = vpow.pop %v1289
        %v1291 = vmul.f32 %v1194, 1.442695
        %v1292 = vpow.pop %v1291
        %v1293 = vmul.f32 %v1195, 1.442695
        %v1294 = vpow.pop %v1293
        %v1295 = vmul.f32 %v1196, 1.442695
        %v1296 = vpow.pop %v1295
        %v1297 = vmul.f32 %v1197, 1.442695
        %v1298 = vpow.pop %v1297
        %v1299 = vmul.f32 %v1198, 1.442695
        %v1300 = vpow.pop %v1299
        %v1301 = vmul.f32 %v1199, 1.442695
        %v1302 = vpow.pop %v1301
        %v1303 = vmul.f32 %v1200, 1.442695
        %v1304 = vpow.pop %v1303
        %v1305 = vmul.f32 %v1201, 1.442695
        %v1306 = vpow.pop %v1305
        %v1307 = vmul.f32 %v1202, 1.442695
        %v1308 = vpow.pop %v1307
        %v1309 = vmul.f32 %v1203, 1.442695
        %v1310 = vpow.pop %v1309
        %v1311 = vmul.f32 %v1204, 1.442695
        %v1312 = vpow.pop %v1311
        %v1313 = vmul.f32 %v1205, 1.442695
        %v1314 = vpow.pop %v1313
        %v1315 = vmul.f32 %v1206, 1.442695
        %v1316 = vpow.pop %v1315
        %v1317 = vmul.f32 %v1207, 1.442695
        %v1318 = vpow.pop %v1317
        %v1319 = vmul.f32 %v1208, 1.442695
        %v1320 = vpow.pop %v1319
        %v1321 = vmul.f32 %v1209, 1.442695
        %v1322 = vpow.pop %v1321
        %v1323 = vmul.f32 %v1210, 1.442695
        %v1324 = vpow.pop %v1323
        %v1325 = vmul.f32 %v1211, 1.442695
        %v1326 = vpow.pop %v1325
        %v1327 = vmul.f32 %v1212, 1.442695
        %v1328 = vpow.pop %v1327
        %v1329 = vmul.f32 %v1213, 1.442695
        %v1330 = vpow.pop %v1329
        %v1331 = vmul.f32 %v1214, 1.442695
        %v1332 = vpow.pop %v1331
        %v1333 = vmul.f32 %v1215, 1.442695
        %v1334 = vpow.pop %v1333
        %v1335 = vmul.f32 %v1216, 1.442695
        %v1336 = vpow.pop %v1335
        %v1337 = vmul.f32 %v1217, 1.442695
        %v1338 = vpow.pop %v1337
        %v1339 = vmul.f32 %v1218, 1.442695
        %v1340 = vpow.pop %v1339
        %v1341 = vmul.f32 %v1219, 1.442695
        %v1342 = vpow.pop %v1341
        %v1343 = vmul.f32 %v1220, 1.442695
        %v1344 = vpow.pop %v1343
        %v1345 = vmul.f32 %v1221, 1.442695
        %v1346 = vpow.pop %v1345
        %v1347 = vmul.f32 %v1222, 1.442695
        %v1348 = vpow.pop %v1347
        %v1349 = vmul.f32 %v1223, 1.442695
        %v1350 = vpow.pop %v1349
        %v1351 = vmul.f32 %v1224, 1.442695
        %v1352 = vpow.pop %v1351
        %v1353 = vadd.f32 %v1226, 1.0
        %v1354 = vadd.f32 %v1228, 1.0
        %v1355 = vadd.f32 %v1230, 1.0
        %v1356 = vadd.f32 %v1232, 1.0
        %v1357 = vadd.f32 %v1234, 1.0
        %v1358 = vadd.f32 %v1236, 1.0
        %v1359 = vadd.f32 %v1238, 1.0
        %v1360 = vadd.f32 %v1240, 1.0
        %v1361 = vadd.f32 %v1242, 1.0
        %v1362 = vadd.f32 %v1244, 1.0
        %v1363 = vadd.f32 %v1246, 1.0
        %v1364 = vadd.f32 %v1248, 1.0
        %v1365 = vadd.f32 %v1250, 1.0
        %v1366 = vadd.f32 %v1252, 1.0
        %v1367 = vadd.f32 %v1254, 1.0
        %v1368 = vadd.f32 %v1256, 1.0
        %v1369 = vadd.f32 %v1258, 1.0
        %v1370 = vadd.f32 %v1260, 1.0
        %v1371 = vadd.f32 %v1262, 1.0
        %v1372 = vadd.f32 %v1264, 1.0
        %v1373 = vadd.f32 %v1266, 1.0
        %v1374 = vadd.f32 %v1268, 1.0
        %v1375 = vadd.f32 %v1270, 1.0
        %v1376 = vadd.f32 %v1272, 1.0
        %v1377 = vadd.f32 %v1274, 1.0
        %v1378 = vadd.f32 %v1276, 1.0
        %v1379 = vadd.f32 %v1278, 1.0
        %v1380 = vadd.f32 %v1280, 1.0
        %v1381 = vadd.f32 %v1282, 1.0
        %v1382 = vadd.f32 %v1284, 1.0
        %v1383 = vadd.f32 %v1286, 1.0
        %v1384 = vadd.f32 %v1288, 1.0
        %v1385 = vadd.f32 %v1290, 1.0
        %v1386 = vadd.f32 %v1292, 1.0
        %v1387 = vadd.f32 %v1294, 1.0
        %v1388 = vadd.f32 %v1296, 1.0
        %v1389 = vadd.f32 %v1298, 1.0
        %v1390 = vadd.f32 %v1300, 1.0
        %v1391 = vadd.f32 %v1302, 1.0
        %v1392 = vadd.f32 %v1304, 1.0
        %v1393 = vadd.f32 %v1306, 1.0
        %v1394 = vadd.f32 %v1308, 1.0
        %v1395 = vadd.f32 %v1310, 1.0
        %v1396 = vadd.f32 %v1312, 1.0
        %v1397 = vadd.f32 %v1314, 1.0
        %v1398 = vadd.f32 %v1316, 1.0
        %v1399 = vadd.f32 %v1318, 1.0
        %v1400 = vadd.f32 %v1320, 1.0
        %v1401 = vadd.f32 %v1322, 1.0
        %v1402 = vadd.f32 %v1324, 1.0
        %v1403 = vadd.f32 %v1326, 1.0
        %v1404 = vadd.f32 %v1328, 1.0
        %v1405 = vadd.f32 %v1330, 1.0
        %v1406 = vadd.f32 %v1332, 1.0
        %v1407 = vadd.f32 %v1334, 1.0
        %v1408 = vadd.f32 %v1336, 1.0
        %v1409 = vadd.f32 %v1338, 1.0
        %v1410 = vadd.f32 %v1340, 1.0
        %v1411 = vadd.f32 %v1342, 1.0
        %v1412 = vadd.f32 %v1344, 1.0
        %v1413 = vadd.f32 %v1346, 1.0
        %v1414 = vadd.f32 %v1348, 1.0
        %v1415 = vadd.f32 %v1350, 1.0
        %v1416 = vadd.f32 %v1352, 1.0
        %v1417 = vrcp.pop %v1353
        %v1418 = vmul.f32 1.0, %v1417
        %v1419 = vrcp.pop %v1354
        %v1420 = vmul.f32 1.0, %v1419
        %v1421 = vrcp.pop %v1355
        %v1422 = vmul.f32 1.0, %v1421
        %v1423 = vrcp.pop %v1356
        %v1424 = vmul.f32 1.0, %v1423
        %v1425 = vrcp.pop %v1357
        %v1426 = vmul.f32 1.0, %v1425
        %v1427 = vrcp.pop %v1358
        %v1428 = vmul.f32 1.0, %v1427
        %v1429 = vrcp.pop %v1359
        %v1430 = vmul.f32 1.0, %v1429
        %v1431 = vrcp.pop %v1360
        %v1432 = vmul.f32 1.0, %v1431
        %v1433 = vrcp.pop %v1361
        %v1434 = vmul.f32 1.0, %v1433
        %v1435 = vrcp.pop %v1362
        %v1436 = vmul.f32 1.0, %v1435
        %v1437 = vrcp.pop %v1363
        %v1438 = vmul.f32 1.0, %v1437
        %v1439 = vrcp.pop %v1364
        %v1440 = vmul.f32 1.0, %v1439
        %v1441 = vrcp.pop %v1365
        %v1442 = vmul.f32 1.0, %v1441
        %v1443 = vrcp.pop %v1366
        %v1444 = vmul.f32 1.0, %v1443
        %v1445 = vrcp.pop %v1367
        %v1446 = vmul.f32 1.0, %v1445
        %v1447 = vrcp.pop %v1368
        %v1448 = vmul.f32 1.0, %v1447
        %v1449 = vrcp.pop %v1369
        %v1450 = vmul.f32 1.0, %v1449
        %v1451 = vrcp.pop %v1370
        %v1452 = vmul.f32 1.0, %v1451
        %v1453 = vrcp.pop %v1371
        %v1454 = vmul.f32 1.0, %v1453
        %v1455 = vrcp.pop %v1372
        %v1456 = vmul.f32 1.0, %v1455
        %v1457 = vrcp.pop %v1373
        %v1458 = vmul.f32 1.0, %v1457
        %v1459 = vrcp.pop %v1374
        %v1460 = vmul.f32 1.0, %v1459
        %v1461 = vrcp.pop %v1375
        %v1462 = vmul.f32 1.0, %v1461
        %v1463 = vrcp.pop %v1376
        %v1464 = vmul.f32 1.0, %v1463
        %v1465 = vrcp.pop %v1377
        %v1466 = vmul.f32 1.0, %v1465
        %v1467 = vrcp.pop %v1378
        %v1468 = vmul.f32 1.0, %v1467
        %v1469 = vrcp.pop %v1379
        %v1470 = vmul.f32 1.0, %v1469
        %v1471 = vrcp.pop %v1380
        %v1472 = vmul.f32 1.0, %v1471
        %v1473 = vrcp.pop %v1381
        %v1474 = vmul.f32 1.0, %v1473
        %v1475 = vrcp.pop %v1382
        %v1476 = vmul.f32 1.0, %v1475
        %v1477 = vrcp.pop %v1383
        %v1478 = vmul.f32 1.0, %v1477
        %v1479 = vrcp.pop %v1384
        %v1480 = vmul.f32 1.0, %v1479
        %v1481 = vrcp.pop %v1385
        %v1482 = vmul.f32 1.0, %v1481
        %v1483 = vrcp.pop %v1386
        %v1484 = vmul.f32 1.0, %v1483
        %v1485 = vrcp.pop %v1387
        %v1486 = vmul.f32 1.0, %v1485
        %v1487 = vrcp.pop %v1388
        %v1488 = vmul.f32 1.0, %v1487
        %v1489 = vrcp.pop %v1389
        %v1490 = vmul.f32 1.0, %v1489
        %v1491 = vrcp.pop %v1390
        %v1492 = vmul.f32 1.0, %v1491
        %v1493 = vrcp.pop %v1391
        %v1494 = vmul.f32 1.0, %v1493
        %v1495 = vrcp.pop %v1392
        %v1496 = vmul.f32 1.0, %v1495
        %v1497 = vrcp.pop %v1393
        %v1498 = vmul.f32 1.0, %v1497
        %v1499 = vrcp.pop %v1394
        %v1500 = vmul.f32 1.0, %v1499
        %v1501 = vrcp.pop %v1395
        %v1502 = vmul.f32 1.0, %v1501
        %v1503 = vrcp.pop %v1396
        %v1504 = vmul.f32 1.0, %v1503
        %v1505 = vrcp.pop %v1397
        %v1506 = vmul.f32 1.0, %v1505
        %v1507 = vrcp.pop %v1398
        %v1508 = vmul.f32 1.0, %v1507
        %v1509 = vrcp.pop %v1399
        %v1510 = vmul.f32 1.0, %v1509
        %v1511 = vrcp.pop %v1400
        %v1512 = vmul.f32 1.0, %v1511
        %v1513 = vrcp.pop %v1401
        %v1514 = vmul.f32 1.0, %v1513
        %v1515 = vrcp.pop %v1402
        %v1516 = vmul.f32 1.0, %v1515
        %v1517 = vrcp.pop %v1403
        %v1518 = vmul.f32 1.0, %v1517
        %v1519 = vrcp.pop %v1404
        %v1520 = vmul.f32 1.0, %v1519
        %v1521 = vrcp.pop %v1405
        %v1522 = vmul.f32 1.0, %v1521
        %v1523 = vrcp.pop %v1406
        %v1524 = vmul.f32 1.0, %v1523
        %v1525 = vrcp.pop %v1407
        %v1526 = vmul.f32 1.0, %v1525
        %v1527 = vrcp.pop %v1408
        %v1528 = vmul.f32 1.0, %v1527
        %v1529 = vrcp.pop %v1409
        %v1530 = vmul.f32 1.0, %v1529
        %v1531 = vrcp.pop %v1410
        %v1532 = vmul.f32 1.0, %v1531
        %v1533 = vrcp.pop %v1411
        %v1534 = vmul.f32 1.0, %v1533
        %v1535 = vrcp.pop %v1412
        %v1536 = vmul.f32 1.0, %v1535
        %v1537 = vrcp.pop %v1413
        %v1538 = vmul.f32 1.0, %v1537
        %v1539 = vrcp.pop %v1414
        %v1540 = vmul.f32 1.0, %v1539
        %v1541 = vrcp.pop %v1415
        %v1542 = vmul.f32 1.0, %v1541
        %v1543 = vrcp.pop %v1416
        %v1544 = vmul.f32 1.0, %v1543
        %v1545 = vmul.f32 %v1003, %v1418
        %v1546 = vmul.f32 %v1005, %v1420
        %v1547 = vmul.f32 %v1007, %v1422
        %v1548 = vmul.f32 %v1009, %v1424
        %v1549 = vmul.f32 %v1013, %v1426
        %v1550 = vmul.f32 %v1015, %v1428
        %v1551 = vmul.f32 %v1017, %v1430
        %v1552 = vmul.f32 %v1019, %v1432
        %v1553 = vmul.f32 %v1023, %v1434
        %v1554 = vmul.f32 %v1025, %v1436
        %v1555 = vmul.f32 %v1027, %v1438
        %v1556 = vmul.f32 %v1029, %v1440
        %v1557 = vmul.f32 %v1033, %v1442
        %v1558 = vmul.f32 %v1035, %v1444
        %v1559 = vmul.f32 %v1037, %v1446
        %v1560 = vmul.f32 %v1039, %v1448
        %v1561 = vmul.f32 %v1043, %v1450
        %v1562 = vmul.f32 %v1045, %v1452
        %v1563 = vmul.f32 %v1047, %v1454
        %v1564 = vmul.f32 %v1049, %v1456
        %v1565 = vmul.f32 %v1053, %v1458
        %v1566 = vmul.f32 %v1055, %v1460
        %v1567 = vmul.f32 %v1057, %v1462
        %v1568 = vmul.f32 %v1059, %v1464
        %v1569 = vmul.f32 %v1063, %v1466
        %v1570 = vmul.f32 %v1065, %v1468
        %v1571 = vmul.f32 %v1067, %v1470
        %v1572 = vmul.f32 %v1069, %v1472
        %v1573 = vmul.f32 %v1073, %v1474
        %v1574 = vmul.f32 %v1075, %v1476
        %v1575 = vmul.f32 %v1077, %v1478
        %v1576 = vmul.f32 %v1079, %v1480
        %v1577 = vmul.f32 %v1083, %v1482
        %v1578 = vmul.f32 %v1085, %v1484
        %v1579 = vmul.f32 %v1087, %v1486
        %v1580 = vmul.f32 %v1089, %v1488
        %v1581 = vmul.f32 %v1093, %v1490
        %v1582 = vmul.f32 %v1095, %v1492
        %v1583 = vmul.f32 %v1097, %v1494
        %v1584 = vmul.f32 %v1099, %v1496
        %v1585 = vmul.f32 %v1103, %v1498
        %v1586 = vmul.f32 %v1105, %v1500
        %v1587 = vmul.f32 %v1107, %v1502
        %v1588 = vmul.f32 %v1109, %v1504
        %v1589 = vmul.f32 %v1113, %v1506
        %v1590 = vmul.f32 %v1115, %v1508
        %v1591 = vmul.f32 %v1117, %v1510
        %v1592 = vmul.f32 %v1119, %v1512
        %v1593 = vmul.f32 %v1123, %v1514
        %v1594 = vmul.f32 %v1125, %v1516
        %v1595 = vmul.f32 %v1127, %v1518
        %v1596 = vmul.f32 %v1129, %v1520
        %v1597 = vmul.f32 %v1133, %v1522
        %v1598 = vmul.f32 %v1135, %v1524
        %v1599 = vmul.f32 %v1137, %v1526
        %v1600 = vmul.f32 %v1139, %v1528
        %v1601 = vmul.f32 %v1143, %v1530
        %v1602 = vmul.f32 %v1145, %v1532
        %v1603 = vmul.f32 %v1147, %v1534
        %v1604 = vmul.f32 %v1149, %v1536
        %v1605 = vmul.f32 %v1153, %v1538
        %v1606 = vmul.f32 %v1155, %v1540
        %v1607 = vmul.f32 %v1157, %v1542
        %v1608 = vmul.f32 %v1159, %v1544
        %v1609 = vadd.f32 %v1545, %v1546
        %v1610 = vadd.f32 %v1547, %v1548
        %v1611 = vadd.f32 %v1549, %v1550
        %v1612 = vadd.f32 %v1551, %v1552
        %v1613 = vadd.f32 %v1553, %v1554
        %v1614 = vadd.f32 %v1555, %v1556
        %v1615 = vadd.f32 %v1557, %v1558
        %v1616 = vadd.f32 %v1559, %v1560
        %v1617 = vadd.f32 %v1561, %v1562
        %v1618 = vadd.f32 %v1563, %v1564
        %v1619 = vadd.f32 %v1565, %v1566
        %v1620 = vadd.f32 %v1567, %v1568
        %v1621 = vadd.f32 %v1569, %v1570
        %v1622 = vadd.f32 %v1571, %v1572
        %v1623 = vadd.f32 %v1573, %v1574
        %v1624 = vadd.f32 %v1575, %v1576
        %v1625 = vadd.f32 %v1577, %v1578
        %v1626 = vadd.f32 %v1579, %v1580
        %v1627 = vadd.f32 %v1581, %v1582
        %v1628 = vadd.f32 %v1583, %v1584
        %v1629 = vadd.f32 %v1585, %v1586
        %v1630 = vadd.f32 %v1587, %v1588
        %v1631 = vadd.f32 %v1589, %v1590
        %v1632 = vadd.f32 %v1591, %v1592
        %v1633 = vadd.f32 %v1593, %v1594
        %v1634 = vadd.f32 %v1595, %v1596
        %v1635 = vadd.f32 %v1597, %v1598
        %v1636 = vadd.f32 %v1599, %v1600
        %v1637 = vadd.f32 %v1601, %v1602
        %v1638 = vadd.f32 %v1603, %v1604
        %v1639 = vadd.f32 %v1605, %v1606
        %v1640 = vadd.f32 %v1607, %v1608
        %v1641 = vld [vmem:[#allocation2] sm:$0xff]
        %v1642 = vld [vmem:[#allocation2 + $0x8] sm:$0xff]
        %v1643 = vld [vmem:[#allocation2 + $0x10] sm:$0xff]
        %v1644 = vld [vmem:[#allocation2 + $0x18] sm:$0xff]
        %v1645 = vld [vmem:[#allocation2 + $0x20] sm:$0xff]
        %v1646 = vld [vmem:[#allocation2 + $0x28] sm:$0xff]
        %v1647 = vld [vmem:[#allocation2 + $0x30] sm:$0xff]
        %v1648 = vld [vmem:[#allocation2 + $0x38] sm:$0xff]
        %v1649 = vld [vmem:[#allocation2 + $0x40] sm:$0xff]
        %v1650 = vld [vmem:[#allocation2 + $0x48] sm:$0xff]
        %v1651 = vld [vmem:[#allocation2 + $0x50] sm:$0xff]
        %v1652 = vld [vmem:[#allocation2 + $0x58] sm:$0xff]
        %v1653 = vld [vmem:[#allocation2 + $0x60] sm:$0xff]
        %v1654 = vld [vmem:[#allocation2 + $0x68] sm:$0xff]
        %v1655 = vld [vmem:[#allocation2 + $0x70] sm:$0xff]
        %v1656 = vld [vmem:[#allocation2 + $0x78] sm:$0xff]
        %v1657 = vld [vmem:[#allocation2 + $0x80] sm:$0xff]
        %v1658 = vld [vmem:[#allocation2 + $0x88] sm:$0xff]
        %v1659 = vld [vmem:[#allocation2 + $0x90] sm:$0xff]
        %v1660 = vld [vmem:[#allocation2 + $0x98] sm:$0xff]
        %v1661 = vld [vmem:[#allocation2 + $0xa0] sm:$0xff]
        %v1662 = vld [vmem:[#allocation2 + $0xa8] sm:$0xff]
        %v1663 = vld [vmem:[#allocation2 + $0xb0] sm:$0xff]
        %v1664 = vld [vmem:[#allocation2 + $0xb8] sm:$0xff]
        %v1665 = vld [vmem:[#allocation2 + $0xc0] sm:$0xff]
        %v1666 = vld [vmem:[#allocation2 + $0xc8] sm:$0xff]
        %v1667 = vld [vmem:[#allocation2 + $0xd0] sm:$0xff]
        %v1668 = vld [vmem:[#allocation2 + $0xd8] sm:$0xff]
        %v1669 = vld [vmem:[#allocation2 + $0xe0] sm:$0xff]
        %v1670 = vld [vmem:[#allocation2 + $0xe8] sm:$0xff]
        %v1671 = vld [vmem:[#allocation2 + $0xf0] sm:$0xff]
        %v1672 = vld [vmem:[#allocation2 + $0xf8] sm:$0xff]
        %v1673 = vadd.f32 %v1641, %v1609
        %v1674 = vadd.f32 %v1642, %v1610
        %v1675 = vadd.f32 %v1643, %v1611
        %v1676 = vadd.f32 %v1644, %v1612
        %v1677 = vadd.f32 %v1645, %v1613
        %v1678 = vadd.f32 %v1646, %v1614
        %v1679 = vadd.f32 %v1647, %v1615
        %v1680 = vadd.f32 %v1648, %v1616
        %v1681 = vadd.f32 %v1649, %v1617
        %v1682 = vadd.f32 %v1650, %v1618
        %v1683 = vadd.f32 %v1651, %v1619
        %v1684 = vadd.f32 %v1652, %v1620
        %v1685 = vadd.f32 %v1653, %v1621
        %v1686 = vadd.f32 %v1654, %v1622
        %v1687 = vadd.f32 %v1655, %v1623
        %v1688 = vadd.f32 %v1656, %v1624
        %v1689 = vadd.f32 %v1657, %v1625
        %v1690 = vadd.f32 %v1658, %v1626
        %v1691 = vadd.f32 %v1659, %v1627
        %v1692 = vadd.f32 %v1660, %v1628
        %v1693 = vadd.f32 %v1661, %v1629
        %v1694 = vadd.f32 %v1662, %v1630
        %v1695 = vadd.f32 %v1663, %v1631
        %v1696 = vadd.f32 %v1664, %v1632
        %v1697 = vadd.f32 %v1665, %v1633
        %v1698 = vadd.f32 %v1666, %v1634
        %v1699 = vadd.f32 %v1667, %v1635
        %v1700 = vadd.f32 %v1668, %v1636
        %v1701 = vadd.f32 %v1669, %v1637
        %v1702 = vadd.f32 %v1670, %v1638
        %v1703 = vadd.f32 %v1671, %v1639
        %v1704 = vadd.f32 %v1672, %v1640
        %1705 = vst [vmem:[#allocation2] sm:$0xff] %v1673
        %1706 = vst [vmem:[#allocation2 + $0x8] sm:$0xff] %v1674
        %1707 = vst [vmem:[#allocation2 + $0x10] sm:$0xff] %v1675
        %1708 = vst [vmem:[#allocation2 + $0x18] sm:$0xff] %v1676
        %1709 = vst [vmem:[#allocation2 + $0x20] sm:$0xff] %v1677
        %1710 = vst [vmem:[#allocation2 + $0x28] sm:$0xff] %v1678
        %1711 = vst [vmem:[#allocation2 + $0x30] sm:$0xff] %v1679
        %1712 = vst [vmem:[#allocation2 + $0x38] sm:$0xff] %v1680
        %1713 = vst [vmem:[#allocation2 + $0x40] sm:$0xff] %v1681
        %1714 = vst [vmem:[#allocation2 + $0x48] sm:$0xff] %v1682
        %1715 = vst [vmem:[#allocation2 + $0x50] sm:$0xff] %v1683
        %1716 = vst [vmem:[#allocation2 + $0x58] sm:$0xff] %v1684
        %1717 = vst [vmem:[#allocation2 + $0x60] sm:$0xff] %v1685
        %1718 = vst [vmem:[#allocation2 + $0x68] sm:$0xff] %v1686
        %1719 = vst [vmem:[#allocation2 + $0x70] sm:$0xff] %v1687
        %1720 = vst [vmem:[#allocation2 + $0x78] sm:$0xff] %v1688
        %1721 = vst [vmem:[#allocation2 + $0x80] sm:$0xff] %v1689
        %1722 = vst [vmem:[#allocation2 + $0x88] sm:$0xff] %v1690
        %1723 = vst [vmem:[#allocation2 + $0x90] sm:$0xff] %v1691
        %1724 = vst [vmem:[#allocation2 + $0x98] sm:$0xff] %v1692
        %1725 = vst [vmem:[#allocation2 + $0xa0] sm:$0xff] %v1693
        %1726 = vst [vmem:[#allocation2 + $0xa8] sm:$0xff] %v1694
        %1727 = vst [vmem:[#allocation2 + $0xb0] sm:$0xff] %v1695
        %1728 = vst [vmem:[#allocation2 + $0xb8] sm:$0xff] %v1696
        %1729 = vst [vmem:[#allocation2 + $0xc0] sm:$0xff] %v1697
        %1730 = vst [vmem:[#allocation2 + $0xc8] sm:$0xff] %v1698
        %1731 = vst [vmem:[#allocation2 + $0xd0] sm:$0xff] %v1699
        %1732 = vst [vmem:[#allocation2 + $0xd8] sm:$0xff] %v1700
        %1733 = vst [vmem:[#allocation2 + $0xe0] sm:$0xff] %v1701
        %1734 = vst [vmem:[#allocation2 + $0xe8] sm:$0xff] %v1702
        %1735 = vst [vmem:[#allocation2 + $0xf0] sm:$0xff] %v1703
        %1736 = vst [vmem:[#allocation2 + $0xf8] sm:$0xff] %v1704
        %s1737 = scalar_lea.vmem %s1, 128
        %v1738 = vld [vmem:[%s1737] sm:$0xf]
        %v1739 = vld [vmem:[%s1737 + $0x4] sm:$0xf]
        %v1740 = vld [vmem:[%s1737 + $0x8] sm:$0xf]
        %v1741 = vld [vmem:[%s1737 + $0xc] sm:$0xf]
        %v1742 = vld [vmem:[%s1737 + $0x10] sm:$0xf]
        %v1743 = vld [vmem:[%s1737 + $0x14] sm:$0xf]
        %v1744 = vld [vmem:[%s1737 + $0x18] sm:$0xf]
        %v1745 = vld [vmem:[%s1737 + $0x1c] sm:$0xf]
        %v1746 = vld [vmem:[%s1737 + $0x20] sm:$0xf]
        %v1747 = vld [vmem:[%s1737 + $0x24] sm:$0xf]
        %v1748 = vld [vmem:[%s1737 + $0x28] sm:$0xf]
        %v1749 = vld [vmem:[%s1737 + $0x2c] sm:$0xf]
        %v1750 = vld [vmem:[%s1737 + $0x30] sm:$0xf]
        %v1751 = vld [vmem:[%s1737 + $0x34] sm:$0xf]
        %v1752 = vld [vmem:[%s1737 + $0x38] sm:$0xf]
        %v1753 = vld [vmem:[%s1737 + $0x3c] sm:$0xf]
        %v1754 = vld [vmem:[%s1737 + $0x40] sm:$0xf]
        %v1755 = vld [vmem:[%s1737 + $0x44] sm:$0xf]
        %v1756 = vld [vmem:[%s1737 + $0x48] sm:$0xf]
        %v1757 = vld [vmem:[%s1737 + $0x4c] sm:$0xf]
        %v1758 = vld [vmem:[%s1737 + $0x50] sm:$0xf]
        %v1759 = vld [vmem:[%s1737 + $0x54] sm:$0xf]
        %v1760 = vld [vmem:[%s1737 + $0x58] sm:$0xf]
        %v1761 = vld [vmem:[%s1737 + $0x5c] sm:$0xf]
        %v1762 = vld [vmem:[%s1737 + $0x60] sm:$0xf]
        %v1763 = vld [vmem:[%s1737 + $0x64] sm:$0xf]
        %v1764 = vld [vmem:[%s1737 + $0x68] sm:$0xf]
        %v1765 = vld [vmem:[%s1737 + $0x6c] sm:$0xf]
        %v1766 = vld [vmem:[%s1737 + $0x70] sm:$0xf]
        %v1767 = vld [vmem:[%s1737 + $0x74] sm:$0xf]
        %v1768 = vld [vmem:[%s1737 + $0x78] sm:$0xf]
        %v1769 = vld [vmem:[%s1737 + $0x7c] sm:$0xf]
        %s1770 = scalar_lea.vmem %s2, 256
        %v1771 = vld [vmem:[%s1770] sm:$0xff]
        %v1772 = vld [vmem:[%s1770 + $0x8] sm:$0xff]
        %v1773 = vld [vmem:[%s1770 + $0x10] sm:$0xff]
        %v1774 = vld [vmem:[%s1770 + $0x18] sm:$0xff]
        %v1775 = vld [vmem:[%s1770 + $0x20] sm:$0xff]
        %v1776 = vld [vmem:[%s1770 + $0x28] sm:$0xff]
        %v1777 = vld [vmem:[%s1770 + $0x30] sm:$0xff]
        %v1778 = vld [vmem:[%s1770 + $0x38] sm:$0xff]
        %v1779 = vld [vmem:[%s1770 + $0x40] sm:$0xff]
        %v1780 = vld [vmem:[%s1770 + $0x48] sm:$0xff]
        %v1781 = vld [vmem:[%s1770 + $0x50] sm:$0xff]
        %v1782 = vld [vmem:[%s1770 + $0x58] sm:$0xff]
        %v1783 = vld [vmem:[%s1770 + $0x60] sm:$0xff]
        %v1784 = vld [vmem:[%s1770 + $0x68] sm:$0xff]
        %v1785 = vld [vmem:[%s1770 + $0x70] sm:$0xff]
        %v1786 = vld [vmem:[%s1770 + $0x78] sm:$0xff]
        %v1787 = vld [vmem:[%s1770 + $0x80] sm:$0xff]
        %v1788 = vld [vmem:[%s1770 + $0x88] sm:$0xff]
        %v1789 = vld [vmem:[%s1770 + $0x90] sm:$0xff]
        %v1790 = vld [vmem:[%s1770 + $0x98] sm:$0xff]
        %v1791 = vld [vmem:[%s1770 + $0xa0] sm:$0xff]
        %v1792 = vld [vmem:[%s1770 + $0xa8] sm:$0xff]
        %v1793 = vld [vmem:[%s1770 + $0xb0] sm:$0xff]
        %v1794 = vld [vmem:[%s1770 + $0xb8] sm:$0xff]
        %v1795 = vld [vmem:[%s1770 + $0xc0] sm:$0xff]
        %v1796 = vld [vmem:[%s1770 + $0xc8] sm:$0xff]
        %v1797 = vld [vmem:[%s1770 + $0xd0] sm:$0xff]
        %v1798 = vld [vmem:[%s1770 + $0xd8] sm:$0xff]
        %v1799 = vld [vmem:[%s1770 + $0xe0] sm:$0xff]
        %v1800 = vld [vmem:[%s1770 + $0xe8] sm:$0xff]
        %v1801 = vld [vmem:[%s1770 + $0xf0] sm:$0xff]
        %v1802 = vld [vmem:[%s1770 + $0xf8] sm:$0xff]
        %1804 = vset.pattern.permute.xlu0 0
        %1805 = vperm.xlu0 %1804, %v1771
        %v1806 = vpop.permute.xlu0 %1805
        %1809 = vset.pattern.permute.xlu0 0
        %1810 = vperm.xlu0 %1809, %v1772
        %v1811 = vpop.permute.xlu0 %1810
        %1814 = vset.pattern.permute.xlu0 0
        %1815 = vperm.xlu0 %1814, %v1773
        %v1816 = vpop.permute.xlu0 %1815
        %1819 = vset.pattern.permute.xlu0 0
        %1820 = vperm.xlu0 %1819, %v1774
        %v1821 = vpop.permute.xlu0 %1820
        %1824 = vset.pattern.permute.xlu0 0
        %1825 = vperm.xlu0 %1824, %v1775
        %v1826 = vpop.permute.xlu0 %1825
        %1829 = vset.pattern.permute.xlu0 0
        %1830 = vperm.xlu0 %1829, %v1776
        %v1831 = vpop.permute.xlu0 %1830
        %1834 = vset.pattern.permute.xlu0 0
        %1835 = vperm.xlu0 %1834, %v1777
        %v1836 = vpop.permute.xlu0 %1835
        %1839 = vset.pattern.permute.xlu0 0
        %1840 = vperm.xlu0 %1839, %v1778
        %v1841 = vpop.permute.xlu0 %1840
        %1844 = vset.pattern.permute.xlu0 0
        %1845 = vperm.xlu0 %1844, %v1779
        %v1846 = vpop.permute.xlu0 %1845
        %1849 = vset.pattern.permute.xlu0 0
        %1850 = vperm.xlu0 %1849, %v1780
        %v1851 = vpop.permute.xlu0 %1850
        %1854 = vset.pattern.permute.xlu0 0
        %1855 = vperm.xlu0 %1854, %v1781
        %v1856 = vpop.permute.xlu0 %1855
        %1859 = vset.pattern.permute.xlu0 0
        %1860 = vperm.xlu0 %1859, %v1782
        %v1861 = vpop.permute.xlu0 %1860
        %1864 = vset.pattern.permute.xlu0 0
        %1865 = vperm.xlu0 %1864, %v1783
        %v1866 = vpop.permute.xlu0 %1865
        %1869 = vset.pattern.permute.xlu0 0
        %1870 = vperm.xlu0 %1869, %v1784
        %v1871 = vpop.permute.xlu0 %1870
        %1874 = vset.pattern.permute.xlu0 0
        %1875 = vperm.xlu0 %1874, %v1785
        %v1876 = vpop.permute.xlu0 %1875
        %1879 = vset.pattern.permute.xlu0 0
        %1880 = vperm.xlu0 %1879, %v1786
        %v1881 = vpop.permute.xlu0 %1880
        %1884 = vset.pattern.permute.xlu0 0
        %1885 = vperm.xlu0 %1884, %v1787
        %v1886 = vpop.permute.xlu0 %1885
        %1889 = vset.pattern.permute.xlu0 0
        %1890 = vperm.xlu0 %1889, %v1788
        %v1891 = vpop.permute.xlu0 %1890
        %1894 = vset.pattern.permute.xlu0 0
        %1895 = vperm.xlu0 %1894, %v1789
        %v1896 = vpop.permute.xlu0 %1895
        %1899 = vset.pattern.permute.xlu0 0
        %1900 = vperm.xlu0 %1899, %v1790
        %v1901 = vpop.permute.xlu0 %1900
        %1904 = vset.pattern.permute.xlu0 0
        %1905 = vperm.xlu0 %1904, %v1791
        %v1906 = vpop.permute.xlu0 %1905
        %1909 = vset.pattern.permute.xlu0 0
        %1910 = vperm.xlu0 %1909, %v1792
        %v1911 = vpop.permute.xlu0 %1910
        %1914 = vset.pattern.permute.xlu0 0
        %1915 = vperm.xlu0 %1914, %v1793
        %v1916 = vpop.permute.xlu0 %1915
        %1919 = vset.pattern.permute.xlu0 0
        %1920 = vperm.xlu0 %1919, %v1794
        %v1921 = vpop.permute.xlu0 %1920
        %1924 = vset.pattern.permute.xlu0 0
        %1925 = vperm.xlu0 %1924, %v1795
        %v1926 = vpop.permute.xlu0 %1925
        %1929 = vset.pattern.permute.xlu0 0
        %1930 = vperm.xlu0 %1929, %v1796
        %v1931 = vpop.permute.xlu0 %1930
        %1934 = vset.pattern.permute.xlu0 0
        %1935 = vperm.xlu0 %1934, %v1797
        %v1936 = vpop.permute.xlu0 %1935
        %1939 = vset.pattern.permute.xlu0 0
        %1940 = vperm.xlu0 %1939, %v1798
        %v1941 = vpop.permute.xlu0 %1940
        %1944 = vset.pattern.permute.xlu0 0
        %1945 = vperm.xlu0 %1944, %v1799
        %v1946 = vpop.permute.xlu0 %1945
        %1949 = vset.pattern.permute.xlu0 0
        %1950 = vperm.xlu0 %1949, %v1800
        %v1951 = vpop.permute.xlu0 %1950
        %1954 = vset.pattern.permute.xlu0 0
        %1955 = vperm.xlu0 %1954, %v1801
        %v1956 = vpop.permute.xlu0 %1955
        %1959 = vset.pattern.permute.xlu0 0
        %1960 = vperm.xlu0 %1959, %v1802
        %v1961 = vpop.permute.xlu0 %1960
        %v1995 = vunpack.c.l.b16 %v1738
        %v1996 = vunpack.c.l.b16 %v1739
        %v1997 = vunpack.c.l.b16 %v1740
        %v1998 = vunpack.c.l.b16 %v1741
        %v1999 = vunpack.c.l.b16 %v1742
        %v2000 = vunpack.c.l.b16 %v1743
        %v2001 = vunpack.c.l.b16 %v1744
        %v2002 = vunpack.c.l.b16 %v1745
        %v2003 = vunpack.c.l.b16 %v1746
        %v2004 = vunpack.c.l.b16 %v1747
        %v2005 = vunpack.c.l.b16 %v1748
        %v2006 = vunpack.c.l.b16 %v1749
        %v2007 = vunpack.c.l.b16 %v1750
        %v2008 = vunpack.c.l.b16 %v1751
        %v2009 = vunpack.c.l.b16 %v1752
        %v2010 = vunpack.c.l.b16 %v1753
        %v2011 = vunpack.c.l.b16 %v1754
        %v2012 = vunpack.c.l.b16 %v1755
        %v2013 = vunpack.c.l.b16 %v1756
        %v2014 = vunpack.c.l.b16 %v1757
        %v2015 = vunpack.c.l.b16 %v1758
        %v2016 = vunpack.c.l.b16 %v1759
        %v2017 = vunpack.c.l.b16 %v1760
        %v2018 = vunpack.c.l.b16 %v1761
        %v2019 = vunpack.c.l.b16 %v1762
        %v2020 = vunpack.c.l.b16 %v1763
        %v2021 = vunpack.c.l.b16 %v1764
        %v2022 = vunpack.c.l.b16 %v1765
        %v2023 = vunpack.c.l.b16 %v1766
        %v2024 = vunpack.c.l.b16 %v1767
        %v2025 = vunpack.c.l.b16 %v1768
        %v2026 = vunpack.c.l.b16 %v1769
        %v2027 = vpack.c.b16 %v1996, %v1995
        %v2028 = vpack.c.b16 %v1998, %v1997
        %v2029 = vpack.c.b16 %v2000, %v1999
        %v2030 = vpack.c.b16 %v2002, %v2001
        %v2031 = vpack.c.b16 %v2004, %v2003
        %v2032 = vpack.c.b16 %v2006, %v2005
        %v2033 = vpack.c.b16 %v2008, %v2007
        %v2034 = vpack.c.b16 %v2010, %v2009
        %v2035 = vpack.c.b16 %v2012, %v2011
        %v2036 = vpack.c.b16 %v2014, %v2013
        %v2037 = vpack.c.b16 %v2016, %v2015
        %v2038 = vpack.c.b16 %v2018, %v2017
        %v2039 = vpack.c.b16 %v2020, %v2019
        %v2040 = vpack.c.b16 %v2022, %v2021
        %v2041 = vpack.c.b16 %v2024, %v2023
        %v2042 = vpack.c.b16 %v2026, %v2025
        %v2044 = vsel %vm909, %v2027, 0
        %v2047 = vsel %vm909, %v2028, 0
        %v2050 = vsel %vm909, %v2029, 0
        %v2053 = vsel %vm909, %v2030, 0
        %v2056 = vsel %vm909, %v2031, 0
        %v2059 = vsel %vm909, %v2032, 0
        %v2062 = vsel %vm909, %v2033, 0
        %v2065 = vsel %vm909, %v2034, 0
        %v2068 = vsel %vm909, %v2035, 0
        %v2071 = vsel %vm909, %v2036, 0
        %v2074 = vsel %vm909, %v2037, 0
        %v2077 = vsel %vm909, %v2038, 0
        %v2080 = vsel %vm909, %v2039, 0
        %v2083 = vsel %vm909, %v2040, 0
        %v2086 = vsel %vm909, %v2041, 0
        %v2089 = vsel %vm909, %v2042, 0
        %2091 = vmatprep.subr.bf16.mxu0 %v966
        %2092 = vmatpush1.bf16.msra.mxu0 %v963
        %2093 = vmatprep.subr.bf16.mxu0 0
        %2094 = vmatpush1.bf16.msra.mxu0 0
        %2095 = vmatprep.subr.bf16.mxu0 0
        %2096 = vmatpush1.bf16.msra.mxu0 0
        %2097 = vmatprep.subr.bf16.mxu0 0
        %2098 = vmatpush1.bf16.msra.mxu0 0
        %2099 = vmatprep.subr.bf16.mxu0 0
        %2100 = vmatpush1.bf16.msra.mxu0 0
        %2101 = vmatprep.subr.bf16.mxu0 0
        %2102 = vmatpush1.bf16.msra.mxu0 0
        %2103 = vmatprep.subr.bf16.mxu0 0
        %2104 = vmatpush1.bf16.msra.mxu0 0
        %2105 = vmatprep.subr.bf16.mxu0 0
        %2106 = vmatpush1.bf16.msra.mxu0 0
        %2107 = vmatprep.subr.bf16.mxu0 0
        %2108 = vmatpush1.bf16.msra.mxu0 0
        %2109 = vmatprep.subr.bf16.mxu0 0
        %2110 = vmatpush1.bf16.msra.mxu0 0
        %2111 = vmatprep.subr.bf16.mxu0 0
        %2112 = vmatpush1.bf16.msra.mxu0 0
        %2113 = vmatprep.subr.bf16.mxu0 0
        %2114 = vmatpush1.bf16.msra.mxu0 0
        %2115 = vmatprep.subr.bf16.mxu0 0
        %2116 = vmatpush1.bf16.msra.mxu0 0
        %2117 = vmatprep.subr.bf16.mxu0 0
        %2118 = vmatpush1.bf16.msra.mxu0 0
        %2119 = vmatprep.subr.bf16.mxu0 0
        %2120 = vmatpush1.bf16.msra.mxu0 0
        %2121 = vmatprep.subr.bf16.mxu0 0
        %2122 = vmatpush1.bf16.msra.mxu0 0
        %2123 = vmatprep.mubr.bf16.mxu0 0
        %2124 = vmatmul.mubr.bf16.gmra.mrb[0].mxu0 %v2044
        %v2125 = vpop.f32.mrb[0].mxu0
        %v2126 = vadd.f32 %v1806, %v2125
        %v2127 = vpop.f32.mrb[0].mxu0
        %v2128 = vadd.f32 %v1806, %v2127
        %v2129 = vpop.f32.mrb[0].mxu0
        %v2130 = vadd.f32 %v1811, %v2129
        %v2131 = vpop.f32.mrb[0].mxu0
        %v2132 = vadd.f32 %v1811, %v2131
        %2133 = vmatprep.mubr.bf16.mxu0 0
        %2134 = vmatmul.mubr.bf16.gmra.mrb[0].mxu0 %v2047
        %v2135 = vpop.f32.mrb[0].mxu0
        %v2136 = vadd.f32 %v1816, %v2135
        %v2137 = vpop.f32.mrb[0].mxu0
        %v2138 = vadd.f32 %v1816, %v2137
        %v2139 = vpop.f32.mrb[0].mxu0
        %v2140 = vadd.f32 %v1821, %v2139
        %v2141 = vpop.f32.mrb[0].mxu0
        %v2142 = vadd.f32 %v1821, %v2141
        %2143 = vmatprep.mubr.bf16.mxu0 0
        %2144 = vmatmul.mubr.bf16.gmra.mrb[0].mxu0 %v2050
        %v2145 = vpop.f32.mrb[0].mxu0
        %v2146 = vadd.f32 %v1826, %v2145
        %v2147 = vpop.f32.mrb[0].mxu0
        %v2148 = vadd.f32 %v1826, %v2147
        %v2149 = vpop.f32.mrb[0].mxu0
        %v2150 = vadd.f32 %v1831, %v2149
        %v2151 = vpop.f32.mrb[0].mxu0
        %v2152 = vadd.f32 %v1831, %v2151
        %2153 = vmatprep.mubr.bf16.mxu0 0
        %2154 = vmatmul.mubr.bf16.gmra.mrb[0].mxu0 %v2053
        %v2155 = vpop.f32.mrb[0].mxu0
        %v2156 = vadd.f32 %v1836, %v2155
        %v2157 = vpop.f32.mrb[0].mxu0
        %v2158 = vadd.f32 %v1836, %v2157
        %v2159 = vpop.f32.mrb[0].mxu0
        %v2160 = vadd.f32 %v1841, %v2159
        %v2161 = vpop.f32.mrb[0].mxu0
        %v2162 = vadd.f32 %v1841, %v2161
        %2163 = vmatprep.mubr.bf16.mxu0 0
        %2164 = vmatmul.mubr.bf16.gmra.mrb[0].mxu0 %v2056
        %v2165 = vpop.f32.mrb[0].mxu0
        %v2166 = vadd.f32 %v1846, %v2165
        %v2167 = vpop.f32.mrb[0].mxu0
        %v2168 = vadd.f32 %v1846, %v2167
        %v2169 = vpop.f32.mrb[0].mxu0
        %v2170 = vadd.f32 %v1851, %v2169
        %v2171 = vpop.f32.mrb[0].mxu0
        %v2172 = vadd.f32 %v1851, %v2171
        %2173 = vmatprep.mubr.bf16.mxu0 0
        %2174 = vmatmul.mubr.bf16.gmra.mrb[0].mxu0 %v2059
        %v2175 = vpop.f32.mrb[0].mxu0
        %v2176 = vadd.f32 %v1856, %v2175
        %v2177 = vpop.f32.mrb[0].mxu0
        %v2178 = vadd.f32 %v1856, %v2177
        %v2179 = vpop.f32.mrb[0].mxu0
        %v2180 = vadd.f32 %v1861, %v2179
        %v2181 = vpop.f32.mrb[0].mxu0
        %v2182 = vadd.f32 %v1861, %v2181
        %2183 = vmatprep.mubr.bf16.mxu0 0
        %2184 = vmatmul.mubr.bf16.gmra.mrb[0].mxu0 %v2062
        %v2185 = vpop.f32.mrb[0].mxu0
        %v2186 = vadd.f32 %v1866, %v2185
        %v2187 = vpop.f32.mrb[0].mxu0
        %v2188 = vadd.f32 %v1866, %v2187
        %v2189 = vpop.f32.mrb[0].mxu0
        %v2190 = vadd.f32 %v1871, %v2189
        %v2191 = vpop.f32.mrb[0].mxu0
        %v2192 = vadd.f32 %v1871, %v2191
        %2193 = vmatprep.mubr.bf16.mxu0 0
        %2194 = vmatmul.mubr.bf16.gmra.mrb[0].mxu0 %v2065
        %v2195 = vpop.f32.mrb[0].mxu0
        %v2196 = vadd.f32 %v1876, %v2195
        %v2197 = vpop.f32.mrb[0].mxu0
        %v2198 = vadd.f32 %v1876, %v2197
        %v2199 = vpop.f32.mrb[0].mxu0
        %v2200 = vadd.f32 %v1881, %v2199
        %v2201 = vpop.f32.mrb[0].mxu0
        %v2202 = vadd.f32 %v1881, %v2201
        %2203 = vmatprep.mubr.bf16.mxu0 0
        %2204 = vmatmul.mubr.bf16.gmra.mrb[0].mxu0 %v2068
        %v2205 = vpop.f32.mrb[0].mxu0
        %v2206 = vadd.f32 %v1886, %v2205
        %v2207 = vpop.f32.mrb[0].mxu0
        %v2208 = vadd.f32 %v1886, %v2207
        %v2209 = vpop.f32.mrb[0].mxu0
        %v2210 = vadd.f32 %v1891, %v2209
        %v2211 = vpop.f32.mrb[0].mxu0
        %v2212 = vadd.f32 %v1891, %v2211
        %2213 = vmatprep.mubr.bf16.mxu0 0
        %2214 = vmatmul.mubr.bf16.gmra.mrb[0].mxu0 %v2071
        %v2215 = vpop.f32.mrb[0].mxu0
        %v2216 = vadd.f32 %v1896, %v2215
        %v2217 = vpop.f32.mrb[0].mxu0
        %v2218 = vadd.f32 %v1896, %v2217
        %v2219 = vpop.f32.mrb[0].mxu0
        %v2220 = vadd.f32 %v1901, %v2219
        %v2221 = vpop.f32.mrb[0].mxu0
        %v2222 = vadd.f32 %v1901, %v2221
        %2223 = vmatprep.mubr.bf16.mxu0 0
        %2224 = vmatmul.mubr.bf16.gmra.mrb[0].mxu0 %v2074
        %v2225 = vpop.f32.mrb[0].mxu0
        %v2226 = vadd.f32 %v1906, %v2225
        %v2227 = vpop.f32.mrb[0].mxu0
        %v2228 = vadd.f32 %v1906, %v2227
        %v2229 = vpop.f32.mrb[0].mxu0
        %v2230 = vadd.f32 %v1911, %v2229
        %v2231 = vpop.f32.mrb[0].mxu0
        %v2232 = vadd.f32 %v1911, %v2231
        %2233 = vmatprep.mubr.bf16.mxu0 0
        %2234 = vmatmul.mubr.bf16.gmra.mrb[0].mxu0 %v2077
        %v2235 = vpop.f32.mrb[0].mxu0
        %v2236 = vadd.f32 %v1916, %v2235
        %v2237 = vpop.f32.mrb[0].mxu0
        %v2238 = vadd.f32 %v1916, %v2237
        %v2239 = vpop.f32.mrb[0].mxu0
        %v2240 = vadd.f32 %v1921, %v2239
        %v2241 = vpop.f32.mrb[0].mxu0
        %v2242 = vadd.f32 %v1921, %v2241
        %2243 = vmatprep.mubr.bf16.mxu0 0
        %2244 = vmatmul.mubr.bf16.gmra.mrb[0].mxu0 %v2080
        %v2245 = vpop.f32.mrb[0].mxu0
        %v2246 = vadd.f32 %v1926, %v2245
        %v2247 = vpop.f32.mrb[0].mxu0
        %v2248 = vadd.f32 %v1926, %v2247
        %v2249 = vpop.f32.mrb[0].mxu0
        %v2250 = vadd.f32 %v1931, %v2249
        %v2251 = vpop.f32.mrb[0].mxu0
        %v2252 = vadd.f32 %v1931, %v2251
        %2253 = vmatprep.mubr.bf16.mxu0 0
        %2254 = vmatmul.mubr.bf16.gmra.mrb[0].mxu0 %v2083
        %v2255 = vpop.f32.mrb[0].mxu0
        %v2256 = vadd.f32 %v1936, %v2255
        %v2257 = vpop.f32.mrb[0].mxu0
        %v2258 = vadd.f32 %v1936, %v2257
        %v2259 = vpop.f32.mrb[0].mxu0
        %v2260 = vadd.f32 %v1941, %v2259
        %v2261 = vpop.f32.mrb[0].mxu0
        %v2262 = vadd.f32 %v1941, %v2261
        %2263 = vmatprep.mubr.bf16.mxu0 0
        %2264 = vmatmul.mubr.bf16.gmra.mrb[0].mxu0 %v2086
        %v2265 = vpop.f32.mrb[0].mxu0
        %v2266 = vadd.f32 %v1946, %v2265
        %v2267 = vpop.f32.mrb[0].mxu0
        %v2268 = vadd.f32 %v1946, %v2267
        %v2269 = vpop.f32.mrb[0].mxu0
        %v2270 = vadd.f32 %v1951, %v2269
        %v2271 = vpop.f32.mrb[0].mxu0
        %v2272 = vadd.f32 %v1951, %v2271
        %2273 = vmatprep.mubr.bf16.mxu0 0
        %2274 = vmatmul.mubr.bf16.gmra.mrb[0].mxu0 %v2089
        %v2275 = vpop.f32.mrb[0].mxu0
        %v2276 = vadd.f32 %v1956, %v2275
        %v2277 = vpop.f32.mrb[0].mxu0
        %v2278 = vadd.f32 %v1956, %v2277
        %v2279 = vpop.f32.mrb[0].mxu0
        %v2280 = vadd.f32 %v1961, %v2279
        %v2281 = vpop.f32.mrb[0].mxu0
        %v2282 = vadd.f32 %v1961, %v2281
        %2283 = vdwg.mxu0
        %v2284 = vxor.u32 %v2126, 2147483648
        %v2285 = vxor.u32 %v2128, 2147483648
        %v2286 = vxor.u32 %v2130, 2147483648
        %v2287 = vxor.u32 %v2132, 2147483648
        %v2288 = vxor.u32 %v2136, 2147483648
        %v2289 = vxor.u32 %v2138, 2147483648
        %v2290 = vxor.u32 %v2140, 2147483648
        %v2291 = vxor.u32 %v2142, 2147483648
        %v2292 = vxor.u32 %v2146, 2147483648
        %v2293 = vxor.u32 %v2148, 2147483648
        %v2294 = vxor.u32 %v2150, 2147483648
        %v2295 = vxor.u32 %v2152, 2147483648
        %v2296 = vxor.u32 %v2156, 2147483648
        %v2297 = vxor.u32 %v2158, 2147483648
        %v2298 = vxor.u32 %v2160, 2147483648
        %v2299 = vxor.u32 %v2162, 2147483648
        %v2300 = vxor.u32 %v2166, 2147483648
        %v2301 = vxor.u32 %v2168, 2147483648
        %v2302 = vxor.u32 %v2170, 2147483648
        %v2303 = vxor.u32 %v2172, 2147483648
        %v2304 = vxor.u32 %v2176, 2147483648
        %v2305 = vxor.u32 %v2178, 2147483648
        %v2306 = vxor.u32 %v2180, 2147483648
        %v2307 = vxor.u32 %v2182, 2147483648
        %v2308 = vxor.u32 %v2186, 2147483648
        %v2309 = vxor.u32 %v2188, 2147483648
        %v2310 = vxor.u32 %v2190, 2147483648
        %v2311 = vxor.u32 %v2192, 2147483648
        %v2312 = vxor.u32 %v2196, 2147483648
        %v2313 = vxor.u32 %v2198, 2147483648
        %v2314 = vxor.u32 %v2200, 2147483648
        %v2315 = vxor.u32 %v2202, 2147483648
        %v2316 = vxor.u32 %v2206, 2147483648
        %v2317 = vxor.u32 %v2208, 2147483648
        %v2318 = vxor.u32 %v2210, 2147483648
        %v2319 = vxor.u32 %v2212, 2147483648
        %v2320 = vxor.u32 %v2216, 2147483648
        %v2321 = vxor.u32 %v2218, 2147483648
        %v2322 = vxor.u32 %v2220, 2147483648
        %v2323 = vxor.u32 %v2222, 2147483648
        %v2324 = vxor.u32 %v2226, 2147483648
        %v2325 = vxor.u32 %v2228, 2147483648
        %v2326 = vxor.u32 %v2230, 2147483648
        %v2327 = vxor.u32 %v2232, 2147483648
        %v2328 = vxor.u32 %v2236, 2147483648
        %v2329 = vxor.u32 %v2238, 2147483648
        %v2330 = vxor.u32 %v2240, 2147483648
        %v2331 = vxor.u32 %v2242, 2147483648
        %v2332 = vxor.u32 %v2246, 2147483648
        %v2333 = vxor.u32 %v2248, 2147483648
        %v2334 = vxor.u32 %v2250, 2147483648
        %v2335 = vxor.u32 %v2252, 2147483648
        %v2336 = vxor.u32 %v2256, 2147483648
        %v2337 = vxor.u32 %v2258, 2147483648
        %v2338 = vxor.u32 %v2260, 2147483648
        %v2339 = vxor.u32 %v2262, 2147483648
        %v2340 = vxor.u32 %v2266, 2147483648
        %v2341 = vxor.u32 %v2268, 2147483648
        %v2342 = vxor.u32 %v2270, 2147483648
        %v2343 = vxor.u32 %v2272, 2147483648
        %v2344 = vxor.u32 %v2276, 2147483648
        %v2345 = vxor.u32 %v2278, 2147483648
        %v2346 = vxor.u32 %v2280, 2147483648
        %v2347 = vxor.u32 %v2282, 2147483648
        %v2348 = vmul.f32 %v2284, 1.442695
        %v2349 = vpow.pop %v2348
        %v2350 = vmul.f32 %v2285, 1.442695
        %v2351 = vpow.pop %v2350
        %v2352 = vmul.f32 %v2286, 1.442695
        %v2353 = vpow.pop %v2352
        %v2354 = vmul.f32 %v2287, 1.442695
        %v2355 = vpow.pop %v2354
        %v2356 = vmul.f32 %v2288, 1.442695
        %v2357 = vpow.pop %v2356
        %v2358 = vmul.f32 %v2289, 1.442695
        %v2359 = vpow.pop %v2358
        %v2360 = vmul.f32 %v2290, 1.442695
        %v2361 = vpow.pop %v2360
        %v2362 = vmul.f32 %v2291, 1.442695
        %v2363 = vpow.pop %v2362
        %v2364 = vmul.f32 %v2292, 1.442695
        %v2365 = vpow.pop %v2364
        %v2366 = vmul.f32 %v2293, 1.442695
        %v2367 = vpow.pop %v2366
        %v2368 = vmul.f32 %v2294, 1.442695
        %v2369 = vpow.pop %v2368
        %v2370 = vmul.f32 %v2295, 1.442695
        %v2371 = vpow.pop %v2370
        %v2372 = vmul.f32 %v2296, 1.442695
        %v2373 = vpow.pop %v2372
        %v2374 = vmul.f32 %v2297, 1.442695
        %v2375 = vpow.pop %v2374
        %v2376 = vmul.f32 %v2298, 1.442695
        %v2377 = vpow.pop %v2376
        %v2378 = vmul.f32 %v2299, 1.442695
        %v2379 = vpow.pop %v2378
        %v2380 = vmul.f32 %v2300, 1.442695
        %v2381 = vpow.pop %v2380
        %v2382 = vmul.f32 %v2301, 1.442695
        %v2383 = vpow.pop %v2382
        %v2384 = vmul.f32 %v2302, 1.442695
        %v2385 = vpow.pop %v2384
        %v2386 = vmul.f32 %v2303, 1.442695
        %v2387 = vpow.pop %v2386
        %v2388 = vmul.f32 %v2304, 1.442695
        %v2389 = vpow.pop %v2388
        %v2390 = vmul.f32 %v2305, 1.442695
        %v2391 = vpow.pop %v2390
        %v2392 = vmul.f32 %v2306, 1.442695
        %v2393 = vpow.pop %v2392
        %v2394 = vmul.f32 %v2307, 1.442695
        %v2395 = vpow.pop %v2394
        %v2396 = vmul.f32 %v2308, 1.442695
        %v2397 = vpow.pop %v2396
        %v2398 = vmul.f32 %v2309, 1.442695
        %v2399 = vpow.pop %v2398
        %v2400 = vmul.f32 %v2310, 1.442695
        %v2401 = vpow.pop %v2400
        %v2402 = vmul.f32 %v2311, 1.442695
        %v2403 = vpow.pop %v2402
        %v2404 = vmul.f32 %v2312, 1.442695
        %v2405 = vpow.pop %v2404
        %v2406 = vmul.f32 %v2313, 1.442695
        %v2407 = vpow.pop %v2406
        %v2408 = vmul.f32 %v2314, 1.442695
        %v2409 = vpow.pop %v2408
        %v2410 = vmul.f32 %v2315, 1.442695
        %v2411 = vpow.pop %v2410
        %v2412 = vmul.f32 %v2316, 1.442695
        %v2413 = vpow.pop %v2412
        %v2414 = vmul.f32 %v2317, 1.442695
        %v2415 = vpow.pop %v2414
        %v2416 = vmul.f32 %v2318, 1.442695
        %v2417 = vpow.pop %v2416
        %v2418 = vmul.f32 %v2319, 1.442695
        %v2419 = vpow.pop %v2418
        %v2420 = vmul.f32 %v2320, 1.442695
        %v2421 = vpow.pop %v2420
        %v2422 = vmul.f32 %v2321, 1.442695
        %v2423 = vpow.pop %v2422
        %v2424 = vmul.f32 %v2322, 1.442695
        %v2425 = vpow.pop %v2424
        %v2426 = vmul.f32 %v2323, 1.442695
        %v2427 = vpow.pop %v2426
        %v2428 = vmul.f32 %v2324, 1.442695
        %v2429 = vpow.pop %v2428
        %v2430 = vmul.f32 %v2325, 1.442695
        %v2431 = vpow.pop %v2430
        %v2432 = vmul.f32 %v2326, 1.442695
        %v2433 = vpow.pop %v2432
        %v2434 = vmul.f32 %v2327, 1.442695
        %v2435 = vpow.pop %v2434
        %v2436 = vmul.f32 %v2328, 1.442695
        %v2437 = vpow.pop %v2436
        %v2438 = vmul.f32 %v2329, 1.442695
        %v2439 = vpow.pop %v2438
        %v2440 = vmul.f32 %v2330, 1.442695
        %v2441 = vpow.pop %v2440
        %v2442 = vmul.f32 %v2331, 1.442695
        %v2443 = vpow.pop %v2442
        %v2444 = vmul.f32 %v2332, 1.442695
        %v2445 = vpow.pop %v2444
        %v2446 = vmul.f32 %v2333, 1.442695
        %v2447 = vpow.pop %v2446
        %v2448 = vmul.f32 %v2334, 1.442695
        %v2449 = vpow.pop %v2448
        %v2450 = vmul.f32 %v2335, 1.442695
        %v2451 = vpow.pop %v2450
        %v2452 = vmul.f32 %v2336, 1.442695
        %v2453 = vpow.pop %v2452
        %v2454 = vmul.f32 %v2337, 1.442695
        %v2455 = vpow.pop %v2454
        %v2456 = vmul.f32 %v2338, 1.442695
        %v2457 = vpow.pop %v2456
        %v2458 = vmul.f32 %v2339, 1.442695
        %v2459 = vpow.pop %v2458
        %v2460 = vmul.f32 %v2340, 1.442695
        %v2461 = vpow.pop %v2460
        %v2462 = vmul.f32 %v2341, 1.442695
        %v2463 = vpow.pop %v2462
        %v2464 = vmul.f32 %v2342, 1.442695
        %v2465 = vpow.pop %v2464
        %v2466 = vmul.f32 %v2343, 1.442695
        %v2467 = vpow.pop %v2466
        %v2468 = vmul.f32 %v2344, 1.442695
        %v2469 = vpow.pop %v2468
        %v2470 = vmul.f32 %v2345, 1.442695
        %v2471 = vpow.pop %v2470
        %v2472 = vmul.f32 %v2346, 1.442695
        %v2473 = vpow.pop %v2472
        %v2474 = vmul.f32 %v2347, 1.442695
        %v2475 = vpow.pop %v2474
        %v2476 = vadd.f32 %v2349, 1.0
        %v2477 = vadd.f32 %v2351, 1.0
        %v2478 = vadd.f32 %v2353, 1.0
        %v2479 = vadd.f32 %v2355, 1.0
        %v2480 = vadd.f32 %v2357, 1.0
        %v2481 = vadd.f32 %v2359, 1.0
        %v2482 = vadd.f32 %v2361, 1.0
        %v2483 = vadd.f32 %v2363, 1.0
        %v2484 = vadd.f32 %v2365, 1.0
        %v2485 = vadd.f32 %v2367, 1.0
        %v2486 = vadd.f32 %v2369, 1.0
        %v2487 = vadd.f32 %v2371, 1.0
        %v2488 = vadd.f32 %v2373, 1.0
        %v2489 = vadd.f32 %v2375, 1.0
        %v2490 = vadd.f32 %v2377, 1.0
        %v2491 = vadd.f32 %v2379, 1.0
        %v2492 = vadd.f32 %v2381, 1.0
        %v2493 = vadd.f32 %v2383, 1.0
        %v2494 = vadd.f32 %v2385, 1.0
        %v2495 = vadd.f32 %v2387, 1.0
        %v2496 = vadd.f32 %v2389, 1.0
        %v2497 = vadd.f32 %v2391, 1.0
        %v2498 = vadd.f32 %v2393, 1.0
        %v2499 = vadd.f32 %v2395, 1.0
        %v2500 = vadd.f32 %v2397, 1.0
        %v2501 = vadd.f32 %v2399, 1.0
        %v2502 = vadd.f32 %v2401, 1.0
        %v2503 = vadd.f32 %v2403, 1.0
        %v2504 = vadd.f32 %v2405, 1.0
        %v2505 = vadd.f32 %v2407, 1.0
        %v2506 = vadd.f32 %v2409, 1.0
        %v2507 = vadd.f32 %v2411, 1.0
        %v2508 = vadd.f32 %v2413, 1.0
        %v2509 = vadd.f32 %v2415, 1.0
        %v2510 = vadd.f32 %v2417, 1.0
        %v2511 = vadd.f32 %v2419, 1.0
        %v2512 = vadd.f32 %v2421, 1.0
        %v2513 = vadd.f32 %v2423, 1.0
        %v2514 = vadd.f32 %v2425, 1.0
        %v2515 = vadd.f32 %v2427, 1.0
        %v2516 = vadd.f32 %v2429, 1.0
        %v2517 = vadd.f32 %v2431, 1.0
        %v2518 = vadd.f32 %v2433, 1.0
        %v2519 = vadd.f32 %v2435, 1.0
        %v2520 = vadd.f32 %v2437, 1.0
        %v2521 = vadd.f32 %v2439, 1.0
        %v2522 = vadd.f32 %v2441, 1.0
        %v2523 = vadd.f32 %v2443, 1.0
        %v2524 = vadd.f32 %v2445, 1.0
        %v2525 = vadd.f32 %v2447, 1.0
        %v2526 = vadd.f32 %v2449, 1.0
        %v2527 = vadd.f32 %v2451, 1.0
        %v2528 = vadd.f32 %v2453, 1.0
        %v2529 = vadd.f32 %v2455, 1.0
        %v2530 = vadd.f32 %v2457, 1.0
        %v2531 = vadd.f32 %v2459, 1.0
        %v2532 = vadd.f32 %v2461, 1.0
        %v2533 = vadd.f32 %v2463, 1.0
        %v2534 = vadd.f32 %v2465, 1.0
        %v2535 = vadd.f32 %v2467, 1.0
        %v2536 = vadd.f32 %v2469, 1.0
        %v2537 = vadd.f32 %v2471, 1.0
        %v2538 = vadd.f32 %v2473, 1.0
        %v2539 = vadd.f32 %v2475, 1.0
        %v2540 = vrcp.pop %v2476
        %v2541 = vmul.f32 1.0, %v2540
        %v2542 = vrcp.pop %v2477
        %v2543 = vmul.f32 1.0, %v2542
        %v2544 = vrcp.pop %v2478
        %v2545 = vmul.f32 1.0, %v2544
        %v2546 = vrcp.pop %v2479
        %v2547 = vmul.f32 1.0, %v2546
        %v2548 = vrcp.pop %v2480
        %v2549 = vmul.f32 1.0, %v2548
        %v2550 = vrcp.pop %v2481
        %v2551 = vmul.f32 1.0, %v2550
        %v2552 = vrcp.pop %v2482
        %v2553 = vmul.f32 1.0, %v2552
        %v2554 = vrcp.pop %v2483
        %v2555 = vmul.f32 1.0, %v2554
        %v2556 = vrcp.pop %v2484
        %v2557 = vmul.f32 1.0, %v2556
        %v2558 = vrcp.pop %v2485
        %v2559 = vmul.f32 1.0, %v2558
        %v2560 = vrcp.pop %v2486
        %v2561 = vmul.f32 1.0, %v2560
        %v2562 = vrcp.pop %v2487
        %v2563 = vmul.f32 1.0, %v2562
        %v2564 = vrcp.pop %v2488
        %v2565 = vmul.f32 1.0, %v2564
        %v2566 = vrcp.pop %v2489
        %v2567 = vmul.f32 1.0, %v2566
        %v2568 = vrcp.pop %v2490
        %v2569 = vmul.f32 1.0, %v2568
        %v2570 = vrcp.pop %v2491
        %v2571 = vmul.f32 1.0, %v2570
        %v2572 = vrcp.pop %v2492
        %v2573 = vmul.f32 1.0, %v2572
        %v2574 = vrcp.pop %v2493
        %v2575 = vmul.f32 1.0, %v2574
        %v2576 = vrcp.pop %v2494
        %v2577 = vmul.f32 1.0, %v2576
        %v2578 = vrcp.pop %v2495
        %v2579 = vmul.f32 1.0, %v2578
        %v2580 = vrcp.pop %v2496
        %v2581 = vmul.f32 1.0, %v2580
        %v2582 = vrcp.pop %v2497
        %v2583 = vmul.f32 1.0, %v2582
        %v2584 = vrcp.pop %v2498
        %v2585 = vmul.f32 1.0, %v2584
        %v2586 = vrcp.pop %v2499
        %v2587 = vmul.f32 1.0, %v2586
        %v2588 = vrcp.pop %v2500
        %v2589 = vmul.f32 1.0, %v2588
        %v2590 = vrcp.pop %v2501
        %v2591 = vmul.f32 1.0, %v2590
        %v2592 = vrcp.pop %v2502
        %v2593 = vmul.f32 1.0, %v2592
        %v2594 = vrcp.pop %v2503
        %v2595 = vmul.f32 1.0, %v2594
        %v2596 = vrcp.pop %v2504
        %v2597 = vmul.f32 1.0, %v2596
        %v2598 = vrcp.pop %v2505
        %v2599 = vmul.f32 1.0, %v2598
        %v2600 = vrcp.pop %v2506
        %v2601 = vmul.f32 1.0, %v2600
        %v2602 = vrcp.pop %v2507
        %v2603 = vmul.f32 1.0, %v2602
        %v2604 = vrcp.pop %v2508
        %v2605 = vmul.f32 1.0, %v2604
        %v2606 = vrcp.pop %v2509
        %v2607 = vmul.f32 1.0, %v2606
        %v2608 = vrcp.pop %v2510
        %v2609 = vmul.f32 1.0, %v2608
        %v2610 = vrcp.pop %v2511
        %v2611 = vmul.f32 1.0, %v2610
        %v2612 = vrcp.pop %v2512
        %v2613 = vmul.f32 1.0, %v2612
        %v2614 = vrcp.pop %v2513
        %v2615 = vmul.f32 1.0, %v2614
        %v2616 = vrcp.pop %v2514
        %v2617 = vmul.f32 1.0, %v2616
        %v2618 = vrcp.pop %v2515
        %v2619 = vmul.f32 1.0, %v2618
        %v2620 = vrcp.pop %v2516
        %v2621 = vmul.f32 1.0, %v2620
        %v2622 = vrcp.pop %v2517
        %v2623 = vmul.f32 1.0, %v2622
        %v2624 = vrcp.pop %v2518
        %v2625 = vmul.f32 1.0, %v2624
        %v2626 = vrcp.pop %v2519
        %v2627 = vmul.f32 1.0, %v2626
        %v2628 = vrcp.pop %v2520
        %v2629 = vmul.f32 1.0, %v2628
        %v2630 = vrcp.pop %v2521
        %v2631 = vmul.f32 1.0, %v2630
        %v2632 = vrcp.pop %v2522
        %v2633 = vmul.f32 1.0, %v2632
        %v2634 = vrcp.pop %v2523
        %v2635 = vmul.f32 1.0, %v2634
        %v2636 = vrcp.pop %v2524
        %v2637 = vmul.f32 1.0, %v2636
        %v2638 = vrcp.pop %v2525
        %v2639 = vmul.f32 1.0, %v2638
        %v2640 = vrcp.pop %v2526
        %v2641 = vmul.f32 1.0, %v2640
        %v2642 = vrcp.pop %v2527
        %v2643 = vmul.f32 1.0, %v2642
        %v2644 = vrcp.pop %v2528
        %v2645 = vmul.f32 1.0, %v2644
        %v2646 = vrcp.pop %v2529
        %v2647 = vmul.f32 1.0, %v2646
        %v2648 = vrcp.pop %v2530
        %v2649 = vmul.f32 1.0, %v2648
        %v2650 = vrcp.pop %v2531
        %v2651 = vmul.f32 1.0, %v2650
        %v2652 = vrcp.pop %v2532
        %v2653 = vmul.f32 1.0, %v2652
        %v2654 = vrcp.pop %v2533
        %v2655 = vmul.f32 1.0, %v2654
        %v2656 = vrcp.pop %v2534
        %v2657 = vmul.f32 1.0, %v2656
        %v2658 = vrcp.pop %v2535
        %v2659 = vmul.f32 1.0, %v2658
        %v2660 = vrcp.pop %v2536
        %v2661 = vmul.f32 1.0, %v2660
        %v2662 = vrcp.pop %v2537
        %v2663 = vmul.f32 1.0, %v2662
        %v2664 = vrcp.pop %v2538
        %v2665 = vmul.f32 1.0, %v2664
        %v2666 = vrcp.pop %v2539
        %v2667 = vmul.f32 1.0, %v2666
        %v2668 = vmul.f32 %v2126, %v2541
        %v2669 = vmul.f32 %v2128, %v2543
        %v2670 = vmul.f32 %v2130, %v2545
        %v2671 = vmul.f32 %v2132, %v2547
        %v2672 = vmul.f32 %v2136, %v2549
        %v2673 = vmul.f32 %v2138, %v2551
        %v2674 = vmul.f32 %v2140, %v2553
        %v2675 = vmul.f32 %v2142, %v2555
        %v2676 = vmul.f32 %v2146, %v2557
        %v2677 = vmul.f32 %v2148, %v2559
        %v2678 = vmul.f32 %v2150, %v2561
        %v2679 = vmul.f32 %v2152, %v2563
        %v2680 = vmul.f32 %v2156, %v2565
        %v2681 = vmul.f32 %v2158, %v2567
        %v2682 = vmul.f32 %v2160, %v2569
        %v2683 = vmul.f32 %v2162, %v2571
        %v2684 = vmul.f32 %v2166, %v2573
        %v2685 = vmul.f32 %v2168, %v2575
        %v2686 = vmul.f32 %v2170, %v2577
        %v2687 = vmul.f32 %v2172, %v2579
        %v2688 = vmul.f32 %v2176, %v2581
        %v2689 = vmul.f32 %v2178, %v2583
        %v2690 = vmul.f32 %v2180, %v2585
        %v2691 = vmul.f32 %v2182, %v2587
        %v2692 = vmul.f32 %v2186, %v2589
        %v2693 = vmul.f32 %v2188, %v2591
        %v2694 = vmul.f32 %v2190, %v2593
        %v2695 = vmul.f32 %v2192, %v2595
        %v2696 = vmul.f32 %v2196, %v2597
        %v2697 = vmul.f32 %v2198, %v2599
        %v2698 = vmul.f32 %v2200, %v2601
        %v2699 = vmul.f32 %v2202, %v2603
        %v2700 = vmul.f32 %v2206, %v2605
        %v2701 = vmul.f32 %v2208, %v2607
        %v2702 = vmul.f32 %v2210, %v2609
        %v2703 = vmul.f32 %v2212, %v2611
        %v2704 = vmul.f32 %v2216, %v2613
        %v2705 = vmul.f32 %v2218, %v2615
        %v2706 = vmul.f32 %v2220, %v2617
        %v2707 = vmul.f32 %v2222, %v2619
        %v2708 = vmul.f32 %v2226, %v2621
        %v2709 = vmul.f32 %v2228, %v2623
        %v2710 = vmul.f32 %v2230, %v2625
        %v2711 = vmul.f32 %v2232, %v2627
        %v2712 = vmul.f32 %v2236, %v2629
        %v2713 = vmul.f32 %v2238, %v2631
        %v2714 = vmul.f32 %v2240, %v2633
        %v2715 = vmul.f32 %v2242, %v2635
        %v2716 = vmul.f32 %v2246, %v2637
        %v2717 = vmul.f32 %v2248, %v2639
        %v2718 = vmul.f32 %v2250, %v2641
        %v2719 = vmul.f32 %v2252, %v2643
        %v2720 = vmul.f32 %v2256, %v2645
        %v2721 = vmul.f32 %v2258, %v2647
        %v2722 = vmul.f32 %v2260, %v2649
        %v2723 = vmul.f32 %v2262, %v2651
        %v2724 = vmul.f32 %v2266, %v2653
        %v2725 = vmul.f32 %v2268, %v2655
        %v2726 = vmul.f32 %v2270, %v2657
        %v2727 = vmul.f32 %v2272, %v2659
        %v2728 = vmul.f32 %v2276, %v2661
        %v2729 = vmul.f32 %v2278, %v2663
        %v2730 = vmul.f32 %v2280, %v2665
        %v2731 = vmul.f32 %v2282, %v2667
        %v2732 = vadd.f32 %v2668, %v2669
        %v2733 = vadd.f32 %v2670, %v2671
        %v2734 = vadd.f32 %v2672, %v2673
        %v2735 = vadd.f32 %v2674, %v2675
        %v2736 = vadd.f32 %v2676, %v2677
        %v2737 = vadd.f32 %v2678, %v2679
        %v2738 = vadd.f32 %v2680, %v2681
        %v2739 = vadd.f32 %v2682, %v2683
        %v2740 = vadd.f32 %v2684, %v2685
        %v2741 = vadd.f32 %v2686, %v2687
        %v2742 = vadd.f32 %v2688, %v2689
        %v2743 = vadd.f32 %v2690, %v2691
        %v2744 = vadd.f32 %v2692, %v2693
        %v2745 = vadd.f32 %v2694, %v2695
        %v2746 = vadd.f32 %v2696, %v2697
        %v2747 = vadd.f32 %v2698, %v2699
        %v2748 = vadd.f32 %v2700, %v2701
        %v2749 = vadd.f32 %v2702, %v2703
        %v2750 = vadd.f32 %v2704, %v2705
        %v2751 = vadd.f32 %v2706, %v2707
        %v2752 = vadd.f32 %v2708, %v2709
        %v2753 = vadd.f32 %v2710, %v2711
        %v2754 = vadd.f32 %v2712, %v2713
        %v2755 = vadd.f32 %v2714, %v2715
        %v2756 = vadd.f32 %v2716, %v2717
        %v2757 = vadd.f32 %v2718, %v2719
        %v2758 = vadd.f32 %v2720, %v2721
        %v2759 = vadd.f32 %v2722, %v2723
        %v2760 = vadd.f32 %v2724, %v2725
        %v2761 = vadd.f32 %v2726, %v2727
        %v2762 = vadd.f32 %v2728, %v2729
        %v2763 = vadd.f32 %v2730, %v2731
        %s2764 = scalar_lea.vmem [#allocation2], 256
        %v2765 = vld [vmem:[%s2764] sm:$0xff]
        %v2766 = vld [vmem:[%s2764 + $0x8] sm:$0xff]
        %v2767 = vld [vmem:[%s2764 + $0x10] sm:$0xff]
        %v2768 = vld [vmem:[%s2764 + $0x18] sm:$0xff]
        %v2769 = vld [vmem:[%s2764 + $0x20] sm:$0xff]
        %v2770 = vld [vmem:[%s2764 + $0x28] sm:$0xff]
        %v2771 = vld [vmem:[%s2764 + $0x30] sm:$0xff]
        %v2772 = vld [vmem:[%s2764 + $0x38] sm:$0xff]
        %v2773 = vld [vmem:[%s2764 + $0x40] sm:$0xff]
        %v2774 = vld [vmem:[%s2764 + $0x48] sm:$0xff]
        %v2775 = vld [vmem:[%s2764 + $0x50] sm:$0xff]
        %v2776 = vld [vmem:[%s2764 + $0x58] sm:$0xff]
        %v2777 = vld [vmem:[%s2764 + $0x60] sm:$0xff]
        %v2778 = vld [vmem:[%s2764 + $0x68] sm:$0xff]
        %v2779 = vld [vmem:[%s2764 + $0x70] sm:$0xff]
        %v2780 = vld [vmem:[%s2764 + $0x78] sm:$0xff]
        %v2781 = vld [vmem:[%s2764 + $0x80] sm:$0xff]
        %v2782 = vld [vmem:[%s2764 + $0x88] sm:$0xff]
        %v2783 = vld [vmem:[%s2764 + $0x90] sm:$0xff]
        %v2784 = vld [vmem:[%s2764 + $0x98] sm:$0xff]
        %v2785 = vld [vmem:[%s2764 + $0xa0] sm:$0xff]
        %v2786 = vld [vmem:[%s2764 + $0xa8] sm:$0xff]
        %v2787 = vld [vmem:[%s2764 + $0xb0] sm:$0xff]
        %v2788 = vld [vmem:[%s2764 + $0xb8] sm:$0xff]
        %v2789 = vld [vmem:[%s2764 + $0xc0] sm:$0xff]
        %v2790 = vld [vmem:[%s2764 + $0xc8] sm:$0xff]
        %v2791 = vld [vmem:[%s2764 + $0xd0] sm:$0xff]
        %v2792 = vld [vmem:[%s2764 + $0xd8] sm:$0xff]
        %v2793 = vld [vmem:[%s2764 + $0xe0] sm:$0xff]
        %v2794 = vld [vmem:[%s2764 + $0xe8] sm:$0xff]
        %v2795 = vld [vmem:[%s2764 + $0xf0] sm:$0xff]
        %v2796 = vld [vmem:[%s2764 + $0xf8] sm:$0xff]
        %v2797 = vadd.f32 %v2765, %v2732
        %v2798 = vadd.f32 %v2766, %v2733
        %v2799 = vadd.f32 %v2767, %v2734
        %v2800 = vadd.f32 %v2768, %v2735
        %v2801 = vadd.f32 %v2769, %v2736
        %v2802 = vadd.f32 %v2770, %v2737
        %v2803 = vadd.f32 %v2771, %v2738
        %v2804 = vadd.f32 %v2772, %v2739
        %v2805 = vadd.f32 %v2773, %v2740
        %v2806 = vadd.f32 %v2774, %v2741
        %v2807 = vadd.f32 %v2775, %v2742
        %v2808 = vadd.f32 %v2776, %v2743
        %v2809 = vadd.f32 %v2777, %v2744
        %v2810 = vadd.f32 %v2778, %v2745
        %v2811 = vadd.f32 %v2779, %v2746
        %v2812 = vadd.f32 %v2780, %v2747
        %v2813 = vadd.f32 %v2781, %v2748
        %v2814 = vadd.f32 %v2782, %v2749
        %v2815 = vadd.f32 %v2783, %v2750
        %v2816 = vadd.f32 %v2784, %v2751
        %v2817 = vadd.f32 %v2785, %v2752
        %v2818 = vadd.f32 %v2786, %v2753
        %v2819 = vadd.f32 %v2787, %v2754
        %v2820 = vadd.f32 %v2788, %v2755
        %v2821 = vadd.f32 %v2789, %v2756
        %v2822 = vadd.f32 %v2790, %v2757
        %v2823 = vadd.f32 %v2791, %v2758
        %v2824 = vadd.f32 %v2792, %v2759
        %v2825 = vadd.f32 %v2793, %v2760
        %v2826 = vadd.f32 %v2794, %v2761
        %v2827 = vadd.f32 %v2795, %v2762
        %v2828 = vadd.f32 %v2796, %v2763
        %2829 = vst [vmem:[%s2764] sm:$0xff] %v2797
        %2830 = vst [vmem:[%s2764 + $0x8] sm:$0xff] %v2798
        %2831 = vst [vmem:[%s2764 + $0x10] sm:$0xff] %v2799
        %2832 = vst [vmem:[%s2764 + $0x18] sm:$0xff] %v2800
        %2833 = vst [vmem:[%s2764 + $0x20] sm:$0xff] %v2801
        %2834 = vst [vmem:[%s2764 + $0x28] sm:$0xff] %v2802
        %2835 = vst [vmem:[%s2764 + $0x30] sm:$0xff] %v2803
        %2836 = vst [vmem:[%s2764 + $0x38] sm:$0xff] %v2804
        %2837 = vst [vmem:[%s2764 + $0x40] sm:$0xff] %v2805
        %2838 = vst [vmem:[%s2764 + $0x48] sm:$0xff] %v2806
        %2839 = vst [vmem:[%s2764 + $0x50] sm:$0xff] %v2807
        %2840 = vst [vmem:[%s2764 + $0x58] sm:$0xff] %v2808
        %2841 = vst [vmem:[%s2764 + $0x60] sm:$0xff] %v2809
        %2842 = vst [vmem:[%s2764 + $0x68] sm:$0xff] %v2810
        %2843 = vst [vmem:[%s2764 + $0x70] sm:$0xff] %v2811
        %2844 = vst [vmem:[%s2764 + $0x78] sm:$0xff] %v2812
        %2845 = vst [vmem:[%s2764 + $0x80] sm:$0xff] %v2813
        %2846 = vst [vmem:[%s2764 + $0x88] sm:$0xff] %v2814
        %2847 = vst [vmem:[%s2764 + $0x90] sm:$0xff] %v2815
        %2848 = vst [vmem:[%s2764 + $0x98] sm:$0xff] %v2816
        %2849 = vst [vmem:[%s2764 + $0xa0] sm:$0xff] %v2817
        %2850 = vst [vmem:[%s2764 + $0xa8] sm:$0xff] %v2818
        %2851 = vst [vmem:[%s2764 + $0xb0] sm:$0xff] %v2819
        %2852 = vst [vmem:[%s2764 + $0xb8] sm:$0xff] %v2820
        %2853 = vst [vmem:[%s2764 + $0xc0] sm:$0xff] %v2821
        %2854 = vst [vmem:[%s2764 + $0xc8] sm:$0xff] %v2822
        %2855 = vst [vmem:[%s2764 + $0xd0] sm:$0xff] %v2823
        %2856 = vst [vmem:[%s2764 + $0xd8] sm:$0xff] %v2824
        %2857 = vst [vmem:[%s2764 + $0xe0] sm:$0xff] %v2825
        %2858 = vst [vmem:[%s2764 + $0xe8] sm:$0xff] %v2826
        %2859 = vst [vmem:[%s2764 + $0xf0] sm:$0xff] %v2827
        %2860 = vst [vmem:[%s2764 + $0xf8] sm:$0xff] %v2828
        %s2861 = scalar_lea.vmem %s1, 256
        %v2862 = vld [vmem:[%s2861] sm:$0xf]
        %v2863 = vld [vmem:[%s2861 + $0x4] sm:$0xf]
        %v2864 = vld [vmem:[%s2861 + $0x8] sm:$0xf]
        %v2865 = vld [vmem:[%s2861 + $0xc] sm:$0xf]
        %v2866 = vld [vmem:[%s2861 + $0x10] sm:$0xf]
        %v2867 = vld [vmem:[%s2861 + $0x14] sm:$0xf]
        %v2868 = vld [vmem:[%s2861 + $0x18] sm:$0xf]
        %v2869 = vld [vmem:[%s2861 + $0x1c] sm:$0xf]
        %v2870 = vld [vmem:[%s2861 + $0x20] sm:$0xf]
        %v2871 = vld [vmem:[%s2861 + $0x24] sm:$0xf]
        %v2872 = vld [vmem:[%s2861 + $0x28] sm:$0xf]
        %v2873 = vld [vmem:[%s2861 + $0x2c] sm:$0xf]
        %v2874 = vld [vmem:[%s2861 + $0x30] sm:$0xf]
        %v2875 = vld [vmem:[%s2861 + $0x34] sm:$0xf]
        %v2876 = vld [vmem:[%s2861 + $0x38] sm:$0xf]
        %v2877 = vld [vmem:[%s2861 + $0x3c] sm:$0xf]
        %v2878 = vld [vmem:[%s2861 + $0x40] sm:$0xf]
        %v2879 = vld [vmem:[%s2861 + $0x44] sm:$0xf]
        %v2880 = vld [vmem:[%s2861 + $0x48] sm:$0xf]
        %v2881 = vld [vmem:[%s2861 + $0x4c] sm:$0xf]
        %v2882 = vld [vmem:[%s2861 + $0x50] sm:$0xf]
        %v2883 = vld [vmem:[%s2861 + $0x54] sm:$0xf]
        %v2884 = vld [vmem:[%s2861 + $0x58] sm:$0xf]
        %v2885 = vld [vmem:[%s2861 + $0x5c] sm:$0xf]
        %v2886 = vld [vmem:[%s2861 + $0x60] sm:$0xf]
        %v2887 = vld [vmem:[%s2861 + $0x64] sm:$0xf]
        %v2888 = vld [vmem:[%s2861 + $0x68] sm:$0xf]
        %v2889 = vld [vmem:[%s2861 + $0x6c] sm:$0xf]
        %v2890 = vld [vmem:[%s2861 + $0x70] sm:$0xf]
        %v2891 = vld [vmem:[%s2861 + $0x74] sm:$0xf]
        %v2892 = vld [vmem:[%s2861 + $0x78] sm:$0xf]
        %v2893 = vld [vmem:[%s2861 + $0x7c] sm:$0xf]
        %s2894 = scalar_lea.vmem %s2, 512
        %v2895 = vld [vmem:[%s2894] sm:$0xff]
        %v2896 = vld [vmem:[%s2894 + $0x8] sm:$0xff]
        %v2897 = vld [vmem:[%s2894 + $0x10] sm:$0xff]
        %v2898 = vld [vmem:[%s2894 + $0x18] sm:$0xff]
        %v2899 = vld [vmem:[%s2894 + $0x20] sm:$0xff]
        %v2900 = vld [vmem:[%s2894 + $0x28] sm:$0xff]
        %v2901 = vld [vmem:[%s2894 + $0x30] sm:$0xff]
        %v2902 = vld [vmem:[%s2894 + $0x38] sm:$0xff]
        %v2903 = vld [vmem:[%s2894 + $0x40] sm:$0xff]
        %v2904 = vld [vmem:[%s2894 + $0x48] sm:$0xff]
        %v2905 = vld [vmem:[%s2894 + $0x50] sm:$0xff]
        %v2906 = vld [vmem:[%s2894 + $0x58] sm:$0xff]
        %v2907 = vld [vmem:[%s2894 + $0x60] sm:$0xff]
        %v2908 = vld [vmem:[%s2894 + $0x68] sm:$0xff]
        %v2909 = vld [vmem:[%s2894 + $0x70] sm:$0xff]
        %v2910 = vld [vmem:[%s2894 + $0x78] sm:$0xff]
        %v2911 = vld [vmem:[%s2894 + $0x80] sm:$0xff]
        %v2912 = vld [vmem:[%s2894 + $0x88] sm:$0xff]
        %v2913 = vld [vmem:[%s2894 + $0x90] sm:$0xff]
        %v2914 = vld [vmem:[%s2894 + $0x98] sm:$0xff]
        %v2915 = vld [vmem:[%s2894 + $0xa0] sm:$0xff]
        %v2916 = vld [vmem:[%s2894 + $0xa8] sm:$0xff]
        %v2917 = vld [vmem:[%s2894 + $0xb0] sm:$0xff]
        %v2918 = vld [vmem:[%s2894 + $0xb8] sm:$0xff]
        %v2919 = vld [vmem:[%s2894 + $0xc0] sm:$0xff]
        %v2920 = vld [vmem:[%s2894 + $0xc8] sm:$0xff]
        %v2921 = vld [vmem:[%s2894 + $0xd0] sm:$0xff]
        %v2922 = vld [vmem:[%s2894 + $0xd8] sm:$0xff]
        %v2923 = vld [vmem:[%s2894 + $0xe0] sm:$0xff]
        %v2924 = vld [vmem:[%s2894 + $0xe8] sm:$0xff]
        %v2925 = vld [vmem:[%s2894 + $0xf0] sm:$0xff]
        %v2926 = vld [vmem:[%s2894 + $0xf8] sm:$0xff]
        %2928 = vset.pattern.permute.xlu0 0
        %2929 = vperm.xlu0 %2928, %v2895
        %v2930 = vpop.permute.xlu0 %2929
        %2933 = vset.pattern.permute.xlu0 0
        %2934 = vperm.xlu0 %2933, %v2896
        %v2935 = vpop.permute.xlu0 %2934
        %2938 = vset.pattern.permute.xlu0 0
        %2939 = vperm.xlu0 %2938, %v2897
        %v2940 = vpop.permute.xlu0 %2939
        %2943 = vset.pattern.permute.xlu0 0
        %2944 = vperm.xlu0 %2943, %v2898
        %v2945 = vpop.permute.xlu0 %2944
        %2948 = vset.pattern.permute.xlu0 0
        %2949 = vperm.xlu0 %2948, %v2899
        %v2950 = vpop.permute.xlu0 %2949
        %2953 = vset.pattern.permute.xlu0 0
        %2954 = vperm.xlu0 %2953, %v2900
        %v2955 = vpop.permute.xlu0 %2954
        %2958 = vset.pattern.permute.xlu0 0
        %2959 = vperm.xlu0 %2958, %v2901
        %v2960 = vpop.permute.xlu0 %2959
        %2963 = vset.pattern.permute.xlu0 0
        %2964 = vperm.xlu0 %2963, %v2902
        %v2965 = vpop.permute.xlu0 %2964
        %2968 = vset.pattern.permute.xlu0 0
        %2969 = vperm.xlu0 %2968, %v2903
        %v2970 = vpop.permute.xlu0 %2969
        %2973 = vset.pattern.permute.xlu0 0
        %2974 = vperm.xlu0 %2973, %v2904
        %v2975 = vpop.permute.xlu0 %2974
        %2978 = vset.pattern.permute.xlu0 0
        %2979 = vperm.xlu0 %2978, %v2905
        %v2980 = vpop.permute.xlu0 %2979
        %2983 = vset.pattern.permute.xlu0 0
        %2984 = vperm.xlu0 %2983, %v2906
        %v2985 = vpop.permute.xlu0 %2984
        %2988 = vset.pattern.permute.xlu0 0
        %2989 = vperm.xlu0 %2988, %v2907
        %v2990 = vpop.permute.xlu0 %2989
        %2993 = vset.pattern.permute.xlu0 0
        %2994 = vperm.xlu0 %2993, %v2908
        %v2995 = vpop.permute.xlu0 %2994
        %2998 = vset.pattern.permute.xlu0 0
        %2999 = vperm.xlu0 %2998, %v2909
        %v3000 = vpop.permute.xlu0 %2999
        %3003 = vset.pattern.permute.xlu0 0
        %3004 = vperm.xlu0 %3003, %v2910
        %v3005 = vpop.permute.xlu0 %3004
        %3008 = vset.pattern.permute.xlu0 0
        %3009 = vperm.xlu0 %3008, %v2911
        %v3010 = vpop.permute.xlu0 %3009
        %3013 = vset.pattern.permute.xlu0 0
        %3014 = vperm.xlu0 %3013, %v2912
        %v3015 = vpop.permute.xlu0 %3014
        %3018 = vset.pattern.permute.xlu0 0
        %3019 = vperm.xlu0 %3018, %v2913
        %v3020 = vpop.permute.xlu0 %3019
        %3023 = vset.pattern.permute.xlu0 0
        %3024 = vperm.xlu0 %3023, %v2914
        %v3025 = vpop.permute.xlu0 %3024
        %3028 = vset.pattern.permute.xlu0 0
        %3029 = vperm.xlu0 %3028, %v2915
        %v3030 = vpop.permute.xlu0 %3029
        %3033 = vset.pattern.permute.xlu0 0
        %3034 = vperm.xlu0 %3033, %v2916
        %v3035 = vpop.permute.xlu0 %3034
        %3038 = vset.pattern.permute.xlu0 0
        %3039 = vperm.xlu0 %3038, %v2917
        %v3040 = vpop.permute.xlu0 %3039
        %3043 = vset.pattern.permute.xlu0 0
        %3044 = vperm.xlu0 %3043, %v2918
        %v3045 = vpop.permute.xlu0 %3044
        %3048 = vset.pattern.permute.xlu0 0
        %3049 = vperm.xlu0 %3048, %v2919
        %v3050 = vpop.permute.xlu0 %3049
        %3053 = vset.pattern.permute.xlu0 0
        %3054 = vperm.xlu0 %3053, %v2920
        %v3055 = vpop.permute.xlu0 %3054
        %3058 = vset.pattern.permute.xlu0 0
        %3059 = vperm.xlu0 %3058, %v2921
        %v3060 = vpop.permute.xlu0 %3059
        %3063 = vset.pattern.permute.xlu0 0
        %3064 = vperm.xlu0 %3063, %v2922
        %v3065 = vpop.permute.xlu0 %3064
        %3068 = vset.pattern.permute.xlu0 0
        %3069 = vperm.xlu0 %3068, %v2923
        %v3070 = vpop.permute.xlu0 %3069
        %3073 = vset.pattern.permute.xlu0 0
        %3074 = vperm.xlu0 %3073, %v2924
        %v3075 = vpop.permute.xlu0 %3074
        %3078 = vset.pattern.permute.xlu0 0
        %3079 = vperm.xlu0 %3078, %v2925
        %v3080 = vpop.permute.xlu0 %3079
        %3083 = vset.pattern.permute.xlu0 0
        %3084 = vperm.xlu0 %3083, %v2926
        %v3085 = vpop.permute.xlu0 %3084
        %v3119 = vunpack.c.l.b16 %v2862
        %v3120 = vunpack.c.l.b16 %v2863
        %v3121 = vunpack.c.l.b16 %v2864
        %v3122 = vunpack.c.l.b16 %v2865
        %v3123 = vunpack.c.l.b16 %v2866
        %v3124 = vunpack.c.l.b16 %v2867
        %v3125 = vunpack.c.l.b16 %v2868
        %v3126 = vunpack.c.l.b16 %v2869
        %v3127 = vunpack.c.l.b16 %v2870
        %v3128 = vunpack.c.l.b16 %v2871
        %v3129 = vunpack.c.l.b16 %v2872
        %v3130 = vunpack.c.l.b16 %v2873
        %v3131 = vunpack.c.l.b16 %v2874
        %v3132 = vunpack.c.l.b16 %v2875
        %v3133 = vunpack.c.l.b16 %v2876
        %v3134 = vunpack.c.l.b16 %v2877
        %v3135 = vunpack.c.l.b16 %v2878
        %v3136 = vunpack.c.l.b16 %v2879
        %v3137 = vunpack.c.l.b16 %v2880
        %v3138 = vunpack.c.l.b16 %v2881
        %v3139 = vunpack.c.l.b16 %v2882
        %v3140 = vunpack.c.l.b16 %v2883
        %v3141 = vunpack.c.l.b16 %v2884
        %v3142 = vunpack.c.l.b16 %v2885
        %v3143 = vunpack.c.l.b16 %v2886
        %v3144 = vunpack.c.l.b16 %v2887
        %v3145 = vunpack.c.l.b16 %v2888
        %v3146 = vunpack.c.l.b16 %v2889
        %v3147 = vunpack.c.l.b16 %v2890
        %v3148 = vunpack.c.l.b16 %v2891
        %v3149 = vunpack.c.l.b16 %v2892
        %v3150 = vunpack.c.l.b16 %v2893
        %v3151 = vpack.c.b16 %v3120, %v3119
        %v3152 = vpack.c.b16 %v3122, %v3121
        %v3153 = vpack.c.b16 %v3124, %v3123
        %v3154 = vpack.c.b16 %v3126, %v3125
        %v3155 = vpack.c.b16 %v3128, %v3127
        %v3156 = vpack.c.b16 %v3130, %v3129
        %v3157 = vpack.c.b16 %v3132, %v3131
        %v3158 = vpack.c.b16 %v3134, %v3133
        %v3159 = vpack.c.b16 %v3136, %v3135
        %v3160 = vpack.c.b16 %v3138, %v3137
        %v3161 = vpack.c.b16 %v3140, %v3139
        %v3162 = vpack.c.b16 %v3142, %v3141
        %v3163 = vpack.c.b16 %v3144, %v3143
        %v3164 = vpack.c.b16 %v3146, %v3145
        %v3165 = vpack.c.b16 %v3148, %v3147
        %v3166 = vpack.c.b16 %v3150, %v3149
        %v3168 = vsel %vm909, %v3151, 0
        %v3171 = vsel %vm909, %v3152, 0
        %v3174 = vsel %vm909, %v3153, 0
        %v3177 = vsel %vm909, %v3154, 0
        %v3180 = vsel %vm909, %v3155, 0
        %v3183 = vsel %vm909, %v3156, 0
        %v3186 = vsel %vm909, %v3157, 0
        %v3189 = vsel %vm909, %v3158, 0
        %v3192 = vsel %vm909, %v3159, 0
        %v3195 = vsel %vm909, %v3160, 0
        %v3198 = vsel %vm909, %v3161, 0
        %v3201 = vsel %vm909, %v3162, 0
        %v3204 = vsel %vm909, %v3163, 0
        %v3207 = vsel %vm909, %v3164, 0
        %v3210 = vsel %vm909, %v3165, 0
        %v3213 = vsel %vm909, %v3166, 0
        %3215 = vmatprep.subr.bf16.mxu0 %v966
        %3216 = vmatpush1.bf16.msra.mxu0 %v963
        %3217 = vmatprep.subr.bf16.mxu0 0
        %3218 = vmatpush1.bf16.msra.mxu0 0
        %3219 = vmatprep.subr.bf16.mxu0 0
        %3220 = vmatpush1.bf16.msra.mxu0 0
        %3221 = vmatprep.subr.bf16.mxu0 0
        %3222 = vmatpush1.bf16.msra.mxu0 0
        %3223 = vmatprep.subr.bf16.mxu0 0
        %3224 = vmatpush1.bf16.msra.mxu0 0
        %3225 = vmatprep.subr.bf16.mxu0 0
        %3226 = vmatpush1.bf16.msra.mxu0 0
        %3227 = vmatprep.subr.bf16.mxu0 0
        %3228 = vmatpush1.bf16.msra.mxu0 0
        %3229 = vmatprep.subr.bf16.mxu0 0
        %3230 = vmatpush1.bf16.msra.mxu0 0
        %3231 = vmatprep.subr.bf16.mxu0 0
        %3232 = vmatpush1.bf16.msra.mxu0 0
        %3233 = vmatprep.subr.bf16.mxu0 0
        %3234 = vmatpush1.bf16.msra.mxu0 0
        %3235 = vmatprep.subr.bf16.mxu0 0
        %3236 = vmatpush1.bf16.msra.mxu0 0
        %3237 = vmatprep.subr.bf16.mxu0 0
        %3238 = vmatpush1.bf16.msra.mxu0 0
        %3239 = vmatprep.subr.bf16.mxu0 0
        %3240 = vmatpush1.bf16.msra.mxu0 0
        %3241 = vmatprep.subr.bf16.mxu0 0
        %3242 = vmatpush1.bf16.msra.mxu0 0
        %3243 = vmatprep.subr.bf16.mxu0 0
        %3244 = vmatpush1.bf16.msra.mxu0 0
        %3245 = vmatprep.subr.bf16.mxu0 0
        %3246 = vmatpush1.bf16.msra.mxu0 0
        %3247 = vmatprep.mubr.bf16.mxu0 0
        %3248 = vmatmul.mubr.bf16.gmra.mrb[0].mxu0 %v3168
        %v3249 = vpop.f32.mrb[0].mxu0
        %v3250 = vadd.f32 %v2930, %v3249
        %v3251 = vpop.f32.mrb[0].mxu0
        %v3252 = vadd.f32 %v2930, %v3251
        %v3253 = vpop.f32.mrb[0].mxu0
        %v3254 = vadd.f32 %v2935, %v3253
        %v3255 = vpop.f32.mrb[0].mxu0
        %v3256 = vadd.f32 %v2935, %v3255
        %3257 = vmatprep.mubr.bf16.mxu0 0
        %3258 = vmatmul.mubr.bf16.gmra.mrb[0].mxu0 %v3171
        %v3259 = vpop.f32.mrb[0].mxu0
        %v3260 = vadd.f32 %v2940, %v3259
        %v3261 = vpop.f32.mrb[0].mxu0
        %v3262 = vadd.f32 %v2940, %v3261
        %v3263 = vpop.f32.mrb[0].mxu0
        %v3264 = vadd.f32 %v2945, %v3263
        %v3265 = vpop.f32.mrb[0].mxu0
        %v3266 = vadd.f32 %v2945, %v3265
        %3267 = vmatprep.mubr.bf16.mxu0 0
        %3268 = vmatmul.mubr.bf16.gmra.mrb[0].mxu0 %v3174
        %v3269 = vpop.f32.mrb[0].mxu0
        %v3270 = vadd.f32 %v2950, %v3269
        %v3271 = vpop.f32.mrb[0].mxu0
        %v3272 = vadd.f32 %v2950, %v3271
        %v3273 = vpop.f32.mrb[0].mxu0
        %v3274 = vadd.f32 %v2955, %v3273
        %v3275 = vpop.f32.mrb[0].mxu0
        %v3276 = vadd.f32 %v2955, %v3275
        %3277 = vmatprep.mubr.bf16.mxu0 0
        %3278 = vmatmul.mubr.bf16.gmra.mrb[0].mxu0 %v3177
        %v3279 = vpop.f32.mrb[0].mxu0
        %v3280 = vadd.f32 %v2960, %v3279
        %v3281 = vpop.f32.mrb[0].mxu0
        %v3282 = vadd.f32 %v2960, %v3281
        %v3283 = vpop.f32.mrb[0].mxu0
        %v3284 = vadd.f32 %v2965, %v3283
        %v3285 = vpop.f32.mrb[0].mxu0
        %v3286 = vadd.f32 %v2965, %v3285
        %3287 = vmatprep.mubr.bf16.mxu0 0
        %3288 = vmatmul.mubr.bf16.gmra.mrb[0].mxu0 %v3180
        %v3289 = vpop.f32.mrb[0].mxu0
        %v3290 = vadd.f32 %v2970, %v3289
        %v3291 = vpop.f32.mrb[0].mxu0
        %v3292 = vadd.f32 %v2970, %v3291
        %v3293 = vpop.f32.mrb[0].mxu0
        %v3294 = vadd.f32 %v2975, %v3293
        %v3295 = vpop.f32.mrb[0].mxu0
        %v3296 = vadd.f32 %v2975, %v3295
        %3297 = vmatprep.mubr.bf16.mxu0 0
        %3298 = vmatmul.mubr.bf16.gmra.mrb[0].mxu0 %v3183
        %v3299 = vpop.f32.mrb[0].mxu0
        %v3300 = vadd.f32 %v2980, %v3299
        %v3301 = vpop.f32.mrb[0].mxu0
        %v3302 = vadd.f32 %v2980, %v3301
        %v3303 = vpop.f32.mrb[0].mxu0
        %v3304 = vadd.f32 %v2985, %v3303
        %v3305 = vpop.f32.mrb[0].mxu0
        %v3306 = vadd.f32 %v2985, %v3305
        %3307 = vmatprep.mubr.bf16.mxu0 0
        %3308 = vmatmul.mubr.bf16.gmra.mrb[0].mxu0 %v3186
        %v3309 = vpop.f32.mrb[0].mxu0
        %v3310 = vadd.f32 %v2990, %v3309
        %v3311 = vpop.f32.mrb[0].mxu0
        %v3312 = vadd.f32 %v2990, %v3311
        %v3313 = vpop.f32.mrb[0].mxu0
        %v3314 = vadd.f32 %v2995, %v3313
        %v3315 = vpop.f32.mrb[0].mxu0
        %v3316 = vadd.f32 %v2995, %v3315
        %3317 = vmatprep.mubr.bf16.mxu0 0
        %3318 = vmatmul.mubr.bf16.gmra.mrb[0].mxu0 %v3189
        %v3319 = vpop.f32.mrb[0].mxu0
        %v3320 = vadd.f32 %v3000, %v3319
        %v3321 = vpop.f32.mrb[0].mxu0
        %v3322 = vadd.f32 %v3000, %v3321
        %v3323 = vpop.f32.mrb[0].mxu0
        %v3324 = vadd.f32 %v3005, %v3323
        %v3325 = vpop.f32.mrb[0].mxu0
        %v3326 = vadd.f32 %v3005, %v3325
        %3327 = vmatprep.mubr.bf16.mxu0 0
        %3328 = vmatmul.mubr.bf16.gmra.mrb[0].mxu0 %v3192
        %v3329 = vpop.f32.mrb[0].mxu0
        %v3330 = vadd.f32 %v3010, %v3329
        %v3331 = vpop.f32.mrb[0].mxu0
        %v3332 = vadd.f32 %v3010, %v3331
        %v3333 = vpop.f32.mrb[0].mxu0
        %v3334 = vadd.f32 %v3015, %v3333
        %v3335 = vpop.f32.mrb[0].mxu0
        %v3336 = vadd.f32 %v3015, %v3335
        %3337 = vmatprep.mubr.bf16.mxu0 0
        %3338 = vmatmul.mubr.bf16.gmra.mrb[0].mxu0 %v3195
        %v3339 = vpop.f32.mrb[0].mxu0
        %v3340 = vadd.f32 %v3020, %v3339
        %v3341 = vpop.f32.mrb[0].mxu0
        %v3342 = vadd.f32 %v3020, %v3341
        %v3343 = vpop.f32.mrb[0].mxu0
        %v3344 = vadd.f32 %v3025, %v3343
        %v3345 = vpop.f32.mrb[0].mxu0
        %v3346 = vadd.f32 %v3025, %v3345
        %3347 = vmatprep.mubr.bf16.mxu0 0
        %3348 = vmatmul.mubr.bf16.gmra.mrb[0].mxu0 %v3198
        %v3349 = vpop.f32.mrb[0].mxu0
        %v3350 = vadd.f32 %v3030, %v3349
        %v3351 = vpop.f32.mrb[0].mxu0
        %v3352 = vadd.f32 %v3030, %v3351
        %v3353 = vpop.f32.mrb[0].mxu0
        %v3354 = vadd.f32 %v3035, %v3353
        %v3355 = vpop.f32.mrb[0].mxu0
        %v3356 = vadd.f32 %v3035, %v3355
        %3357 = vmatprep.mubr.bf16.mxu0 0
        %3358 = vmatmul.mubr.bf16.gmra.mrb[0].mxu0 %v3201
        %v3359 = vpop.f32.mrb[0].mxu0
        %v3360 = vadd.f32 %v3040, %v3359
        %v3361 = vpop.f32.mrb[0].mxu0
        %v3362 = vadd.f32 %v3040, %v3361
        %v3363 = vpop.f32.mrb[0].mxu0
        %v3364 = vadd.f32 %v3045, %v3363
        %v3365 = vpop.f32.mrb[0].mxu0
        %v3366 = vadd.f32 %v3045, %v3365
        %3367 = vmatprep.mubr.bf16.mxu0 0
        %3368 = vmatmul.mubr.bf16.gmra.mrb[0].mxu0 %v3204
        %v3369 = vpop.f32.mrb[0].mxu0
        %v3370 = vadd.f32 %v3050, %v3369
        %v3371 = vpop.f32.mrb[0].mxu0
        %v3372 = vadd.f32 %v3050, %v3371
        %v3373 = vpop.f32.mrb[0].mxu0
        %v3374 = vadd.f32 %v3055, %v3373
        %v3375 = vpop.f32.mrb[0].mxu0
        %v3376 = vadd.f32 %v3055, %v3375
        %3377 = vmatprep.mubr.bf16.mxu0 0
        %3378 = vmatmul.mubr.bf16.gmra.mrb[0].mxu0 %v3207
        %v3379 = vpop.f32.mrb[0].mxu0
        %v3380 = vadd.f32 %v3060, %v3379
        %v3381 = vpop.f32.mrb[0].mxu0
        %v3382 = vadd.f32 %v3060, %v3381
        %v3383 = vpop.f32.mrb[0].mxu0
        %v3384 = vadd.f32 %v3065, %v3383
        %v3385 = vpop.f32.mrb[0].mxu0
        %v3386 = vadd.f32 %v3065, %v3385
        %3387 = vmatprep.mubr.bf16.mxu0 0
        %3388 = vmatmul.mubr.bf16.gmra.mrb[0].mxu0 %v3210
        %v3389 = vpop.f32.mrb[0].mxu0
        %v3390 = vadd.f32 %v3070, %v3389
        %v3391 = vpop.f32.mrb[0].mxu0
        %v3392 = vadd.f32 %v3070, %v3391
        %v3393 = vpop.f32.mrb[0].mxu0
        %v3394 = vadd.f32 %v3075, %v3393
        %v3395 = vpop.f32.mrb[0].mxu0
        %v3396 = vadd.f32 %v3075, %v3395
        %3397 = vmatprep.mubr.bf16.mxu0 0
        %3398 = vmatmul.mubr.bf16.gmra.mrb[0].mxu0 %v3213
        %v3399 = vpop.f32.mrb[0].mxu0
        %v3400 = vadd.f32 %v3080, %v3399
        %v3401 = vpop.f32.mrb[0].mxu0
        %v3402 = vadd.f32 %v3080, %v3401
        %v3403 = vpop.f32.mrb[0].mxu0
        %v3404 = vadd.f32 %v3085, %v3403
        %v3405 = vpop.f32.mrb[0].mxu0
        %v3406 = vadd.f32 %v3085, %v3405
        %3407 = vdwg.mxu0
        %v3408 = vxor.u32 %v3250, 2147483648
        %v3409 = vxor.u32 %v3252, 2147483648
        %v3410 = vxor.u32 %v3254, 2147483648
        %v3411 = vxor.u32 %v3256, 2147483648
        %v3412 = vxor.u32 %v3260, 2147483648
        %v3413 = vxor.u32 %v3262, 2147483648
        %v3414 = vxor.u32 %v3264, 2147483648
        %v3415 = vxor.u32 %v3266, 2147483648
        %v3416 = vxor.u32 %v3270, 2147483648
        %v3417 = vxor.u32 %v3272, 2147483648
        %v3418 = vxor.u32 %v3274, 2147483648
        %v3419 = vxor.u32 %v3276, 2147483648
        %v3420 = vxor.u32 %v3280, 2147483648
        %v3421 = vxor.u32 %v3282, 2147483648
        %v3422 = vxor.u32 %v3284, 2147483648
        %v3423 = vxor.u32 %v3286, 2147483648
        %v3424 = vxor.u32 %v3290, 2147483648
        %v3425 = vxor.u32 %v3292, 2147483648
        %v3426 = vxor.u32 %v3294, 2147483648
        %v3427 = vxor.u32 %v3296, 2147483648
        %v3428 = vxor.u32 %v3300, 2147483648
        %v3429 = vxor.u32 %v3302, 2147483648
        %v3430 = vxor.u32 %v3304, 2147483648
        %v3431 = vxor.u32 %v3306, 2147483648
        %v3432 = vxor.u32 %v3310, 2147483648
        %v3433 = vxor.u32 %v3312, 2147483648
        %v3434 = vxor.u32 %v3314, 2147483648
        %v3435 = vxor.u32 %v3316, 2147483648
        %v3436 = vxor.u32 %v3320, 2147483648
        %v3437 = vxor.u32 %v3322, 2147483648
        %v3438 = vxor.u32 %v3324, 2147483648
        %v3439 = vxor.u32 %v3326, 2147483648
        %v3440 = vxor.u32 %v3330, 2147483648
        %v3441 = vxor.u32 %v3332, 2147483648
        %v3442 = vxor.u32 %v3334, 2147483648
        %v3443 = vxor.u32 %v3336, 2147483648
        %v3444 = vxor.u32 %v3340, 2147483648
        %v3445 = vxor.u32 %v3342, 2147483648
        %v3446 = vxor.u32 %v3344, 2147483648
        %v3447 = vxor.u32 %v3346, 2147483648
        %v3448 = vxor.u32 %v3350, 2147483648
        %v3449 = vxor.u32 %v3352, 2147483648
        %v3450 = vxor.u32 %v3354, 2147483648
        %v3451 = vxor.u32 %v3356, 2147483648
        %v3452 = vxor.u32 %v3360, 2147483648
        %v3453 = vxor.u32 %v3362, 2147483648
        %v3454 = vxor.u32 %v3364, 2147483648
        %v3455 = vxor.u32 %v3366, 2147483648
        %v3456 = vxor.u32 %v3370, 2147483648
        %v3457 = vxor.u32 %v3372, 2147483648
        %v3458 = vxor.u32 %v3374, 2147483648
        %v3459 = vxor.u32 %v3376, 2147483648
        %v3460 = vxor.u32 %v3380, 2147483648
        %v3461 = vxor.u32 %v3382, 2147483648
        %v3462 = vxor.u32 %v3384, 2147483648
        %v3463 = vxor.u32 %v3386, 2147483648
        %v3464 = vxor.u32 %v3390, 2147483648
        %v3465 = vxor.u32 %v3392, 2147483648
        %v3466 = vxor.u32 %v3394, 2147483648
        %v3467 = vxor.u32 %v3396, 2147483648
        %v3468 = vxor.u32 %v3400, 2147483648
        %v3469 = vxor.u32 %v3402, 2147483648
        %v3470 = vxor.u32 %v3404, 2147483648
        %v3471 = vxor.u32 %v3406, 2147483648
        %v3472 = vmul.f32 %v3408, 1.442695
        %v3473 = vpow.pop %v3472
        %v3474 = vmul.f32 %v3409, 1.442695
        %v3475 = vpow.pop %v3474
        %v3476 = vmul.f32 %v3410, 1.442695
        %v3477 = vpow.pop %v3476
        %v3478 = vmul.f32 %v3411, 1.442695
        %v3479 = vpow.pop %v3478
        %v3480 = vmul.f32 %v3412, 1.442695
        %v3481 = vpow.pop %v3480
        %v3482 = vmul.f32 %v3413, 1.442695
        %v3483 = vpow.pop %v3482
        %v3484 = vmul.f32 %v3414, 1.442695
        %v3485 = vpow.pop %v3484
        %v3486 = vmul.f32 %v3415, 1.442695
        %v3487 = vpow.pop %v3486
        %v3488 = vmul.f32 %v3416, 1.442695
        %v3489 = vpow.pop %v3488
        %v3490 = vmul.f32 %v3417, 1.442695
        %v3491 = vpow.pop %v3490
        %v3492 = vmul.f32 %v3418, 1.442695
        %v3493 = vpow.pop %v3492
        %v3494 = vmul.f32 %v3419, 1.442695
        %v3495 = vpow.pop %v3494
        %v3496 = vmul.f32 %v3420, 1.442695
        %v3497 = vpow.pop %v3496
        %v3498 = vmul.f32 %v3421, 1.442695
        %v3499 = vpow.pop %v3498
        %v3500 = vmul.f32 %v3422, 1.442695
        %v3501 = vpow.pop %v3500
        %v3502 = vmul.f32 %v3423, 1.442695
        %v3503 = vpow.pop %v3502
        %v3504 = vmul.f32 %v3424, 1.442695
        %v3505 = vpow.pop %v3504
        %v3506 = vmul.f32 %v3425, 1.442695
        %v3507 = vpow.pop %v3506
        %v3508 = vmul.f32 %v3426, 1.442695
        %v3509 = vpow.pop %v3508
        %v3510 = vmul.f32 %v3427, 1.442695
        %v3511 = vpow.pop %v3510
        %v3512 = vmul.f32 %v3428, 1.442695
        %v3513 = vpow.pop %v3512
        %v3514 = vmul.f32 %v3429, 1.442695
        %v3515 = vpow.pop %v3514
        %v3516 = vmul.f32 %v3430, 1.442695
        %v3517 = vpow.pop %v3516
        %v3518 = vmul.f32 %v3431, 1.442695
        %v3519 = vpow.pop %v3518
        %v3520 = vmul.f32 %v3432, 1.442695
        %v3521 = vpow.pop %v3520
        %v3522 = vmul.f32 %v3433, 1.442695
        %v3523 = vpow.pop %v3522
        %v3524 = vmul.f32 %v3434, 1.442695
        %v3525 = vpow.pop %v3524
        %v3526 = vmul.f32 %v3435, 1.442695
        %v3527 = vpow.pop %v3526
        %v3528 = vmul.f32 %v3436, 1.442695
        %v3529 = vpow.pop %v3528
        %v3530 = vmul.f32 %v3437, 1.442695
        %v3531 = vpow.pop %v3530
        %v3532 = vmul.f32 %v3438, 1.442695
        %v3533 = vpow.pop %v3532
        %v3534 = vmul.f32 %v3439, 1.442695
        %v3535 = vpow.pop %v3534
        %v3536 = vmul.f32 %v3440, 1.442695
        %v3537 = vpow.pop %v3536
        %v3538 = vmul.f32 %v3441, 1.442695
        %v3539 = vpow.pop %v3538
        %v3540 = vmul.f32 %v3442, 1.442695
        %v3541 = vpow.pop %v3540
        %v3542 = vmul.f32 %v3443, 1.442695
        %v3543 = vpow.pop %v3542
        %v3544 = vmul.f32 %v3444, 1.442695
        %v3545 = vpow.pop %v3544
        %v3546 = vmul.f32 %v3445, 1.442695
        %v3547 = vpow.pop %v3546
        %v3548 = vmul.f32 %v3446, 1.442695
        %v3549 = vpow.pop %v3548
        %v3550 = vmul.f32 %v3447, 1.442695
        %v3551 = vpow.pop %v3550
        %v3552 = vmul.f32 %v3448, 1.442695
        %v3553 = vpow.pop %v3552
        %v3554 = vmul.f32 %v3449, 1.442695
        %v3555 = vpow.pop %v3554
        %v3556 = vmul.f32 %v3450, 1.442695
        %v3557 = vpow.pop %v3556
        %v3558 = vmul.f32 %v3451, 1.442695
        %v3559 = vpow.pop %v3558
        %v3560 = vmul.f32 %v3452, 1.442695
        %v3561 = vpow.pop %v3560
        %v3562 = vmul.f32 %v3453, 1.442695
        %v3563 = vpow.pop %v3562
        %v3564 = vmul.f32 %v3454, 1.442695
        %v3565 = vpow.pop %v3564
        %v3566 = vmul.f32 %v3455, 1.442695
        %v3567 = vpow.pop %v3566
        %v3568 = vmul.f32 %v3456, 1.442695
        %v3569 = vpow.pop %v3568
        %v3570 = vmul.f32 %v3457, 1.442695
        %v3571 = vpow.pop %v3570
        %v3572 = vmul.f32 %v3458, 1.442695
        %v3573 = vpow.pop %v3572
        %v3574 = vmul.f32 %v3459, 1.442695
        %v3575 = vpow.pop %v3574
        %v3576 = vmul.f32 %v3460, 1.442695
        %v3577 = vpow.pop %v3576
        %v3578 = vmul.f32 %v3461, 1.442695
        %v3579 = vpow.pop %v3578
        %v3580 = vmul.f32 %v3462, 1.442695
        %v3581 = vpow.pop %v3580
        %v3582 = vmul.f32 %v3463, 1.442695
        %v3583 = vpow.pop %v3582
        %v3584 = vmul.f32 %v3464, 1.442695
        %v3585 = vpow.pop %v3584
        %v3586 = vmul.f32 %v3465, 1.442695
        %v3587 = vpow.pop %v3586
        %v3588 = vmul.f32 %v3466, 1.442695
        %v3589 = vpow.pop %v3588
        %v3590 = vmul.f32 %v3467, 1.442695
        %v3591 = vpow.pop %v3590
        %v3592 = vmul.f32 %v3468, 1.442695
        %v3593 = vpow.pop %v3592
        %v3594 = vmul.f32 %v3469, 1.442695
        %v3595 = vpow.pop %v3594
        %v3596 = vmul.f32 %v3470, 1.442695
        %v3597 = vpow.pop %v3596
        %v3598 = vmul.f32 %v3471, 1.442695
        %v3599 = vpow.pop %v3598
        %v3600 = vadd.f32 %v3473, 1.0
        %v3601 = vadd.f32 %v3475, 1.0
        %v3602 = vadd.f32 %v3477, 1.0
        %v3603 = vadd.f32 %v3479, 1.0
        %v3604 = vadd.f32 %v3481, 1.0
        %v3605 = vadd.f32 %v3483, 1.0
        %v3606 = vadd.f32 %v3485, 1.0
        %v3607 = vadd.f32 %v3487, 1.0
        %v3608 = vadd.f32 %v3489, 1.0
        %v3609 = vadd.f32 %v3491, 1.0
        %v3610 = vadd.f32 %v3493, 1.0
        %v3611 = vadd.f32 %v3495, 1.0
        %v3612 = vadd.f32 %v3497, 1.0
        %v3613 = vadd.f32 %v3499, 1.0
        %v3614 = vadd.f32 %v3501, 1.0
        %v3615 = vadd.f32 %v3503, 1.0
        %v3616 = vadd.f32 %v3505, 1.0
        %v3617 = vadd.f32 %v3507, 1.0
        %v3618 = vadd.f32 %v3509, 1.0
        %v3619 = vadd.f32 %v3511, 1.0
        %v3620 = vadd.f32 %v3513, 1.0
        %v3621 = vadd.f32 %v3515, 1.0
        %v3622 = vadd.f32 %v3517, 1.0
        %v3623 = vadd.f32 %v3519, 1.0
        %v3624 = vadd.f32 %v3521, 1.0
        %v3625 = vadd.f32 %v3523, 1.0
        %v3626 = vadd.f32 %v3525, 1.0
        %v3627 = vadd.f32 %v3527, 1.0
        %v3628 = vadd.f32 %v3529, 1.0
        %v3629 = vadd.f32 %v3531, 1.0
        %v3630 = vadd.f32 %v3533, 1.0
        %v3631 = vadd.f32 %v3535, 1.0
        %v3632 = vadd.f32 %v3537, 1.0
        %v3633 = vadd.f32 %v3539, 1.0
        %v3634 = vadd.f32 %v3541, 1.0
        %v3635 = vadd.f32 %v3543, 1.0
        %v3636 = vadd.f32 %v3545, 1.0
        %v3637 = vadd.f32 %v3547, 1.0
        %v3638 = vadd.f32 %v3549, 1.0
        %v3639 = vadd.f32 %v3551, 1.0
        %v3640 = vadd.f32 %v3553, 1.0
        %v3641 = vadd.f32 %v3555, 1.0
        %v3642 = vadd.f32 %v3557, 1.0
        %v3643 = vadd.f32 %v3559, 1.0
        %v3644 = vadd.f32 %v3561, 1.0
        %v3645 = vadd.f32 %v3563, 1.0
        %v3646 = vadd.f32 %v3565, 1.0
        %v3647 = vadd.f32 %v3567, 1.0
        %v3648 = vadd.f32 %v3569, 1.0
        %v3649 = vadd.f32 %v3571, 1.0
        %v3650 = vadd.f32 %v3573, 1.0
        %v3651 = vadd.f32 %v3575, 1.0
        %v3652 = vadd.f32 %v3577, 1.0
        %v3653 = vadd.f32 %v3579, 1.0
        %v3654 = vadd.f32 %v3581, 1.0
        %v3655 = vadd.f32 %v3583, 1.0
        %v3656 = vadd.f32 %v3585, 1.0
        %v3657 = vadd.f32 %v3587, 1.0
        %v3658 = vadd.f32 %v3589, 1.0
        %v3659 = vadd.f32 %v3591, 1.0
        %v3660 = vadd.f32 %v3593, 1.0
        %v3661 = vadd.f32 %v3595, 1.0
        %v3662 = vadd.f32 %v3597, 1.0
        %v3663 = vadd.f32 %v3599, 1.0
        %v3664 = vrcp.pop %v3600
        %v3665 = vmul.f32 1.0, %v3664
        %v3666 = vrcp.pop %v3601
        %v3667 = vmul.f32 1.0, %v3666
        %v3668 = vrcp.pop %v3602
        %v3669 = vmul.f32 1.0, %v3668
        %v3670 = vrcp.pop %v3603
        %v3671 = vmul.f32 1.0, %v3670
        %v3672 = vrcp.pop %v3604
        %v3673 = vmul.f32 1.0, %v3672
        %v3674 = vrcp.pop %v3605
        %v3675 = vmul.f32 1.0, %v3674
        %v3676 = vrcp.pop %v3606
        %v3677 = vmul.f32 1.0, %v3676
        %v3678 = vrcp.pop %v3607
        %v3679 = vmul.f32 1.0, %v3678
        %v3680 = vrcp.pop %v3608
        %v3681 = vmul.f32 1.0, %v3680
        %v3682 = vrcp.pop %v3609
        %v3683 = vmul.f32 1.0, %v3682
        %v3684 = vrcp.pop %v3610
        %v3685 = vmul.f32 1.0, %v3684
        %v3686 = vrcp.pop %v3611
        %v3687 = vmul.f32 1.0, %v3686
        %v3688 = vrcp.pop %v3612
        %v3689 = vmul.f32 1.0, %v3688
        %v3690 = vrcp.pop %v3613
        %v3691 = vmul.f32 1.0, %v3690
        %v3692 = vrcp.pop %v3614
        %v3693 = vmul.f32 1.0, %v3692
        %v3694 = vrcp.pop %v3615
        %v3695 = vmul.f32 1.0, %v3694
        %v3696 = vrcp.pop %v3616
        %v3697 = vmul.f32 1.0, %v3696
        %v3698 = vrcp.pop %v3617
        %v3699 = vmul.f32 1.0, %v3698
        %v3700 = vrcp.pop %v3618
        %v3701 = vmul.f32 1.0, %v3700
        %v3702 = vrcp.pop %v3619
        %v3703 = vmul.f32 1.0, %v3702
        %v3704 = vrcp.pop %v3620
        %v3705 = vmul.f32 1.0, %v3704
        %v3706 = vrcp.pop %v3621
        %v3707 = vmul.f32 1.0, %v3706
        %v3708 = vrcp.pop %v3622
        %v3709 = vmul.f32 1.0, %v3708
        %v3710 = vrcp.pop %v3623
        %v3711 = vmul.f32 1.0, %v3710
        %v3712 = vrcp.pop %v3624
        %v3713 = vmul.f32 1.0, %v3712
        %v3714 = vrcp.pop %v3625
        %v3715 = vmul.f32 1.0, %v3714
        %v3716 = vrcp.pop %v3626
        %v3717 = vmul.f32 1.0, %v3716
        %v3718 = vrcp.pop %v3627
        %v3719 = vmul.f32 1.0, %v3718
        %v3720 = vrcp.pop %v3628
        %v3721 = vmul.f32 1.0, %v3720
        %v3722 = vrcp.pop %v3629
        %v3723 = vmul.f32 1.0, %v3722
        %v3724 = vrcp.pop %v3630
        %v3725 = vmul.f32 1.0, %v3724
        %v3726 = vrcp.pop %v3631
        %v3727 = vmul.f32 1.0, %v3726
        %v3728 = vrcp.pop %v3632
        %v3729 = vmul.f32 1.0, %v3728
        %v3730 = vrcp.pop %v3633
        %v3731 = vmul.f32 1.0, %v3730
        %v3732 = vrcp.pop %v3634
        %v3733 = vmul.f32 1.0, %v3732
        %v3734 = vrcp.pop %v3635
        %v3735 = vmul.f32 1.0, %v3734
        %v3736 = vrcp.pop %v3636
        %v3737 = vmul.f32 1.0, %v3736
        %v3738 = vrcp.pop %v3637
        %v3739 = vmul.f32 1.0, %v3738
        %v3740 = vrcp.pop %v3638
        %v3741 = vmul.f32 1.0, %v3740
        %v3742 = vrcp.pop %v3639
        %v3743 = vmul.f32 1.0, %v3742
        %v3744 = vrcp.pop %v3640
        %v3745 = vmul.f32 1.0, %v3744
        %v3746 = vrcp.pop %v3641
        %v3747 = vmul.f32 1.0, %v3746
        %v3748 = vrcp.pop %v3642
        %v3749 = vmul.f32 1.0, %v3748
        %v3750 = vrcp.pop %v3643
        %v3751 = vmul.f32 1.0, %v3750
        %v3752 = vrcp.pop %v3644
        %v3753 = vmul.f32 1.0, %v3752
        %v3754 = vrcp.pop %v3645
        %v3755 = vmul.f32 1.0, %v3754
        %v3756 = vrcp.pop %v3646
        %v3757 = vmul.f32 1.0, %v3756
        %v3758 = vrcp.pop %v3647
        %v3759 = vmul.f32 1.0, %v3758
        %v3760 = vrcp.pop %v3648
        %v3761 = vmul.f32 1.0, %v3760
        %v3762 = vrcp.pop %v3649
        %v3763 = vmul.f32 1.0, %v3762
        %v3764 = vrcp.pop %v3650
        %v3765 = vmul.f32 1.0, %v3764
        %v3766 = vrcp.pop %v3651
        %v3767 = vmul.f32 1.0, %v3766
        %v3768 = vrcp.pop %v3652
        %v3769 = vmul.f32 1.0, %v3768
        %v3770 = vrcp.pop %v3653
        %v3771 = vmul.f32 1.0, %v3770
        %v3772 = vrcp.pop %v3654
        %v3773 = vmul.f32 1.0, %v3772
        %v3774 = vrcp.pop %v3655
        %v3775 = vmul.f32 1.0, %v3774
        %v3776 = vrcp.pop %v3656
        %v3777 = vmul.f32 1.0, %v3776
        %v3778 = vrcp.pop %v3657
        %v3779 = vmul.f32 1.0, %v3778
        %v3780 = vrcp.pop %v3658
        %v3781 = vmul.f32 1.0, %v3780
        %v3782 = vrcp.pop %v3659
        %v3783 = vmul.f32 1.0, %v3782
        %v3784 = vrcp.pop %v3660
        %v3785 = vmul.f32 1.0, %v3784
        %v3786 = vrcp.pop %v3661
        %v3787 = vmul.f32 1.0, %v3786
        %v3788 = vrcp.pop %v3662
        %v3789 = vmul.f32 1.0, %v3788
        %v3790 = vrcp.pop %v3663
        %v3791 = vmul.f32 1.0, %v3790
        %v3792 = vmul.f32 %v3250, %v3665
        %v3793 = vmul.f32 %v3252, %v3667
        %v3794 = vmul.f32 %v3254, %v3669
        %v3795 = vmul.f32 %v3256, %v3671
        %v3796 = vmul.f32 %v3260, %v3673
        %v3797 = vmul.f32 %v3262, %v3675
        %v3798 = vmul.f32 %v3264, %v3677
        %v3799 = vmul.f32 %v3266, %v3679
        %v3800 = vmul.f32 %v3270, %v3681
        %v3801 = vmul.f32 %v3272, %v3683
        %v3802 = vmul.f32 %v3274, %v3685
        %v3803 = vmul.f32 %v3276, %v3687
        %v3804 = vmul.f32 %v3280, %v3689
        %v3805 = vmul.f32 %v3282, %v3691
        %v3806 = vmul.f32 %v3284, %v3693
        %v3807 = vmul.f32 %v3286, %v3695
        %v3808 = vmul.f32 %v3290, %v3697
        %v3809 = vmul.f32 %v3292, %v3699
        %v3810 = vmul.f32 %v3294, %v3701
        %v3811 = vmul.f32 %v3296, %v3703
        %v3812 = vmul.f32 %v3300, %v3705
        %v3813 = vmul.f32 %v3302, %v3707
        %v3814 = vmul.f32 %v3304, %v3709
        %v3815 = vmul.f32 %v3306, %v3711
        %v3816 = vmul.f32 %v3310, %v3713
        %v3817 = vmul.f32 %v3312, %v3715
        %v3818 = vmul.f32 %v3314, %v3717
        %v3819 = vmul.f32 %v3316, %v3719
        %v3820 = vmul.f32 %v3320, %v3721
        %v3821 = vmul.f32 %v3322, %v3723
        %v3822 = vmul.f32 %v3324, %v3725
        %v3823 = vmul.f32 %v3326, %v3727
        %v3824 = vmul.f32 %v3330, %v3729
        %v3825 = vmul.f32 %v3332, %v3731
        %v3826 = vmul.f32 %v3334, %v3733
        %v3827 = vmul.f32 %v3336, %v3735
        %v3828 = vmul.f32 %v3340, %v3737
        %v3829 = vmul.f32 %v3342, %v3739
        %v3830 = vmul.f32 %v3344, %v3741
        %v3831 = vmul.f32 %v3346, %v3743
        %v3832 = vmul.f32 %v3350, %v3745
        %v3833 = vmul.f32 %v3352, %v3747
        %v3834 = vmul.f32 %v3354, %v3749
        %v3835 = vmul.f32 %v3356, %v3751
        %v3836 = vmul.f32 %v3360, %v3753
        %v3837 = vmul.f32 %v3362, %v3755
        %v3838 = vmul.f32 %v3364, %v3757
        %v3839 = vmul.f32 %v3366, %v3759
        %v3840 = vmul.f32 %v3370, %v3761
        %v3841 = vmul.f32 %v3372, %v3763
        %v3842 = vmul.f32 %v3374, %v3765
        %v3843 = vmul.f32 %v3376, %v3767
        %v3844 = vmul.f32 %v3380, %v3769
        %v3845 = vmul.f32 %v3382, %v3771
        %v3846 = vmul.f32 %v3384, %v3773
        %v3847 = vmul.f32 %v3386, %v3775
        %v3848 = vmul.f32 %v3390, %v3777
        %v3849 = vmul.f32 %v3392, %v3779
        %v3850 = vmul.f32 %v3394, %v3781
        %v3851 = vmul.f32 %v3396, %v3783
        %v3852 = vmul.f32 %v3400, %v3785
        %v3853 = vmul.f32 %v3402, %v3787
        %v3854 = vmul.f32 %v3404, %v3789
        %v3855 = vmul.f32 %v3406, %v3791
        %v3856 = vadd.f32 %v3792, %v3793
        %v3857 = vadd.f32 %v3794, %v3795
        %v3858 = vadd.f32 %v3796, %v3797
        %v3859 = vadd.f32 %v3798, %v3799
        %v3860 = vadd.f32 %v3800, %v3801
        %v3861 = vadd.f32 %v3802, %v3803
        %v3862 = vadd.f32 %v3804, %v3805
        %v3863 = vadd.f32 %v3806, %v3807
        %v3864 = vadd.f32 %v3808, %v3809
        %v3865 = vadd.f32 %v3810, %v3811
        %v3866 = vadd.f32 %v3812, %v3813
        %v3867 = vadd.f32 %v3814, %v3815
        %v3868 = vadd.f32 %v3816, %v3817
        %v3869 = vadd.f32 %v3818, %v3819
        %v3870 = vadd.f32 %v3820, %v3821
        %v3871 = vadd.f32 %v3822, %v3823
        %v3872 = vadd.f32 %v3824, %v3825
        %v3873 = vadd.f32 %v3826, %v3827
        %v3874 = vadd.f32 %v3828, %v3829
        %v3875 = vadd.f32 %v3830, %v3831
        %v3876 = vadd.f32 %v3832, %v3833
        %v3877 = vadd.f32 %v3834, %v3835
        %v3878 = vadd.f32 %v3836, %v3837
        %v3879 = vadd.f32 %v3838, %v3839
        %v3880 = vadd.f32 %v3840, %v3841
        %v3881 = vadd.f32 %v3842, %v3843
        %v3882 = vadd.f32 %v3844, %v3845
        %v3883 = vadd.f32 %v3846, %v3847
        %v3884 = vadd.f32 %v3848, %v3849
        %v3885 = vadd.f32 %v3850, %v3851
        %v3886 = vadd.f32 %v3852, %v3853
        %v3887 = vadd.f32 %v3854, %v3855
        %s3888 = scalar_lea.vmem [#allocation2], 512
        %v3889 = vld [vmem:[%s3888] sm:$0xff]
        %v3890 = vld [vmem:[%s3888 + $0x8] sm:$0xff]
        %v3891 = vld [vmem:[%s3888 + $0x10] sm:$0xff]
        %v3892 = vld [vmem:[%s3888 + $0x18] sm:$0xff]
        %v3893 = vld [vmem:[%s3888 + $0x20] sm:$0xff]
        %v3894 = vld [vmem:[%s3888 + $0x28] sm:$0xff]
        %v3895 = vld [vmem:[%s3888 + $0x30] sm:$0xff]
        %v3896 = vld [vmem:[%s3888 + $0x38] sm:$0xff]
        %v3897 = vld [vmem:[%s3888 + $0x40] sm:$0xff]
        %v3898 = vld [vmem:[%s3888 + $0x48] sm:$0xff]
        %v3899 = vld [vmem:[%s3888 + $0x50] sm:$0xff]
        %v3900 = vld [vmem:[%s3888 + $0x58] sm:$0xff]
        %v3901 = vld [vmem:[%s3888 + $0x60] sm:$0xff]
        %v3902 = vld [vmem:[%s3888 + $0x68] sm:$0xff]
        %v3903 = vld [vmem:[%s3888 + $0x70] sm:$0xff]
        %v3904 = vld [vmem:[%s3888 + $0x78] sm:$0xff]
        %v3905 = vld [vmem:[%s3888 + $0x80] sm:$0xff]
        %v3906 = vld [vmem:[%s3888 + $0x88] sm:$0xff]
        %v3907 = vld [vmem:[%s3888 + $0x90] sm:$0xff]
        %v3908 = vld [vmem:[%s3888 + $0x98] sm:$0xff]
        %v3909 = vld [vmem:[%s3888 + $0xa0] sm:$0xff]
        %v3910 = vld [vmem:[%s3888 + $0xa8] sm:$0xff]
        %v3911 = vld [vmem:[%s3888 + $0xb0] sm:$0xff]
        %v3912 = vld [vmem:[%s3888 + $0xb8] sm:$0xff]
        %v3913 = vld [vmem:[%s3888 + $0xc0] sm:$0xff]
        %v3914 = vld [vmem:[%s3888 + $0xc8] sm:$0xff]
        %v3915 = vld [vmem:[%s3888 + $0xd0] sm:$0xff]
        %v3916 = vld [vmem:[%s3888 + $0xd8] sm:$0xff]
        %v3917 = vld [vmem:[%s3888 + $0xe0] sm:$0xff]
        %v3918 = vld [vmem:[%s3888 + $0xe8] sm:$0xff]
        %v3919 = vld [vmem:[%s3888 + $0xf0] sm:$0xff]
        %v3920 = vld [vmem:[%s3888 + $0xf8] sm:$0xff]
        %v3921 = vadd.f32 %v3889, %v3856
        %v3922 = vadd.f32 %v3890, %v3857
        %v3923 = vadd.f32 %v3891, %v3858
        %v3924 = vadd.f32 %v3892, %v3859
        %v3925 = vadd.f32 %v3893, %v3860
        %v3926 = vadd.f32 %v3894, %v3861
        %v3927 = vadd.f32 %v3895, %v3862
        %v3928 = vadd.f32 %v3896, %v3863
        %v3929 = vadd.f32 %v3897, %v3864
        %v3930 = vadd.f32 %v3898, %v3865
        %v3931 = vadd.f32 %v3899, %v3866
        %v3932 = vadd.f32 %v3900, %v3867
        %v3933 = vadd.f32 %v3901, %v3868
        %v3934 = vadd.f32 %v3902, %v3869
        %v3935 = vadd.f32 %v3903, %v3870
        %v3936 = vadd.f32 %v3904, %v3871
        %v3937 = vadd.f32 %v3905, %v3872
        %v3938 = vadd.f32 %v3906, %v3873
        %v3939 = vadd.f32 %v3907, %v3874
        %v3940 = vadd.f32 %v3908, %v3875
        %v3941 = vadd.f32 %v3909, %v3876
        %v3942 = vadd.f32 %v3910, %v3877
        %v3943 = vadd.f32 %v3911, %v3878
        %v3944 = vadd.f32 %v3912, %v3879
        %v3945 = vadd.f32 %v3913, %v3880
        %v3946 = vadd.f32 %v3914, %v3881
        %v3947 = vadd.f32 %v3915, %v3882
        %v3948 = vadd.f32 %v3916, %v3883
        %v3949 = vadd.f32 %v3917, %v3884
        %v3950 = vadd.f32 %v3918, %v3885
        %v3951 = vadd.f32 %v3919, %v3886
        %v3952 = vadd.f32 %v3920, %v3887
        %3953 = vst [vmem:[%s3888] sm:$0xff] %v3921
        %3954 = vst [vmem:[%s3888 + $0x8] sm:$0xff] %v3922
        %3955 = vst [vmem:[%s3888 + $0x10] sm:$0xff] %v3923
        %3956 = vst [vmem:[%s3888 + $0x18] sm:$0xff] %v3924
        %3957 = vst [vmem:[%s3888 + $0x20] sm:$0xff] %v3925
        %3958 = vst [vmem:[%s3888 + $0x28] sm:$0xff] %v3926
        %3959 = vst [vmem:[%s3888 + $0x30] sm:$0xff] %v3927
        %3960 = vst [vmem:[%s3888 + $0x38] sm:$0xff] %v3928
        %3961 = vst [vmem:[%s3888 + $0x40] sm:$0xff] %v3929
        %3962 = vst [vmem:[%s3888 + $0x48] sm:$0xff] %v3930
        %3963 = vst [vmem:[%s3888 + $0x50] sm:$0xff] %v3931
        %3964 = vst [vmem:[%s3888 + $0x58] sm:$0xff] %v3932
        %3965 = vst [vmem:[%s3888 + $0x60] sm:$0xff] %v3933
        %3966 = vst [vmem:[%s3888 + $0x68] sm:$0xff] %v3934
        %3967 = vst [vmem:[%s3888 + $0x70] sm:$0xff] %v3935
        %3968 = vst [vmem:[%s3888 + $0x78] sm:$0xff] %v3936
        %3969 = vst [vmem:[%s3888 + $0x80] sm:$0xff] %v3937
        %3970 = vst [vmem:[%s3888 + $0x88] sm:$0xff] %v3938
        %3971 = vst [vmem:[%s3888 + $0x90] sm:$0xff] %v3939
        %3972 = vst [vmem:[%s3888 + $0x98] sm:$0xff] %v3940
        %3973 = vst [vmem:[%s3888 + $0xa0] sm:$0xff] %v3941
        %3974 = vst [vmem:[%s3888 + $0xa8] sm:$0xff] %v3942
        %3975 = vst [vmem:[%s3888 + $0xb0] sm:$0xff] %v3943
        %3976 = vst [vmem:[%s3888 + $0xb8] sm:$0xff] %v3944
        %3977 = vst [vmem:[%s3888 + $0xc0] sm:$0xff] %v3945
        %3978 = vst [vmem:[%s3888 + $0xc8] sm:$0xff] %v3946
        %3979 = vst [vmem:[%s3888 + $0xd0] sm:$0xff] %v3947
        %3980 = vst [vmem:[%s3888 + $0xd8] sm:$0xff] %v3948
        %3981 = vst [vmem:[%s3888 + $0xe0] sm:$0xff] %v3949
        %3982 = vst [vmem:[%s3888 + $0xe8] sm:$0xff] %v3950
        %3983 = vst [vmem:[%s3888 + $0xf0] sm:$0xff] %v3951
        %3984 = vst [vmem:[%s3888 + $0xf8] sm:$0xff] %v3952
        %s3985 = scalar_lea.vmem %s1, 384
        %v3986 = vld [vmem:[%s3985] sm:$0xf]
        %v3987 = vld [vmem:[%s3985 + $0x4] sm:$0xf]
        %v3988 = vld [vmem:[%s3985 + $0x8] sm:$0xf]
        %v3989 = vld [vmem:[%s3985 + $0xc] sm:$0xf]
        %v3990 = vld [vmem:[%s3985 + $0x10] sm:$0xf]
        %v3991 = vld [vmem:[%s3985 + $0x14] sm:$0xf]
        %v3992 = vld [vmem:[%s3985 + $0x18] sm:$0xf]
        %v3993 = vld [vmem:[%s3985 + $0x1c] sm:$0xf]
        %v3994 = vld [vmem:[%s3985 + $0x20] sm:$0xf]
        %v3995 = vld [vmem:[%s3985 + $0x24] sm:$0xf]
        %v3996 = vld [vmem:[%s3985 + $0x28] sm:$0xf]
        %v3997 = vld [vmem:[%s3985 + $0x2c] sm:$0xf]
        %v3998 = vld [vmem:[%s3985 + $0x30] sm:$0xf]
        %v3999 = vld [vmem:[%s3985 + $0x34] sm:$0xf]
        %v4000 = vld [vmem:[%s3985 + $0x38] sm:$0xf]
        %v4001 = vld [vmem:[%s3985 + $0x3c] sm:$0xf]
        %v4002 = vld [vmem:[%s3985 + $0x40] sm:$0xf]
        %v4003 = vld [vmem:[%s3985 + $0x44] sm:$0xf]
        %v4004 = vld [vmem:[%s3985 + $0x48] sm:$0xf]
        %v4005 = vld [vmem:[%s3985 + $0x4c] sm:$0xf]
        %v4006 = vld [vmem:[%s3985 + $0x50] sm:$0xf]
        %v4007 = vld [vmem:[%s3985 + $0x54] sm:$0xf]
        %v4008 = vld [vmem:[%s3985 + $0x58] sm:$0xf]
        %v4009 = vld [vmem:[%s3985 + $0x5c] sm:$0xf]
        %v4010 = vld [vmem:[%s3985 + $0x60] sm:$0xf]
        %v4011 = vld [vmem:[%s3985 + $0x64] sm:$0xf]
        %v4012 = vld [vmem:[%s3985 + $0x68] sm:$0xf]
        %v4013 = vld [vmem:[%s3985 + $0x6c] sm:$0xf]
        %v4014 = vld [vmem:[%s3985 + $0x70] sm:$0xf]
        %v4015 = vld [vmem:[%s3985 + $0x74] sm:$0xf]
        %v4016 = vld [vmem:[%s3985 + $0x78] sm:$0xf]
        %v4017 = vld [vmem:[%s3985 + $0x7c] sm:$0xf]
        %s4018 = scalar_lea.vmem %s2, 768
        %v4019 = vld [vmem:[%s4018] sm:$0xff]
        %v4020 = vld [vmem:[%s4018 + $0x8] sm:$0xff]
        %v4021 = vld [vmem:[%s4018 + $0x10] sm:$0xff]
        %v4022 = vld [vmem:[%s4018 + $0x18] sm:$0xff]
        %v4023 = vld [vmem:[%s4018 + $0x20] sm:$0xff]
        %v4024 = vld [vmem:[%s4018 + $0x28] sm:$0xff]
        %v4025 = vld [vmem:[%s4018 + $0x30] sm:$0xff]
        %v4026 = vld [vmem:[%s4018 + $0x38] sm:$0xff]
        %v4027 = vld [vmem:[%s4018 + $0x40] sm:$0xff]
        %v4028 = vld [vmem:[%s4018 + $0x48] sm:$0xff]
        %v4029 = vld [vmem:[%s4018 + $0x50] sm:$0xff]
        %v4030 = vld [vmem:[%s4018 + $0x58] sm:$0xff]
        %v4031 = vld [vmem:[%s4018 + $0x60] sm:$0xff]
        %v4032 = vld [vmem:[%s4018 + $0x68] sm:$0xff]
        %v4033 = vld [vmem:[%s4018 + $0x70] sm:$0xff]
        %v4034 = vld [vmem:[%s4018 + $0x78] sm:$0xff]
        %v4035 = vld [vmem:[%s4018 + $0x80] sm:$0xff]
        %v4036 = vld [vmem:[%s4018 + $0x88] sm:$0xff]
        %v4037 = vld [vmem:[%s4018 + $0x90] sm:$0xff]
        %v4038 = vld [vmem:[%s4018 + $0x98] sm:$0xff]
        %v4039 = vld [vmem:[%s4018 + $0xa0] sm:$0xff]
        %v4040 = vld [vmem:[%s4018 + $0xa8] sm:$0xff]
        %v4041 = vld [vmem:[%s4018 + $0xb0] sm:$0xff]
        %v4042 = vld [vmem:[%s4018 + $0xb8] sm:$0xff]
        %v4043 = vld [vmem:[%s4018 + $0xc0] sm:$0xff]
        %v4044 = vld [vmem:[%s4018 + $0xc8] sm:$0xff]
        %v4045 = vld [vmem:[%s4018 + $0xd0] sm:$0xff]
        %v4046 = vld [vmem:[%s4018 + $0xd8] sm:$0xff]
        %v4047 = vld [vmem:[%s4018 + $0xe0] sm:$0xff]
        %v4048 = vld [vmem:[%s4018 + $0xe8] sm:$0xff]
        %v4049 = vld [vmem:[%s4018 + $0xf0] sm:$0xff]
        %v4050 = vld [vmem:[%s4018 + $0xf8] sm:$0xff]
        %4052 = vset.pattern.permute.xlu0 0
        %4053 = vperm.xlu0 %4052, %v4019
        %v4054 = vpop.permute.xlu0 %4053
        %4057 = vset.pattern.permute.xlu0 0
        %4058 = vperm.xlu0 %4057, %v4020
        %v4059 = vpop.permute.xlu0 %4058
        %4062 = vset.pattern.permute.xlu0 0
        %4063 = vperm.xlu0 %4062, %v4021
        %v4064 = vpop.permute.xlu0 %4063
        %4067 = vset.pattern.permute.xlu0 0
        %4068 = vperm.xlu0 %4067, %v4022
        %v4069 = vpop.permute.xlu0 %4068
        %4072 = vset.pattern.permute.xlu0 0
        %4073 = vperm.xlu0 %4072, %v4023
        %v4074 = vpop.permute.xlu0 %4073
        %4077 = vset.pattern.permute.xlu0 0
        %4078 = vperm.xlu0 %4077, %v4024
        %v4079 = vpop.permute.xlu0 %4078
        %4082 = vset.pattern.permute.xlu0 0
        %4083 = vperm.xlu0 %4082, %v4025
        %v4084 = vpop.permute.xlu0 %4083
        %4087 = vset.pattern.permute.xlu0 0
        %4088 = vperm.xlu0 %4087, %v4026
        %v4089 = vpop.permute.xlu0 %4088
        %4092 = vset.pattern.permute.xlu0 0
        %4093 = vperm.xlu0 %4092, %v4027
        %v4094 = vpop.permute.xlu0 %4093
        %4097 = vset.pattern.permute.xlu0 0
        %4098 = vperm.xlu0 %4097, %v4028
        %v4099 = vpop.permute.xlu0 %4098
        %4102 = vset.pattern.permute.xlu0 0
        %4103 = vperm.xlu0 %4102, %v4029
        %v4104 = vpop.permute.xlu0 %4103
        %4107 = vset.pattern.permute.xlu0 0
        %4108 = vperm.xlu0 %4107, %v4030
        %v4109 = vpop.permute.xlu0 %4108
        %4112 = vset.pattern.permute.xlu0 0
        %4113 = vperm.xlu0 %4112, %v4031
        %v4114 = vpop.permute.xlu0 %4113
        %4117 = vset.pattern.permute.xlu0 0
        %4118 = vperm.xlu0 %4117, %v4032
        %v4119 = vpop.permute.xlu0 %4118
        %4122 = vset.pattern.permute.xlu0 0
        %4123 = vperm.xlu0 %4122, %v4033
        %v4124 = vpop.permute.xlu0 %4123
        %4127 = vset.pattern.permute.xlu0 0
        %4128 = vperm.xlu0 %4127, %v4034
        %v4129 = vpop.permute.xlu0 %4128
        %4132 = vset.pattern.permute.xlu0 0
        %4133 = vperm.xlu0 %4132, %v4035
        %v4134 = vpop.permute.xlu0 %4133
        %4137 = vset.pattern.permute.xlu0 0
        %4138 = vperm.xlu0 %4137, %v4036
        %v4139 = vpop.permute.xlu0 %4138
        %4142 = vset.pattern.permute.xlu0 0
        %4143 = vperm.xlu0 %4142, %v4037
        %v4144 = vpop.permute.xlu0 %4143
        %4147 = vset.pattern.permute.xlu0 0
        %4148 = vperm.xlu0 %4147, %v4038
        %v4149 = vpop.permute.xlu0 %4148
        %4152 = vset.pattern.permute.xlu0 0
        %4153 = vperm.xlu0 %4152, %v4039
        %v4154 = vpop.permute.xlu0 %4153
        %4157 = vset.pattern.permute.xlu0 0
        %4158 = vperm.xlu0 %4157, %v4040
        %v4159 = vpop.permute.xlu0 %4158
        %4162 = vset.pattern.permute.xlu0 0
        %4163 = vperm.xlu0 %4162, %v4041
        %v4164 = vpop.permute.xlu0 %4163
        %4167 = vset.pattern.permute.xlu0 0
        %4168 = vperm.xlu0 %4167, %v4042
        %v4169 = vpop.permute.xlu0 %4168
        %4172 = vset.pattern.permute.xlu0 0
        %4173 = vperm.xlu0 %4172, %v4043
        %v4174 = vpop.permute.xlu0 %4173
        %4177 = vset.pattern.permute.xlu0 0
        %4178 = vperm.xlu0 %4177, %v4044
        %v4179 = vpop.permute.xlu0 %4178
        %4182 = vset.pattern.permute.xlu0 0
        %4183 = vperm.xlu0 %4182, %v4045
        %v4184 = vpop.permute.xlu0 %4183
        %4187 = vset.pattern.permute.xlu0 0
        %4188 = vperm.xlu0 %4187, %v4046
        %v4189 = vpop.permute.xlu0 %4188
        %4192 = vset.pattern.permute.xlu0 0
        %4193 = vperm.xlu0 %4192, %v4047
        %v4194 = vpop.permute.xlu0 %4193
        %4197 = vset.pattern.permute.xlu0 0
        %4198 = vperm.xlu0 %4197, %v4048
        %v4199 = vpop.permute.xlu0 %4198
        %4202 = vset.pattern.permute.xlu0 0
        %4203 = vperm.xlu0 %4202, %v4049
        %v4204 = vpop.permute.xlu0 %4203
        %4207 = vset.pattern.permute.xlu0 0
        %4208 = vperm.xlu0 %4207, %v4050
        %v4209 = vpop.permute.xlu0 %4208
        %v4243 = vunpack.c.l.b16 %v3986
        %v4244 = vunpack.c.l.b16 %v3987
        %v4245 = vunpack.c.l.b16 %v3988
        %v4246 = vunpack.c.l.b16 %v3989
        %v4247 = vunpack.c.l.b16 %v3990
        %v4248 = vunpack.c.l.b16 %v3991
        %v4249 = vunpack.c.l.b16 %v3992
        %v4250 = vunpack.c.l.b16 %v3993
        %v4251 = vunpack.c.l.b16 %v3994
        %v4252 = vunpack.c.l.b16 %v3995
        %v4253 = vunpack.c.l.b16 %v3996
        %v4254 = vunpack.c.l.b16 %v3997
        %v4255 = vunpack.c.l.b16 %v3998
        %v4256 = vunpack.c.l.b16 %v3999
        %v4257 = vunpack.c.l.b16 %v4000
        %v4258 = vunpack.c.l.b16 %v4001
        %v4259 = vunpack.c.l.b16 %v4002
        %v4260 = vunpack.c.l.b16 %v4003
        %v4261 = vunpack.c.l.b16 %v4004
        %v4262 = vunpack.c.l.b16 %v4005
        %v4263 = vunpack.c.l.b16 %v4006
        %v4264 = vunpack.c.l.b16 %v4007
        %v4265 = vunpack.c.l.b16 %v4008
        %v4266 = vunpack.c.l.b16 %v4009
        %v4267 = vunpack.c.l.b16 %v4010
        %v4268 = vunpack.c.l.b16 %v4011
        %v4269 = vunpack.c.l.b16 %v4012
        %v4270 = vunpack.c.l.b16 %v4013
        %v4271 = vunpack.c.l.b16 %v4014
        %v4272 = vunpack.c.l.b16 %v4015
        %v4273 = vunpack.c.l.b16 %v4016
        %v4274 = vunpack.c.l.b16 %v4017
        %v4275 = vpack.c.b16 %v4244, %v4243
        %v4276 = vpack.c.b16 %v4246, %v4245
        %v4277 = vpack.c.b16 %v4248, %v4247
        %v4278 = vpack.c.b16 %v4250, %v4249
        %v4279 = vpack.c.b16 %v4252, %v4251
        %v4280 = vpack.c.b16 %v4254, %v4253
        %v4281 = vpack.c.b16 %v4256, %v4255
        %v4282 = vpack.c.b16 %v4258, %v4257
        %v4283 = vpack.c.b16 %v4260, %v4259
        %v4284 = vpack.c.b16 %v4262, %v4261
        %v4285 = vpack.c.b16 %v4264, %v4263
        %v4286 = vpack.c.b16 %v4266, %v4265
        %v4287 = vpack.c.b16 %v4268, %v4267
        %v4288 = vpack.c.b16 %v4270, %v4269
        %v4289 = vpack.c.b16 %v4272, %v4271
        %v4290 = vpack.c.b16 %v4274, %v4273
        %v4292 = vsel %vm909, %v4275, 0
        %v4295 = vsel %vm909, %v4276, 0
        %v4298 = vsel %vm909, %v4277, 0
        %v4301 = vsel %vm909, %v4278, 0
        %v4304 = vsel %vm909, %v4279, 0
        %v4307 = vsel %vm909, %v4280, 0
        %v4310 = vsel %vm909, %v4281, 0
        %v4313 = vsel %vm909, %v4282, 0
        %v4316 = vsel %vm909, %v4283, 0
        %v4319 = vsel %vm909, %v4284, 0
        %v4322 = vsel %vm909, %v4285, 0
        %v4325 = vsel %vm909, %v4286, 0
        %v4328 = vsel %vm909, %v4287, 0
        %v4331 = vsel %vm909, %v4288, 0
        %v4334 = vsel %vm909, %v4289, 0
        %v4337 = vsel %vm909, %v4290, 0
        %4339 = vmatprep.subr.bf16.mxu0 %v966
        %4340 = vmatpush1.bf16.msra.mxu0 %v963
        %4341 = vmatprep.subr.bf16.mxu0 0
        %4342 = vmatpush1.bf16.msra.mxu0 0
        %4343 = vmatprep.subr.bf16.mxu0 0
        %4344 = vmatpush1.bf16.msra.mxu0 0
        %4345 = vmatprep.subr.bf16.mxu0 0
        %4346 = vmatpush1.bf16.msra.mxu0 0
        %4347 = vmatprep.subr.bf16.mxu0 0
        %4348 = vmatpush1.bf16.msra.mxu0 0
        %4349 = vmatprep.subr.bf16.mxu0 0
        %4350 = vmatpush1.bf16.msra.mxu0 0
        %4351 = vmatprep.subr.bf16.mxu0 0
        %4352 = vmatpush1.bf16.msra.mxu0 0
        %4353 = vmatprep.subr.bf16.mxu0 0
        %4354 = vmatpush1.bf16.msra.mxu0 0
        %4355 = vmatprep.subr.bf16.mxu0 0
        %4356 = vmatpush1.bf16.msra.mxu0 0
        %4357 = vmatprep.subr.bf16.mxu0 0
        %4358 = vmatpush1.bf16.msra.mxu0 0
        %4359 = vmatprep.subr.bf16.mxu0 0
        %4360 = vmatpush1.bf16.msra.mxu0 0
        %4361 = vmatprep.subr.bf16.mxu0 0
        %4362 = vmatpush1.bf16.msra.mxu0 0
        %4363 = vmatprep.subr.bf16.mxu0 0
        %4364 = vmatpush1.bf16.msra.mxu0 0
        %4365 = vmatprep.subr.bf16.mxu0 0
        %4366 = vmatpush1.bf16.msra.mxu0 0
        %4367 = vmatprep.subr.bf16.mxu0 0
        %4368 = vmatpush1.bf16.msra.mxu0 0
        %4369 = vmatprep.subr.bf16.mxu0 0
        %4370 = vmatpush1.bf16.msra.mxu0 0
        %4371 = vmatprep.mubr.bf16.mxu0 0
        %4372 = vmatmul.mubr.bf16.gmra.mrb[0].mxu0 %v4292
        %v4373 = vpop.f32.mrb[0].mxu0
        %v4374 = vadd.f32 %v4054, %v4373
        %v4375 = vpop.f32.mrb[0].mxu0
        %v4376 = vadd.f32 %v4054, %v4375
        %v4377 = vpop.f32.mrb[0].mxu0
        %v4378 = vadd.f32 %v4059, %v4377
        %v4379 = vpop.f32.mrb[0].mxu0
        %v4380 = vadd.f32 %v4059, %v4379
        %4381 = vmatprep.mubr.bf16.mxu0 0
        %4382 = vmatmul.mubr.bf16.gmra.mrb[0].mxu0 %v4295
        %v4383 = vpop.f32.mrb[0].mxu0
        %v4384 = vadd.f32 %v4064, %v4383
        %v4385 = vpop.f32.mrb[0].mxu0
        %v4386 = vadd.f32 %v4064, %v4385
        %v4387 = vpop.f32.mrb[0].mxu0
        %v4388 = vadd.f32 %v4069, %v4387
        %v4389 = vpop.f32.mrb[0].mxu0
        %v4390 = vadd.f32 %v4069, %v4389
        %4391 = vmatprep.mubr.bf16.mxu0 0
        %4392 = vmatmul.mubr.bf16.gmra.mrb[0].mxu0 %v4298
        %v4393 = vpop.f32.mrb[0].mxu0
        %v4394 = vadd.f32 %v4074, %v4393
        %v4395 = vpop.f32.mrb[0].mxu0
        %v4396 = vadd.f32 %v4074, %v4395
        %v4397 = vpop.f32.mrb[0].mxu0
        %v4398 = vadd.f32 %v4079, %v4397
        %v4399 = vpop.f32.mrb[0].mxu0
        %v4400 = vadd.f32 %v4079, %v4399
        %4401 = vmatprep.mubr.bf16.mxu0 0
        %4402 = vmatmul.mubr.bf16.gmra.mrb[0].mxu0 %v4301
        %v4403 = vpop.f32.mrb[0].mxu0
        %v4404 = vadd.f32 %v4084, %v4403
        %v4405 = vpop.f32.mrb[0].mxu0
        %v4406 = vadd.f32 %v4084, %v4405
        %v4407 = vpop.f32.mrb[0].mxu0
        %v4408 = vadd.f32 %v4089, %v4407
        %v4409 = vpop.f32.mrb[0].mxu0
        %v4410 = vadd.f32 %v4089, %v4409
        %4411 = vmatprep.mubr.bf16.mxu0 0
        %4412 = vmatmul.mubr.bf16.gmra.mrb[0].mxu0 %v4304
        %v4413 = vpop.f32.mrb[0].mxu0
        %v4414 = vadd.f32 %v4094, %v4413
        %v4415 = vpop.f32.mrb[0].mxu0
        %v4416 = vadd.f32 %v4094, %v4415
        %v4417 = vpop.f32.mrb[0].mxu0
        %v4418 = vadd.f32 %v4099, %v4417
        %v4419 = vpop.f32.mrb[0].mxu0
        %v4420 = vadd.f32 %v4099, %v4419
        %4421 = vmatprep.mubr.bf16.mxu0 0
        %4422 = vmatmul.mubr.bf16.gmra.mrb[0].mxu0 %v4307
        %v4423 = vpop.f32.mrb[0].mxu0
        %v4424 = vadd.f32 %v4104, %v4423
        %v4425 = vpop.f32.mrb[0].mxu0
        %v4426 = vadd.f32 %v4104, %v4425
        %v4427 = vpop.f32.mrb[0].mxu0
        %v4428 = vadd.f32 %v4109, %v4427
        %v4429 = vpop.f32.mrb[0].mxu0
        %v4430 = vadd.f32 %v4109, %v4429
        %4431 = vmatprep.mubr.bf16.mxu0 0
        %4432 = vmatmul.mubr.bf16.gmra.mrb[0].mxu0 %v4310
        %v4433 = vpop.f32.mrb[0].mxu0
        %v4434 = vadd.f32 %v4114, %v4433
        %v4435 = vpop.f32.mrb[0].mxu0
        %v4436 = vadd.f32 %v4114, %v4435
        %v4437 = vpop.f32.mrb[0].mxu0
        %v4438 = vadd.f32 %v4119, %v4437
        %v4439 = vpop.f32.mrb[0].mxu0
        %v4440 = vadd.f32 %v4119, %v4439
        %4441 = vmatprep.mubr.bf16.mxu0 0
        %4442 = vmatmul.mubr.bf16.gmra.mrb[0].mxu0 %v4313
        %v4443 = vpop.f32.mrb[0].mxu0
        %v4444 = vadd.f32 %v4124, %v4443
        %v4445 = vpop.f32.mrb[0].mxu0
        %v4446 = vadd.f32 %v4124, %v4445
        %v4447 = vpop.f32.mrb[0].mxu0
        %v4448 = vadd.f32 %v4129, %v4447
        %v4449 = vpop.f32.mrb[0].mxu0
        %v4450 = vadd.f32 %v4129, %v4449
        %4451 = vmatprep.mubr.bf16.mxu0 0
        %4452 = vmatmul.mubr.bf16.gmra.mrb[0].mxu0 %v4316
        %v4453 = vpop.f32.mrb[0].mxu0
        %v4454 = vadd.f32 %v4134, %v4453
        %v4455 = vpop.f32.mrb[0].mxu0
        %v4456 = vadd.f32 %v4134, %v4455
        %v4457 = vpop.f32.mrb[0].mxu0
        %v4458 = vadd.f32 %v4139, %v4457
        %v4459 = vpop.f32.mrb[0].mxu0
        %v4460 = vadd.f32 %v4139, %v4459
        %4461 = vmatprep.mubr.bf16.mxu0 0
        %4462 = vmatmul.mubr.bf16.gmra.mrb[0].mxu0 %v4319
        %v4463 = vpop.f32.mrb[0].mxu0
        %v4464 = vadd.f32 %v4144, %v4463
        %v4465 = vpop.f32.mrb[0].mxu0
        %v4466 = vadd.f32 %v4144, %v4465
        %v4467 = vpop.f32.mrb[0].mxu0
        %v4468 = vadd.f32 %v4149, %v4467
        %v4469 = vpop.f32.mrb[0].mxu0
        %v4470 = vadd.f32 %v4149, %v4469
        %4471 = vmatprep.mubr.bf16.mxu0 0
        %4472 = vmatmul.mubr.bf16.gmra.mrb[0].mxu0 %v4322
        %v4473 = vpop.f32.mrb[0].mxu0
        %v4474 = vadd.f32 %v4154, %v4473
        %v4475 = vpop.f32.mrb[0].mxu0
        %v4476 = vadd.f32 %v4154, %v4475
        %v4477 = vpop.f32.mrb[0].mxu0
        %v4478 = vadd.f32 %v4159, %v4477
        %v4479 = vpop.f32.mrb[0].mxu0
        %v4480 = vadd.f32 %v4159, %v4479
        %4481 = vmatprep.mubr.bf16.mxu0 0
        %4482 = vmatmul.mubr.bf16.gmra.mrb[0].mxu0 %v4325
        %v4483 = vpop.f32.mrb[0].mxu0
        %v4484 = vadd.f32 %v4164, %v4483
        %v4485 = vpop.f32.mrb[0].mxu0
        %v4486 = vadd.f32 %v4164, %v4485
        %v4487 = vpop.f32.mrb[0].mxu0
        %v4488 = vadd.f32 %v4169, %v4487
        %v4489 = vpop.f32.mrb[0].mxu0
        %v4490 = vadd.f32 %v4169, %v4489
        %4491 = vmatprep.mubr.bf16.mxu0 0
        %4492 = vmatmul.mubr.bf16.gmra.mrb[0].mxu0 %v4328
        %v4493 = vpop.f32.mrb[0].mxu0
        %v4494 = vadd.f32 %v4174, %v4493
        %v4495 = vpop.f32.mrb[0].mxu0
        %v4496 = vadd.f32 %v4174, %v4495
        %v4497 = vpop.f32.mrb[0].mxu0
        %v4498 = vadd.f32 %v4179, %v4497
        %v4499 = vpop.f32.mrb[0].mxu0
        %v4500 = vadd.f32 %v4179, %v4499
        %4501 = vmatprep.mubr.bf16.mxu0 0
        %4502 = vmatmul.mubr.bf16.gmra.mrb[0].mxu0 %v4331
        %v4503 = vpop.f32.mrb[0].mxu0
        %v4504 = vadd.f32 %v4184, %v4503
        %v4505 = vpop.f32.mrb[0].mxu0
        %v4506 = vadd.f32 %v4184, %v4505
        %v4507 = vpop.f32.mrb[0].mxu0
        %v4508 = vadd.f32 %v4189, %v4507
        %v4509 = vpop.f32.mrb[0].mxu0
        %v4510 = vadd.f32 %v4189, %v4509
        %4511 = vmatprep.mubr.bf16.mxu0 0
        %4512 = vmatmul.mubr.bf16.gmra.mrb[0].mxu0 %v4334
        %v4513 = vpop.f32.mrb[0].mxu0
        %v4514 = vadd.f32 %v4194, %v4513
        %v4515 = vpop.f32.mrb[0].mxu0
        %v4516 = vadd.f32 %v4194, %v4515
        %v4517 = vpop.f32.mrb[0].mxu0
        %v4518 = vadd.f32 %v4199, %v4517
        %v4519 = vpop.f32.mrb[0].mxu0
        %v4520 = vadd.f32 %v4199, %v4519
        %4521 = vmatprep.mubr.bf16.mxu0 0
        %4522 = vmatmul.mubr.bf16.gmra.mrb[0].mxu0 %v4337
        %v4523 = vpop.f32.mrb[0].mxu0
        %v4524 = vadd.f32 %v4204, %v4523
        %v4525 = vpop.f32.mrb[0].mxu0
        %v4526 = vadd.f32 %v4204, %v4525
        %v4527 = vpop.f32.mrb[0].mxu0
        %v4528 = vadd.f32 %v4209, %v4527
        %v4529 = vpop.f32.mrb[0].mxu0
        %v4530 = vadd.f32 %v4209, %v4529
        %4531 = vdwg.mxu0
        %v4532 = vxor.u32 %v4374, 2147483648
        %v4533 = vxor.u32 %v4376, 2147483648
        %v4534 = vxor.u32 %v4378, 2147483648
        %v4535 = vxor.u32 %v4380, 2147483648
        %v4536 = vxor.u32 %v4384, 2147483648
        %v4537 = vxor.u32 %v4386, 2147483648
        %v4538 = vxor.u32 %v4388, 2147483648
        %v4539 = vxor.u32 %v4390, 2147483648
        %v4540 = vxor.u32 %v4394, 2147483648
        %v4541 = vxor.u32 %v4396, 2147483648
        %v4542 = vxor.u32 %v4398, 2147483648
        %v4543 = vxor.u32 %v4400, 2147483648
        %v4544 = vxor.u32 %v4404, 2147483648
        %v4545 = vxor.u32 %v4406, 2147483648
        %v4546 = vxor.u32 %v4408, 2147483648
        %v4547 = vxor.u32 %v4410, 2147483648
        %v4548 = vxor.u32 %v4414, 2147483648
        %v4549 = vxor.u32 %v4416, 2147483648
        %v4550 = vxor.u32 %v4418, 2147483648
        %v4551 = vxor.u32 %v4420, 2147483648
        %v4552 = vxor.u32 %v4424, 2147483648
        %v4553 = vxor.u32 %v4426, 2147483648
        %v4554 = vxor.u32 %v4428, 2147483648
        %v4555 = vxor.u32 %v4430, 2147483648
        %v4556 = vxor.u32 %v4434, 2147483648
        %v4557 = vxor.u32 %v4436, 2147483648
        %v4558 = vxor.u32 %v4438, 2147483648
        %v4559 = vxor.u32 %v4440, 2147483648
        %v4560 = vxor.u32 %v4444, 2147483648
        %v4561 = vxor.u32 %v4446, 2147483648
        %v4562 = vxor.u32 %v4448, 2147483648
        %v4563 = vxor.u32 %v4450, 2147483648
        %v4564 = vxor.u32 %v4454, 2147483648
        %v4565 = vxor.u32 %v4456, 2147483648
        %v4566 = vxor.u32 %v4458, 2147483648
        %v4567 = vxor.u32 %v4460, 2147483648
        %v4568 = vxor.u32 %v4464, 2147483648
        %v4569 = vxor.u32 %v4466, 2147483648
        %v4570 = vxor.u32 %v4468, 2147483648
        %v4571 = vxor.u32 %v4470, 2147483648
        %v4572 = vxor.u32 %v4474, 2147483648
        %v4573 = vxor.u32 %v4476, 2147483648
        %v4574 = vxor.u32 %v4478, 2147483648
        %v4575 = vxor.u32 %v4480, 2147483648
        %v4576 = vxor.u32 %v4484, 2147483648
        %v4577 = vxor.u32 %v4486, 2147483648
        %v4578 = vxor.u32 %v4488, 2147483648
        %v4579 = vxor.u32 %v4490, 2147483648
        %v4580 = vxor.u32 %v4494, 2147483648
        %v4581 = vxor.u32 %v4496, 2147483648
        %v4582 = vxor.u32 %v4498, 2147483648
        %v4583 = vxor.u32 %v4500, 2147483648
        %v4584 = vxor.u32 %v4504, 2147483648
        %v4585 = vxor.u32 %v4506, 2147483648
        %v4586 = vxor.u32 %v4508, 2147483648
        %v4587 = vxor.u32 %v4510, 2147483648
        %v4588 = vxor.u32 %v4514, 2147483648
        %v4589 = vxor.u32 %v4516, 2147483648
        %v4590 = vxor.u32 %v4518, 2147483648
        %v4591 = vxor.u32 %v4520, 2147483648
        %v4592 = vxor.u32 %v4524, 2147483648
        %v4593 = vxor.u32 %v4526, 2147483648
        %v4594 = vxor.u32 %v4528, 2147483648
        %v4595 = vxor.u32 %v4530, 2147483648
        %v4596 = vmul.f32 %v4532, 1.442695
        %v4597 = vpow.pop %v4596
        %v4598 = vmul.f32 %v4533, 1.442695
        %v4599 = vpow.pop %v4598
        %v4600 = vmul.f32 %v4534, 1.442695
        %v4601 = vpow.pop %v4600
        %v4602 = vmul.f32 %v4535, 1.442695
        %v4603 = vpow.pop %v4602
        %v4604 = vmul.f32 %v4536, 1.442695
        %v4605 = vpow.pop %v4604
        %v4606 = vmul.f32 %v4537, 1.442695
        %v4607 = vpow.pop %v4606
        %v4608 = vmul.f32 %v4538, 1.442695
        %v4609 = vpow.pop %v4608
        %v4610 = vmul.f32 %v4539, 1.442695
        %v4611 = vpow.pop %v4610
        %v4612 = vmul.f32 %v4540, 1.442695
        %v4613 = vpow.pop %v4612
        %v4614 = vmul.f32 %v4541, 1.442695
        %v4615 = vpow.pop %v4614
        %v4616 = vmul.f32 %v4542, 1.442695
        %v4617 = vpow.pop %v4616
        %v4618 = vmul.f32 %v4543, 1.442695
        %v4619 = vpow.pop %v4618
        %v4620 = vmul.f32 %v4544, 1.442695
        %v4621 = vpow.pop %v4620
        %v4622 = vmul.f32 %v4545, 1.442695
        %v4623 = vpow.pop %v4622
        %v4624 = vmul.f32 %v4546, 1.442695
        %v4625 = vpow.pop %v4624
        %v4626 = vmul.f32 %v4547, 1.442695
        %v4627 = vpow.pop %v4626
        %v4628 = vmul.f32 %v4548, 1.442695
        %v4629 = vpow.pop %v4628
        %v4630 = vmul.f32 %v4549, 1.442695
        %v4631 = vpow.pop %v4630
        %v4632 = vmul.f32 %v4550, 1.442695
        %v4633 = vpow.pop %v4632
        %v4634 = vmul.f32 %v4551, 1.442695
        %v4635 = vpow.pop %v4634
        %v4636 = vmul.f32 %v4552, 1.442695
        %v4637 = vpow.pop %v4636
        %v4638 = vmul.f32 %v4553, 1.442695
        %v4639 = vpow.pop %v4638
        %v4640 = vmul.f32 %v4554, 1.442695
        %v4641 = vpow.pop %v4640
        %v4642 = vmul.f32 %v4555, 1.442695
        %v4643 = vpow.pop %v4642
        %v4644 = vmul.f32 %v4556, 1.442695
        %v4645 = vpow.pop %v4644
        %v4646 = vmul.f32 %v4557, 1.442695
        %v4647 = vpow.pop %v4646
        %v4648 = vmul.f32 %v4558, 1.442695
        %v4649 = vpow.pop %v4648
        %v4650 = vmul.f32 %v4559, 1.442695
        %v4651 = vpow.pop %v4650
        %v4652 = vmul.f32 %v4560, 1.442695
        %v4653 = vpow.pop %v4652
        %v4654 = vmul.f32 %v4561, 1.442695
        %v4655 = vpow.pop %v4654
        %v4656 = vmul.f32 %v4562, 1.442695
        %v4657 = vpow.pop %v4656
        %v4658 = vmul.f32 %v4563, 1.442695
        %v4659 = vpow.pop %v4658
        %v4660 = vmul.f32 %v4564, 1.442695
        %v4661 = vpow.pop %v4660
        %v4662 = vmul.f32 %v4565, 1.442695
        %v4663 = vpow.pop %v4662
        %v4664 = vmul.f32 %v4566, 1.442695
        %v4665 = vpow.pop %v4664
        %v4666 = vmul.f32 %v4567, 1.442695
        %v4667 = vpow.pop %v4666
        %v4668 = vmul.f32 %v4568, 1.442695
        %v4669 = vpow.pop %v4668
        %v4670 = vmul.f32 %v4569, 1.442695
        %v4671 = vpow.pop %v4670
        %v4672 = vmul.f32 %v4570, 1.442695
        %v4673 = vpow.pop %v4672
        %v4674 = vmul.f32 %v4571, 1.442695
        %v4675 = vpow.pop %v4674
        %v4676 = vmul.f32 %v4572, 1.442695
        %v4677 = vpow.pop %v4676
        %v4678 = vmul.f32 %v4573, 1.442695
        %v4679 = vpow.pop %v4678
        %v4680 = vmul.f32 %v4574, 1.442695
        %v4681 = vpow.pop %v4680
        %v4682 = vmul.f32 %v4575, 1.442695
        %v4683 = vpow.pop %v4682
        %v4684 = vmul.f32 %v4576, 1.442695
        %v4685 = vpow.pop %v4684
        %v4686 = vmul.f32 %v4577, 1.442695
        %v4687 = vpow.pop %v4686
        %v4688 = vmul.f32 %v4578, 1.442695
        %v4689 = vpow.pop %v4688
        %v4690 = vmul.f32 %v4579, 1.442695
        %v4691 = vpow.pop %v4690
        %v4692 = vmul.f32 %v4580, 1.442695
        %v4693 = vpow.pop %v4692
        %v4694 = vmul.f32 %v4581, 1.442695
        %v4695 = vpow.pop %v4694
        %v4696 = vmul.f32 %v4582, 1.442695
        %v4697 = vpow.pop %v4696
        %v4698 = vmul.f32 %v4583, 1.442695
        %v4699 = vpow.pop %v4698
        %v4700 = vmul.f32 %v4584, 1.442695
        %v4701 = vpow.pop %v4700
        %v4702 = vmul.f32 %v4585, 1.442695
        %v4703 = vpow.pop %v4702
        %v4704 = vmul.f32 %v4586, 1.442695
        %v4705 = vpow.pop %v4704
        %v4706 = vmul.f32 %v4587, 1.442695
        %v4707 = vpow.pop %v4706
        %v4708 = vmul.f32 %v4588, 1.442695
        %v4709 = vpow.pop %v4708
        %v4710 = vmul.f32 %v4589, 1.442695
        %v4711 = vpow.pop %v4710
        %v4712 = vmul.f32 %v4590, 1.442695
        %v4713 = vpow.pop %v4712
        %v4714 = vmul.f32 %v4591, 1.442695
        %v4715 = vpow.pop %v4714
        %v4716 = vmul.f32 %v4592, 1.442695
        %v4717 = vpow.pop %v4716
        %v4718 = vmul.f32 %v4593, 1.442695
        %v4719 = vpow.pop %v4718
        %v4720 = vmul.f32 %v4594, 1.442695
        %v4721 = vpow.pop %v4720
        %v4722 = vmul.f32 %v4595, 1.442695
        %v4723 = vpow.pop %v4722
        %v4724 = vadd.f32 %v4597, 1.0
        %v4725 = vadd.f32 %v4599, 1.0
        %v4726 = vadd.f32 %v4601, 1.0
        %v4727 = vadd.f32 %v4603, 1.0
        %v4728 = vadd.f32 %v4605, 1.0
        %v4729 = vadd.f32 %v4607, 1.0
        %v4730 = vadd.f32 %v4609, 1.0
        %v4731 = vadd.f32 %v4611, 1.0
        %v4732 = vadd.f32 %v4613, 1.0
        %v4733 = vadd.f32 %v4615, 1.0
        %v4734 = vadd.f32 %v4617, 1.0
        %v4735 = vadd.f32 %v4619, 1.0
        %v4736 = vadd.f32 %v4621, 1.0
        %v4737 = vadd.f32 %v4623, 1.0
        %v4738 = vadd.f32 %v4625, 1.0
        %v4739 = vadd.f32 %v4627, 1.0
        %v4740 = vadd.f32 %v4629, 1.0
        %v4741 = vadd.f32 %v4631, 1.0
        %v4742 = vadd.f32 %v4633, 1.0
        %v4743 = vadd.f32 %v4635, 1.0
        %v4744 = vadd.f32 %v4637, 1.0
        %v4745 = vadd.f32 %v4639, 1.0
        %v4746 = vadd.f32 %v4641, 1.0
        %v4747 = vadd.f32 %v4643, 1.0
        %v4748 = vadd.f32 %v4645, 1.0
        %v4749 = vadd.f32 %v4647, 1.0
        %v4750 = vadd.f32 %v4649, 1.0
        %v4751 = vadd.f32 %v4651, 1.0
        %v4752 = vadd.f32 %v4653, 1.0
        %v4753 = vadd.f32 %v4655, 1.0
        %v4754 = vadd.f32 %v4657, 1.0
        %v4755 = vadd.f32 %v4659, 1.0
        %v4756 = vadd.f32 %v4661, 1.0
        %v4757 = vadd.f32 %v4663, 1.0
        %v4758 = vadd.f32 %v4665, 1.0
        %v4759 = vadd.f32 %v4667, 1.0
        %v4760 = vadd.f32 %v4669, 1.0
        %v4761 = vadd.f32 %v4671, 1.0
        %v4762 = vadd.f32 %v4673, 1.0
        %v4763 = vadd.f32 %v4675, 1.0
        %v4764 = vadd.f32 %v4677, 1.0
        %v4765 = vadd.f32 %v4679, 1.0
        %v4766 = vadd.f32 %v4681, 1.0
        %v4767 = vadd.f32 %v4683, 1.0
        %v4768 = vadd.f32 %v4685, 1.0
        %v4769 = vadd.f32 %v4687, 1.0
        %v4770 = vadd.f32 %v4689, 1.0
        %v4771 = vadd.f32 %v4691, 1.0
        %v4772 = vadd.f32 %v4693, 1.0
        %v4773 = vadd.f32 %v4695, 1.0
        %v4774 = vadd.f32 %v4697, 1.0
        %v4775 = vadd.f32 %v4699, 1.0
        %v4776 = vadd.f32 %v4701, 1.0
        %v4777 = vadd.f32 %v4703, 1.0
        %v4778 = vadd.f32 %v4705, 1.0
        %v4779 = vadd.f32 %v4707, 1.0
        %v4780 = vadd.f32 %v4709, 1.0
        %v4781 = vadd.f32 %v4711, 1.0
        %v4782 = vadd.f32 %v4713, 1.0
        %v4783 = vadd.f32 %v4715, 1.0
        %v4784 = vadd.f32 %v4717, 1.0
        %v4785 = vadd.f32 %v4719, 1.0
        %v4786 = vadd.f32 %v4721, 1.0
        %v4787 = vadd.f32 %v4723, 1.0
        %v4788 = vrcp.pop %v4724
        %v4789 = vmul.f32 1.0, %v4788
        %v4790 = vrcp.pop %v4725
        %v4791 = vmul.f32 1.0, %v4790
        %v4792 = vrcp.pop %v4726
        %v4793 = vmul.f32 1.0, %v4792
        %v4794 = vrcp.pop %v4727
        %v4795 = vmul.f32 1.0, %v4794
        %v4796 = vrcp.pop %v4728
        %v4797 = vmul.f32 1.0, %v4796
        %v4798 = vrcp.pop %v4729
        %v4799 = vmul.f32 1.0, %v4798
        %v4800 = vrcp.pop %v4730
        %v4801 = vmul.f32 1.0, %v4800
        %v4802 = vrcp.pop %v4731
        %v4803 = vmul.f32 1.0, %v4802
        %v4804 = vrcp.pop %v4732
        %v4805 = vmul.f32 1.0, %v4804
        %v4806 = vrcp.pop %v4733
        %v4807 = vmul.f32 1.0, %v4806
        %v4808 = vrcp.pop %v4734
        %v4809 = vmul.f32 1.0, %v4808
        %v4810 = vrcp.pop %v4735
        %v4811 = vmul.f32 1.0, %v4810
        %v4812 = vrcp.pop %v4736
        %v4813 = vmul.f32 1.0, %v4812
        %v4814 = vrcp.pop %v4737
        %v4815 = vmul.f32 1.0, %v4814
        %v4816 = vrcp.pop %v4738
        %v4817 = vmul.f32 1.0, %v4816
        %v4818 = vrcp.pop %v4739
        %v4819 = vmul.f32 1.0, %v4818
        %v4820 = vrcp.pop %v4740
        %v4821 = vmul.f32 1.0, %v4820
        %v4822 = vrcp.pop %v4741
        %v4823 = vmul.f32 1.0, %v4822
        %v4824 = vrcp.pop %v4742
        %v4825 = vmul.f32 1.0, %v4824
        %v4826 = vrcp.pop %v4743
        %v4827 = vmul.f32 1.0, %v4826
        %v4828 = vrcp.pop %v4744
        %v4829 = vmul.f32 1.0, %v4828
        %v4830 = vrcp.pop %v4745
        %v4831 = vmul.f32 1.0, %v4830
        %v4832 = vrcp.pop %v4746
        %v4833 = vmul.f32 1.0, %v4832
        %v4834 = vrcp.pop %v4747
        %v4835 = vmul.f32 1.0, %v4834
        %v4836 = vrcp.pop %v4748
        %v4837 = vmul.f32 1.0, %v4836
        %v4838 = vrcp.pop %v4749
        %v4839 = vmul.f32 1.0, %v4838
        %v4840 = vrcp.pop %v4750
        %v4841 = vmul.f32 1.0, %v4840
        %v4842 = vrcp.pop %v4751
        %v4843 = vmul.f32 1.0, %v4842
        %v4844 = vrcp.pop %v4752
        %v4845 = vmul.f32 1.0, %v4844
        %v4846 = vrcp.pop %v4753
        %v4847 = vmul.f32 1.0, %v4846
        %v4848 = vrcp.pop %v4754
        %v4849 = vmul.f32 1.0, %v4848
        %v4850 = vrcp.pop %v4755
        %v4851 = vmul.f32 1.0, %v4850
        %v4852 = vrcp.pop %v4756
        %v4853 = vmul.f32 1.0, %v4852
        %v4854 = vrcp.pop %v4757
        %v4855 = vmul.f32 1.0, %v4854
        %v4856 = vrcp.pop %v4758
        %v4857 = vmul.f32 1.0, %v4856
        %v4858 = vrcp.pop %v4759
        %v4859 = vmul.f32 1.0, %v4858
        %v4860 = vrcp.pop %v4760
        %v4861 = vmul.f32 1.0, %v4860
        %v4862 = vrcp.pop %v4761
        %v4863 = vmul.f32 1.0, %v4862
        %v4864 = vrcp.pop %v4762
        %v4865 = vmul.f32 1.0, %v4864
        %v4866 = vrcp.pop %v4763
        %v4867 = vmul.f32 1.0, %v4866
        %v4868 = vrcp.pop %v4764
        %v4869 = vmul.f32 1.0, %v4868
        %v4870 = vrcp.pop %v4765
        %v4871 = vmul.f32 1.0, %v4870
        %v4872 = vrcp.pop %v4766
        %v4873 = vmul.f32 1.0, %v4872
        %v4874 = vrcp.pop %v4767
        %v4875 = vmul.f32 1.0, %v4874
        %v4876 = vrcp.pop %v4768
        %v4877 = vmul.f32 1.0, %v4876
        %v4878 = vrcp.pop %v4769
        %v4879 = vmul.f32 1.0, %v4878
        %v4880 = vrcp.pop %v4770
        %v4881 = vmul.f32 1.0, %v4880
        %v4882 = vrcp.pop %v4771
        %v4883 = vmul.f32 1.0, %v4882
        %v4884 = vrcp.pop %v4772
        %v4885 = vmul.f32 1.0, %v4884
        %v4886 = vrcp.pop %v4773
        %v4887 = vmul.f32 1.0, %v4886
        %v4888 = vrcp.pop %v4774
        %v4889 = vmul.f32 1.0, %v4888
        %v4890 = vrcp.pop %v4775
        %v4891 = vmul.f32 1.0, %v4890
        %v4892 = vrcp.pop %v4776
        %v4893 = vmul.f32 1.0, %v4892
        %v4894 = vrcp.pop %v4777
        %v4895 = vmul.f32 1.0, %v4894
        %v4896 = vrcp.pop %v4778
        %v4897 = vmul.f32 1.0, %v4896
        %v4898 = vrcp.pop %v4779
        %v4899 = vmul.f32 1.0, %v4898
        %v4900 = vrcp.pop %v4780
        %v4901 = vmul.f32 1.0, %v4900
        %v4902 = vrcp.pop %v4781
        %v4903 = vmul.f32 1.0, %v4902
        %v4904 = vrcp.pop %v4782
        %v4905 = vmul.f32 1.0, %v4904
        %v4906 = vrcp.pop %v4783
        %v4907 = vmul.f32 1.0, %v4906
        %v4908 = vrcp.pop %v4784
        %v4909 = vmul.f32 1.0, %v4908
        %v4910 = vrcp.pop %v4785
        %v4911 = vmul.f32 1.0, %v4910
        %v4912 = vrcp.pop %v4786
        %v4913 = vmul.f32 1.0, %v4912
        %v4914 = vrcp.pop %v4787
        %v4915 = vmul.f32 1.0, %v4914
        %v4916 = vmul.f32 %v4374, %v4789
        %v4917 = vmul.f32 %v4376, %v4791
        %v4918 = vmul.f32 %v4378, %v4793
        %v4919 = vmul.f32 %v4380, %v4795
        %v4920 = vmul.f32 %v4384, %v4797
        %v4921 = vmul.f32 %v4386, %v4799
        %v4922 = vmul.f32 %v4388, %v4801
        %v4923 = vmul.f32 %v4390, %v4803
        %v4924 = vmul.f32 %v4394, %v4805
        %v4925 = vmul.f32 %v4396, %v4807
        %v4926 = vmul.f32 %v4398, %v4809
        %v4927 = vmul.f32 %v4400, %v4811
        %v4928 = vmul.f32 %v4404, %v4813
        %v4929 = vmul.f32 %v4406, %v4815
        %v4930 = vmul.f32 %v4408, %v4817
        %v4931 = vmul.f32 %v4410, %v4819
        %v4932 = vmul.f32 %v4414, %v4821
        %v4933 = vmul.f32 %v4416, %v4823
        %v4934 = vmul.f32 %v4418, %v4825
        %v4935 = vmul.f32 %v4420, %v4827
        %v4936 = vmul.f32 %v4424, %v4829
        %v4937 = vmul.f32 %v4426, %v4831
        %v4938 = vmul.f32 %v4428, %v4833
        %v4939 = vmul.f32 %v4430, %v4835
        %v4940 = vmul.f32 %v4434, %v4837
        %v4941 = vmul.f32 %v4436, %v4839
        %v4942 = vmul.f32 %v4438, %v4841
        %v4943 = vmul.f32 %v4440, %v4843
        %v4944 = vmul.f32 %v4444, %v4845
        %v4945 = vmul.f32 %v4446, %v4847
        %v4946 = vmul.f32 %v4448, %v4849
        %v4947 = vmul.f32 %v4450, %v4851
        %v4948 = vmul.f32 %v4454, %v4853
        %v4949 = vmul.f32 %v4456, %v4855
        %v4950 = vmul.f32 %v4458, %v4857
        %v4951 = vmul.f32 %v4460, %v4859
        %v4952 = vmul.f32 %v4464, %v4861
        %v4953 = vmul.f32 %v4466, %v4863
        %v4954 = vmul.f32 %v4468, %v4865
        %v4955 = vmul.f32 %v4470, %v4867
        %v4956 = vmul.f32 %v4474, %v4869
        %v4957 = vmul.f32 %v4476, %v4871
        %v4958 = vmul.f32 %v4478, %v4873
        %v4959 = vmul.f32 %v4480, %v4875
        %v4960 = vmul.f32 %v4484, %v4877
        %v4961 = vmul.f32 %v4486, %v4879
        %v4962 = vmul.f32 %v4488, %v4881
        %v4963 = vmul.f32 %v4490, %v4883
        %v4964 = vmul.f32 %v4494, %v4885
        %v4965 = vmul.f32 %v4496, %v4887
        %v4966 = vmul.f32 %v4498, %v4889
        %v4967 = vmul.f32 %v4500, %v4891
        %v4968 = vmul.f32 %v4504, %v4893
        %v4969 = vmul.f32 %v4506, %v4895
        %v4970 = vmul.f32 %v4508, %v4897
        %v4971 = vmul.f32 %v4510, %v4899
        %v4972 = vmul.f32 %v4514, %v4901
        %v4973 = vmul.f32 %v4516, %v4903
        %v4974 = vmul.f32 %v4518, %v4905
        %v4975 = vmul.f32 %v4520, %v4907
        %v4976 = vmul.f32 %v4524, %v4909
        %v4977 = vmul.f32 %v4526, %v4911
        %v4978 = vmul.f32 %v4528, %v4913
        %v4979 = vmul.f32 %v4530, %v4915
        %v4980 = vadd.f32 %v4916, %v4917
        %v4981 = vadd.f32 %v4918, %v4919
        %v4982 = vadd.f32 %v4920, %v4921
        %v4983 = vadd.f32 %v4922, %v4923
        %v4984 = vadd.f32 %v4924, %v4925
        %v4985 = vadd.f32 %v4926, %v4927
        %v4986 = vadd.f32 %v4928, %v4929
        %v4987 = vadd.f32 %v4930, %v4931
        %v4988 = vadd.f32 %v4932, %v4933
        %v4989 = vadd.f32 %v4934, %v4935
        %v4990 = vadd.f32 %v4936, %v4937
        %v4991 = vadd.f32 %v4938, %v4939
        %v4992 = vadd.f32 %v4940, %v4941
        %v4993 = vadd.f32 %v4942, %v4943
        %v4994 = vadd.f32 %v4944, %v4945
        %v4995 = vadd.f32 %v4946, %v4947
        %v4996 = vadd.f32 %v4948, %v4949
        %v4997 = vadd.f32 %v4950, %v4951
        %v4998 = vadd.f32 %v4952, %v4953
        %v4999 = vadd.f32 %v4954, %v4955
        %v5000 = vadd.f32 %v4956, %v4957
        %v5001 = vadd.f32 %v4958, %v4959
        %v5002 = vadd.f32 %v4960, %v4961
        %v5003 = vadd.f32 %v4962, %v4963
        %v5004 = vadd.f32 %v4964, %v4965
        %v5005 = vadd.f32 %v4966, %v4967
        %v5006 = vadd.f32 %v4968, %v4969
        %v5007 = vadd.f32 %v4970, %v4971
        %v5008 = vadd.f32 %v4972, %v4973
        %v5009 = vadd.f32 %v4974, %v4975
        %v5010 = vadd.f32 %v4976, %v4977
        %v5011 = vadd.f32 %v4978, %v4979
        %s5012 = scalar_lea.vmem [#allocation2], 768
        %v5013 = vld [vmem:[%s5012] sm:$0xff]
        %v5014 = vld [vmem:[%s5012 + $0x8] sm:$0xff]
        %v5015 = vld [vmem:[%s5012 + $0x10] sm:$0xff]
        %v5016 = vld [vmem:[%s5012 + $0x18] sm:$0xff]
        %v5017 = vld [vmem:[%s5012 + $0x20] sm:$0xff]
        %v5018 = vld [vmem:[%s5012 + $0x28] sm:$0xff]
        %v5019 = vld [vmem:[%s5012 + $0x30] sm:$0xff]
        %v5020 = vld [vmem:[%s5012 + $0x38] sm:$0xff]
        %v5021 = vld [vmem:[%s5012 + $0x40] sm:$0xff]
        %v5022 = vld [vmem:[%s5012 + $0x48] sm:$0xff]
        %v5023 = vld [vmem:[%s5012 + $0x50] sm:$0xff]
        %v5024 = vld [vmem:[%s5012 + $0x58] sm:$0xff]
        %v5025 = vld [vmem:[%s5012 + $0x60] sm:$0xff]
        %v5026 = vld [vmem:[%s5012 + $0x68] sm:$0xff]
        %v5027 = vld [vmem:[%s5012 + $0x70] sm:$0xff]
        %v5028 = vld [vmem:[%s5012 + $0x78] sm:$0xff]
        %v5029 = vld [vmem:[%s5012 + $0x80] sm:$0xff]
        %v5030 = vld [vmem:[%s5012 + $0x88] sm:$0xff]
        %v5031 = vld [vmem:[%s5012 + $0x90] sm:$0xff]
        %v5032 = vld [vmem:[%s5012 + $0x98] sm:$0xff]
        %v5033 = vld [vmem:[%s5012 + $0xa0] sm:$0xff]
        %v5034 = vld [vmem:[%s5012 + $0xa8] sm:$0xff]
        %v5035 = vld [vmem:[%s5012 + $0xb0] sm:$0xff]
        %v5036 = vld [vmem:[%s5012 + $0xb8] sm:$0xff]
        %v5037 = vld [vmem:[%s5012 + $0xc0] sm:$0xff]
        %v5038 = vld [vmem:[%s5012 + $0xc8] sm:$0xff]
        %v5039 = vld [vmem:[%s5012 + $0xd0] sm:$0xff]
        %v5040 = vld [vmem:[%s5012 + $0xd8] sm:$0xff]
        %v5041 = vld [vmem:[%s5012 + $0xe0] sm:$0xff]
        %v5042 = vld [vmem:[%s5012 + $0xe8] sm:$0xff]
        %v5043 = vld [vmem:[%s5012 + $0xf0] sm:$0xff]
        %v5044 = vld [vmem:[%s5012 + $0xf8] sm:$0xff]
        %v5045 = vadd.f32 %v5013, %v4980
        %v5046 = vadd.f32 %v5014, %v4981
        %v5047 = vadd.f32 %v5015, %v4982
        %v5048 = vadd.f32 %v5016, %v4983
        %v5049 = vadd.f32 %v5017, %v4984
        %v5050 = vadd.f32 %v5018, %v4985
        %v5051 = vadd.f32 %v5019, %v4986
        %v5052 = vadd.f32 %v5020, %v4987
        %v5053 = vadd.f32 %v5021, %v4988
        %v5054 = vadd.f32 %v5022, %v4989
        %v5055 = vadd.f32 %v5023, %v4990
        %v5056 = vadd.f32 %v5024, %v4991
        %v5057 = vadd.f32 %v5025, %v4992
        %v5058 = vadd.f32 %v5026, %v4993
        %v5059 = vadd.f32 %v5027, %v4994
        %v5060 = vadd.f32 %v5028, %v4995
        %v5061 = vadd.f32 %v5029, %v4996
        %v5062 = vadd.f32 %v5030, %v4997
        %v5063 = vadd.f32 %v5031, %v4998
        %v5064 = vadd.f32 %v5032, %v4999
        %v5065 = vadd.f32 %v5033, %v5000
        %v5066 = vadd.f32 %v5034, %v5001
        %v5067 = vadd.f32 %v5035, %v5002
        %v5068 = vadd.f32 %v5036, %v5003
        %v5069 = vadd.f32 %v5037, %v5004
        %v5070 = vadd.f32 %v5038, %v5005
        %v5071 = vadd.f32 %v5039, %v5006
        %v5072 = vadd.f32 %v5040, %v5007
        %v5073 = vadd.f32 %v5041, %v5008
        %v5074 = vadd.f32 %v5042, %v5009
        %v5075 = vadd.f32 %v5043, %v5010
        %v5076 = vadd.f32 %v5044, %v5011
        %5077 = vst [vmem:[%s5012] sm:$0xff] %v5045
        %5078 = vst [vmem:[%s5012 + $0x8] sm:$0xff] %v5046
        %5079 = vst [vmem:[%s5012 + $0x10] sm:$0xff] %v5047
        %5080 = vst [vmem:[%s5012 + $0x18] sm:$0xff] %v5048
        %5081 = vst [vmem:[%s5012 + $0x20] sm:$0xff] %v5049
        %5082 = vst [vmem:[%s5012 + $0x28] sm:$0xff] %v5050
        %5083 = vst [vmem:[%s5012 + $0x30] sm:$0xff] %v5051
        %5084 = vst [vmem:[%s5012 + $0x38] sm:$0xff] %v5052
        %5085 = vst [vmem:[%s5012 + $0x40] sm:$0xff] %v5053
        %5086 = vst [vmem:[%s5012 + $0x48] sm:$0xff] %v5054
        %5087 = vst [vmem:[%s5012 + $0x50] sm:$0xff] %v5055
        %5088 = vst [vmem:[%s5012 + $0x58] sm:$0xff] %v5056
        %5089 = vst [vmem:[%s5012 + $0x60] sm:$0xff] %v5057
        %5090 = vst [vmem:[%s5012 + $0x68] sm:$0xff] %v5058
        %5091 = vst [vmem:[%s5012 + $0x70] sm:$0xff] %v5059
        %5092 = vst [vmem:[%s5012 + $0x78] sm:$0xff] %v5060
        %5093 = vst [vmem:[%s5012 + $0x80] sm:$0xff] %v5061
        %5094 = vst [vmem:[%s5012 + $0x88] sm:$0xff] %v5062
        %5095 = vst [vmem:[%s5012 + $0x90] sm:$0xff] %v5063
        %5096 = vst [vmem:[%s5012 + $0x98] sm:$0xff] %v5064
        %5097 = vst [vmem:[%s5012 + $0xa0] sm:$0xff] %v5065
        %5098 = vst [vmem:[%s5012 + $0xa8] sm:$0xff] %v5066
        %5099 = vst [vmem:[%s5012 + $0xb0] sm:$0xff] %v5067
        %5100 = vst [vmem:[%s5012 + $0xb8] sm:$0xff] %v5068
        %5101 = vst [vmem:[%s5012 + $0xc0] sm:$0xff] %v5069
        %5102 = vst [vmem:[%s5012 + $0xc8] sm:$0xff] %v5070
        %5103 = vst [vmem:[%s5012 + $0xd0] sm:$0xff] %v5071
        %5104 = vst [vmem:[%s5012 + $0xd8] sm:$0xff] %v5072
        %5105 = vst [vmem:[%s5012 + $0xe0] sm:$0xff] %v5073
        %5106 = vst [vmem:[%s5012 + $0xe8] sm:$0xff] %v5074
        %5107 = vst [vmem:[%s5012 + $0xf0] sm:$0xff] %v5075
        %5108 = vst [vmem:[%s5012 + $0xf8] sm:$0xff] %v5076
        %s5109 = scalar_lea.vmem %s1, 512
        %v5110 = vld [vmem:[%s5109] sm:$0xf]
        %v5111 = vld [vmem:[%s5109 + $0x4] sm:$0xf]
        %v5112 = vld [vmem:[%s5109 + $0x8] sm:$0xf]
        %v5113 = vld [vmem:[%s5109 + $0xc] sm:$0xf]
        %v5114 = vld [vmem:[%s5109 + $0x10] sm:$0xf]
        %v5115 = vld [vmem:[%s5109 + $0x14] sm:$0xf]
        %v5116 = vld [vmem:[%s5109 + $0x18] sm:$0xf]
        %v5117 = vld [vmem:[%s5109 + $0x1c] sm:$0xf]
        %v5118 = vld [vmem:[%s5109 + $0x20] sm:$0xf]
        %v5119 = vld [vmem:[%s5109 + $0x24] sm:$0xf]
        %v5120 = vld [vmem:[%s5109 + $0x28] sm:$0xf]
        %v5121 = vld [vmem:[%s5109 + $0x2c] sm:$0xf]
        %v5122 = vld [vmem:[%s5109 + $0x30] sm:$0xf]
        %v5123 = vld [vmem:[%s5109 + $0x34] sm:$0xf]
        %v5124 = vld [vmem:[%s5109 + $0x38] sm:$0xf]
        %v5125 = vld [vmem:[%s5109 + $0x3c] sm:$0xf]
        %v5126 = vld [vmem:[%s5109 + $0x40] sm:$0xf]
        %v5127 = vld [vmem:[%s5109 + $0x44] sm:$0xf]
        %v5128 = vld [vmem:[%s5109 + $0x48] sm:$0xf]
        %v5129 = vld [vmem:[%s5109 + $0x4c] sm:$0xf]
        %v5130 = vld [vmem:[%s5109 + $0x50] sm:$0xf]
        %v5131 = vld [vmem:[%s5109 + $0x54] sm:$0xf]
        %v5132 = vld [vmem:[%s5109 + $0x58] sm:$0xf]
        %v5133 = vld [vmem:[%s5109 + $0x5c] sm:$0xf]
        %v5134 = vld [vmem:[%s5109 + $0x60] sm:$0xf]
        %v5135 = vld [vmem:[%s5109 + $0x64] sm:$0xf]
        %v5136 = vld [vmem:[%s5109 + $0x68] sm:$0xf]
        %v5137 = vld [vmem:[%s5109 + $0x6c] sm:$0xf]
        %v5138 = vld [vmem:[%s5109 + $0x70] sm:$0xf]
        %v5139 = vld [vmem:[%s5109 + $0x74] sm:$0xf]
        %v5140 = vld [vmem:[%s5109 + $0x78] sm:$0xf]
        %v5141 = vld [vmem:[%s5109 + $0x7c] sm:$0xf]
        %s5142 = scalar_lea.vmem %s2, 1024
        %v5143 = vld [vmem:[%s5142] sm:$0xff]
        %v5144 = vld [vmem:[%s5142 + $0x8] sm:$0xff]
        %v5145 = vld [vmem:[%s5142 + $0x10] sm:$0xff]
        %v5146 = vld [vmem:[%s5142 + $0x18] sm:$0xff]
        %v5147 = vld [vmem:[%s5142 + $0x20] sm:$0xff]
        %v5148 = vld [vmem:[%s5142 + $0x28] sm:$0xff]
        %v5149 = vld [vmem:[%s5142 + $0x30] sm:$0xff]
        %v5150 = vld [vmem:[%s5142 + $0x38] sm:$0xff]
        %v5151 = vld [vmem:[%s5142 + $0x40] sm:$0xff]
        %v5152 = vld [vmem:[%s5142 + $0x48] sm:$0xff]
        %v5153 = vld [vmem:[%s5142 + $0x50] sm:$0xff]
        %v5154 = vld [vmem:[%s5142 + $0x58] sm:$0xff]
        %v5155 = vld [vmem:[%s5142 + $0x60] sm:$0xff]
        %v5156 = vld [vmem:[%s5142 + $0x68] sm:$0xff]
        %v5157 = vld [vmem:[%s5142 + $0x70] sm:$0xff]
        %v5158 = vld [vmem:[%s5142 + $0x78] sm:$0xff]
        %v5159 = vld [vmem:[%s5142 + $0x80] sm:$0xff]
        %v5160 = vld [vmem:[%s5142 + $0x88] sm:$0xff]
        %v5161 = vld [vmem:[%s5142 + $0x90] sm:$0xff]
        %v5162 = vld [vmem:[%s5142 + $0x98] sm:$0xff]
        %v5163 = vld [vmem:[%s5142 + $0xa0] sm:$0xff]
        %v5164 = vld [vmem:[%s5142 + $0xa8] sm:$0xff]
        %v5165 = vld [vmem:[%s5142 + $0xb0] sm:$0xff]
        %v5166 = vld [vmem:[%s5142 + $0xb8] sm:$0xff]
        %v5167 = vld [vmem:[%s5142 + $0xc0] sm:$0xff]
        %v5168 = vld [vmem:[%s5142 + $0xc8] sm:$0xff]
        %v5169 = vld [vmem:[%s5142 + $0xd0] sm:$0xff]
        %v5170 = vld [vmem:[%s5142 + $0xd8] sm:$0xff]
        %v5171 = vld [vmem:[%s5142 + $0xe0] sm:$0xff]
        %v5172 = vld [vmem:[%s5142 + $0xe8] sm:$0xff]
        %v5173 = vld [vmem:[%s5142 + $0xf0] sm:$0xff]
        %v5174 = vld [vmem:[%s5142 + $0xf8] sm:$0xff]
        %5176 = vset.pattern.permute.xlu0 0
        %5177 = vperm.xlu0 %5176, %v5143
        %v5178 = vpop.permute.xlu0 %5177
        %5181 = vset.pattern.permute.xlu0 0
        %5182 = vperm.xlu0 %5181, %v5144
        %v5183 = vpop.permute.xlu0 %5182
        %5186 = vset.pattern.permute.xlu0 0
        %5187 = vperm.xlu0 %5186, %v5145
        %v5188 = vpop.permute.xlu0 %5187
        %5191 = vset.pattern.permute.xlu0 0
        %5192 = vperm.xlu0 %5191, %v5146
        %v5193 = vpop.permute.xlu0 %5192
        %5196 = vset.pattern.permute.xlu0 0
        %5197 = vperm.xlu0 %5196, %v5147
        %v5198 = vpop.permute.xlu0 %5197
        %5201 = vset.pattern.permute.xlu0 0
        %5202 = vperm.xlu0 %5201, %v5148
        %v5203 = vpop.permute.xlu0 %5202
        %5206 = vset.pattern.permute.xlu0 0
        %5207 = vperm.xlu0 %5206, %v5149
        %v5208 = vpop.permute.xlu0 %5207
        %5211 = vset.pattern.permute.xlu0 0
        %5212 = vperm.xlu0 %5211, %v5150
        %v5213 = vpop.permute.xlu0 %5212
        %5216 = vset.pattern.permute.xlu0 0
        %5217 = vperm.xlu0 %5216, %v5151
        %v5218 = vpop.permute.xlu0 %5217
        %5221 = vset.pattern.permute.xlu0 0
        %5222 = vperm.xlu0 %5221, %v5152
        %v5223 = vpop.permute.xlu0 %5222
        %5226 = vset.pattern.permute.xlu0 0
        %5227 = vperm.xlu0 %5226, %v5153
        %v5228 = vpop.permute.xlu0 %5227
        %5231 = vset.pattern.permute.xlu0 0
        %5232 = vperm.xlu0 %5231, %v5154
        %v5233 = vpop.permute.xlu0 %5232
        %5236 = vset.pattern.permute.xlu0 0
        %5237 = vperm.xlu0 %5236, %v5155
        %v5238 = vpop.permute.xlu0 %5237
        %5241 = vset.pattern.permute.xlu0 0
        %5242 = vperm.xlu0 %5241, %v5156
        %v5243 = vpop.permute.xlu0 %5242
        %5246 = vset.pattern.permute.xlu0 0
        %5247 = vperm.xlu0 %5246, %v5157
        %v5248 = vpop.permute.xlu0 %5247
        %5251 = vset.pattern.permute.xlu0 0
        %5252 = vperm.xlu0 %5251, %v5158
        %v5253 = vpop.permute.xlu0 %5252
        %5256 = vset.pattern.permute.xlu0 0
        %5257 = vperm.xlu0 %5256, %v5159
        %v5258 = vpop.permute.xlu0 %5257
        %5261 = vset.pattern.permute.xlu0 0
        %5262 = vperm.xlu0 %5261, %v5160
        %v5263 = vpop.permute.xlu0 %5262
        %5266 = vset.pattern.permute.xlu0 0
        %5267 = vperm.xlu0 %5266, %v5161
        %v5268 = vpop.permute.xlu0 %5267
        %5271 = vset.pattern.permute.xlu0 0
        %5272 = vperm.xlu0 %5271, %v5162
        %v5273 = vpop.permute.xlu0 %5272
        %5276 = vset.pattern.permute.xlu0 0
        %5277 = vperm.xlu0 %5276, %v5163
        %v5278 = vpop.permute.xlu0 %5277
        %5281 = vset.pattern.permute.xlu0 0
        %5282 = vperm.xlu0 %5281, %v5164
        %v5283 = vpop.permute.xlu0 %5282
        %5286 = vset.pattern.permute.xlu0 0
        %5287 = vperm.xlu0 %5286, %v5165
        %v5288 = vpop.permute.xlu0 %5287
        %5291 = vset.pattern.permute.xlu0 0
        %5292 = vperm.xlu0 %5291, %v5166
        %v5293 = vpop.permute.xlu0 %5292
        %5296 = vset.pattern.permute.xlu0 0
        %5297 = vperm.xlu0 %5296, %v5167
        %v5298 = vpop.permute.xlu0 %5297
        %5301 = vset.pattern.permute.xlu0 0
        %5302 = vperm.xlu0 %5301, %v5168
        %v5303 = vpop.permute.xlu0 %5302
        %5306 = vset.pattern.permute.xlu0 0
        %5307 = vperm.xlu0 %5306, %v5169
        %v5308 = vpop.permute.xlu0 %5307
        %5311 = vset.pattern.permute.xlu0 0
        %5312 = vperm.xlu0 %5311, %v5170
        %v5313 = vpop.permute.xlu0 %5312
        %5316 = vset.pattern.permute.xlu0 0
        %5317 = vperm.xlu0 %5316, %v5171
        %v5318 = vpop.permute.xlu0 %5317
        %5321 = vset.pattern.permute.xlu0 0
        %5322 = vperm.xlu0 %5321, %v5172
        %v5323 = vpop.permute.xlu0 %5322
        %5326 = vset.pattern.permute.xlu0 0
        %5327 = vperm.xlu0 %5326, %v5173
        %v5328 = vpop.permute.xlu0 %5327
        %5331 = vset.pattern.permute.xlu0 0
        %5332 = vperm.xlu0 %5331, %v5174
        %v5333 = vpop.permute.xlu0 %5332
        %v5367 = vunpack.c.l.b16 %v5110
        %v5368 = vunpack.c.l.b16 %v5111
        %v5369 = vunpack.c.l.b16 %v5112
        %v5370 = vunpack.c.l.b16 %v5113
        %v5371 = vunpack.c.l.b16 %v5114
        %v5372 = vunpack.c.l.b16 %v5115
        %v5373 = vunpack.c.l.b16 %v5116
        %v5374 = vunpack.c.l.b16 %v5117
        %v5375 = vunpack.c.l.b16 %v5118
        %v5376 = vunpack.c.l.b16 %v5119
        %v5377 = vunpack.c.l.b16 %v5120
        %v5378 = vunpack.c.l.b16 %v5121
        %v5379 = vunpack.c.l.b16 %v5122
        %v5380 = vunpack.c.l.b16 %v5123
        %v5381 = vunpack.c.l.b16 %v5124
        %v5382 = vunpack.c.l.b16 %v5125
        %v5383 = vunpack.c.l.b16 %v5126
        %v5384 = vunpack.c.l.b16 %v5127
        %v5385 = vunpack.c.l.b16 %v5128
        %v5386 = vunpack.c.l.b16 %v5129
        %v5387 = vunpack.c.l.b16 %v5130
        %v5388 = vunpack.c.l.b16 %v5131
        %v5389 = vunpack.c.l.b16 %v5132
        %v5390 = vunpack.c.l.b16 %v5133
        %v5391 = vunpack.c.l.b16 %v5134
        %v5392 = vunpack.c.l.b16 %v5135
        %v5393 = vunpack.c.l.b16 %v5136
        %v5394 = vunpack.c.l.b16 %v5137
        %v5395 = vunpack.c.l.b16 %v5138
        %v5396 = vunpack.c.l.b16 %v5139
        %v5397 = vunpack.c.l.b16 %v5140
        %v5398 = vunpack.c.l.b16 %v5141
        %v5399 = vpack.c.b16 %v5368, %v5367
        %v5400 = vpack.c.b16 %v5370, %v5369
        %v5401 = vpack.c.b16 %v5372, %v5371
        %v5402 = vpack.c.b16 %v5374, %v5373
        %v5403 = vpack.c.b16 %v5376, %v5375
        %v5404 = vpack.c.b16 %v5378, %v5377
        %v5405 = vpack.c.b16 %v5380, %v5379
        %v5406 = vpack.c.b16 %v5382, %v5381
        %v5407 = vpack.c.b16 %v5384, %v5383
        %v5408 = vpack.c.b16 %v5386, %v5385
        %v5409 = vpack.c.b16 %v5388, %v5387
        %v5410 = vpack.c.b16 %v5390, %v5389
        %v5411 = vpack.c.b16 %v5392, %v5391
        %v5412 = vpack.c.b16 %v5394, %v5393
        %v5413 = vpack.c.b16 %v5396, %v5395
        %v5414 = vpack.c.b16 %v5398, %v5397
        %v5416 = vsel %vm909, %v5399, 0
        %v5419 = vsel %vm909, %v5400, 0
        %v5422 = vsel %vm909, %v5401, 0
        %v5425 = vsel %vm909, %v5402, 0
        %v5428 = vsel %vm909, %v5403, 0
        %v5431 = vsel %vm909, %v5404, 0
        %v5434 = vsel %vm909, %v5405, 0
        %v5437 = vsel %vm909, %v5406, 0
        %v5440 = vsel %vm909, %v5407, 0
        %v5443 = vsel %vm909, %v5408, 0
        %v5446 = vsel %vm909, %v5409, 0
        %v5449 = vsel %vm909, %v5410, 0
        %v5452 = vsel %vm909, %v5411, 0
        %v5455 = vsel %vm909, %v5412, 0
        %v5458 = vsel %vm909, %v5413, 0
        %v5461 = vsel %vm909, %v5414, 0
        %5463 = vmatprep.subr.bf16.mxu0 %v966
        %5464 = vmatpush1.bf16.msra.mxu0 %v963
        %5465 = vmatprep.subr.bf16.mxu0 0
        %5466 = vmatpush1.bf16.msra.mxu0 0
        %5467 = vmatprep.subr.bf16.mxu0 0
        %5468 = vmatpush1.bf16.msra.mxu0 0
        %5469 = vmatprep.subr.bf16.mxu0 0
        %5470 = vmatpush1.bf16.msra.mxu0 0
        %5471 = vmatprep.subr.bf16.mxu0 0
        %5472 = vmatpush1.bf16.msra.mxu0 0
        %5473 = vmatprep.subr.bf16.mxu0 0
        %5474 = vmatpush1.bf16.msra.mxu0 0
        %5475 = vmatprep.subr.bf16.mxu0 0
        %5476 = vmatpush1.bf16.msra.mxu0 0
        %5477 = vmatprep.subr.bf16.mxu0 0
        %5478 = vmatpush1.bf16.msra.mxu0 0
        %5479 = vmatprep.subr.bf16.mxu0 0
        %5480 = vmatpush1.bf16.msra.mxu0 0
        %5481 = vmatprep.subr.bf16.mxu0 0
        %5482 = vmatpush1.bf16.msra.mxu0 0
        %5483 = vmatprep.subr.bf16.mxu0 0
        %5484 = vmatpush1.bf16.msra.mxu0 0
        %5485 = vmatprep.subr.bf16.mxu0 0
        %5486 = vmatpush1.bf16.msra.mxu0 0
        %5487 = vmatprep.subr.bf16.mxu0 0
        %5488 = vmatpush1.bf16.msra.mxu0 0
        %5489 = vmatprep.subr.bf16.mxu0 0
        %5490 = vmatpush1.bf16.msra.mxu0 0
        %5491 = vmatprep.subr.bf16.mxu0 0
        %5492 = vmatpush1.bf16.msra.mxu0 0
        %5493 = vmatprep.subr.bf16.mxu0 0
        %5494 = vmatpush1.bf16.msra.mxu0 0
        %5495 = vmatprep.mubr.bf16.mxu0 0
        %5496 = vmatmul.mubr.bf16.gmra.mrb[0].mxu0 %v5416
        %v5497 = vpop.f32.mrb[0].mxu0
        %v5498 = vadd.f32 %v5178, %v5497
        %v5499 = vpop.f32.mrb[0].mxu0
        %v5500 = vadd.f32 %v5178, %v5499
        %v5501 = vpop.f32.mrb[0].mxu0
        %v5502 = vadd.f32 %v5183, %v5501
        %v5503 = vpop.f32.mrb[0].mxu0
        %v5504 = vadd.f32 %v5183, %v5503
        %5505 = vmatprep.mubr.bf16.mxu0 0
        %5506 = vmatmul.mubr.bf16.gmra.mrb[0].mxu0 %v5419
        %v5507 = vpop.f32.mrb[0].mxu0
        %v5508 = vadd.f32 %v5188, %v5507
        %v5509 = vpop.f32.mrb[0].mxu0
        %v5510 = vadd.f32 %v5188, %v5509
        %v5511 = vpop.f32.mrb[0].mxu0
        %v5512 = vadd.f32 %v5193, %v5511
        %v5513 = vpop.f32.mrb[0].mxu0
        %v5514 = vadd.f32 %v5193, %v5513
        %5515 = vmatprep.mubr.bf16.mxu0 0
        %5516 = vmatmul.mubr.bf16.gmra.mrb[0].mxu0 %v5422
        %v5517 = vpop.f32.mrb[0].mxu0
        %v5518 = vadd.f32 %v5198, %v5517
        %v5519 = vpop.f32.mrb[0].mxu0
        %v5520 = vadd.f32 %v5198, %v5519
        %v5521 = vpop.f32.mrb[0].mxu0
        %v5522 = vadd.f32 %v5203, %v5521
        %v5523 = vpop.f32.mrb[0].mxu0
        %v5524 = vadd.f32 %v5203, %v5523
        %5525 = vmatprep.mubr.bf16.mxu0 0
        %5526 = vmatmul.mubr.bf16.gmra.mrb[0].mxu0 %v5425
        %v5527 = vpop.f32.mrb[0].mxu0
        %v5528 = vadd.f32 %v5208, %v5527
        %v5529 = vpop.f32.mrb[0].mxu0
        %v5530 = vadd.f32 %v5208, %v5529
        %v5531 = vpop.f32.mrb[0].mxu0
        %v5532 = vadd.f32 %v5213, %v5531
        %v5533 = vpop.f32.mrb[0].mxu0
        %v5534 = vadd.f32 %v5213, %v5533
        %5535 = vmatprep.mubr.bf16.mxu0 0
        %5536 = vmatmul.mubr.bf16.gmra.mrb[0].mxu0 %v5428
        %v5537 = vpop.f32.mrb[0].mxu0
        %v5538 = vadd.f32 %v5218, %v5537
        %v5539 = vpop.f32.mrb[0].mxu0
        %v5540 = vadd.f32 %v5218, %v5539
        %v5541 = vpop.f32.mrb[0].mxu0
        %v5542 = vadd.f32 %v5223, %v5541
        %v5543 = vpop.f32.mrb[0].mxu0
        %v5544 = vadd.f32 %v5223, %v5543
        %5545 = vmatprep.mubr.bf16.mxu0 0
        %5546 = vmatmul.mubr.bf16.gmra.mrb[0].mxu0 %v5431
        %v5547 = vpop.f32.mrb[0].mxu0
        %v5548 = vadd.f32 %v5228, %v5547
        %v5549 = vpop.f32.mrb[0].mxu0
        %v5550 = vadd.f32 %v5228, %v5549
        %v5551 = vpop.f32.mrb[0].mxu0
        %v5552 = vadd.f32 %v5233, %v5551
        %v5553 = vpop.f32.mrb[0].mxu0
        %v5554 = vadd.f32 %v5233, %v5553
        %5555 = vmatprep.mubr.bf16.mxu0 0
        %5556 = vmatmul.mubr.bf16.gmra.mrb[0].mxu0 %v5434
        %v5557 = vpop.f32.mrb[0].mxu0
        %v5558 = vadd.f32 %v5238, %v5557
        %v5559 = vpop.f32.mrb[0].mxu0
        %v5560 = vadd.f32 %v5238, %v5559
        %v5561 = vpop.f32.mrb[0].mxu0
        %v5562 = vadd.f32 %v5243, %v5561
        %v5563 = vpop.f32.mrb[0].mxu0
        %v5564 = vadd.f32 %v5243, %v5563
        %5565 = vmatprep.mubr.bf16.mxu0 0
        %5566 = vmatmul.mubr.bf16.gmra.mrb[0].mxu0 %v5437
        %v5567 = vpop.f32.mrb[0].mxu0
        %v5568 = vadd.f32 %v5248, %v5567
        %v5569 = vpop.f32.mrb[0].mxu0
        %v5570 = vadd.f32 %v5248, %v5569
        %v5571 = vpop.f32.mrb[0].mxu0
        %v5572 = vadd.f32 %v5253, %v5571
        %v5573 = vpop.f32.mrb[0].mxu0
        %v5574 = vadd.f32 %v5253, %v5573
        %5575 = vmatprep.mubr.bf16.mxu0 0
        %5576 = vmatmul.mubr.bf16.gmra.mrb[0].mxu0 %v5440
        %v5577 = vpop.f32.mrb[0].mxu0
        %v5578 = vadd.f32 %v5258, %v5577
        %v5579 = vpop.f32.mrb[0].mxu0
        %v5580 = vadd.f32 %v5258, %v5579
        %v5581 = vpop.f32.mrb[0].mxu0
        %v5582 = vadd.f32 %v5263, %v5581
        %v5583 = vpop.f32.mrb[0].mxu0
        %v5584 = vadd.f32 %v5263, %v5583
        %5585 = vmatprep.mubr.bf16.mxu0 0
        %5586 = vmatmul.mubr.bf16.gmra.mrb[0].mxu0 %v5443
        %v5587 = vpop.f32.mrb[0].mxu0
        %v5588 = vadd.f32 %v5268, %v5587
        %v5589 = vpop.f32.mrb[0].mxu0
        %v5590 = vadd.f32 %v5268, %v5589
        %v5591 = vpop.f32.mrb[0].mxu0
        %v5592 = vadd.f32 %v5273, %v5591
        %v5593 = vpop.f32.mrb[0].mxu0
        %v5594 = vadd.f32 %v5273, %v5593
        %5595 = vmatprep.mubr.bf16.mxu0 0
        %5596 = vmatmul.mubr.bf16.gmra.mrb[0].mxu0 %v5446
        %v5597 = vpop.f32.mrb[0].mxu0
        %v5598 = vadd.f32 %v5278, %v5597
        %v5599 = vpop.f32.mrb[0].mxu0
        %v5600 = vadd.f32 %v5278, %v5599
        %v5601 = vpop.f32.mrb[0].mxu0
        %v5602 = vadd.f32 %v5283, %v5601
        %v5603 = vpop.f32.mrb[0].mxu0
        %v5604 = vadd.f32 %v5283, %v5603
        %5605 = vmatprep.mubr.bf16.mxu0 0
        %5606 = vmatmul.mubr.bf16.gmra.mrb[0].mxu0 %v5449
        %v5607 = vpop.f32.mrb[0].mxu0
        %v5608 = vadd.f32 %v5288, %v5607
        %v5609 = vpop.f32.mrb[0].mxu0
        %v5610 = vadd.f32 %v5288, %v5609
        %v5611 = vpop.f32.mrb[0].mxu0
        %v5612 = vadd.f32 %v5293, %v5611
        %v5613 = vpop.f32.mrb[0].mxu0
        %v5614 = vadd.f32 %v5293, %v5613
        %5615 = vmatprep.mubr.bf16.mxu0 0
        %5616 = vmatmul.mubr.bf16.gmra.mrb[0].mxu0 %v5452
        %v5617 = vpop.f32.mrb[0].mxu0
        %v5618 = vadd.f32 %v5298, %v5617
        %v5619 = vpop.f32.mrb[0].mxu0
        %v5620 = vadd.f32 %v5298, %v5619
        %v5621 = vpop.f32.mrb[0].mxu0
        %v5622 = vadd.f32 %v5303, %v5621
        %v5623 = vpop.f32.mrb[0].mxu0
        %v5624 = vadd.f32 %v5303, %v5623
        %5625 = vmatprep.mubr.bf16.mxu0 0
        %5626 = vmatmul.mubr.bf16.gmra.mrb[0].mxu0 %v5455
        %v5627 = vpop.f32.mrb[0].mxu0
        %v5628 = vadd.f32 %v5308, %v5627
        %v5629 = vpop.f32.mrb[0].mxu0
        %v5630 = vadd.f32 %v5308, %v5629
        %v5631 = vpop.f32.mrb[0].mxu0
        %v5632 = vadd.f32 %v5313, %v5631
        %v5633 = vpop.f32.mrb[0].mxu0
        %v5634 = vadd.f32 %v5313, %v5633
        %5635 = vmatprep.mubr.bf16.mxu0 0
        %5636 = vmatmul.mubr.bf16.gmra.mrb[0].mxu0 %v5458
        %v5637 = vpop.f32.mrb[0].mxu0
        %v5638 = vadd.f32 %v5318, %v5637
        %v5639 = vpop.f32.mrb[0].mxu0
        %v5640 = vadd.f32 %v5318, %v5639
        %v5641 = vpop.f32.mrb[0].mxu0
        %v5642 = vadd.f32 %v5323, %v5641
        %v5643 = vpop.f32.mrb[0].mxu0
        %v5644 = vadd.f32 %v5323, %v5643
        %5645 = vmatprep.mubr.bf16.mxu0 0
        %5646 = vmatmul.mubr.bf16.gmra.mrb[0].mxu0 %v5461
        %v5647 = vpop.f32.mrb[0].mxu0
        %v5648 = vadd.f32 %v5328, %v5647
        %v5649 = vpop.f32.mrb[0].mxu0
        %v5650 = vadd.f32 %v5328, %v5649
        %v5651 = vpop.f32.mrb[0].mxu0
        %v5652 = vadd.f32 %v5333, %v5651
        %v5653 = vpop.f32.mrb[0].mxu0
        %v5654 = vadd.f32 %v5333, %v5653
        %5655 = vdwg.mxu0
        %v5656 = vxor.u32 %v5498, 2147483648
        %v5657 = vxor.u32 %v5500, 2147483648
        %v5658 = vxor.u32 %v5502, 2147483648
        %v5659 = vxor.u32 %v5504, 2147483648
        %v5660 = vxor.u32 %v5508, 2147483648
        %v5661 = vxor.u32 %v5510, 2147483648
        %v5662 = vxor.u32 %v5512, 2147483648
        %v5663 = vxor.u32 %v5514, 2147483648
        %v5664 = vxor.u32 %v5518, 2147483648
        %v5665 = vxor.u32 %v5520, 2147483648
        %v5666 = vxor.u32 %v5522, 2147483648
        %v5667 = vxor.u32 %v5524, 2147483648
        %v5668 = vxor.u32 %v5528, 2147483648
        %v5669 = vxor.u32 %v5530, 2147483648
        %v5670 = vxor.u32 %v5532, 2147483648
        %v5671 = vxor.u32 %v5534, 2147483648
        %v5672 = vxor.u32 %v5538, 2147483648
        %v5673 = vxor.u32 %v5540, 2147483648
        %v5674 = vxor.u32 %v5542, 2147483648
        %v5675 = vxor.u32 %v5544, 2147483648
        %v5676 = vxor.u32 %v5548, 2147483648
        %v5677 = vxor.u32 %v5550, 2147483648
        %v5678 = vxor.u32 %v5552, 2147483648
        %v5679 = vxor.u32 %v5554, 2147483648
        %v5680 = vxor.u32 %v5558, 2147483648
        %v5681 = vxor.u32 %v5560, 2147483648
        %v5682 = vxor.u32 %v5562, 2147483648
        %v5683 = vxor.u32 %v5564, 2147483648
        %v5684 = vxor.u32 %v5568, 2147483648
        %v5685 = vxor.u32 %v5570, 2147483648
        %v5686 = vxor.u32 %v5572, 2147483648
        %v5687 = vxor.u32 %v5574, 2147483648
        %v5688 = vxor.u32 %v5578, 2147483648
        %v5689 = vxor.u32 %v5580, 2147483648
        %v5690 = vxor.u32 %v5582, 2147483648
        %v5691 = vxor.u32 %v5584, 2147483648
        %v5692 = vxor.u32 %v5588, 2147483648
        %v5693 = vxor.u32 %v5590, 2147483648
        %v5694 = vxor.u32 %v5592, 2147483648
        %v5695 = vxor.u32 %v5594, 2147483648
        %v5696 = vxor.u32 %v5598, 2147483648
        %v5697 = vxor.u32 %v5600, 2147483648
        %v5698 = vxor.u32 %v5602, 2147483648
        %v5699 = vxor.u32 %v5604, 2147483648
        %v5700 = vxor.u32 %v5608, 2147483648
        %v5701 = vxor.u32 %v5610, 2147483648
        %v5702 = vxor.u32 %v5612, 2147483648
        %v5703 = vxor.u32 %v5614, 2147483648
        %v5704 = vxor.u32 %v5618, 2147483648
        %v5705 = vxor.u32 %v5620, 2147483648
        %v5706 = vxor.u32 %v5622, 2147483648
        %v5707 = vxor.u32 %v5624, 2147483648
        %v5708 = vxor.u32 %v5628, 2147483648
        %v5709 = vxor.u32 %v5630, 2147483648
        %v5710 = vxor.u32 %v5632, 2147483648
        %v5711 = vxor.u32 %v5634, 2147483648
        %v5712 = vxor.u32 %v5638, 2147483648
        %v5713 = vxor.u32 %v5640, 2147483648
        %v5714 = vxor.u32 %v5642, 2147483648
        %v5715 = vxor.u32 %v5644, 2147483648
        %v5716 = vxor.u32 %v5648, 2147483648
        %v5717 = vxor.u32 %v5650, 2147483648
        %v5718 = vxor.u32 %v5652, 2147483648
        %v5719 = vxor.u32 %v5654, 2147483648
        %v5720 = vmul.f32 %v5656, 1.442695
        %v5721 = vpow.pop %v5720
        %v5722 = vmul.f32 %v5657, 1.442695
        %v5723 = vpow.pop %v5722
        %v5724 = vmul.f32 %v5658, 1.442695
        %v5725 = vpow.pop %v5724
        %v5726 = vmul.f32 %v5659, 1.442695
        %v5727 = vpow.pop %v5726
        %v5728 = vmul.f32 %v5660, 1.442695
        %v5729 = vpow.pop %v5728
        %v5730 = vmul.f32 %v5661, 1.442695
        %v5731 = vpow.pop %v5730
        %v5732 = vmul.f32 %v5662, 1.442695
        %v5733 = vpow.pop %v5732
        %v5734 = vmul.f32 %v5663, 1.442695
        %v5735 = vpow.pop %v5734
        %v5736 = vmul.f32 %v5664, 1.442695
        %v5737 = vpow.pop %v5736
        %v5738 = vmul.f32 %v5665, 1.442695
        %v5739 = vpow.pop %v5738
        %v5740 = vmul.f32 %v5666, 1.442695
        %v5741 = vpow.pop %v5740
        %v5742 = vmul.f32 %v5667, 1.442695
        %v5743 = vpow.pop %v5742
        %v5744 = vmul.f32 %v5668, 1.442695
        %v5745 = vpow.pop %v5744
        %v5746 = vmul.f32 %v5669, 1.442695
        %v5747 = vpow.pop %v5746
        %v5748 = vmul.f32 %v5670, 1.442695
        %v5749 = vpow.pop %v5748
        %v5750 = vmul.f32 %v5671, 1.442695
        %v5751 = vpow.pop %v5750
        %v5752 = vmul.f32 %v5672, 1.442695
        %v5753 = vpow.pop %v5752
        %v5754 = vmul.f32 %v5673, 1.442695
        %v5755 = vpow.pop %v5754
        %v5756 = vmul.f32 %v5674, 1.442695
        %v5757 = vpow.pop %v5756
        %v5758 = vmul.f32 %v5675, 1.442695
        %v5759 = vpow.pop %v5758
        %v5760 = vmul.f32 %v5676, 1.442695
        %v5761 = vpow.pop %v5760
        %v5762 = vmul.f32 %v5677, 1.442695
        %v5763 = vpow.pop %v5762
        %v5764 = vmul.f32 %v5678, 1.442695
        %v5765 = vpow.pop %v5764
        %v5766 = vmul.f32 %v5679, 1.442695
        %v5767 = vpow.pop %v5766
        %v5768 = vmul.f32 %v5680, 1.442695
        %v5769 = vpow.pop %v5768
        %v5770 = vmul.f32 %v5681, 1.442695
        %v5771 = vpow.pop %v5770
        %v5772 = vmul.f32 %v5682, 1.442695
        %v5773 = vpow.pop %v5772
        %v5774 = vmul.f32 %v5683, 1.442695
        %v5775 = vpow.pop %v5774
        %v5776 = vmul.f32 %v5684, 1.442695
        %v5777 = vpow.pop %v5776
        %v5778 = vmul.f32 %v5685, 1.442695
        %v5779 = vpow.pop %v5778
        %v5780 = vmul.f32 %v5686, 1.442695
        %v5781 = vpow.pop %v5780
        %v5782 = vmul.f32 %v5687, 1.442695
        %v5783 = vpow.pop %v5782
        %v5784 = vmul.f32 %v5688, 1.442695
        %v5785 = vpow.pop %v5784
        %v5786 = vmul.f32 %v5689, 1.442695
        %v5787 = vpow.pop %v5786
        %v5788 = vmul.f32 %v5690, 1.442695
        %v5789 = vpow.pop %v5788
        %v5790 = vmul.f32 %v5691, 1.442695
        %v5791 = vpow.pop %v5790
        %v5792 = vmul.f32 %v5692, 1.442695
        %v5793 = vpow.pop %v5792
        %v5794 = vmul.f32 %v5693, 1.442695
        %v5795 = vpow.pop %v5794
        %v5796 = vmul.f32 %v5694, 1.442695
        %v5797 = vpow.pop %v5796
        %v5798 = vmul.f32 %v5695, 1.442695
        %v5799 = vpow.pop %v5798
        %v5800 = vmul.f32 %v5696, 1.442695
        %v5801 = vpow.pop %v5800
        %v5802 = vmul.f32 %v5697, 1.442695
        %v5803 = vpow.pop %v5802
        %v5804 = vmul.f32 %v5698, 1.442695
        %v5805 = vpow.pop %v5804
        %v5806 = vmul.f32 %v5699, 1.442695
        %v5807 = vpow.pop %v5806
        %v5808 = vmul.f32 %v5700, 1.442695
        %v5809 = vpow.pop %v5808
        %v5810 = vmul.f32 %v5701, 1.442695
        %v5811 = vpow.pop %v5810
        %v5812 = vmul.f32 %v5702, 1.442695
        %v5813 = vpow.pop %v5812
        %v5814 = vmul.f32 %v5703, 1.442695
        %v5815 = vpow.pop %v5814
        %v5816 = vmul.f32 %v5704, 1.442695
        %v5817 = vpow.pop %v5816
        %v5818 = vmul.f32 %v5705, 1.442695
        %v5819 = vpow.pop %v5818
        %v5820 = vmul.f32 %v5706, 1.442695
        %v5821 = vpow.pop %v5820
        %v5822 = vmul.f32 %v5707, 1.442695
        %v5823 = vpow.pop %v5822
        %v5824 = vmul.f32 %v5708, 1.442695
        %v5825 = vpow.pop %v5824
        %v5826 = vmul.f32 %v5709, 1.442695
        %v5827 = vpow.pop %v5826
        %v5828 = vmul.f32 %v5710, 1.442695
        %v5829 = vpow.pop %v5828
        %v5830 = vmul.f32 %v5711, 1.442695
        %v5831 = vpow.pop %v5830
        %v5832 = vmul.f32 %v5712, 1.442695
        %v5833 = vpow.pop %v5832
        %v5834 = vmul.f32 %v5713, 1.442695
        %v5835 = vpow.pop %v5834
        %v5836 = vmul.f32 %v5714, 1.442695
        %v5837 = vpow.pop %v5836
        %v5838 = vmul.f32 %v5715, 1.442695
        %v5839 = vpow.pop %v5838
        %v5840 = vmul.f32 %v5716, 1.442695
        %v5841 = vpow.pop %v5840
        %v5842 = vmul.f32 %v5717, 1.442695
        %v5843 = vpow.pop %v5842
        %v5844 = vmul.f32 %v5718, 1.442695
        %v5845 = vpow.pop %v5844
        %v5846 = vmul.f32 %v5719, 1.442695
        %v5847 = vpow.pop %v5846
        %v5848 = vadd.f32 %v5721, 1.0
        %v5849 = vadd.f32 %v5723, 1.0
        %v5850 = vadd.f32 %v5725, 1.0
        %v5851 = vadd.f32 %v5727, 1.0
        %v5852 = vadd.f32 %v5729, 1.0
        %v5853 = vadd.f32 %v5731, 1.0
        %v5854 = vadd.f32 %v5733, 1.0
        %v5855 = vadd.f32 %v5735, 1.0
        %v5856 = vadd.f32 %v5737, 1.0
        %v5857 = vadd.f32 %v5739, 1.0
        %v5858 = vadd.f32 %v5741, 1.0
        %v5859 = vadd.f32 %v5743, 1.0
        %v5860 = vadd.f32 %v5745, 1.0
        %v5861 = vadd.f32 %v5747, 1.0
        %v5862 = vadd.f32 %v5749, 1.0
        %v5863 = vadd.f32 %v5751, 1.0
        %v5864 = vadd.f32 %v5753, 1.0
        %v5865 = vadd.f32 %v5755, 1.0
        %v5866 = vadd.f32 %v5757, 1.0
        %v5867 = vadd.f32 %v5759, 1.0
        %v5868 = vadd.f32 %v5761, 1.0
        %v5869 = vadd.f32 %v5763, 1.0
        %v5870 = vadd.f32 %v5765, 1.0
        %v5871 = vadd.f32 %v5767, 1.0
        %v5872 = vadd.f32 %v5769, 1.0
        %v5873 = vadd.f32 %v5771, 1.0
        %v5874 = vadd.f32 %v5773, 1.0
        %v5875 = vadd.f32 %v5775, 1.0
        %v5876 = vadd.f32 %v5777, 1.0
        %v5877 = vadd.f32 %v5779, 1.0
        %v5878 = vadd.f32 %v5781, 1.0
        %v5879 = vadd.f32 %v5783, 1.0
        %v5880 = vadd.f32 %v5785, 1.0
        %v5881 = vadd.f32 %v5787, 1.0
        %v5882 = vadd.f32 %v5789, 1.0
        %v5883 = vadd.f32 %v5791, 1.0
        %v5884 = vadd.f32 %v5793, 1.0
        %v5885 = vadd.f32 %v5795, 1.0
        %v5886 = vadd.f32 %v5797, 1.0
        %v5887 = vadd.f32 %v5799, 1.0
        %v5888 = vadd.f32 %v5801, 1.0
        %v5889 = vadd.f32 %v5803, 1.0
        %v5890 = vadd.f32 %v5805, 1.0
        %v5891 = vadd.f32 %v5807, 1.0
        %v5892 = vadd.f32 %v5809, 1.0
        %v5893 = vadd.f32 %v5811, 1.0
        %v5894 = vadd.f32 %v5813, 1.0
        %v5895 = vadd.f32 %v5815, 1.0
        %v5896 = vadd.f32 %v5817, 1.0
        %v5897 = vadd.f32 %v5819, 1.0
        %v5898 = vadd.f32 %v5821, 1.0
        %v5899 = vadd.f32 %v5823, 1.0
        %v5900 = vadd.f32 %v5825, 1.0
        %v5901 = vadd.f32 %v5827, 1.0
        %v5902 = vadd.f32 %v5829, 1.0
        %v5903 = vadd.f32 %v5831, 1.0
        %v5904 = vadd.f32 %v5833, 1.0
        %v5905 = vadd.f32 %v5835, 1.0
        %v5906 = vadd.f32 %v5837, 1.0
        %v5907 = vadd.f32 %v5839, 1.0
        %v5908 = vadd.f32 %v5841, 1.0
        %v5909 = vadd.f32 %v5843, 1.0
        %v5910 = vadd.f32 %v5845, 1.0
        %v5911 = vadd.f32 %v5847, 1.0
        %v5912 = vrcp.pop %v5848
        %v5913 = vmul.f32 1.0, %v5912
        %v5914 = vrcp.pop %v5849
        %v5915 = vmul.f32 1.0, %v5914
        %v5916 = vrcp.pop %v5850
        %v5917 = vmul.f32 1.0, %v5916
        %v5918 = vrcp.pop %v5851
        %v5919 = vmul.f32 1.0, %v5918
        %v5920 = vrcp.pop %v5852
        %v5921 = vmul.f32 1.0, %v5920
        %v5922 = vrcp.pop %v5853
        %v5923 = vmul.f32 1.0, %v5922
        %v5924 = vrcp.pop %v5854
        %v5925 = vmul.f32 1.0, %v5924
        %v5926 = vrcp.pop %v5855
        %v5927 = vmul.f32 1.0, %v5926
        %v5928 = vrcp.pop %v5856
        %v5929 = vmul.f32 1.0, %v5928
        %v5930 = vrcp.pop %v5857
        %v5931 = vmul.f32 1.0, %v5930
        %v5932 = vrcp.pop %v5858
        %v5933 = vmul.f32 1.0, %v5932
        %v5934 = vrcp.pop %v5859
        %v5935 = vmul.f32 1.0, %v5934
        %v5936 = vrcp.pop %v5860
        %v5937 = vmul.f32 1.0, %v5936
        %v5938 = vrcp.pop %v5861
        %v5939 = vmul.f32 1.0, %v5938
        %v5940 = vrcp.pop %v5862
        %v5941 = vmul.f32 1.0, %v5940
        %v5942 = vrcp.pop %v5863
        %v5943 = vmul.f32 1.0, %v5942
        %v5944 = vrcp.pop %v5864
        %v5945 = vmul.f32 1.0, %v5944
        %v5946 = vrcp.pop %v5865
        %v5947 = vmul.f32 1.0, %v5946
        %v5948 = vrcp.pop %v5866
        %v5949 = vmul.f32 1.0, %v5948
        %v5950 = vrcp.pop %v5867
        %v5951 = vmul.f32 1.0, %v5950
        %v5952 = vrcp.pop %v5868
        %v5953 = vmul.f32 1.0, %v5952
        %v5954 = vrcp.pop %v5869
        %v5955 = vmul.f32 1.0, %v5954
        %v5956 = vrcp.pop %v5870
        %v5957 = vmul.f32 1.0, %v5956
        %v5958 = vrcp.pop %v5871
        %v5959 = vmul.f32 1.0, %v5958
        %v5960 = vrcp.pop %v5872
        %v5961 = vmul.f32 1.0, %v5960
        %v5962 = vrcp.pop %v5873
        %v5963 = vmul.f32 1.0, %v5962
        %v5964 = vrcp.pop %v5874
        %v5965 = vmul.f32 1.0, %v5964
        %v5966 = vrcp.pop %v5875
        %v5967 = vmul.f32 1.0, %v5966
        %v5968 = vrcp.pop %v5876
        %v5969 = vmul.f32 1.0, %v5968
        %v5970 = vrcp.pop %v5877
        %v5971 = vmul.f32 1.0, %v5970
        %v5972 = vrcp.pop %v5878
        %v5973 = vmul.f32 1.0, %v5972
        %v5974 = vrcp.pop %v5879
        %v5975 = vmul.f32 1.0, %v5974
        %v5976 = vrcp.pop %v5880
        %v5977 = vmul.f32 1.0, %v5976
        %v5978 = vrcp.pop %v5881
        %v5979 = vmul.f32 1.0, %v5978
        %v5980 = vrcp.pop %v5882
        %v5981 = vmul.f32 1.0, %v5980
        %v5982 = vrcp.pop %v5883
        %v5983 = vmul.f32 1.0, %v5982
        %v5984 = vrcp.pop %v5884
        %v5985 = vmul.f32 1.0, %v5984
        %v5986 = vrcp.pop %v5885
        %v5987 = vmul.f32 1.0, %v5986
        %v5988 = vrcp.pop %v5886
        %v5989 = vmul.f32 1.0, %v5988
        %v5990 = vrcp.pop %v5887
        %v5991 = vmul.f32 1.0, %v5990
        %v5992 = vrcp.pop %v5888
        %v5993 = vmul.f32 1.0, %v5992
        %v5994 = vrcp.pop %v5889
        %v5995 = vmul.f32 1.0, %v5994
        %v5996 = vrcp.pop %v5890
        %v5997 = vmul.f32 1.0, %v5996
        %v5998 = vrcp.pop %v5891
        %v5999 = vmul.f32 1.0, %v5998
        %v6000 = vrcp.pop %v5892
        %v6001 = vmul.f32 1.0, %v6000
        %v6002 = vrcp.pop %v5893
        %v6003 = vmul.f32 1.0, %v6002
        %v6004 = vrcp.pop %v5894
        %v6005 = vmul.f32 1.0, %v6004
        %v6006 = vrcp.pop %v5895
        %v6007 = vmul.f32 1.0, %v6006
        %v6008 = vrcp.pop %v5896
        %v6009 = vmul.f32 1.0, %v6008
        %v6010 = vrcp.pop %v5897
        %v6011 = vmul.f32 1.0, %v6010
        %v6012 = vrcp.pop %v5898
        %v6013 = vmul.f32 1.0, %v6012
        %v6014 = vrcp.pop %v5899
        %v6015 = vmul.f32 1.0, %v6014
        %v6016 = vrcp.pop %v5900
        %v6017 = vmul.f32 1.0, %v6016
        %v6018 = vrcp.pop %v5901
        %v6019 = vmul.f32 1.0, %v6018
        %v6020 = vrcp.pop %v5902
        %v6021 = vmul.f32 1.0, %v6020
        %v6022 = vrcp.pop %v5903
        %v6023 = vmul.f32 1.0, %v6022
        %v6024 = vrcp.pop %v5904
        %v6025 = vmul.f32 1.0, %v6024
        %v6026 = vrcp.pop %v5905
        %v6027 = vmul.f32 1.0, %v6026
        %v6028 = vrcp.pop %v5906
        %v6029 = vmul.f32 1.0, %v6028
        %v6030 = vrcp.pop %v5907
        %v6031 = vmul.f32 1.0, %v6030
        %v6032 = vrcp.pop %v5908
        %v6033 = vmul.f32 1.0, %v6032
        %v6034 = vrcp.pop %v5909
        %v6035 = vmul.f32 1.0, %v6034
        %v6036 = vrcp.pop %v5910
        %v6037 = vmul.f32 1.0, %v6036
        %v6038 = vrcp.pop %v5911
        %v6039 = vmul.f32 1.0, %v6038
        %v6040 = vmul.f32 %v5498, %v5913
        %v6041 = vmul.f32 %v5500, %v5915
        %v6042 = vmul.f32 %v5502, %v5917
        %v6043 = vmul.f32 %v5504, %v5919
        %v6044 = vmul.f32 %v5508, %v5921
        %v6045 = vmul.f32 %v5510, %v5923
        %v6046 = vmul.f32 %v5512, %v5925
        %v6047 = vmul.f32 %v5514, %v5927
        %v6048 = vmul.f32 %v5518, %v5929
        %v6049 = vmul.f32 %v5520, %v5931
        %v6050 = vmul.f32 %v5522, %v5933
        %v6051 = vmul.f32 %v5524, %v5935
        %v6052 = vmul.f32 %v5528, %v5937
        %v6053 = vmul.f32 %v5530, %v5939
        %v6054 = vmul.f32 %v5532, %v5941
        %v6055 = vmul.f32 %v5534, %v5943
        %v6056 = vmul.f32 %v5538, %v5945
        %v6057 = vmul.f32 %v5540, %v5947
        %v6058 = vmul.f32 %v5542, %v5949
        %v6059 = vmul.f32 %v5544, %v5951
        %v6060 = vmul.f32 %v5548, %v5953
        %v6061 = vmul.f32 %v5550, %v5955
        %v6062 = vmul.f32 %v5552, %v5957
        %v6063 = vmul.f32 %v5554, %v5959
        %v6064 = vmul.f32 %v5558, %v5961
        %v6065 = vmul.f32 %v5560, %v5963
        %v6066 = vmul.f32 %v5562, %v5965
        %v6067 = vmul.f32 %v5564, %v5967
        %v6068 = vmul.f32 %v5568, %v5969
        %v6069 = vmul.f32 %v5570, %v5971
        %v6070 = vmul.f32 %v5572, %v5973
        %v6071 = vmul.f32 %v5574, %v5975
        %v6072 = vmul.f32 %v5578, %v5977
        %v6073 = vmul.f32 %v5580, %v5979
        %v6074 = vmul.f32 %v5582, %v5981
        %v6075 = vmul.f32 %v5584, %v5983
        %v6076 = vmul.f32 %v5588, %v5985
        %v6077 = vmul.f32 %v5590, %v5987
        %v6078 = vmul.f32 %v5592, %v5989
        %v6079 = vmul.f32 %v5594, %v5991
        %v6080 = vmul.f32 %v5598, %v5993
        %v6081 = vmul.f32 %v5600, %v5995
        %v6082 = vmul.f32 %v5602, %v5997
        %v6083 = vmul.f32 %v5604, %v5999
        %v6084 = vmul.f32 %v5608, %v6001
        %v6085 = vmul.f32 %v5610, %v6003
        %v6086 = vmul.f32 %v5612, %v6005
        %v6087 = vmul.f32 %v5614, %v6007
        %v6088 = vmul.f32 %v5618, %v6009
        %v6089 = vmul.f32 %v5620, %v6011
        %v6090 = vmul.f32 %v5622, %v6013
        %v6091 = vmul.f32 %v5624, %v6015
        %v6092 = vmul.f32 %v5628, %v6017
        %v6093 = vmul.f32 %v5630, %v6019
        %v6094 = vmul.f32 %v5632, %v6021
        %v6095 = vmul.f32 %v5634, %v6023
        %v6096 = vmul.f32 %v5638, %v6025
        %v6097 = vmul.f32 %v5640, %v6027
        %v6098 = vmul.f32 %v5642, %v6029
        %v6099 = vmul.f32 %v5644, %v6031
        %v6100 = vmul.f32 %v5648, %v6033
        %v6101 = vmul.f32 %v5650, %v6035
        %v6102 = vmul.f32 %v5652, %v6037
        %v6103 = vmul.f32 %v5654, %v6039
        %v6104 = vadd.f32 %v6040, %v6041
        %v6105 = vadd.f32 %v6042, %v6043
        %v6106 = vadd.f32 %v6044, %v6045
        %v6107 = vadd.f32 %v6046, %v6047
        %v6108 = vadd.f32 %v6048, %v6049
        %v6109 = vadd.f32 %v6050, %v6051
        %v6110 = vadd.f32 %v6052, %v6053
        %v6111 = vadd.f32 %v6054, %v6055
        %v6112 = vadd.f32 %v6056, %v6057
        %v6113 = vadd.f32 %v6058, %v6059
        %v6114 = vadd.f32 %v6060, %v6061
        %v6115 = vadd.f32 %v6062, %v6063
        %v6116 = vadd.f32 %v6064, %v6065
        %v6117 = vadd.f32 %v6066, %v6067
        %v6118 = vadd.f32 %v6068, %v6069
        %v6119 = vadd.f32 %v6070, %v6071
        %v6120 = vadd.f32 %v6072, %v6073
        %v6121 = vadd.f32 %v6074, %v6075
        %v6122 = vadd.f32 %v6076, %v6077
        %v6123 = vadd.f32 %v6078, %v6079
        %v6124 = vadd.f32 %v6080, %v6081
        %v6125 = vadd.f32 %v6082, %v6083
        %v6126 = vadd.f32 %v6084, %v6085
        %v6127 = vadd.f32 %v6086, %v6087
        %v6128 = vadd.f32 %v6088, %v6089
        %v6129 = vadd.f32 %v6090, %v6091
        %v6130 = vadd.f32 %v6092, %v6093
        %v6131 = vadd.f32 %v6094, %v6095
        %v6132 = vadd.f32 %v6096, %v6097
        %v6133 = vadd.f32 %v6098, %v6099
        %v6134 = vadd.f32 %v6100, %v6101
        %v6135 = vadd.f32 %v6102, %v6103
        %s6136 = scalar_lea.vmem [#allocation2], 1024
        %v6137 = vld [vmem:[%s6136] sm:$0xff]
        %v6138 = vld [vmem:[%s6136 + $0x8] sm:$0xff]
        %v6139 = vld [vmem:[%s6136 + $0x10] sm:$0xff]
        %v6140 = vld [vmem:[%s6136 + $0x18] sm:$0xff]
        %v6141 = vld [vmem:[%s6136 + $0x20] sm:$0xff]
        %v6142 = vld [vmem:[%s6136 + $0x28] sm:$0xff]
        %v6143 = vld [vmem:[%s6136 + $0x30] sm:$0xff]
        %v6144 = vld [vmem:[%s6136 + $0x38] sm:$0xff]
        %v6145 = vld [vmem:[%s6136 + $0x40] sm:$0xff]
        %v6146 = vld [vmem:[%s6136 + $0x48] sm:$0xff]
        %v6147 = vld [vmem:[%s6136 + $0x50] sm:$0xff]
        %v6148 = vld [vmem:[%s6136 + $0x58] sm:$0xff]
        %v6149 = vld [vmem:[%s6136 + $0x60] sm:$0xff]
        %v6150 = vld [vmem:[%s6136 + $0x68] sm:$0xff]
        %v6151 = vld [vmem:[%s6136 + $0x70] sm:$0xff]
        %v6152 = vld [vmem:[%s6136 + $0x78] sm:$0xff]
        %v6153 = vld [vmem:[%s6136 + $0x80] sm:$0xff]
        %v6154 = vld [vmem:[%s6136 + $0x88] sm:$0xff]
        %v6155 = vld [vmem:[%s6136 + $0x90] sm:$0xff]
        %v6156 = vld [vmem:[%s6136 + $0x98] sm:$0xff]
        %v6157 = vld [vmem:[%s6136 + $0xa0] sm:$0xff]
        %v6158 = vld [vmem:[%s6136 + $0xa8] sm:$0xff]
        %v6159 = vld [vmem:[%s6136 + $0xb0] sm:$0xff]
        %v6160 = vld [vmem:[%s6136 + $0xb8] sm:$0xff]
        %v6161 = vld [vmem:[%s6136 + $0xc0] sm:$0xff]
        %v6162 = vld [vmem:[%s6136 + $0xc8] sm:$0xff]
        %v6163 = vld [vmem:[%s6136 + $0xd0] sm:$0xff]
        %v6164 = vld [vmem:[%s6136 + $0xd8] sm:$0xff]
        %v6165 = vld [vmem:[%s6136 + $0xe0] sm:$0xff]
        %v6166 = vld [vmem:[%s6136 + $0xe8] sm:$0xff]
        %v6167 = vld [vmem:[%s6136 + $0xf0] sm:$0xff]
        %v6168 = vld [vmem:[%s6136 + $0xf8] sm:$0xff]
        %v6169 = vadd.f32 %v6137, %v6104
        %v6170 = vadd.f32 %v6138, %v6105
        %v6171 = vadd.f32 %v6139, %v6106
        %v6172 = vadd.f32 %v6140, %v6107
        %v6173 = vadd.f32 %v6141, %v6108
        %v6174 = vadd.f32 %v6142, %v6109
        %v6175 = vadd.f32 %v6143, %v6110
        %v6176 = vadd.f32 %v6144, %v6111
        %v6177 = vadd.f32 %v6145, %v6112
        %v6178 = vadd.f32 %v6146, %v6113
        %v6179 = vadd.f32 %v6147, %v6114
        %v6180 = vadd.f32 %v6148, %v6115
        %v6181 = vadd.f32 %v6149, %v6116
        %v6182 = vadd.f32 %v6150, %v6117
        %v6183 = vadd.f32 %v6151, %v6118
        %v6184 = vadd.f32 %v6152, %v6119
        %v6185 = vadd.f32 %v6153, %v6120
        %v6186 = vadd.f32 %v6154, %v6121
        %v6187 = vadd.f32 %v6155, %v6122
        %v6188 = vadd.f32 %v6156, %v6123
        %v6189 = vadd.f32 %v6157, %v6124
        %v6190 = vadd.f32 %v6158, %v6125
        %v6191 = vadd.f32 %v6159, %v6126
        %v6192 = vadd.f32 %v6160, %v6127
        %v6193 = vadd.f32 %v6161, %v6128
        %v6194 = vadd.f32 %v6162, %v6129
        %v6195 = vadd.f32 %v6163, %v6130
        %v6196 = vadd.f32 %v6164, %v6131
        %v6197 = vadd.f32 %v6165, %v6132
        %v6198 = vadd.f32 %v6166, %v6133
        %v6199 = vadd.f32 %v6167, %v6134
        %v6200 = vadd.f32 %v6168, %v6135
        %6201 = vst [vmem:[%s6136] sm:$0xff] %v6169
        %6202 = vst [vmem:[%s6136 + $0x8] sm:$0xff] %v6170
        %6203 = vst [vmem:[%s6136 + $0x10] sm:$0xff] %v6171
        %6204 = vst [vmem:[%s6136 + $0x18] sm:$0xff] %v6172
        %6205 = vst [vmem:[%s6136 + $0x20] sm:$0xff] %v6173
        %6206 = vst [vmem:[%s6136 + $0x28] sm:$0xff] %v6174
        %6207 = vst [vmem:[%s6136 + $0x30] sm:$0xff] %v6175
        %6208 = vst [vmem:[%s6136 + $0x38] sm:$0xff] %v6176
        %6209 = vst [vmem:[%s6136 + $0x40] sm:$0xff] %v6177
        %6210 = vst [vmem:[%s6136 + $0x48] sm:$0xff] %v6178
        %6211 = vst [vmem:[%s6136 + $0x50] sm:$0xff] %v6179
        %6212 = vst [vmem:[%s6136 + $0x58] sm:$0xff] %v6180
        %6213 = vst [vmem:[%s6136 + $0x60] sm:$0xff] %v6181
        %6214 = vst [vmem:[%s6136 + $0x68] sm:$0xff] %v6182
        %6215 = vst [vmem:[%s6136 + $0x70] sm:$0xff] %v6183
        %6216 = vst [vmem:[%s6136 + $0x78] sm:$0xff] %v6184
        %6217 = vst [vmem:[%s6136 + $0x80] sm:$0xff] %v6185
        %6218 = vst [vmem:[%s6136 + $0x88] sm:$0xff] %v6186
        %6219 = vst [vmem:[%s6136 + $0x90] sm:$0xff] %v6187
        %6220 = vst [vmem:[%s6136 + $0x98] sm:$0xff] %v6188
        %6221 = vst [vmem:[%s6136 + $0xa0] sm:$0xff] %v6189
        %6222 = vst [vmem:[%s6136 + $0xa8] sm:$0xff] %v6190
        %6223 = vst [vmem:[%s6136 + $0xb0] sm:$0xff] %v6191
        %6224 = vst [vmem:[%s6136 + $0xb8] sm:$0xff] %v6192
        %6225 = vst [vmem:[%s6136 + $0xc0] sm:$0xff] %v6193
        %6226 = vst [vmem:[%s6136 + $0xc8] sm:$0xff] %v6194
        %6227 = vst [vmem:[%s6136 + $0xd0] sm:$0xff] %v6195
        %6228 = vst [vmem:[%s6136 + $0xd8] sm:$0xff] %v6196
        %6229 = vst [vmem:[%s6136 + $0xe0] sm:$0xff] %v6197
        %6230 = vst [vmem:[%s6136 + $0xe8] sm:$0xff] %v6198
        %6231 = vst [vmem:[%s6136 + $0xf0] sm:$0xff] %v6199
        %6232 = vst [vmem:[%s6136 + $0xf8] sm:$0xff] %v6200
        // Predicated region
        $region73: #{angle_predictor_forward.1} parent=63 // pred_check
          %p6233 = pneg %p431
        $region74: #{angle_predictor_forward.1} parent=63 // pred_check_branch
          %6235 = sbr.rel (%p6233) target = $region76
        $region75: #{angle_predictor_forward.1} parent=63 // pred_region
          %v6236 = vld [vmem:[#allocation2] sm:$0xff]
          %v6237 = vld [vmem:[#allocation2 + $0x8] sm:$0xff]
          %v6238 = vld [vmem:[#allocation2 + $0x10] sm:$0xff]
          %v6239 = vld [vmem:[#allocation2 + $0x18] sm:$0xff]
          %v6240 = vld [vmem:[#allocation2 + $0x20] sm:$0xff]
          %v6241 = vld [vmem:[#allocation2 + $0x28] sm:$0xff]
          %v6242 = vld [vmem:[#allocation2 + $0x30] sm:$0xff]
          %v6243 = vld [vmem:[#allocation2 + $0x38] sm:$0xff]
          %v6244 = vld [vmem:[#allocation2 + $0x40] sm:$0xff]
          %v6245 = vld [vmem:[#allocation2 + $0x48] sm:$0xff]
          %v6246 = vld [vmem:[#allocation2 + $0x50] sm:$0xff]
          %v6247 = vld [vmem:[#allocation2 + $0x58] sm:$0xff]
          %v6248 = vld [vmem:[#allocation2 + $0x60] sm:$0xff]
          %v6249 = vld [vmem:[#allocation2 + $0x68] sm:$0xff]
          %v6250 = vld [vmem:[#allocation2 + $0x70] sm:$0xff]
          %v6251 = vld [vmem:[#allocation2 + $0x78] sm:$0xff]
          %v6252 = vld [vmem:[#allocation2 + $0x80] sm:$0xff]
          %v6253 = vld [vmem:[#allocation2 + $0x88] sm:$0xff]
          %v6254 = vld [vmem:[#allocation2 + $0x90] sm:$0xff]
          %v6255 = vld [vmem:[#allocation2 + $0x98] sm:$0xff]
          %v6256 = vld [vmem:[#allocation2 + $0xa0] sm:$0xff]
          %v6257 = vld [vmem:[#allocation2 + $0xa8] sm:$0xff]
          %v6258 = vld [vmem:[#allocation2 + $0xb0] sm:$0xff]
          %v6259 = vld [vmem:[#allocation2 + $0xb8] sm:$0xff]
          %v6260 = vld [vmem:[#allocation2 + $0xc0] sm:$0xff]
          %v6261 = vld [vmem:[#allocation2 + $0xc8] sm:$0xff]
          %v6262 = vld [vmem:[#allocation2 + $0xd0] sm:$0xff]
          %v6263 = vld [vmem:[#allocation2 + $0xd8] sm:$0xff]
          %v6264 = vld [vmem:[#allocation2 + $0xe0] sm:$0xff]
          %v6265 = vld [vmem:[#allocation2 + $0xe8] sm:$0xff]
          %v6266 = vld [vmem:[#allocation2 + $0xf0] sm:$0xff]
          %v6267 = vld [vmem:[#allocation2 + $0xf8] sm:$0xff]
          %v6268 = vld [vmem:[#allocation2 + $0x100] sm:$0xff]
          %v6269 = vld [vmem:[#allocation2 + $0x108] sm:$0xff]
          %v6270 = vld [vmem:[#allocation2 + $0x110] sm:$0xff]
          %v6271 = vld [vmem:[#allocation2 + $0x118] sm:$0xff]
          %v6272 = vld [vmem:[#allocation2 + $0x120] sm:$0xff]
          %v6273 = vld [vmem:[#allocation2 + $0x128] sm:$0xff]
          %v6274 = vld [vmem:[#allocation2 + $0x130] sm:$0xff]
          %v6275 = vld [vmem:[#allocation2 + $0x138] sm:$0xff]
          %v6276 = vld [vmem:[#allocation2 + $0x140] sm:$0xff]
          %v6277 = vld [vmem:[#allocation2 + $0x148] sm:$0xff]
          %v6278 = vld [vmem:[#allocation2 + $0x150] sm:$0xff]
          %v6279 = vld [vmem:[#allocation2 + $0x158] sm:$0xff]
          %v6280 = vld [vmem:[#allocation2 + $0x160] sm:$0xff]
          %v6281 = vld [vmem:[#allocation2 + $0x168] sm:$0xff]
          %v6282 = vld [vmem:[#allocation2 + $0x170] sm:$0xff]
          %v6283 = vld [vmem:[#allocation2 + $0x178] sm:$0xff]
          %v6284 = vld [vmem:[#allocation2 + $0x180] sm:$0xff]
          %v6285 = vld [vmem:[#allocation2 + $0x188] sm:$0xff]
          %v6286 = vld [vmem:[#allocation2 + $0x190] sm:$0xff]
          %v6287 = vld [vmem:[#allocation2 + $0x198] sm:$0xff]
          %v6288 = vld [vmem:[#allocation2 + $0x1a0] sm:$0xff]
          %v6289 = vld [vmem:[#allocation2 + $0x1a8] sm:$0xff]
          %v6290 = vld [vmem:[#allocation2 + $0x1b0] sm:$0xff]
          %v6291 = vld [vmem:[#allocation2 + $0x1b8] sm:$0xff]
          %v6292 = vld [vmem:[#allocation2 + $0x1c0] sm:$0xff]
          %v6293 = vld [vmem:[#allocation2 + $0x1c8] sm:$0xff]
          %v6294 = vld [vmem:[#allocation2 + $0x1d0] sm:$0xff]
          %v6295 = vld [vmem:[#allocation2 + $0x1d8] sm:$0xff]
          %v6296 = vld [vmem:[#allocation2 + $0x1e0] sm:$0xff]
          %v6297 = vld [vmem:[#allocation2 + $0x1e8] sm:$0xff]
          %v6298 = vld [vmem:[#allocation2 + $0x1f0] sm:$0xff]
          %v6299 = vld [vmem:[#allocation2 + $0x1f8] sm:$0xff]
          %v6300 = vld [vmem:[#allocation2 + $0x200] sm:$0xff]
          %v6301 = vld [vmem:[#allocation2 + $0x208] sm:$0xff]
          %v6302 = vld [vmem:[#allocation2 + $0x210] sm:$0xff]
          %v6303 = vld [vmem:[#allocation2 + $0x218] sm:$0xff]
          %v6304 = vld [vmem:[#allocation2 + $0x220] sm:$0xff]
          %v6305 = vld [vmem:[#allocation2 + $0x228] sm:$0xff]
          %v6306 = vld [vmem:[#allocation2 + $0x230] sm:$0xff]
          %v6307 = vld [vmem:[#allocation2 + $0x238] sm:$0xff]
          %v6308 = vld [vmem:[#allocation2 + $0x240] sm:$0xff]
          %v6309 = vld [vmem:[#allocation2 + $0x248] sm:$0xff]
          %v6310 = vld [vmem:[#allocation2 + $0x250] sm:$0xff]
          %v6311 = vld [vmem:[#allocation2 + $0x258] sm:$0xff]
          %v6312 = vld [vmem:[#allocation2 + $0x260] sm:$0xff]
          %v6313 = vld [vmem:[#allocation2 + $0x268] sm:$0xff]
          %v6314 = vld [vmem:[#allocation2 + $0x270] sm:$0xff]
          %v6315 = vld [vmem:[#allocation2 + $0x278] sm:$0xff]
          %v6316 = vld [vmem:[#allocation2 + $0x280] sm:$0xff]
          %v6317 = vld [vmem:[#allocation2 + $0x288] sm:$0xff]
          %v6318 = vld [vmem:[#allocation2 + $0x290] sm:$0xff]
          %v6319 = vld [vmem:[#allocation2 + $0x298] sm:$0xff]
          %v6320 = vld [vmem:[#allocation2 + $0x2a0] sm:$0xff]
          %v6321 = vld [vmem:[#allocation2 + $0x2a8] sm:$0xff]
          %v6322 = vld [vmem:[#allocation2 + $0x2b0] sm:$0xff]
          %v6323 = vld [vmem:[#allocation2 + $0x2b8] sm:$0xff]
          %v6324 = vld [vmem:[#allocation2 + $0x2c0] sm:$0xff]
          %v6325 = vld [vmem:[#allocation2 + $0x2c8] sm:$0xff]
          %v6326 = vld [vmem:[#allocation2 + $0x2d0] sm:$0xff]
          %v6327 = vld [vmem:[#allocation2 + $0x2d8] sm:$0xff]
          %v6328 = vld [vmem:[#allocation2 + $0x2e0] sm:$0xff]
          %v6329 = vld [vmem:[#allocation2 + $0x2e8] sm:$0xff]
          %v6330 = vld [vmem:[#allocation2 + $0x2f0] sm:$0xff]
          %v6331 = vld [vmem:[#allocation2 + $0x2f8] sm:$0xff]
          %v6332 = vld [vmem:[#allocation2 + $0x300] sm:$0xff]
          %v6333 = vld [vmem:[#allocation2 + $0x308] sm:$0xff]
          %v6334 = vld [vmem:[#allocation2 + $0x310] sm:$0xff]
          %v6335 = vld [vmem:[#allocation2 + $0x318] sm:$0xff]
          %v6336 = vld [vmem:[#allocation2 + $0x320] sm:$0xff]
          %v6337 = vld [vmem:[#allocation2 + $0x328] sm:$0xff]
          %v6338 = vld [vmem:[#allocation2 + $0x330] sm:$0xff]
          %v6339 = vld [vmem:[#allocation2 + $0x338] sm:$0xff]
          %v6340 = vld [vmem:[#allocation2 + $0x340] sm:$0xff]
          %v6341 = vld [vmem:[#allocation2 + $0x348] sm:$0xff]
          %v6342 = vld [vmem:[#allocation2 + $0x350] sm:$0xff]
          %v6343 = vld [vmem:[#allocation2 + $0x358] sm:$0xff]
          %v6344 = vld [vmem:[#allocation2 + $0x360] sm:$0xff]
          %v6345 = vld [vmem:[#allocation2 + $0x368] sm:$0xff]
          %v6346 = vld [vmem:[#allocation2 + $0x370] sm:$0xff]
          %v6347 = vld [vmem:[#allocation2 + $0x378] sm:$0xff]
          %v6348 = vld [vmem:[#allocation2 + $0x380] sm:$0xff]
          %v6349 = vld [vmem:[#allocation2 + $0x388] sm:$0xff]
          %v6350 = vld [vmem:[#allocation2 + $0x390] sm:$0xff]
          %v6351 = vld [vmem:[#allocation2 + $0x398] sm:$0xff]
          %v6352 = vld [vmem:[#allocation2 + $0x3a0] sm:$0xff]
          %v6353 = vld [vmem:[#allocation2 + $0x3a8] sm:$0xff]
          %v6354 = vld [vmem:[#allocation2 + $0x3b0] sm:$0xff]
          %v6355 = vld [vmem:[#allocation2 + $0x3b8] sm:$0xff]
          %v6356 = vld [vmem:[#allocation2 + $0x3c0] sm:$0xff]
          %v6357 = vld [vmem:[#allocation2 + $0x3c8] sm:$0xff]
          %v6358 = vld [vmem:[#allocation2 + $0x3d0] sm:$0xff]
          %v6359 = vld [vmem:[#allocation2 + $0x3d8] sm:$0xff]
          %v6360 = vld [vmem:[#allocation2 + $0x3e0] sm:$0xff]
          %v6361 = vld [vmem:[#allocation2 + $0x3e8] sm:$0xff]
          %v6362 = vld [vmem:[#allocation2 + $0x3f0] sm:$0xff]
          %v6363 = vld [vmem:[#allocation2 + $0x3f8] sm:$0xff]
          %v6364 = vld [vmem:[#allocation2 + $0x400] sm:$0xff]
          %v6365 = vld [vmem:[#allocation2 + $0x408] sm:$0xff]
          %v6366 = vld [vmem:[#allocation2 + $0x410] sm:$0xff]
          %v6367 = vld [vmem:[#allocation2 + $0x418] sm:$0xff]
          %v6368 = vld [vmem:[#allocation2 + $0x420] sm:$0xff]
          %v6369 = vld [vmem:[#allocation2 + $0x428] sm:$0xff]
          %v6370 = vld [vmem:[#allocation2 + $0x430] sm:$0xff]
          %v6371 = vld [vmem:[#allocation2 + $0x438] sm:$0xff]
          %v6372 = vld [vmem:[#allocation2 + $0x440] sm:$0xff]
          %v6373 = vld [vmem:[#allocation2 + $0x448] sm:$0xff]
          %v6374 = vld [vmem:[#allocation2 + $0x450] sm:$0xff]
          %v6375 = vld [vmem:[#allocation2 + $0x458] sm:$0xff]
          %v6376 = vld [vmem:[#allocation2 + $0x460] sm:$0xff]
          %v6377 = vld [vmem:[#allocation2 + $0x468] sm:$0xff]
          %v6378 = vld [vmem:[#allocation2 + $0x470] sm:$0xff]
          %v6379 = vld [vmem:[#allocation2 + $0x478] sm:$0xff]
          %v6380 = vld [vmem:[#allocation2 + $0x480] sm:$0xff]
          %v6381 = vld [vmem:[#allocation2 + $0x488] sm:$0xff]
          %v6382 = vld [vmem:[#allocation2 + $0x490] sm:$0xff]
          %v6383 = vld [vmem:[#allocation2 + $0x498] sm:$0xff]
          %v6384 = vld [vmem:[#allocation2 + $0x4a0] sm:$0xff]
          %v6385 = vld [vmem:[#allocation2 + $0x4a8] sm:$0xff]
          %v6386 = vld [vmem:[#allocation2 + $0x4b0] sm:$0xff]
          %v6387 = vld [vmem:[#allocation2 + $0x4b8] sm:$0xff]
          %v6388 = vld [vmem:[#allocation2 + $0x4c0] sm:$0xff]
          %v6389 = vld [vmem:[#allocation2 + $0x4c8] sm:$0xff]
          %v6390 = vld [vmem:[#allocation2 + $0x4d0] sm:$0xff]
          %v6391 = vld [vmem:[#allocation2 + $0x4d8] sm:$0xff]
          %v6392 = vld [vmem:[#allocation2 + $0x4e0] sm:$0xff]
          %v6393 = vld [vmem:[#allocation2 + $0x4e8] sm:$0xff]
          %v6394 = vld [vmem:[#allocation2 + $0x4f0] sm:$0xff]
          %v6395 = vld [vmem:[#allocation2 + $0x4f8] sm:$0xff]
          %6396 = vadd.xlane.f32.xlu0 %v6236
          %v6397 = vpop.xlane.xlu0 %6396
          %6398 = vadd.xlane.f32.xlu0 %v6237
          %v6399 = vpop.xlane.xlu0 %6398
          %6400 = vadd.xlane.f32.xlu0 %v6238
          %v6401 = vpop.xlane.xlu0 %6400
          %6402 = vadd.xlane.f32.xlu0 %v6239
          %v6403 = vpop.xlane.xlu0 %6402
          %6404 = vadd.xlane.f32.xlu0 %v6240
          %v6405 = vpop.xlane.xlu0 %6404
          %6406 = vadd.xlane.f32.xlu0 %v6241
          %v6407 = vpop.xlane.xlu0 %6406
          %6408 = vadd.xlane.f32.xlu0 %v6242
          %v6409 = vpop.xlane.xlu0 %6408
          %6410 = vadd.xlane.f32.xlu0 %v6243
          %v6411 = vpop.xlane.xlu0 %6410
          %6412 = vadd.xlane.f32.xlu0 %v6244
          %v6413 = vpop.xlane.xlu0 %6412
          %6414 = vadd.xlane.f32.xlu0 %v6245
          %v6415 = vpop.xlane.xlu0 %6414
          %6416 = vadd.xlane.f32.xlu0 %v6246
          %v6417 = vpop.xlane.xlu0 %6416
          %6418 = vadd.xlane.f32.xlu0 %v6247
          %v6419 = vpop.xlane.xlu0 %6418
          %6420 = vadd.xlane.f32.xlu0 %v6248
          %v6421 = vpop.xlane.xlu0 %6420
          %6422 = vadd.xlane.f32.xlu0 %v6249
          %v6423 = vpop.xlane.xlu0 %6422
          %6424 = vadd.xlane.f32.xlu0 %v6250
          %v6425 = vpop.xlane.xlu0 %6424
          %6426 = vadd.xlane.f32.xlu0 %v6251
          %v6427 = vpop.xlane.xlu0 %6426
          %6428 = vadd.xlane.f32.xlu0 %v6252
          %v6429 = vpop.xlane.xlu0 %6428
          %6430 = vadd.xlane.f32.xlu0 %v6253
          %v6431 = vpop.xlane.xlu0 %6430
          %6432 = vadd.xlane.f32.xlu0 %v6254
          %v6433 = vpop.xlane.xlu0 %6432
          %6434 = vadd.xlane.f32.xlu0 %v6255
          %v6435 = vpop.xlane.xlu0 %6434
          %6436 = vadd.xlane.f32.xlu0 %v6256
          %v6437 = vpop.xlane.xlu0 %6436
          %6438 = vadd.xlane.f32.xlu0 %v6257
          %v6439 = vpop.xlane.xlu0 %6438
          %6440 = vadd.xlane.f32.xlu0 %v6258
          %v6441 = vpop.xlane.xlu0 %6440
          %6442 = vadd.xlane.f32.xlu0 %v6259
          %v6443 = vpop.xlane.xlu0 %6442
          %6444 = vadd.xlane.f32.xlu0 %v6260
          %v6445 = vpop.xlane.xlu0 %6444
          %6446 = vadd.xlane.f32.xlu0 %v6261
          %v6447 = vpop.xlane.xlu0 %6446
          %6448 = vadd.xlane.f32.xlu0 %v6262
          %v6449 = vpop.xlane.xlu0 %6448
          %6450 = vadd.xlane.f32.xlu0 %v6263
          %v6451 = vpop.xlane.xlu0 %6450
          %6452 = vadd.xlane.f32.xlu0 %v6264
          %v6453 = vpop.xlane.xlu0 %6452
          %6454 = vadd.xlane.f32.xlu0 %v6265
          %v6455 = vpop.xlane.xlu0 %6454
          %6456 = vadd.xlane.f32.xlu0 %v6266
          %v6457 = vpop.xlane.xlu0 %6456
          %6458 = vadd.xlane.f32.xlu0 %v6267
          %v6459 = vpop.xlane.xlu0 %6458
          %6460 = vadd.xlane.f32.xlu0 %v6268
          %v6461 = vpop.xlane.xlu0 %6460
          %6462 = vadd.xlane.f32.xlu0 %v6269
          %v6463 = vpop.xlane.xlu0 %6462
          %6464 = vadd.xlane.f32.xlu0 %v6270
          %v6465 = vpop.xlane.xlu0 %6464
          %6466 = vadd.xlane.f32.xlu0 %v6271
          %v6467 = vpop.xlane.xlu0 %6466
          %6468 = vadd.xlane.f32.xlu0 %v6272
          %v6469 = vpop.xlane.xlu0 %6468
          %6470 = vadd.xlane.f32.xlu0 %v6273
          %v6471 = vpop.xlane.xlu0 %6470
          %6472 = vadd.xlane.f32.xlu0 %v6274
          %v6473 = vpop.xlane.xlu0 %6472
          %6474 = vadd.xlane.f32.xlu0 %v6275
          %v6475 = vpop.xlane.xlu0 %6474
          %6476 = vadd.xlane.f32.xlu0 %v6276
          %v6477 = vpop.xlane.xlu0 %6476
          %6478 = vadd.xlane.f32.xlu0 %v6277
          %v6479 = vpop.xlane.xlu0 %6478
          %6480 = vadd.xlane.f32.xlu0 %v6278
          %v6481 = vpop.xlane.xlu0 %6480
          %6482 = vadd.xlane.f32.xlu0 %v6279
          %v6483 = vpop.xlane.xlu0 %6482
          %6484 = vadd.xlane.f32.xlu0 %v6280
          %v6485 = vpop.xlane.xlu0 %6484
          %6486 = vadd.xlane.f32.xlu0 %v6281
          %v6487 = vpop.xlane.xlu0 %6486
          %6488 = vadd.xlane.f32.xlu0 %v6282
          %v6489 = vpop.xlane.xlu0 %6488
          %6490 = vadd.xlane.f32.xlu0 %v6283
          %v6491 = vpop.xlane.xlu0 %6490
          %6492 = vadd.xlane.f32.xlu0 %v6284
          %v6493 = vpop.xlane.xlu0 %6492
          %6494 = vadd.xlane.f32.xlu0 %v6285
          %v6495 = vpop.xlane.xlu0 %6494
          %6496 = vadd.xlane.f32.xlu0 %v6286
          %v6497 = vpop.xlane.xlu0 %6496
          %6498 = vadd.xlane.f32.xlu0 %v6287
          %v6499 = vpop.xlane.xlu0 %6498
          %6500 = vadd.xlane.f32.xlu0 %v6288
          %v6501 = vpop.xlane.xlu0 %6500
          %6502 = vadd.xlane.f32.xlu0 %v6289
          %v6503 = vpop.xlane.xlu0 %6502
          %6504 = vadd.xlane.f32.xlu0 %v6290
          %v6505 = vpop.xlane.xlu0 %6504
          %6506 = vadd.xlane.f32.xlu0 %v6291
          %v6507 = vpop.xlane.xlu0 %6506
          %6508 = vadd.xlane.f32.xlu0 %v6292
          %v6509 = vpop.xlane.xlu0 %6508
          %6510 = vadd.xlane.f32.xlu0 %v6293
          %v6511 = vpop.xlane.xlu0 %6510
          %6512 = vadd.xlane.f32.xlu0 %v6294
          %v6513 = vpop.xlane.xlu0 %6512
          %6514 = vadd.xlane.f32.xlu0 %v6295
          %v6515 = vpop.xlane.xlu0 %6514
          %6516 = vadd.xlane.f32.xlu0 %v6296
          %v6517 = vpop.xlane.xlu0 %6516
          %6518 = vadd.xlane.f32.xlu0 %v6297
          %v6519 = vpop.xlane.xlu0 %6518
          %6520 = vadd.xlane.f32.xlu0 %v6298
          %v6521 = vpop.xlane.xlu0 %6520
          %6522 = vadd.xlane.f32.xlu0 %v6299
          %v6523 = vpop.xlane.xlu0 %6522
          %6524 = vadd.xlane.f32.xlu0 %v6300
          %v6525 = vpop.xlane.xlu0 %6524
          %6526 = vadd.xlane.f32.xlu0 %v6301
          %v6527 = vpop.xlane.xlu0 %6526
          %6528 = vadd.xlane.f32.xlu0 %v6302
          %v6529 = vpop.xlane.xlu0 %6528
          %6530 = vadd.xlane.f32.xlu0 %v6303
          %v6531 = vpop.xlane.xlu0 %6530
          %6532 = vadd.xlane.f32.xlu0 %v6304
          %v6533 = vpop.xlane.xlu0 %6532
          %6534 = vadd.xlane.f32.xlu0 %v6305
          %v6535 = vpop.xlane.xlu0 %6534
          %6536 = vadd.xlane.f32.xlu0 %v6306
          %v6537 = vpop.xlane.xlu0 %6536
          %6538 = vadd.xlane.f32.xlu0 %v6307
          %v6539 = vpop.xlane.xlu0 %6538
          %6540 = vadd.xlane.f32.xlu0 %v6308
          %v6541 = vpop.xlane.xlu0 %6540
          %6542 = vadd.xlane.f32.xlu0 %v6309
          %v6543 = vpop.xlane.xlu0 %6542
          %6544 = vadd.xlane.f32.xlu0 %v6310
          %v6545 = vpop.xlane.xlu0 %6544
          %6546 = vadd.xlane.f32.xlu0 %v6311
          %v6547 = vpop.xlane.xlu0 %6546
          %6548 = vadd.xlane.f32.xlu0 %v6312
          %v6549 = vpop.xlane.xlu0 %6548
          %6550 = vadd.xlane.f32.xlu0 %v6313
          %v6551 = vpop.xlane.xlu0 %6550
          %6552 = vadd.xlane.f32.xlu0 %v6314
          %v6553 = vpop.xlane.xlu0 %6552
          %6554 = vadd.xlane.f32.xlu0 %v6315
          %v6555 = vpop.xlane.xlu0 %6554
          %6556 = vadd.xlane.f32.xlu0 %v6316
          %v6557 = vpop.xlane.xlu0 %6556
          %6558 = vadd.xlane.f32.xlu0 %v6317
          %v6559 = vpop.xlane.xlu0 %6558
          %6560 = vadd.xlane.f32.xlu0 %v6318
          %v6561 = vpop.xlane.xlu0 %6560
          %6562 = vadd.xlane.f32.xlu0 %v6319
          %v6563 = vpop.xlane.xlu0 %6562
          %6564 = vadd.xlane.f32.xlu0 %v6320
          %v6565 = vpop.xlane.xlu0 %6564
          %6566 = vadd.xlane.f32.xlu0 %v6321
          %v6567 = vpop.xlane.xlu0 %6566
          %6568 = vadd.xlane.f32.xlu0 %v6322
          %v6569 = vpop.xlane.xlu0 %6568
          %6570 = vadd.xlane.f32.xlu0 %v6323
          %v6571 = vpop.xlane.xlu0 %6570
          %6572 = vadd.xlane.f32.xlu0 %v6324
          %v6573 = vpop.xlane.xlu0 %6572
          %6574 = vadd.xlane.f32.xlu0 %v6325
          %v6575 = vpop.xlane.xlu0 %6574
          %6576 = vadd.xlane.f32.xlu0 %v6326
          %v6577 = vpop.xlane.xlu0 %6576
          %6578 = vadd.xlane.f32.xlu0 %v6327
          %v6579 = vpop.xlane.xlu0 %6578
          %6580 = vadd.xlane.f32.xlu0 %v6328
          %v6581 = vpop.xlane.xlu0 %6580
          %6582 = vadd.xlane.f32.xlu0 %v6329
          %v6583 = vpop.xlane.xlu0 %6582
          %6584 = vadd.xlane.f32.xlu0 %v6330
          %v6585 = vpop.xlane.xlu0 %6584
          %6586 = vadd.xlane.f32.xlu0 %v6331
          %v6587 = vpop.xlane.xlu0 %6586
          %6588 = vadd.xlane.f32.xlu0 %v6332
          %v6589 = vpop.xlane.xlu0 %6588
          %6590 = vadd.xlane.f32.xlu0 %v6333
          %v6591 = vpop.xlane.xlu0 %6590
          %6592 = vadd.xlane.f32.xlu0 %v6334
          %v6593 = vpop.xlane.xlu0 %6592
          %6594 = vadd.xlane.f32.xlu0 %v6335
          %v6595 = vpop.xlane.xlu0 %6594
          %6596 = vadd.xlane.f32.xlu0 %v6336
          %v6597 = vpop.xlane.xlu0 %6596
          %6598 = vadd.xlane.f32.xlu0 %v6337
          %v6599 = vpop.xlane.xlu0 %6598
          %6600 = vadd.xlane.f32.xlu0 %v6338
          %v6601 = vpop.xlane.xlu0 %6600
          %6602 = vadd.xlane.f32.xlu0 %v6339
          %v6603 = vpop.xlane.xlu0 %6602
          %6604 = vadd.xlane.f32.xlu0 %v6340
          %v6605 = vpop.xlane.xlu0 %6604
          %6606 = vadd.xlane.f32.xlu0 %v6341
          %v6607 = vpop.xlane.xlu0 %6606
          %6608 = vadd.xlane.f32.xlu0 %v6342
          %v6609 = vpop.xlane.xlu0 %6608
          %6610 = vadd.xlane.f32.xlu0 %v6343
          %v6611 = vpop.xlane.xlu0 %6610
          %6612 = vadd.xlane.f32.xlu0 %v6344
          %v6613 = vpop.xlane.xlu0 %6612
          %6614 = vadd.xlane.f32.xlu0 %v6345
          %v6615 = vpop.xlane.xlu0 %6614
          %6616 = vadd.xlane.f32.xlu0 %v6346
          %v6617 = vpop.xlane.xlu0 %6616
          %6618 = vadd.xlane.f32.xlu0 %v6347
          %v6619 = vpop.xlane.xlu0 %6618
          %6620 = vadd.xlane.f32.xlu0 %v6348
          %v6621 = vpop.xlane.xlu0 %6620
          %6622 = vadd.xlane.f32.xlu0 %v6349
          %v6623 = vpop.xlane.xlu0 %6622
          %6624 = vadd.xlane.f32.xlu0 %v6350
          %v6625 = vpop.xlane.xlu0 %6624
          %6626 = vadd.xlane.f32.xlu0 %v6351
          %v6627 = vpop.xlane.xlu0 %6626
          %6628 = vadd.xlane.f32.xlu0 %v6352
          %v6629 = vpop.xlane.xlu0 %6628
          %6630 = vadd.xlane.f32.xlu0 %v6353
          %v6631 = vpop.xlane.xlu0 %6630
          %6632 = vadd.xlane.f32.xlu0 %v6354
          %v6633 = vpop.xlane.xlu0 %6632
          %6634 = vadd.xlane.f32.xlu0 %v6355
          %v6635 = vpop.xlane.xlu0 %6634
          %6636 = vadd.xlane.f32.xlu0 %v6356
          %v6637 = vpop.xlane.xlu0 %6636
          %6638 = vadd.xlane.f32.xlu0 %v6357
          %v6639 = vpop.xlane.xlu0 %6638
          %6640 = vadd.xlane.f32.xlu0 %v6358
          %v6641 = vpop.xlane.xlu0 %6640
          %6642 = vadd.xlane.f32.xlu0 %v6359
          %v6643 = vpop.xlane.xlu0 %6642
          %6644 = vadd.xlane.f32.xlu0 %v6360
          %v6645 = vpop.xlane.xlu0 %6644
          %6646 = vadd.xlane.f32.xlu0 %v6361
          %v6647 = vpop.xlane.xlu0 %6646
          %6648 = vadd.xlane.f32.xlu0 %v6362
          %v6649 = vpop.xlane.xlu0 %6648
          %6650 = vadd.xlane.f32.xlu0 %v6363
          %v6651 = vpop.xlane.xlu0 %6650
          %6652 = vadd.xlane.f32.xlu0 %v6364
          %v6653 = vpop.xlane.xlu0 %6652
          %6654 = vadd.xlane.f32.xlu0 %v6365
          %v6655 = vpop.xlane.xlu0 %6654
          %6656 = vadd.xlane.f32.xlu0 %v6366
          %v6657 = vpop.xlane.xlu0 %6656
          %6658 = vadd.xlane.f32.xlu0 %v6367
          %v6659 = vpop.xlane.xlu0 %6658
          %6660 = vadd.xlane.f32.xlu0 %v6368
          %v6661 = vpop.xlane.xlu0 %6660
          %6662 = vadd.xlane.f32.xlu0 %v6369
          %v6663 = vpop.xlane.xlu0 %6662
          %6664 = vadd.xlane.f32.xlu0 %v6370
          %v6665 = vpop.xlane.xlu0 %6664
          %6666 = vadd.xlane.f32.xlu0 %v6371
          %v6667 = vpop.xlane.xlu0 %6666
          %6668 = vadd.xlane.f32.xlu0 %v6372
          %v6669 = vpop.xlane.xlu0 %6668
          %6670 = vadd.xlane.f32.xlu0 %v6373
          %v6671 = vpop.xlane.xlu0 %6670
          %6672 = vadd.xlane.f32.xlu0 %v6374
          %v6673 = vpop.xlane.xlu0 %6672
          %6674 = vadd.xlane.f32.xlu0 %v6375
          %v6675 = vpop.xlane.xlu0 %6674
          %6676 = vadd.xlane.f32.xlu0 %v6376
          %v6677 = vpop.xlane.xlu0 %6676
          %6678 = vadd.xlane.f32.xlu0 %v6377
          %v6679 = vpop.xlane.xlu0 %6678
          %6680 = vadd.xlane.f32.xlu0 %v6378
          %v6681 = vpop.xlane.xlu0 %6680
          %6682 = vadd.xlane.f32.xlu0 %v6379
          %v6683 = vpop.xlane.xlu0 %6682
          %6684 = vadd.xlane.f32.xlu0 %v6380
          %v6685 = vpop.xlane.xlu0 %6684
          %6686 = vadd.xlane.f32.xlu0 %v6381
          %v6687 = vpop.xlane.xlu0 %6686
          %6688 = vadd.xlane.f32.xlu0 %v6382
          %v6689 = vpop.xlane.xlu0 %6688
          %6690 = vadd.xlane.f32.xlu0 %v6383
          %v6691 = vpop.xlane.xlu0 %6690
          %6692 = vadd.xlane.f32.xlu0 %v6384
          %v6693 = vpop.xlane.xlu0 %6692
          %6694 = vadd.xlane.f32.xlu0 %v6385
          %v6695 = vpop.xlane.xlu0 %6694
          %6696 = vadd.xlane.f32.xlu0 %v6386
          %v6697 = vpop.xlane.xlu0 %6696
          %6698 = vadd.xlane.f32.xlu0 %v6387
          %v6699 = vpop.xlane.xlu0 %6698
          %6700 = vadd.xlane.f32.xlu0 %v6388
          %v6701 = vpop.xlane.xlu0 %6700
          %6702 = vadd.xlane.f32.xlu0 %v6389
          %v6703 = vpop.xlane.xlu0 %6702
          %6704 = vadd.xlane.f32.xlu0 %v6390
          %v6705 = vpop.xlane.xlu0 %6704
          %6706 = vadd.xlane.f32.xlu0 %v6391
          %v6707 = vpop.xlane.xlu0 %6706
          %6708 = vadd.xlane.f32.xlu0 %v6392
          %v6709 = vpop.xlane.xlu0 %6708
          %6710 = vadd.xlane.f32.xlu0 %v6393
          %v6711 = vpop.xlane.xlu0 %6710
          %6712 = vadd.xlane.f32.xlu0 %v6394
          %v6713 = vpop.xlane.xlu0 %6712
          %6714 = vadd.xlane.f32.xlu0 %v6395
          %v6715 = vpop.xlane.xlu0 %6714
          %v6716 = vmul.f32 %v6397, 0.00390625
          %v6717 = vmul.f32 %v6399, 0.00390625
          %v6718 = vmul.f32 %v6401, 0.00390625
          %v6719 = vmul.f32 %v6403, 0.00390625
          %v6720 = vmul.f32 %v6405, 0.00390625
          %v6721 = vmul.f32 %v6407, 0.00390625
          %v6722 = vmul.f32 %v6409, 0.00390625
          %v6723 = vmul.f32 %v6411, 0.00390625
          %v6724 = vmul.f32 %v6413, 0.00390625
          %v6725 = vmul.f32 %v6415, 0.00390625
          %v6726 = vmul.f32 %v6417, 0.00390625
          %v6727 = vmul.f32 %v6419, 0.00390625
          %v6728 = vmul.f32 %v6421, 0.00390625
          %v6729 = vmul.f32 %v6423, 0.00390625
          %v6730 = vmul.f32 %v6425, 0.00390625
          %v6731 = vmul.f32 %v6427, 0.00390625
          %v6732 = vmul.f32 %v6429, 0.00390625
          %v6733 = vmul.f32 %v6431, 0.00390625
          %v6734 = vmul.f32 %v6433, 0.00390625
          %v6735 = vmul.f32 %v6435, 0.00390625
          %v6736 = vmul.f32 %v6437, 0.00390625
          %v6737 = vmul.f32 %v6439, 0.00390625
          %v6738 = vmul.f32 %v6441, 0.00390625
          %v6739 = vmul.f32 %v6443, 0.00390625
          %v6740 = vmul.f32 %v6445, 0.00390625
          %v6741 = vmul.f32 %v6447, 0.00390625
          %v6742 = vmul.f32 %v6449, 0.00390625
          %v6743 = vmul.f32 %v6451, 0.00390625
          %v6744 = vmul.f32 %v6453, 0.00390625
          %v6745 = vmul.f32 %v6455, 0.00390625
          %v6746 = vmul.f32 %v6457, 0.00390625
          %v6747 = vmul.f32 %v6459, 0.00390625
          %v6748 = vmul.f32 %v6461, 0.00390625
          %v6749 = vmul.f32 %v6463, 0.00390625
          %v6750 = vmul.f32 %v6465, 0.00390625
          %v6751 = vmul.f32 %v6467, 0.00390625
          %v6752 = vmul.f32 %v6469, 0.00390625
          %v6753 = vmul.f32 %v6471, 0.00390625
          %v6754 = vmul.f32 %v6473, 0.00390625
          %v6755 = vmul.f32 %v6475, 0.00390625
          %v6756 = vmul.f32 %v6477, 0.00390625
          %v6757 = vmul.f32 %v6479, 0.00390625
          %v6758 = vmul.f32 %v6481, 0.00390625
          %v6759 = vmul.f32 %v6483, 0.00390625
          %v6760 = vmul.f32 %v6485, 0.00390625
          %v6761 = vmul.f32 %v6487, 0.00390625
          %v6762 = vmul.f32 %v6489, 0.00390625
          %v6763 = vmul.f32 %v6491, 0.00390625
          %v6764 = vmul.f32 %v6493, 0.00390625
          %v6765 = vmul.f32 %v6495, 0.00390625
          %v6766 = vmul.f32 %v6497, 0.00390625
          %v6767 = vmul.f32 %v6499, 0.00390625
          %v6768 = vmul.f32 %v6501, 0.00390625
          %v6769 = vmul.f32 %v6503, 0.00390625
          %v6770 = vmul.f32 %v6505, 0.00390625
          %v6771 = vmul.f32 %v6507, 0.00390625
          %v6772 = vmul.f32 %v6509, 0.00390625
          %v6773 = vmul.f32 %v6511, 0.00390625
          %v6774 = vmul.f32 %v6513, 0.00390625
          %v6775 = vmul.f32 %v6515, 0.00390625
          %v6776 = vmul.f32 %v6517, 0.00390625
          %v6777 = vmul.f32 %v6519, 0.00390625
          %v6778 = vmul.f32 %v6521, 0.00390625
          %v6779 = vmul.f32 %v6523, 0.00390625
          %v6780 = vmul.f32 %v6525, 0.00390625
          %v6781 = vmul.f32 %v6527, 0.00390625
          %v6782 = vmul.f32 %v6529, 0.00390625
          %v6783 = vmul.f32 %v6531, 0.00390625
          %v6784 = vmul.f32 %v6533, 0.00390625
          %v6785 = vmul.f32 %v6535, 0.00390625
          %v6786 = vmul.f32 %v6537, 0.00390625
          %v6787 = vmul.f32 %v6539, 0.00390625
          %v6788 = vmul.f32 %v6541, 0.00390625
          %v6789 = vmul.f32 %v6543, 0.00390625
          %v6790 = vmul.f32 %v6545, 0.00390625
          %v6791 = vmul.f32 %v6547, 0.00390625
          %v6792 = vmul.f32 %v6549, 0.00390625
          %v6793 = vmul.f32 %v6551, 0.00390625
          %v6794 = vmul.f32 %v6553, 0.00390625
          %v6795 = vmul.f32 %v6555, 0.00390625
          %v6796 = vmul.f32 %v6557, 0.00390625
          %v6797 = vmul.f32 %v6559, 0.00390625
          %v6798 = vmul.f32 %v6561, 0.00390625
          %v6799 = vmul.f32 %v6563, 0.00390625
          %v6800 = vmul.f32 %v6565, 0.00390625
          %v6801 = vmul.f32 %v6567, 0.00390625
          %v6802 = vmul.f32 %v6569, 0.00390625
          %v6803 = vmul.f32 %v6571, 0.00390625
          %v6804 = vmul.f32 %v6573, 0.00390625
          %v6805 = vmul.f32 %v6575, 0.00390625
          %v6806 = vmul.f32 %v6577, 0.00390625
          %v6807 = vmul.f32 %v6579, 0.00390625
          %v6808 = vmul.f32 %v6581, 0.00390625
          %v6809 = vmul.f32 %v6583, 0.00390625
          %v6810 = vmul.f32 %v6585, 0.00390625
          %v6811 = vmul.f32 %v6587, 0.00390625
          %v6812 = vmul.f32 %v6589, 0.00390625
          %v6813 = vmul.f32 %v6591, 0.00390625
          %v6814 = vmul.f32 %v6593, 0.00390625
          %v6815 = vmul.f32 %v6595, 0.00390625
          %v6816 = vmul.f32 %v6597, 0.00390625
          %v6817 = vmul.f32 %v6599, 0.00390625
          %v6818 = vmul.f32 %v6601, 0.00390625
          %v6819 = vmul.f32 %v6603, 0.00390625
          %v6820 = vmul.f32 %v6605, 0.00390625
          %v6821 = vmul.f32 %v6607, 0.00390625
          %v6822 = vmul.f32 %v6609, 0.00390625
          %v6823 = vmul.f32 %v6611, 0.00390625
          %v6824 = vmul.f32 %v6613, 0.00390625
          %v6825 = vmul.f32 %v6615, 0.00390625
          %v6826 = vmul.f32 %v6617, 0.00390625
          %v6827 = vmul.f32 %v6619, 0.00390625
          %v6828 = vmul.f32 %v6621, 0.00390625
          %v6829 = vmul.f32 %v6623, 0.00390625
          %v6830 = vmul.f32 %v6625, 0.00390625
          %v6831 = vmul.f32 %v6627, 0.00390625
          %v6832 = vmul.f32 %v6629, 0.00390625
          %v6833 = vmul.f32 %v6631, 0.00390625
          %v6834 = vmul.f32 %v6633, 0.00390625
          %v6835 = vmul.f32 %v6635, 0.00390625
          %v6836 = vmul.f32 %v6637, 0.00390625
          %v6837 = vmul.f32 %v6639, 0.00390625
          %v6838 = vmul.f32 %v6641, 0.00390625
          %v6839 = vmul.f32 %v6643, 0.00390625
          %v6840 = vmul.f32 %v6645, 0.00390625
          %v6841 = vmul.f32 %v6647, 0.00390625
          %v6842 = vmul.f32 %v6649, 0.00390625
          %v6843 = vmul.f32 %v6651, 0.00390625
          %v6844 = vmul.f32 %v6653, 0.00390625
          %v6845 = vmul.f32 %v6655, 0.00390625
          %v6846 = vmul.f32 %v6657, 0.00390625
          %v6847 = vmul.f32 %v6659, 0.00390625
          %v6848 = vmul.f32 %v6661, 0.00390625
          %v6849 = vmul.f32 %v6663, 0.00390625
          %v6850 = vmul.f32 %v6665, 0.00390625
          %v6851 = vmul.f32 %v6667, 0.00390625
          %v6852 = vmul.f32 %v6669, 0.00390625
          %v6853 = vmul.f32 %v6671, 0.00390625
          %v6854 = vmul.f32 %v6673, 0.00390625
          %v6855 = vmul.f32 %v6675, 0.00390625
          %v6856 = vmul.f32 %v6677, 0.00390625
          %v6857 = vmul.f32 %v6679, 0.00390625
          %v6858 = vmul.f32 %v6681, 0.00390625
          %v6859 = vmul.f32 %v6683, 0.00390625
          %v6860 = vmul.f32 %v6685, 0.00390625
          %v6861 = vmul.f32 %v6687, 0.00390625
          %v6862 = vmul.f32 %v6689, 0.00390625
          %v6863 = vmul.f32 %v6691, 0.00390625
          %v6864 = vmul.f32 %v6693, 0.00390625
          %v6865 = vmul.f32 %v6695, 0.00390625
          %v6866 = vmul.f32 %v6697, 0.00390625
          %v6867 = vmul.f32 %v6699, 0.00390625
          %v6868 = vmul.f32 %v6701, 0.00390625
          %v6869 = vmul.f32 %v6703, 0.00390625
          %v6870 = vmul.f32 %v6705, 0.00390625
          %v6871 = vmul.f32 %v6707, 0.00390625
          %v6872 = vmul.f32 %v6709, 0.00390625
          %v6873 = vmul.f32 %v6711, 0.00390625
          %v6874 = vmul.f32 %v6713, 0.00390625
          %v6875 = vmul.f32 %v6715, 0.00390625
          %v6876 = vpack.c.bf16 %v6717, %v6716
          %v6877 = vpack.c.bf16 %v6719, %v6718
          %v6878 = vpack.c.bf16 %v6721, %v6720
          %v6879 = vpack.c.bf16 %v6723, %v6722
          %v6880 = vpack.c.bf16 %v6725, %v6724
          %v6881 = vpack.c.bf16 %v6727, %v6726
          %v6882 = vpack.c.bf16 %v6729, %v6728
          %v6883 = vpack.c.bf16 %v6731, %v6730
          %v6884 = vpack.c.bf16 %v6733, %v6732
          %v6885 = vpack.c.bf16 %v6735, %v6734
          %v6886 = vpack.c.bf16 %v6737, %v6736
          %v6887 = vpack.c.bf16 %v6739, %v6738
          %v6888 = vpack.c.bf16 %v6741, %v6740
          %v6889 = vpack.c.bf16 %v6743, %v6742
          %v6890 = vpack.c.bf16 %v6745, %v6744
          %v6891 = vpack.c.bf16 %v6747, %v6746
          %v6892 = vpack.c.bf16 %v6749, %v6748
          %v6893 = vpack.c.bf16 %v6751, %v6750
          %v6894 = vpack.c.bf16 %v6753, %v6752
          %v6895 = vpack.c.bf16 %v6755, %v6754
          %v6896 = vpack.c.bf16 %v6757, %v6756
          %v6897 = vpack.c.bf16 %v6759, %v6758
          %v6898 = vpack.c.bf16 %v6761, %v6760
          %v6899 = vpack.c.bf16 %v6763, %v6762
          %v6900 = vpack.c.bf16 %v6765, %v6764
          %v6901 = vpack.c.bf16 %v6767, %v6766
          %v6902 = vpack.c.bf16 %v6769, %v6768
          %v6903 = vpack.c.bf16 %v6771, %v6770
          %v6904 = vpack.c.bf16 %v6773, %v6772
          %v6905 = vpack.c.bf16 %v6775, %v6774
          %v6906 = vpack.c.bf16 %v6777, %v6776
          %v6907 = vpack.c.bf16 %v6779, %v6778
          %v6908 = vpack.c.bf16 %v6781, %v6780
          %v6909 = vpack.c.bf16 %v6783, %v6782
          %v6910 = vpack.c.bf16 %v6785, %v6784
          %v6911 = vpack.c.bf16 %v6787, %v6786
          %v6912 = vpack.c.bf16 %v6789, %v6788
          %v6913 = vpack.c.bf16 %v6791, %v6790
          %v6914 = vpack.c.bf16 %v6793, %v6792
          %v6915 = vpack.c.bf16 %v6795, %v6794
          %v6916 = vpack.c.bf16 %v6797, %v6796
          %v6917 = vpack.c.bf16 %v6799, %v6798
          %v6918 = vpack.c.bf16 %v6801, %v6800
          %v6919 = vpack.c.bf16 %v6803, %v6802
          %v6920 = vpack.c.bf16 %v6805, %v6804
          %v6921 = vpack.c.bf16 %v6807, %v6806
          %v6922 = vpack.c.bf16 %v6809, %v6808
          %v6923 = vpack.c.bf16 %v6811, %v6810
          %v6924 = vpack.c.bf16 %v6813, %v6812
          %v6925 = vpack.c.bf16 %v6815, %v6814
          %v6926 = vpack.c.bf16 %v6817, %v6816
          %v6927 = vpack.c.bf16 %v6819, %v6818
          %v6928 = vpack.c.bf16 %v6821, %v6820
          %v6929 = vpack.c.bf16 %v6823, %v6822
          %v6930 = vpack.c.bf16 %v6825, %v6824
          %v6931 = vpack.c.bf16 %v6827, %v6826
          %v6932 = vpack.c.bf16 %v6829, %v6828
          %v6933 = vpack.c.bf16 %v6831, %v6830
          %v6934 = vpack.c.bf16 %v6833, %v6832
          %v6935 = vpack.c.bf16 %v6835, %v6834
          %v6936 = vpack.c.bf16 %v6837, %v6836
          %v6937 = vpack.c.bf16 %v6839, %v6838
          %v6938 = vpack.c.bf16 %v6841, %v6840
          %v6939 = vpack.c.bf16 %v6843, %v6842
          %v6940 = vpack.c.bf16 %v6845, %v6844
          %v6941 = vpack.c.bf16 %v6847, %v6846
          %v6942 = vpack.c.bf16 %v6849, %v6848
          %v6943 = vpack.c.bf16 %v6851, %v6850
          %v6944 = vpack.c.bf16 %v6853, %v6852
          %v6945 = vpack.c.bf16 %v6855, %v6854
          %v6946 = vpack.c.bf16 %v6857, %v6856
          %v6947 = vpack.c.bf16 %v6859, %v6858
          %v6948 = vpack.c.bf16 %v6861, %v6860
          %v6949 = vpack.c.bf16 %v6863, %v6862
          %v6950 = vpack.c.bf16 %v6865, %v6864
          %v6951 = vpack.c.bf16 %v6867, %v6866
          %v6952 = vpack.c.bf16 %v6869, %v6868
          %v6953 = vpack.c.bf16 %v6871, %v6870
          %v6954 = vpack.c.bf16 %v6873, %v6872
          %v6955 = vpack.c.bf16 %v6875, %v6874
          %v6956 = vld [vmem:[%s3] sm:$0xff]
          %v6957 = vld [vmem:[%s3 + $0x8] sm:$0xff]
          %v6958 = vld [vmem:[%s3 + $0x10] sm:$0xff]
          %v6959 = vld [vmem:[%s3 + $0x18] sm:$0xff]
          %v6960 = vld [vmem:[%s3 + $0x20] sm:$0xff]
          %v6961 = vld [vmem:[%s3 + $0x28] sm:$0xff]
          %v6962 = vld [vmem:[%s3 + $0x30] sm:$0xff]
          %v6963 = vld [vmem:[%s3 + $0x38] sm:$0xff]
          %v6964 = vld [vmem:[%s3 + $0x40] sm:$0xff]
          %v6965 = vld [vmem:[%s3 + $0x48] sm:$0xff]
          %v6966 = vld [vmem:[%s3 + $0x50] sm:$0xff]
          %v6967 = vld [vmem:[%s3 + $0x58] sm:$0xff]
          %v6968 = vld [vmem:[%s3 + $0x60] sm:$0xff]
          %v6969 = vld [vmem:[%s3 + $0x68] sm:$0xff]
          %v6970 = vld [vmem:[%s3 + $0x70] sm:$0xff]
          %v6971 = vld [vmem:[%s3 + $0x78] sm:$0xff]
          %v6972 = vld [vmem:[%s3 + $0x80] sm:$0xff]
          %v6973 = vld [vmem:[%s3 + $0x88] sm:$0xff]
          %v6974 = vld [vmem:[%s3 + $0x90] sm:$0xff]
          %v6975 = vld [vmem:[%s3 + $0x98] sm:$0xff]
          %v6976 = vld [vmem:[%s3 + $0xa0] sm:$0xff]
          %v6977 = vld [vmem:[%s3 + $0xa8] sm:$0xff]
          %v6978 = vld [vmem:[%s3 + $0xb0] sm:$0xff]
          %v6979 = vld [vmem:[%s3 + $0xb8] sm:$0xff]
          %v6980 = vld [vmem:[%s3 + $0xc0] sm:$0xff]
          %v6981 = vld [vmem:[%s3 + $0xc8] sm:$0xff]
          %v6982 = vld [vmem:[%s3 + $0xd0] sm:$0xff]
          %v6983 = vld [vmem:[%s3 + $0xd8] sm:$0xff]
          %v6984 = vld [vmem:[%s3 + $0xe0] sm:$0xff]
          %v6985 = vld [vmem:[%s3 + $0xe8] sm:$0xff]
          %v6986 = vld [vmem:[%s3 + $0xf0] sm:$0xff]
          %v6987 = vld [vmem:[%s3 + $0xf8] sm:$0xff]
          %v6988 = vld [vmem:[%s3 + $0x100] sm:$0xff]
          %v6989 = vld [vmem:[%s3 + $0x108] sm:$0xff]
          %v6990 = vld [vmem:[%s3 + $0x110] sm:$0xff]
          %v6991 = vld [vmem:[%s3 + $0x118] sm:$0xff]
          %v6992 = vld [vmem:[%s3 + $0x120] sm:$0xff]
          %v6993 = vld [vmem:[%s3 + $0x128] sm:$0xff]
          %v6994 = vld [vmem:[%s3 + $0x130] sm:$0xff]
          %v6995 = vld [vmem:[%s3 + $0x138] sm:$0xff]
          %v6996 = vld [vmem:[%s3 + $0x140] sm:$0xff]
          %v6997 = vld [vmem:[%s3 + $0x148] sm:$0xff]
          %v6998 = vld [vmem:[%s3 + $0x150] sm:$0xff]
          %v6999 = vld [vmem:[%s3 + $0x158] sm:$0xff]
          %v7000 = vld [vmem:[%s3 + $0x160] sm:$0xff]
          %v7001 = vld [vmem:[%s3 + $0x168] sm:$0xff]
          %v7002 = vld [vmem:[%s3 + $0x170] sm:$0xff]
          %v7003 = vld [vmem:[%s3 + $0x178] sm:$0xff]
          %v7004 = vld [vmem:[%s3 + $0x180] sm:$0xff]
          %v7005 = vld [vmem:[%s3 + $0x188] sm:$0xff]
          %v7006 = vld [vmem:[%s3 + $0x190] sm:$0xff]
          %v7007 = vld [vmem:[%s3 + $0x198] sm:$0xff]
          %v7008 = vld [vmem:[%s3 + $0x1a0] sm:$0xff]
          %v7009 = vld [vmem:[%s3 + $0x1a8] sm:$0xff]
          %v7010 = vld [vmem:[%s3 + $0x1b0] sm:$0xff]
          %v7011 = vld [vmem:[%s3 + $0x1b8] sm:$0xff]
          %v7012 = vld [vmem:[%s3 + $0x1c0] sm:$0xff]
          %v7013 = vld [vmem:[%s3 + $0x1c8] sm:$0xff]
          %v7014 = vld [vmem:[%s3 + $0x1d0] sm:$0xff]
          %v7015 = vld [vmem:[%s3 + $0x1d8] sm:$0xff]
          %v7016 = vld [vmem:[%s3 + $0x1e0] sm:$0xff]
          %v7017 = vld [vmem:[%s3 + $0x1e8] sm:$0xff]
          %v7018 = vld [vmem:[%s3 + $0x1f0] sm:$0xff]
          %v7019 = vld [vmem:[%s3 + $0x1f8] sm:$0xff]
          %v7020 = vld [vmem:[%s3 + $0x200] sm:$0xff]
          %v7021 = vld [vmem:[%s3 + $0x208] sm:$0xff]
          %v7022 = vld [vmem:[%s3 + $0x210] sm:$0xff]
          %v7023 = vld [vmem:[%s3 + $0x218] sm:$0xff]
          %v7024 = vld [vmem:[%s3 + $0x220] sm:$0xff]
          %v7025 = vld [vmem:[%s3 + $0x228] sm:$0xff]
          %v7026 = vld [vmem:[%s3 + $0x230] sm:$0xff]
          %v7027 = vld [vmem:[%s3 + $0x238] sm:$0xff]
          %v7028 = vld [vmem:[%s3 + $0x240] sm:$0xff]
          %v7029 = vld [vmem:[%s3 + $0x248] sm:$0xff]
          %v7030 = vld [vmem:[%s3 + $0x250] sm:$0xff]
          %v7031 = vld [vmem:[%s3 + $0x258] sm:$0xff]
          %v7032 = vld [vmem:[%s3 + $0x260] sm:$0xff]
          %v7033 = vld [vmem:[%s3 + $0x268] sm:$0xff]
          %v7034 = vld [vmem:[%s3 + $0x270] sm:$0xff]
          %v7035 = vld [vmem:[%s3 + $0x278] sm:$0xff]
          %v7036 = vld [vmem:[%s3 + $0x280] sm:$0xff]
          %v7037 = vld [vmem:[%s3 + $0x288] sm:$0xff]
          %v7038 = vld [vmem:[%s3 + $0x290] sm:$0xff]
          %v7039 = vld [vmem:[%s3 + $0x298] sm:$0xff]
          %v7040 = vld [vmem:[%s3 + $0x2a0] sm:$0xff]
          %v7041 = vld [vmem:[%s3 + $0x2a8] sm:$0xff]
          %v7042 = vld [vmem:[%s3 + $0x2b0] sm:$0xff]
          %v7043 = vld [vmem:[%s3 + $0x2b8] sm:$0xff]
          %v7044 = vld [vmem:[%s3 + $0x2c0] sm:$0xff]
          %v7045 = vld [vmem:[%s3 + $0x2c8] sm:$0xff]
          %v7046 = vld [vmem:[%s3 + $0x2d0] sm:$0xff]
          %v7047 = vld [vmem:[%s3 + $0x2d8] sm:$0xff]
          %v7048 = vld [vmem:[%s3 + $0x2e0] sm:$0xff]
          %v7049 = vld [vmem:[%s3 + $0x2e8] sm:$0xff]
          %v7050 = vld [vmem:[%s3 + $0x2f0] sm:$0xff]
          %v7051 = vld [vmem:[%s3 + $0x2f8] sm:$0xff]
          %v7052 = vld [vmem:[%s3 + $0x300] sm:$0xff]
          %v7053 = vld [vmem:[%s3 + $0x308] sm:$0xff]
          %v7054 = vld [vmem:[%s3 + $0x310] sm:$0xff]
          %v7055 = vld [vmem:[%s3 + $0x318] sm:$0xff]
          %v7056 = vld [vmem:[%s3 + $0x320] sm:$0xff]
          %v7057 = vld [vmem:[%s3 + $0x328] sm:$0xff]
          %v7058 = vld [vmem:[%s3 + $0x330] sm:$0xff]
          %v7059 = vld [vmem:[%s3 + $0x338] sm:$0xff]
          %v7060 = vld [vmem:[%s3 + $0x340] sm:$0xff]
          %v7061 = vld [vmem:[%s3 + $0x348] sm:$0xff]
          %v7062 = vld [vmem:[%s3 + $0x350] sm:$0xff]
          %v7063 = vld [vmem:[%s3 + $0x358] sm:$0xff]
          %v7064 = vld [vmem:[%s3 + $0x360] sm:$0xff]
          %v7065 = vld [vmem:[%s3 + $0x368] sm:$0xff]
          %v7066 = vld [vmem:[%s3 + $0x370] sm:$0xff]
          %v7067 = vld [vmem:[%s3 + $0x378] sm:$0xff]
          %v7068 = vld [vmem:[%s3 + $0x380] sm:$0xff]
          %v7069 = vld [vmem:[%s3 + $0x388] sm:$0xff]
          %v7070 = vld [vmem:[%s3 + $0x390] sm:$0xff]
          %v7071 = vld [vmem:[%s3 + $0x398] sm:$0xff]
          %v7072 = vld [vmem:[%s3 + $0x3a0] sm:$0xff]
          %v7073 = vld [vmem:[%s3 + $0x3a8] sm:$0xff]
          %v7074 = vld [vmem:[%s3 + $0x3b0] sm:$0xff]
          %v7075 = vld [vmem:[%s3 + $0x3b8] sm:$0xff]
          %v7076 = vld [vmem:[%s3 + $0x3c0] sm:$0xff]
          %v7077 = vld [vmem:[%s3 + $0x3c8] sm:$0xff]
          %v7078 = vld [vmem:[%s3 + $0x3d0] sm:$0xff]
          %v7079 = vld [vmem:[%s3 + $0x3d8] sm:$0xff]
          %v7080 = vld [vmem:[%s3 + $0x3e0] sm:$0xff]
          %v7081 = vld [vmem:[%s3 + $0x3e8] sm:$0xff]
          %v7082 = vld [vmem:[%s3 + $0x3f0] sm:$0xff]
          %v7083 = vld [vmem:[%s3 + $0x3f8] sm:$0xff]
          %v7084 = vld [vmem:[%s3 + $0x400] sm:$0xff]
          %v7085 = vld [vmem:[%s3 + $0x408] sm:$0xff]
          %v7086 = vld [vmem:[%s3 + $0x410] sm:$0xff]
          %v7087 = vld [vmem:[%s3 + $0x418] sm:$0xff]
          %v7088 = vld [vmem:[%s3 + $0x420] sm:$0xff]
          %v7089 = vld [vmem:[%s3 + $0x428] sm:$0xff]
          %v7090 = vld [vmem:[%s3 + $0x430] sm:$0xff]
          %v7091 = vld [vmem:[%s3 + $0x438] sm:$0xff]
          %v7092 = vld [vmem:[%s3 + $0x440] sm:$0xff]
          %v7093 = vld [vmem:[%s3 + $0x448] sm:$0xff]
          %v7094 = vld [vmem:[%s3 + $0x450] sm:$0xff]
          %v7095 = vld [vmem:[%s3 + $0x458] sm:$0xff]
          %v7096 = vld [vmem:[%s3 + $0x460] sm:$0xff]
          %v7097 = vld [vmem:[%s3 + $0x468] sm:$0xff]
          %v7098 = vld [vmem:[%s3 + $0x470] sm:$0xff]
          %v7099 = vld [vmem:[%s3 + $0x478] sm:$0xff]
          %v7100 = vld [vmem:[%s3 + $0x480] sm:$0xff]
          %v7101 = vld [vmem:[%s3 + $0x488] sm:$0xff]
          %v7102 = vld [vmem:[%s3 + $0x490] sm:$0xff]
          %v7103 = vld [vmem:[%s3 + $0x498] sm:$0xff]
          %v7104 = vld [vmem:[%s3 + $0x4a0] sm:$0xff]
          %v7105 = vld [vmem:[%s3 + $0x4a8] sm:$0xff]
          %v7106 = vld [vmem:[%s3 + $0x4b0] sm:$0xff]
          %v7107 = vld [vmem:[%s3 + $0x4b8] sm:$0xff]
          %v7108 = vld [vmem:[%s3 + $0x4c0] sm:$0xff]
          %v7109 = vld [vmem:[%s3 + $0x4c8] sm:$0xff]
          %v7110 = vld [vmem:[%s3 + $0x4d0] sm:$0xff]
          %v7111 = vld [vmem:[%s3 + $0x4d8] sm:$0xff]
          %v7112 = vld [vmem:[%s3 + $0x4e0] sm:$0xff]
          %v7113 = vld [vmem:[%s3 + $0x4e8] sm:$0xff]
          %v7114 = vld [vmem:[%s3 + $0x4f0] sm:$0xff]
          %v7115 = vld [vmem:[%s3 + $0x4f8] sm:$0xff]
          %v7116 = vld [vmem:[%s3 + $0x500] sm:$0xff]
          %v7117 = vld [vmem:[%s3 + $0x508] sm:$0xff]
          %v7118 = vld [vmem:[%s3 + $0x510] sm:$0xff]
          %v7119 = vld [vmem:[%s3 + $0x518] sm:$0xff]
          %v7120 = vld [vmem:[%s3 + $0x520] sm:$0xff]
          %v7121 = vld [vmem:[%s3 + $0x528] sm:$0xff]
          %v7122 = vld [vmem:[%s3 + $0x530] sm:$0xff]
          %v7123 = vld [vmem:[%s3 + $0x538] sm:$0xff]
          %v7124 = vld [vmem:[%s3 + $0x540] sm:$0xff]
          %v7125 = vld [vmem:[%s3 + $0x548] sm:$0xff]
          %v7126 = vld [vmem:[%s3 + $0x550] sm:$0xff]
          %v7127 = vld [vmem:[%s3 + $0x558] sm:$0xff]
          %v7128 = vld [vmem:[%s3 + $0x560] sm:$0xff]
          %v7129 = vld [vmem:[%s3 + $0x568] sm:$0xff]
          %v7130 = vld [vmem:[%s3 + $0x570] sm:$0xff]
          %v7131 = vld [vmem:[%s3 + $0x578] sm:$0xff]
          %v7132 = vld [vmem:[%s3 + $0x580] sm:$0xff]
          %v7133 = vld [vmem:[%s3 + $0x588] sm:$0xff]
          %v7134 = vld [vmem:[%s3 + $0x590] sm:$0xff]
          %v7135 = vld [vmem:[%s3 + $0x598] sm:$0xff]
          %v7136 = vld [vmem:[%s3 + $0x5a0] sm:$0xff]
          %v7137 = vld [vmem:[%s3 + $0x5a8] sm:$0xff]
          %v7138 = vld [vmem:[%s3 + $0x5b0] sm:$0xff]
          %v7139 = vld [vmem:[%s3 + $0x5b8] sm:$0xff]
          %v7140 = vld [vmem:[%s3 + $0x5c0] sm:$0xff]
          %v7141 = vld [vmem:[%s3 + $0x5c8] sm:$0xff]
          %v7142 = vld [vmem:[%s3 + $0x5d0] sm:$0xff]
          %v7143 = vld [vmem:[%s3 + $0x5d8] sm:$0xff]
          %v7144 = vld [vmem:[%s3 + $0x5e0] sm:$0xff]
          %v7145 = vld [vmem:[%s3 + $0x5e8] sm:$0xff]
          %v7146 = vld [vmem:[%s3 + $0x5f0] sm:$0xff]
          %v7147 = vld [vmem:[%s3 + $0x5f8] sm:$0xff]
          %v7148 = vld [vmem:[%s3 + $0x600] sm:$0xff]
          %v7149 = vld [vmem:[%s3 + $0x608] sm:$0xff]
          %v7150 = vld [vmem:[%s3 + $0x610] sm:$0xff]
          %v7151 = vld [vmem:[%s3 + $0x618] sm:$0xff]
          %v7152 = vld [vmem:[%s3 + $0x620] sm:$0xff]
          %v7153 = vld [vmem:[%s3 + $0x628] sm:$0xff]
          %v7154 = vld [vmem:[%s3 + $0x630] sm:$0xff]
          %v7155 = vld [vmem:[%s3 + $0x638] sm:$0xff]
          %v7156 = vld [vmem:[%s3 + $0x640] sm:$0xff]
          %v7157 = vld [vmem:[%s3 + $0x648] sm:$0xff]
          %v7158 = vld [vmem:[%s3 + $0x650] sm:$0xff]
          %v7159 = vld [vmem:[%s3 + $0x658] sm:$0xff]
          %v7160 = vld [vmem:[%s3 + $0x660] sm:$0xff]
          %v7161 = vld [vmem:[%s3 + $0x668] sm:$0xff]
          %v7162 = vld [vmem:[%s3 + $0x670] sm:$0xff]
          %v7163 = vld [vmem:[%s3 + $0x678] sm:$0xff]
          %v7164 = vld [vmem:[%s3 + $0x680] sm:$0xff]
          %v7165 = vld [vmem:[%s3 + $0x688] sm:$0xff]
          %v7166 = vld [vmem:[%s3 + $0x690] sm:$0xff]
          %v7167 = vld [vmem:[%s3 + $0x698] sm:$0xff]
          %v7168 = vld [vmem:[%s3 + $0x6a0] sm:$0xff]
          %v7169 = vld [vmem:[%s3 + $0x6a8] sm:$0xff]
          %v7170 = vld [vmem:[%s3 + $0x6b0] sm:$0xff]
          %v7171 = vld [vmem:[%s3 + $0x6b8] sm:$0xff]
          %v7172 = vld [vmem:[%s3 + $0x6c0] sm:$0xff]
          %v7173 = vld [vmem:[%s3 + $0x6c8] sm:$0xff]
          %v7174 = vld [vmem:[%s3 + $0x6d0] sm:$0xff]
          %v7175 = vld [vmem:[%s3 + $0x6d8] sm:$0xff]
          %v7176 = vld [vmem:[%s3 + $0x6e0] sm:$0xff]
          %v7177 = vld [vmem:[%s3 + $0x6e8] sm:$0xff]
          %v7178 = vld [vmem:[%s3 + $0x6f0] sm:$0xff]
          %v7179 = vld [vmem:[%s3 + $0x6f8] sm:$0xff]
          %v7180 = vld [vmem:[%s3 + $0x700] sm:$0xff]
          %v7181 = vld [vmem:[%s3 + $0x708] sm:$0xff]
          %v7182 = vld [vmem:[%s3 + $0x710] sm:$0xff]
          %v7183 = vld [vmem:[%s3 + $0x718] sm:$0xff]
          %v7184 = vld [vmem:[%s3 + $0x720] sm:$0xff]
          %v7185 = vld [vmem:[%s3 + $0x728] sm:$0xff]
          %v7186 = vld [vmem:[%s3 + $0x730] sm:$0xff]
          %v7187 = vld [vmem:[%s3 + $0x738] sm:$0xff]
          %v7188 = vld [vmem:[%s3 + $0x740] sm:$0xff]
          %v7189 = vld [vmem:[%s3 + $0x748] sm:$0xff]
          %v7190 = vld [vmem:[%s3 + $0x750] sm:$0xff]
          %v7191 = vld [vmem:[%s3 + $0x758] sm:$0xff]
          %v7192 = vld [vmem:[%s3 + $0x760] sm:$0xff]
          %v7193 = vld [vmem:[%s3 + $0x768] sm:$0xff]
          %v7194 = vld [vmem:[%s3 + $0x770] sm:$0xff]
          %v7195 = vld [vmem:[%s3 + $0x778] sm:$0xff]
          %v7196 = vld [vmem:[%s3 + $0x780] sm:$0xff]
          %v7197 = vld [vmem:[%s3 + $0x788] sm:$0xff]
          %v7198 = vld [vmem:[%s3 + $0x790] sm:$0xff]
          %v7199 = vld [vmem:[%s3 + $0x798] sm:$0xff]
          %v7200 = vld [vmem:[%s3 + $0x7a0] sm:$0xff]
          %v7201 = vld [vmem:[%s3 + $0x7a8] sm:$0xff]
          %v7202 = vld [vmem:[%s3 + $0x7b0] sm:$0xff]
          %v7203 = vld [vmem:[%s3 + $0x7b8] sm:$0xff]
          %v7204 = vld [vmem:[%s3 + $0x7c0] sm:$0xff]
          %v7205 = vld [vmem:[%s3 + $0x7c8] sm:$0xff]
          %v7206 = vld [vmem:[%s3 + $0x7d0] sm:$0xff]
          %v7207 = vld [vmem:[%s3 + $0x7d8] sm:$0xff]
          %v7208 = vld [vmem:[%s3 + $0x7e0] sm:$0xff]
          %v7209 = vld [vmem:[%s3 + $0x7e8] sm:$0xff]
          %v7210 = vld [vmem:[%s3 + $0x7f0] sm:$0xff]
          %v7211 = vld [vmem:[%s3 + $0x7f8] sm:$0xff]
          %v7212 = vld [vmem:[%s3 + $0x800] sm:$0xff]
          %v7213 = vld [vmem:[%s3 + $0x808] sm:$0xff]
          %v7214 = vld [vmem:[%s3 + $0x810] sm:$0xff]
          %v7215 = vld [vmem:[%s3 + $0x818] sm:$0xff]
          %v7216 = vld [vmem:[%s3 + $0x820] sm:$0xff]
          %v7217 = vld [vmem:[%s3 + $0x828] sm:$0xff]
          %v7218 = vld [vmem:[%s3 + $0x830] sm:$0xff]
          %v7219 = vld [vmem:[%s3 + $0x838] sm:$0xff]
          %v7220 = vld [vmem:[%s3 + $0x840] sm:$0xff]
          %v7221 = vld [vmem:[%s3 + $0x848] sm:$0xff]
          %v7222 = vld [vmem:[%s3 + $0x850] sm:$0xff]
          %v7223 = vld [vmem:[%s3 + $0x858] sm:$0xff]
          %v7224 = vld [vmem:[%s3 + $0x860] sm:$0xff]
          %v7225 = vld [vmem:[%s3 + $0x868] sm:$0xff]
          %v7226 = vld [vmem:[%s3 + $0x870] sm:$0xff]
          %v7227 = vld [vmem:[%s3 + $0x878] sm:$0xff]
          %v7228 = vld [vmem:[%s3 + $0x880] sm:$0xff]
          %v7229 = vld [vmem:[%s3 + $0x888] sm:$0xff]
          %v7230 = vld [vmem:[%s3 + $0x890] sm:$0xff]
          %v7231 = vld [vmem:[%s3 + $0x898] sm:$0xff]
          %v7232 = vld [vmem:[%s3 + $0x8a0] sm:$0xff]
          %v7233 = vld [vmem:[%s3 + $0x8a8] sm:$0xff]
          %v7234 = vld [vmem:[%s3 + $0x8b0] sm:$0xff]
          %v7235 = vld [vmem:[%s3 + $0x8b8] sm:$0xff]
          %v7236 = vld [vmem:[%s3 + $0x8c0] sm:$0xff]
          %v7237 = vld [vmem:[%s3 + $0x8c8] sm:$0xff]
          %v7238 = vld [vmem:[%s3 + $0x8d0] sm:$0xff]
          %v7239 = vld [vmem:[%s3 + $0x8d8] sm:$0xff]
          %v7240 = vld [vmem:[%s3 + $0x8e0] sm:$0xff]
          %v7241 = vld [vmem:[%s3 + $0x8e8] sm:$0xff]
          %v7242 = vld [vmem:[%s3 + $0x8f0] sm:$0xff]
          %v7243 = vld [vmem:[%s3 + $0x8f8] sm:$0xff]
          %v7244 = vld [vmem:[%s3 + $0x900] sm:$0xff]
          %v7245 = vld [vmem:[%s3 + $0x908] sm:$0xff]
          %v7246 = vld [vmem:[%s3 + $0x910] sm:$0xff]
          %v7247 = vld [vmem:[%s3 + $0x918] sm:$0xff]
          %v7248 = vld [vmem:[%s3 + $0x920] sm:$0xff]
          %v7249 = vld [vmem:[%s3 + $0x928] sm:$0xff]
          %v7250 = vld [vmem:[%s3 + $0x930] sm:$0xff]
          %v7251 = vld [vmem:[%s3 + $0x938] sm:$0xff]
          %v7252 = vld [vmem:[%s3 + $0x940] sm:$0xff]
          %v7253 = vld [vmem:[%s3 + $0x948] sm:$0xff]
          %v7254 = vld [vmem:[%s3 + $0x950] sm:$0xff]
          %v7255 = vld [vmem:[%s3 + $0x958] sm:$0xff]
          %v7256 = vld [vmem:[%s3 + $0x960] sm:$0xff]
          %v7257 = vld [vmem:[%s3 + $0x968] sm:$0xff]
          %v7258 = vld [vmem:[%s3 + $0x970] sm:$0xff]
          %v7259 = vld [vmem:[%s3 + $0x978] sm:$0xff]
          %v7260 = vld [vmem:[%s3 + $0x980] sm:$0xff]
          %v7261 = vld [vmem:[%s3 + $0x988] sm:$0xff]
          %v7262 = vld [vmem:[%s3 + $0x990] sm:$0xff]
          %v7263 = vld [vmem:[%s3 + $0x998] sm:$0xff]
          %v7264 = vld [vmem:[%s3 + $0x9a0] sm:$0xff]
          %v7265 = vld [vmem:[%s3 + $0x9a8] sm:$0xff]
          %v7266 = vld [vmem:[%s3 + $0x9b0] sm:$0xff]
          %v7267 = vld [vmem:[%s3 + $0x9b8] sm:$0xff]
          %v7268 = vld [vmem:[%s3 + $0x9c0] sm:$0xff]
          %v7269 = vld [vmem:[%s3 + $0x9c8] sm:$0xff]
          %v7270 = vld [vmem:[%s3 + $0x9d0] sm:$0xff]
          %v7271 = vld [vmem:[%s3 + $0x9d8] sm:$0xff]
          %v7272 = vld [vmem:[%s3 + $0x9e0] sm:$0xff]
          %v7273 = vld [vmem:[%s3 + $0x9e8] sm:$0xff]
          %v7274 = vld [vmem:[%s3 + $0x9f0] sm:$0xff]
          %v7275 = vld [vmem:[%s3 + $0x9f8] sm:$0xff]
          %v7276 = vld [vmem:[%s4] sm:$0xff]
          %v7277 = vld [vmem:[%s4 + $0x8] sm:$0xff]
          %v7278 = vld [vmem:[%s4 + $0x10] sm:$0xff]
          %v7279 = vld [vmem:[%s4 + $0x18] sm:$0xff]
          %v7280 = vld [vmem:[%s4 + $0x20] sm:$0xff]
          %v7281 = vld [vmem:[%s4 + $0x28] sm:$0xff]
          %v7282 = vld [vmem:[%s4 + $0x30] sm:$0xff]
          %v7283 = vld [vmem:[%s4 + $0x38] sm:$0xff]
          %v7284 = vld [vmem:[%s4 + $0x40] sm:$0xff]
          %v7285 = vld [vmem:[%s4 + $0x48] sm:$0xff]
          %v7286 = vld [vmem:[%s4 + $0x50] sm:$0xff]
          %v7287 = vld [vmem:[%s4 + $0x58] sm:$0xff]
          %v7288 = vld [vmem:[%s4 + $0x60] sm:$0xff]
          %v7289 = vld [vmem:[%s4 + $0x68] sm:$0xff]
          %v7290 = vld [vmem:[%s4 + $0x70] sm:$0xff]
          %v7291 = vld [vmem:[%s4 + $0x78] sm:$0xff]
          %v7292 = vld [vmem:[%s4 + $0x80] sm:$0xff]
          %v7293 = vld [vmem:[%s4 + $0x88] sm:$0xff]
          %v7294 = vld [vmem:[%s4 + $0x90] sm:$0xff]
          %v7295 = vld [vmem:[%s4 + $0x98] sm:$0xff]
          %v7296 = vld [vmem:[%s4 + $0xa0] sm:$0xff]
          %v7297 = vld [vmem:[%s4 + $0xa8] sm:$0xff]
          %v7298 = vld [vmem:[%s4 + $0xb0] sm:$0xff]
          %v7299 = vld [vmem:[%s4 + $0xb8] sm:$0xff]
          %v7300 = vld [vmem:[%s4 + $0xc0] sm:$0xff]
          %v7301 = vld [vmem:[%s4 + $0xc8] sm:$0xff]
          %v7302 = vld [vmem:[%s4 + $0xd0] sm:$0xff]
          %v7303 = vld [vmem:[%s4 + $0xd8] sm:$0xff]
          %v7304 = vld [vmem:[%s4 + $0xe0] sm:$0xff]
          %v7305 = vld [vmem:[%s4 + $0xe8] sm:$0xff]
          %v7306 = vld [vmem:[%s4 + $0xf0] sm:$0xff]
          %v7307 = vld [vmem:[%s4 + $0xf8] sm:$0xff]
          %v7308 = vld [vmem:[%s4 + $0x100] sm:$0xff]
          %v7309 = vld [vmem:[%s4 + $0x108] sm:$0xff]
          %v7310 = vld [vmem:[%s4 + $0x110] sm:$0xff]
          %v7311 = vld [vmem:[%s4 + $0x118] sm:$0xff]
          %v7312 = vld [vmem:[%s4 + $0x120] sm:$0xff]
          %v7313 = vld [vmem:[%s4 + $0x128] sm:$0xff]
          %v7314 = vld [vmem:[%s4 + $0x130] sm:$0xff]
          %v7315 = vld [vmem:[%s4 + $0x138] sm:$0xff]
          %v7316 = vld [vmem:[%s4 + $0x140] sm:$0xff]
          %v7317 = vld [vmem:[%s4 + $0x148] sm:$0xff]
          %v7318 = vld [vmem:[%s4 + $0x150] sm:$0xff]
          %v7319 = vld [vmem:[%s4 + $0x158] sm:$0xff]
          %v7320 = vld [vmem:[%s4 + $0x160] sm:$0xff]
          %v7321 = vld [vmem:[%s4 + $0x168] sm:$0xff]
          %v7322 = vld [vmem:[%s4 + $0x170] sm:$0xff]
          %v7323 = vld [vmem:[%s4 + $0x178] sm:$0xff]
          %v7324 = vld [vmem:[%s4 + $0x180] sm:$0xff]
          %v7325 = vld [vmem:[%s4 + $0x188] sm:$0xff]
          %v7326 = vld [vmem:[%s4 + $0x190] sm:$0xff]
          %v7327 = vld [vmem:[%s4 + $0x198] sm:$0xff]
          %v7328 = vld [vmem:[%s4 + $0x1a0] sm:$0xff]
          %v7329 = vld [vmem:[%s4 + $0x1a8] sm:$0xff]
          %v7330 = vld [vmem:[%s4 + $0x1b0] sm:$0xff]
          %v7331 = vld [vmem:[%s4 + $0x1b8] sm:$0xff]
          %v7332 = vld [vmem:[%s4 + $0x1c0] sm:$0xff]
          %v7333 = vld [vmem:[%s4 + $0x1c8] sm:$0xff]
          %v7334 = vld [vmem:[%s4 + $0x1d0] sm:$0xff]
          %v7335 = vld [vmem:[%s4 + $0x1d8] sm:$0xff]
          %v7336 = vld [vmem:[%s4 + $0x1e0] sm:$0xff]
          %v7337 = vld [vmem:[%s4 + $0x1e8] sm:$0xff]
          %v7338 = vld [vmem:[%s4 + $0x1f0] sm:$0xff]
          %v7339 = vld [vmem:[%s4 + $0x1f8] sm:$0xff]
          %v7660 = vunpack.c.l.b16 %v6956
          %v7661 = vunpack.c.h.b16 %v6956
          %v7662 = vunpack.c.l.b16 %v6957
          %v7663 = vunpack.c.h.b16 %v6957
          %v7664 = vunpack.c.l.b16 %v6958
          %v7665 = vunpack.c.h.b16 %v6958
          %v7666 = vunpack.c.l.b16 %v6959
          %v7667 = vunpack.c.h.b16 %v6959
          %v7668 = vunpack.c.l.b16 %v6960
          %v7669 = vunpack.c.h.b16 %v6960
          %v7670 = vunpack.c.l.b16 %v6961
          %v7671 = vunpack.c.h.b16 %v6961
          %v7672 = vunpack.c.l.b16 %v6962
          %v7673 = vunpack.c.h.b16 %v6962
          %v7674 = vunpack.c.l.b16 %v6963
          %v7675 = vunpack.c.h.b16 %v6963
          %v7676 = vunpack.c.l.b16 %v6964
          %v7677 = vunpack.c.h.b16 %v6964
          %v7678 = vunpack.c.l.b16 %v6965
          %v7679 = vunpack.c.h.b16 %v6965
          %v7680 = vunpack.c.l.b16 %v6966
          %v7681 = vunpack.c.h.b16 %v6966
          %v7682 = vunpack.c.l.b16 %v6967
          %v7683 = vunpack.c.h.b16 %v6967
          %v7684 = vunpack.c.l.b16 %v6968
          %v7685 = vunpack.c.h.b16 %v6968
          %v7686 = vunpack.c.l.b16 %v6969
          %v7687 = vunpack.c.h.b16 %v6969
          %v7688 = vunpack.c.l.b16 %v6970
          %v7689 = vunpack.c.h.b16 %v6970
          %v7690 = vunpack.c.l.b16 %v6971
          %v7691 = vunpack.c.h.b16 %v6971
          %v7692 = vunpack.c.l.b16 %v6972
          %v7693 = vunpack.c.h.b16 %v6972
          %v7694 = vunpack.c.l.b16 %v6973
          %v7695 = vunpack.c.h.b16 %v6973
          %v7696 = vunpack.c.l.b16 %v6974
          %v7697 = vunpack.c.h.b16 %v6974
          %v7698 = vunpack.c.l.b16 %v6975
          %v7699 = vunpack.c.h.b16 %v6975
          %v7700 = vunpack.c.l.b16 %v6976
          %v7701 = vunpack.c.h.b16 %v6976
          %v7702 = vunpack.c.l.b16 %v6977
          %v7703 = vunpack.c.h.b16 %v6977
          %v7704 = vunpack.c.l.b16 %v6978
          %v7705 = vunpack.c.h.b16 %v6978
          %v7706 = vunpack.c.l.b16 %v6979
          %v7707 = vunpack.c.h.b16 %v6979
          %v7708 = vunpack.c.l.b16 %v6980
          %v7709 = vunpack.c.h.b16 %v6980
          %v7710 = vunpack.c.l.b16 %v6981
          %v7711 = vunpack.c.h.b16 %v6981
          %v7712 = vunpack.c.l.b16 %v6982
          %v7713 = vunpack.c.h.b16 %v6982
          %v7714 = vunpack.c.l.b16 %v6983
          %v7715 = vunpack.c.h.b16 %v6983
          %v7716 = vunpack.c.l.b16 %v6984
          %v7717 = vunpack.c.h.b16 %v6984
          %v7718 = vunpack.c.l.b16 %v6985
          %v7719 = vunpack.c.h.b16 %v6985
          %v7720 = vunpack.c.l.b16 %v6986
          %v7721 = vunpack.c.h.b16 %v6986
          %v7722 = vunpack.c.l.b16 %v6987
          %v7723 = vunpack.c.h.b16 %v6987
          %v7724 = vunpack.c.l.b16 %v6988
          %v7725 = vunpack.c.h.b16 %v6988
          %v7726 = vunpack.c.l.b16 %v6989
          %v7727 = vunpack.c.h.b16 %v6989
          %v7728 = vunpack.c.l.b16 %v6990
          %v7729 = vunpack.c.h.b16 %v6990
          %v7730 = vunpack.c.l.b16 %v6991
          %v7731 = vunpack.c.h.b16 %v6991
          %v7732 = vunpack.c.l.b16 %v6992
          %v7733 = vunpack.c.h.b16 %v6992
          %v7734 = vunpack.c.l.b16 %v6993
          %v7735 = vunpack.c.h.b16 %v6993
          %v7736 = vunpack.c.l.b16 %v6994
          %v7737 = vunpack.c.h.b16 %v6994
          %v7738 = vunpack.c.l.b16 %v6995
          %v7739 = vunpack.c.h.b16 %v6995
          %v7740 = vunpack.c.l.b16 %v6996
          %v7741 = vunpack.c.h.b16 %v6996
          %v7742 = vunpack.c.l.b16 %v6997
          %v7743 = vunpack.c.h.b16 %v6997
          %v7744 = vunpack.c.l.b16 %v6998
          %v7745 = vunpack.c.h.b16 %v6998
          %v7746 = vunpack.c.l.b16 %v6999
          %v7747 = vunpack.c.h.b16 %v6999
          %v7748 = vunpack.c.l.b16 %v7000
          %v7749 = vunpack.c.h.b16 %v7000
          %v7750 = vunpack.c.l.b16 %v7001
          %v7751 = vunpack.c.h.b16 %v7001
          %v7752 = vunpack.c.l.b16 %v7002
          %v7753 = vunpack.c.h.b16 %v7002
          %v7754 = vunpack.c.l.b16 %v7003
          %v7755 = vunpack.c.h.b16 %v7003
          %v7756 = vunpack.c.l.b16 %v7004
          %v7757 = vunpack.c.h.b16 %v7004
          %v7758 = vunpack.c.l.b16 %v7005
          %v7759 = vunpack.c.h.b16 %v7005
          %v7760 = vunpack.c.l.b16 %v7006
          %v7761 = vunpack.c.h.b16 %v7006
          %v7762 = vunpack.c.l.b16 %v7007
          %v7763 = vunpack.c.h.b16 %v7007
          %v7764 = vunpack.c.l.b16 %v7008
          %v7765 = vunpack.c.h.b16 %v7008
          %v7766 = vunpack.c.l.b16 %v7009
          %v7767 = vunpack.c.h.b16 %v7009
          %v7768 = vunpack.c.l.b16 %v7010
          %v7769 = vunpack.c.h.b16 %v7010
          %v7770 = vunpack.c.l.b16 %v7011
          %v7771 = vunpack.c.h.b16 %v7011
          %v7772 = vunpack.c.l.b16 %v7012
          %v7773 = vunpack.c.h.b16 %v7012
          %v7774 = vunpack.c.l.b16 %v7013
          %v7775 = vunpack.c.h.b16 %v7013
          %v7776 = vunpack.c.l.b16 %v7014
          %v7777 = vunpack.c.h.b16 %v7014
          %v7778 = vunpack.c.l.b16 %v7015
          %v7779 = vunpack.c.h.b16 %v7015
          %v7780 = vunpack.c.l.b16 %v7016
          %v7781 = vunpack.c.h.b16 %v7016
          %v7782 = vunpack.c.l.b16 %v7017
          %v7783 = vunpack.c.h.b16 %v7017
          %v7784 = vunpack.c.l.b16 %v7018
          %v7785 = vunpack.c.h.b16 %v7018
          %v7786 = vunpack.c.l.b16 %v7019
          %v7787 = vunpack.c.h.b16 %v7019
          %v7788 = vunpack.c.l.b16 %v7020
          %v7789 = vunpack.c.h.b16 %v7020
          %v7790 = vunpack.c.l.b16 %v7021
          %v7791 = vunpack.c.h.b16 %v7021
          %v7792 = vunpack.c.l.b16 %v7022
          %v7793 = vunpack.c.h.b16 %v7022
          %v7794 = vunpack.c.l.b16 %v7023
          %v7795 = vunpack.c.h.b16 %v7023
          %v7796 = vunpack.c.l.b16 %v7024
          %v7797 = vunpack.c.h.b16 %v7024
          %v7798 = vunpack.c.l.b16 %v7025
          %v7799 = vunpack.c.h.b16 %v7025
          %v7800 = vunpack.c.l.b16 %v7026
          %v7801 = vunpack.c.h.b16 %v7026
          %v7802 = vunpack.c.l.b16 %v7027
          %v7803 = vunpack.c.h.b16 %v7027
          %v7804 = vunpack.c.l.b16 %v7028
          %v7805 = vunpack.c.h.b16 %v7028
          %v7806 = vunpack.c.l.b16 %v7029
          %v7807 = vunpack.c.h.b16 %v7029
          %v7808 = vunpack.c.l.b16 %v7030
          %v7809 = vunpack.c.h.b16 %v7030
          %v7810 = vunpack.c.l.b16 %v7031
          %v7811 = vunpack.c.h.b16 %v7031
          %v7812 = vunpack.c.l.b16 %v7032
          %v7813 = vunpack.c.h.b16 %v7032
          %v7814 = vunpack.c.l.b16 %v7033
          %v7815 = vunpack.c.h.b16 %v7033
          %v7816 = vunpack.c.l.b16 %v7034
          %v7817 = vunpack.c.h.b16 %v7034
          %v7818 = vunpack.c.l.b16 %v7035
          %v7819 = vunpack.c.h.b16 %v7035
          %v7820 = vunpack.c.l.b16 %v7036
          %v7821 = vunpack.c.h.b16 %v7036
          %v7822 = vunpack.c.l.b16 %v7037
          %v7823 = vunpack.c.h.b16 %v7037
          %v7824 = vunpack.c.l.b16 %v7038
          %v7825 = vunpack.c.h.b16 %v7038
          %v7826 = vunpack.c.l.b16 %v7039
          %v7827 = vunpack.c.h.b16 %v7039
          %v7828 = vunpack.c.l.b16 %v7040
          %v7829 = vunpack.c.h.b16 %v7040
          %v7830 = vunpack.c.l.b16 %v7041
          %v7831 = vunpack.c.h.b16 %v7041
          %v7832 = vunpack.c.l.b16 %v7042
          %v7833 = vunpack.c.h.b16 %v7042
          %v7834 = vunpack.c.l.b16 %v7043
          %v7835 = vunpack.c.h.b16 %v7043
          %v7836 = vunpack.c.l.b16 %v7044
          %v7837 = vunpack.c.h.b16 %v7044
          %v7838 = vunpack.c.l.b16 %v7045
          %v7839 = vunpack.c.h.b16 %v7045
          %v7840 = vunpack.c.l.b16 %v7046
          %v7841 = vunpack.c.h.b16 %v7046
          %v7842 = vunpack.c.l.b16 %v7047
          %v7843 = vunpack.c.h.b16 %v7047
          %v7844 = vunpack.c.l.b16 %v7048
          %v7845 = vunpack.c.h.b16 %v7048
          %v7846 = vunpack.c.l.b16 %v7049
          %v7847 = vunpack.c.h.b16 %v7049
          %v7848 = vunpack.c.l.b16 %v7050
          %v7849 = vunpack.c.h.b16 %v7050
          %v7850 = vunpack.c.l.b16 %v7051
          %v7851 = vunpack.c.h.b16 %v7051
          %v7852 = vunpack.c.l.b16 %v7052
          %v7853 = vunpack.c.h.b16 %v7052
          %v7854 = vunpack.c.l.b16 %v7053
          %v7855 = vunpack.c.h.b16 %v7053
          %v7856 = vunpack.c.l.b16 %v7054
          %v7857 = vunpack.c.h.b16 %v7054
          %v7858 = vunpack.c.l.b16 %v7055
          %v7859 = vunpack.c.h.b16 %v7055
          %v7860 = vunpack.c.l.b16 %v7056
          %v7861 = vunpack.c.h.b16 %v7056
          %v7862 = vunpack.c.l.b16 %v7057
          %v7863 = vunpack.c.h.b16 %v7057
          %v7864 = vunpack.c.l.b16 %v7058
          %v7865 = vunpack.c.h.b16 %v7058
          %v7866 = vunpack.c.l.b16 %v7059
          %v7867 = vunpack.c.h.b16 %v7059
          %v7868 = vunpack.c.l.b16 %v7060
          %v7869 = vunpack.c.h.b16 %v7060
          %v7870 = vunpack.c.l.b16 %v7061
          %v7871 = vunpack.c.h.b16 %v7061
          %v7872 = vunpack.c.l.b16 %v7062
          %v7873 = vunpack.c.h.b16 %v7062
          %v7874 = vunpack.c.l.b16 %v7063
          %v7875 = vunpack.c.h.b16 %v7063
          %v7876 = vunpack.c.l.b16 %v7064
          %v7877 = vunpack.c.h.b16 %v7064
          %v7878 = vunpack.c.l.b16 %v7065
          %v7879 = vunpack.c.h.b16 %v7065
          %v7880 = vunpack.c.l.b16 %v7066
          %v7881 = vunpack.c.h.b16 %v7066
          %v7882 = vunpack.c.l.b16 %v7067
          %v7883 = vunpack.c.h.b16 %v7067
          %v7884 = vunpack.c.l.b16 %v7068
          %v7885 = vunpack.c.h.b16 %v7068
          %v7886 = vunpack.c.l.b16 %v7069
          %v7887 = vunpack.c.h.b16 %v7069
          %v7888 = vunpack.c.l.b16 %v7070
          %v7889 = vunpack.c.h.b16 %v7070
          %v7890 = vunpack.c.l.b16 %v7071
          %v7891 = vunpack.c.h.b16 %v7071
          %v7892 = vunpack.c.l.b16 %v7072
          %v7893 = vunpack.c.h.b16 %v7072
          %v7894 = vunpack.c.l.b16 %v7073
          %v7895 = vunpack.c.h.b16 %v7073
          %v7896 = vunpack.c.l.b16 %v7074
          %v7897 = vunpack.c.h.b16 %v7074
          %v7898 = vunpack.c.l.b16 %v7075
          %v7899 = vunpack.c.h.b16 %v7075
          %v7900 = vunpack.c.l.b16 %v7076
          %v7901 = vunpack.c.h.b16 %v7076
          %v7902 = vunpack.c.l.b16 %v7077
          %v7903 = vunpack.c.h.b16 %v7077
          %v7904 = vunpack.c.l.b16 %v7078
          %v7905 = vunpack.c.h.b16 %v7078
          %v7906 = vunpack.c.l.b16 %v7079
          %v7907 = vunpack.c.h.b16 %v7079
          %v7908 = vunpack.c.l.b16 %v7080
          %v7909 = vunpack.c.h.b16 %v7080
          %v7910 = vunpack.c.l.b16 %v7081
          %v7911 = vunpack.c.h.b16 %v7081
          %v7912 = vunpack.c.l.b16 %v7082
          %v7913 = vunpack.c.h.b16 %v7082
          %v7914 = vunpack.c.l.b16 %v7083
          %v7915 = vunpack.c.h.b16 %v7083
          %v7916 = vunpack.c.l.b16 %v7084
          %v7917 = vunpack.c.h.b16 %v7084
          %v7918 = vunpack.c.l.b16 %v7085
          %v7919 = vunpack.c.h.b16 %v7085
          %v7920 = vunpack.c.l.b16 %v7086
          %v7921 = vunpack.c.h.b16 %v7086
          %v7922 = vunpack.c.l.b16 %v7087
          %v7923 = vunpack.c.h.b16 %v7087
          %v7924 = vunpack.c.l.b16 %v7088
          %v7925 = vunpack.c.h.b16 %v7088
          %v7926 = vunpack.c.l.b16 %v7089
          %v7927 = vunpack.c.h.b16 %v7089
          %v7928 = vunpack.c.l.b16 %v7090
          %v7929 = vunpack.c.h.b16 %v7090
          %v7930 = vunpack.c.l.b16 %v7091
          %v7931 = vunpack.c.h.b16 %v7091
          %v7932 = vunpack.c.l.b16 %v7092
          %v7933 = vunpack.c.h.b16 %v7092
          %v7934 = vunpack.c.l.b16 %v7093
          %v7935 = vunpack.c.h.b16 %v7093
          %v7936 = vunpack.c.l.b16 %v7094
          %v7937 = vunpack.c.h.b16 %v7094
          %v7938 = vunpack.c.l.b16 %v7095
          %v7939 = vunpack.c.h.b16 %v7095
          %v7940 = vunpack.c.l.b16 %v7096
          %v7941 = vunpack.c.h.b16 %v7096
          %v7942 = vunpack.c.l.b16 %v7097
          %v7943 = vunpack.c.h.b16 %v7097
          %v7944 = vunpack.c.l.b16 %v7098
          %v7945 = vunpack.c.h.b16 %v7098
          %v7946 = vunpack.c.l.b16 %v7099
          %v7947 = vunpack.c.h.b16 %v7099
          %v7948 = vunpack.c.l.b16 %v7100
          %v7949 = vunpack.c.h.b16 %v7100
          %v7950 = vunpack.c.l.b16 %v7101
          %v7951 = vunpack.c.h.b16 %v7101
          %v7952 = vunpack.c.l.b16 %v7102
          %v7953 = vunpack.c.h.b16 %v7102
          %v7954 = vunpack.c.l.b16 %v7103
          %v7955 = vunpack.c.h.b16 %v7103
          %v7956 = vunpack.c.l.b16 %v7104
          %v7957 = vunpack.c.h.b16 %v7104
          %v7958 = vunpack.c.l.b16 %v7105
          %v7959 = vunpack.c.h.b16 %v7105
          %v7960 = vunpack.c.l.b16 %v7106
          %v7961 = vunpack.c.h.b16 %v7106
          %v7962 = vunpack.c.l.b16 %v7107
          %v7963 = vunpack.c.h.b16 %v7107
          %v7964 = vunpack.c.l.b16 %v7108
          %v7965 = vunpack.c.h.b16 %v7108
          %v7966 = vunpack.c.l.b16 %v7109
          %v7967 = vunpack.c.h.b16 %v7109
          %v7968 = vunpack.c.l.b16 %v7110
          %v7969 = vunpack.c.h.b16 %v7110
          %v7970 = vunpack.c.l.b16 %v7111
          %v7971 = vunpack.c.h.b16 %v7111
          %v7972 = vunpack.c.l.b16 %v7112
          %v7973 = vunpack.c.h.b16 %v7112
          %v7974 = vunpack.c.l.b16 %v7113
          %v7975 = vunpack.c.h.b16 %v7113
          %v7976 = vunpack.c.l.b16 %v7114
          %v7977 = vunpack.c.h.b16 %v7114
          %v7978 = vunpack.c.l.b16 %v7115
          %v7979 = vunpack.c.h.b16 %v7115
          %v7980 = vunpack.c.l.b16 %v7116
          %v7981 = vunpack.c.h.b16 %v7116
          %v7982 = vunpack.c.l.b16 %v7117
          %v7983 = vunpack.c.h.b16 %v7117
          %v7984 = vunpack.c.l.b16 %v7118
          %v7985 = vunpack.c.h.b16 %v7118
          %v7986 = vunpack.c.l.b16 %v7119
          %v7987 = vunpack.c.h.b16 %v7119
          %v7988 = vunpack.c.l.b16 %v7120
          %v7989 = vunpack.c.h.b16 %v7120
          %v7990 = vunpack.c.l.b16 %v7121
          %v7991 = vunpack.c.h.b16 %v7121
          %v7992 = vunpack.c.l.b16 %v7122
          %v7993 = vunpack.c.h.b16 %v7122
          %v7994 = vunpack.c.l.b16 %v7123
          %v7995 = vunpack.c.h.b16 %v7123
          %v7996 = vunpack.c.l.b16 %v7124
          %v7997 = vunpack.c.h.b16 %v7124
          %v7998 = vunpack.c.l.b16 %v7125
          %v7999 = vunpack.c.h.b16 %v7125
          %v8000 = vunpack.c.l.b16 %v7126
          %v8001 = vunpack.c.h.b16 %v7126
          %v8002 = vunpack.c.l.b16 %v7127
          %v8003 = vunpack.c.h.b16 %v7127
          %v8004 = vunpack.c.l.b16 %v7128
          %v8005 = vunpack.c.h.b16 %v7128
          %v8006 = vunpack.c.l.b16 %v7129
          %v8007 = vunpack.c.h.b16 %v7129
          %v8008 = vunpack.c.l.b16 %v7130
          %v8009 = vunpack.c.h.b16 %v7130
          %v8010 = vunpack.c.l.b16 %v7131
          %v8011 = vunpack.c.h.b16 %v7131
          %v8012 = vunpack.c.l.b16 %v7132
          %v8013 = vunpack.c.h.b16 %v7132
          %v8014 = vunpack.c.l.b16 %v7133
          %v8015 = vunpack.c.h.b16 %v7133
          %v8016 = vunpack.c.l.b16 %v7134
          %v8017 = vunpack.c.h.b16 %v7134
          %v8018 = vunpack.c.l.b16 %v7135
          %v8019 = vunpack.c.h.b16 %v7135
          %v8020 = vunpack.c.l.b16 %v7136
          %v8021 = vunpack.c.h.b16 %v7136
          %v8022 = vunpack.c.l.b16 %v7137
          %v8023 = vunpack.c.h.b16 %v7137
          %v8024 = vunpack.c.l.b16 %v7138
          %v8025 = vunpack.c.h.b16 %v7138
          %v8026 = vunpack.c.l.b16 %v7139
          %v8027 = vunpack.c.h.b16 %v7139
          %v8028 = vunpack.c.l.b16 %v7140
          %v8029 = vunpack.c.h.b16 %v7140
          %v8030 = vunpack.c.l.b16 %v7141
          %v8031 = vunpack.c.h.b16 %v7141
          %v8032 = vunpack.c.l.b16 %v7142
          %v8033 = vunpack.c.h.b16 %v7142
          %v8034 = vunpack.c.l.b16 %v7143
          %v8035 = vunpack.c.h.b16 %v7143
          %v8036 = vunpack.c.l.b16 %v7144
          %v8037 = vunpack.c.h.b16 %v7144
          %v8038 = vunpack.c.l.b16 %v7145
          %v8039 = vunpack.c.h.b16 %v7145
          %v8040 = vunpack.c.l.b16 %v7146
          %v8041 = vunpack.c.h.b16 %v7146
          %v8042 = vunpack.c.l.b16 %v7147
          %v8043 = vunpack.c.h.b16 %v7147
          %v8044 = vunpack.c.l.b16 %v7148
          %v8045 = vunpack.c.h.b16 %v7148
          %v8046 = vunpack.c.l.b16 %v7149
          %v8047 = vunpack.c.h.b16 %v7149
          %v8048 = vunpack.c.l.b16 %v7150
          %v8049 = vunpack.c.h.b16 %v7150
          %v8050 = vunpack.c.l.b16 %v7151
          %v8051 = vunpack.c.h.b16 %v7151
          %v8052 = vunpack.c.l.b16 %v7152
          %v8053 = vunpack.c.h.b16 %v7152
          %v8054 = vunpack.c.l.b16 %v7153
          %v8055 = vunpack.c.h.b16 %v7153
          %v8056 = vunpack.c.l.b16 %v7154
          %v8057 = vunpack.c.h.b16 %v7154
          %v8058 = vunpack.c.l.b16 %v7155
          %v8059 = vunpack.c.h.b16 %v7155
          %v8060 = vunpack.c.l.b16 %v7156
          %v8061 = vunpack.c.h.b16 %v7156
          %v8062 = vunpack.c.l.b16 %v7157
          %v8063 = vunpack.c.h.b16 %v7157
          %v8064 = vunpack.c.l.b16 %v7158
          %v8065 = vunpack.c.h.b16 %v7158
          %v8066 = vunpack.c.l.b16 %v7159
          %v8067 = vunpack.c.h.b16 %v7159
          %v8068 = vunpack.c.l.b16 %v7160
          %v8069 = vunpack.c.h.b16 %v7160
          %v8070 = vunpack.c.l.b16 %v7161
          %v8071 = vunpack.c.h.b16 %v7161
          %v8072 = vunpack.c.l.b16 %v7162
          %v8073 = vunpack.c.h.b16 %v7162
          %v8074 = vunpack.c.l.b16 %v7163
          %v8075 = vunpack.c.h.b16 %v7163
          %v8076 = vunpack.c.l.b16 %v7164
          %v8077 = vunpack.c.h.b16 %v7164
          %v8078 = vunpack.c.l.b16 %v7165
          %v8079 = vunpack.c.h.b16 %v7165
          %v8080 = vunpack.c.l.b16 %v7166
          %v8081 = vunpack.c.h.b16 %v7166
          %v8082 = vunpack.c.l.b16 %v7167
          %v8083 = vunpack.c.h.b16 %v7167
          %v8084 = vunpack.c.l.b16 %v7168
          %v8085 = vunpack.c.h.b16 %v7168
          %v8086 = vunpack.c.l.b16 %v7169
          %v8087 = vunpack.c.h.b16 %v7169
          %v8088 = vunpack.c.l.b16 %v7170
          %v8089 = vunpack.c.h.b16 %v7170
          %v8090 = vunpack.c.l.b16 %v7171
          %v8091 = vunpack.c.h.b16 %v7171
          %v8092 = vunpack.c.l.b16 %v7172
          %v8093 = vunpack.c.h.b16 %v7172
          %v8094 = vunpack.c.l.b16 %v7173
          %v8095 = vunpack.c.h.b16 %v7173
          %v8096 = vunpack.c.l.b16 %v7174
          %v8097 = vunpack.c.h.b16 %v7174
          %v8098 = vunpack.c.l.b16 %v7175
          %v8099 = vunpack.c.h.b16 %v7175
          %v8100 = vunpack.c.l.b16 %v7176
          %v8101 = vunpack.c.h.b16 %v7176
          %v8102 = vunpack.c.l.b16 %v7177
          %v8103 = vunpack.c.h.b16 %v7177
          %v8104 = vunpack.c.l.b16 %v7178
          %v8105 = vunpack.c.h.b16 %v7178
          %v8106 = vunpack.c.l.b16 %v7179
          %v8107 = vunpack.c.h.b16 %v7179
          %v8108 = vunpack.c.l.b16 %v7180
          %v8109 = vunpack.c.h.b16 %v7180
          %v8110 = vunpack.c.l.b16 %v7181
          %v8111 = vunpack.c.h.b16 %v7181
          %v8112 = vunpack.c.l.b16 %v7182
          %v8113 = vunpack.c.h.b16 %v7182
          %v8114 = vunpack.c.l.b16 %v7183
          %v8115 = vunpack.c.h.b16 %v7183
          %v8116 = vunpack.c.l.b16 %v7184
          %v8117 = vunpack.c.h.b16 %v7184
          %v8118 = vunpack.c.l.b16 %v7185
          %v8119 = vunpack.c.h.b16 %v7185
          %v8120 = vunpack.c.l.b16 %v7186
          %v8121 = vunpack.c.h.b16 %v7186
          %v8122 = vunpack.c.l.b16 %v7187
          %v8123 = vunpack.c.h.b16 %v7187
          %v8124 = vunpack.c.l.b16 %v7188
          %v8125 = vunpack.c.h.b16 %v7188
          %v8126 = vunpack.c.l.b16 %v7189
          %v8127 = vunpack.c.h.b16 %v7189
          %v8128 = vunpack.c.l.b16 %v7190
          %v8129 = vunpack.c.h.b16 %v7190
          %v8130 = vunpack.c.l.b16 %v7191
          %v8131 = vunpack.c.h.b16 %v7191
          %v8132 = vunpack.c.l.b16 %v7192
          %v8133 = vunpack.c.h.b16 %v7192
          %v8134 = vunpack.c.l.b16 %v7193
          %v8135 = vunpack.c.h.b16 %v7193
          %v8136 = vunpack.c.l.b16 %v7194
          %v8137 = vunpack.c.h.b16 %v7194
          %v8138 = vunpack.c.l.b16 %v7195
          %v8139 = vunpack.c.h.b16 %v7195
          %v8140 = vunpack.c.l.b16 %v7196
          %v8141 = vunpack.c.h.b16 %v7196
          %v8142 = vunpack.c.l.b16 %v7197
          %v8143 = vunpack.c.h.b16 %v7197
          %v8144 = vunpack.c.l.b16 %v7198
          %v8145 = vunpack.c.h.b16 %v7198
          %v8146 = vunpack.c.l.b16 %v7199
          %v8147 = vunpack.c.h.b16 %v7199
          %v8148 = vunpack.c.l.b16 %v7200
          %v8149 = vunpack.c.h.b16 %v7200
          %v8150 = vunpack.c.l.b16 %v7201
          %v8151 = vunpack.c.h.b16 %v7201
          %v8152 = vunpack.c.l.b16 %v7202
          %v8153 = vunpack.c.h.b16 %v7202
          %v8154 = vunpack.c.l.b16 %v7203
          %v8155 = vunpack.c.h.b16 %v7203
          %v8156 = vunpack.c.l.b16 %v7204
          %v8157 = vunpack.c.h.b16 %v7204
          %v8158 = vunpack.c.l.b16 %v7205
          %v8159 = vunpack.c.h.b16 %v7205
          %v8160 = vunpack.c.l.b16 %v7206
          %v8161 = vunpack.c.h.b16 %v7206
          %v8162 = vunpack.c.l.b16 %v7207
          %v8163 = vunpack.c.h.b16 %v7207
          %v8164 = vunpack.c.l.b16 %v7208
          %v8165 = vunpack.c.h.b16 %v7208
          %v8166 = vunpack.c.l.b16 %v7209
          %v8167 = vunpack.c.h.b16 %v7209
          %v8168 = vunpack.c.l.b16 %v7210
          %v8169 = vunpack.c.h.b16 %v7210
          %v8170 = vunpack.c.l.b16 %v7211
          %v8171 = vunpack.c.h.b16 %v7211
          %v8172 = vunpack.c.l.b16 %v7212
          %v8173 = vunpack.c.h.b16 %v7212
          %v8174 = vunpack.c.l.b16 %v7213
          %v8175 = vunpack.c.h.b16 %v7213
          %v8176 = vunpack.c.l.b16 %v7214
          %v8177 = vunpack.c.h.b16 %v7214
          %v8178 = vunpack.c.l.b16 %v7215
          %v8179 = vunpack.c.h.b16 %v7215
          %v8180 = vunpack.c.l.b16 %v7216
          %v8181 = vunpack.c.h.b16 %v7216
          %v8182 = vunpack.c.l.b16 %v7217
          %v8183 = vunpack.c.h.b16 %v7217
          %v8184 = vunpack.c.l.b16 %v7218
          %v8185 = vunpack.c.h.b16 %v7218
          %v8186 = vunpack.c.l.b16 %v7219
          %v8187 = vunpack.c.h.b16 %v7219
          %v8188 = vunpack.c.l.b16 %v7220
          %v8189 = vunpack.c.h.b16 %v7220
          %v8190 = vunpack.c.l.b16 %v7221
          %v8191 = vunpack.c.h.b16 %v7221
          %v8192 = vunpack.c.l.b16 %v7222
          %v8193 = vunpack.c.h.b16 %v7222
          %v8194 = vunpack.c.l.b16 %v7223
          %v8195 = vunpack.c.h.b16 %v7223
          %v8196 = vunpack.c.l.b16 %v7224
          %v8197 = vunpack.c.h.b16 %v7224
          %v8198 = vunpack.c.l.b16 %v7225
          %v8199 = vunpack.c.h.b16 %v7225
          %v8200 = vunpack.c.l.b16 %v7226
          %v8201 = vunpack.c.h.b16 %v7226
          %v8202 = vunpack.c.l.b16 %v7227
          %v8203 = vunpack.c.h.b16 %v7227
          %v8204 = vunpack.c.l.b16 %v7228
          %v8205 = vunpack.c.h.b16 %v7228
          %v8206 = vunpack.c.l.b16 %v7229
          %v8207 = vunpack.c.h.b16 %v7229
          %v8208 = vunpack.c.l.b16 %v7230
          %v8209 = vunpack.c.h.b16 %v7230
          %v8210 = vunpack.c.l.b16 %v7231
          %v8211 = vunpack.c.h.b16 %v7231
          %v8212 = vunpack.c.l.b16 %v7232
          %v8213 = vunpack.c.h.b16 %v7232
          %v8214 = vunpack.c.l.b16 %v7233
          %v8215 = vunpack.c.h.b16 %v7233
          %v8216 = vunpack.c.l.b16 %v7234
          %v8217 = vunpack.c.h.b16 %v7234
          %v8218 = vunpack.c.l.b16 %v7235
          %v8219 = vunpack.c.h.b16 %v7235
          %v8220 = vunpack.c.l.b16 %v7236
          %v8221 = vunpack.c.h.b16 %v7236
          %v8222 = vunpack.c.l.b16 %v7237
          %v8223 = vunpack.c.h.b16 %v7237
          %v8224 = vunpack.c.l.b16 %v7238
          %v8225 = vunpack.c.h.b16 %v7238
          %v8226 = vunpack.c.l.b16 %v7239
          %v8227 = vunpack.c.h.b16 %v7239
          %v8228 = vunpack.c.l.b16 %v7240
          %v8229 = vunpack.c.h.b16 %v7240
          %v8230 = vunpack.c.l.b16 %v7241
          %v8231 = vunpack.c.h.b16 %v7241
          %v8232 = vunpack.c.l.b16 %v7242
          %v8233 = vunpack.c.h.b16 %v7242
          %v8234 = vunpack.c.l.b16 %v7243
          %v8235 = vunpack.c.h.b16 %v7243
          %v8236 = vunpack.c.l.b16 %v7244
          %v8237 = vunpack.c.h.b16 %v7244
          %v8238 = vunpack.c.l.b16 %v7245
          %v8239 = vunpack.c.h.b16 %v7245
          %v8240 = vunpack.c.l.b16 %v7246
          %v8241 = vunpack.c.h.b16 %v7246
          %v8242 = vunpack.c.l.b16 %v7247
          %v8243 = vunpack.c.h.b16 %v7247
          %v8244 = vunpack.c.l.b16 %v7248
          %v8245 = vunpack.c.h.b16 %v7248
          %v8246 = vunpack.c.l.b16 %v7249
          %v8247 = vunpack.c.h.b16 %v7249
          %v8248 = vunpack.c.l.b16 %v7250
          %v8249 = vunpack.c.h.b16 %v7250
          %v8250 = vunpack.c.l.b16 %v7251
          %v8251 = vunpack.c.h.b16 %v7251
          %v8252 = vunpack.c.l.b16 %v7252
          %v8253 = vunpack.c.h.b16 %v7252
          %v8254 = vunpack.c.l.b16 %v7253
          %v8255 = vunpack.c.h.b16 %v7253
          %v8256 = vunpack.c.l.b16 %v7254
          %v8257 = vunpack.c.h.b16 %v7254
          %v8258 = vunpack.c.l.b16 %v7255
          %v8259 = vunpack.c.h.b16 %v7255
          %v8260 = vunpack.c.l.b16 %v7256
          %v8261 = vunpack.c.h.b16 %v7256
          %v8262 = vunpack.c.l.b16 %v7257
          %v8263 = vunpack.c.h.b16 %v7257
          %v8264 = vunpack.c.l.b16 %v7258
          %v8265 = vunpack.c.h.b16 %v7258
          %v8266 = vunpack.c.l.b16 %v7259
          %v8267 = vunpack.c.h.b16 %v7259
          %v8268 = vunpack.c.l.b16 %v7260
          %v8269 = vunpack.c.h.b16 %v7260
          %v8270 = vunpack.c.l.b16 %v7261
          %v8271 = vunpack.c.h.b16 %v7261
          %v8272 = vunpack.c.l.b16 %v7262
          %v8273 = vunpack.c.h.b16 %v7262
          %v8274 = vunpack.c.l.b16 %v7263
          %v8275 = vunpack.c.h.b16 %v7263
          %v8276 = vunpack.c.l.b16 %v7264
          %v8277 = vunpack.c.h.b16 %v7264
          %v8278 = vunpack.c.l.b16 %v7265
          %v8279 = vunpack.c.h.b16 %v7265
          %v8280 = vunpack.c.l.b16 %v7266
          %v8281 = vunpack.c.h.b16 %v7266
          %v8282 = vunpack.c.l.b16 %v7267
          %v8283 = vunpack.c.h.b16 %v7267
          %v8284 = vunpack.c.l.b16 %v7268
          %v8285 = vunpack.c.h.b16 %v7268
          %v8286 = vunpack.c.l.b16 %v7269
          %v8287 = vunpack.c.h.b16 %v7269
          %v8288 = vunpack.c.l.b16 %v7270
          %v8289 = vunpack.c.h.b16 %v7270
          %v8290 = vunpack.c.l.b16 %v7271
          %v8291 = vunpack.c.h.b16 %v7271
          %v8292 = vunpack.c.l.b16 %v7272
          %v8293 = vunpack.c.h.b16 %v7272
          %v8294 = vunpack.c.l.b16 %v7273
          %v8295 = vunpack.c.h.b16 %v7273
          %v8296 = vunpack.c.l.b16 %v7274
          %v8297 = vunpack.c.h.b16 %v7274
          %v8298 = vunpack.c.l.b16 %v7275
          %v8299 = vunpack.c.h.b16 %v7275
          %v8300 = vpack.c.b16 %v7670, %v7660
          %v8301 = vpack.c.b16 %v7671, %v7661
          %v8302 = vpack.c.b16 %v7672, %v7662
          %v8303 = vpack.c.b16 %v7673, %v7663
          %v8304 = vpack.c.b16 %v7674, %v7664
          %v8305 = vpack.c.b16 %v7675, %v7665
          %v8306 = vpack.c.b16 %v7676, %v7666
          %v8307 = vpack.c.b16 %v7677, %v7667
          %v8308 = vpack.c.b16 %v7678, %v7668
          %v8309 = vpack.c.b16 %v7679, %v7669
          %v8310 = vpack.c.b16 %v7690, %v7680
          %v8311 = vpack.c.b16 %v7691, %v7681
          %v8312 = vpack.c.b16 %v7692, %v7682
          %v8313 = vpack.c.b16 %v7693, %v7683
          %v8314 = vpack.c.b16 %v7694, %v7684
          %v8315 = vpack.c.b16 %v7695, %v7685
          %v8316 = vpack.c.b16 %v7696, %v7686
          %v8317 = vpack.c.b16 %v7697, %v7687
          %v8318 = vpack.c.b16 %v7698, %v7688
          %v8319 = vpack.c.b16 %v7699, %v7689
          %v8320 = vpack.c.b16 %v7710, %v7700
          %v8321 = vpack.c.b16 %v7711, %v7701
          %v8322 = vpack.c.b16 %v7712, %v7702
          %v8323 = vpack.c.b16 %v7713, %v7703
          %v8324 = vpack.c.b16 %v7714, %v7704
          %v8325 = vpack.c.b16 %v7715, %v7705
          %v8326 = vpack.c.b16 %v7716, %v7706
          %v8327 = vpack.c.b16 %v7717, %v7707
          %v8328 = vpack.c.b16 %v7718, %v7708
          %v8329 = vpack.c.b16 %v7719, %v7709
          %v8330 = vpack.c.b16 %v7730, %v7720
          %v8331 = vpack.c.b16 %v7731, %v7721
          %v8332 = vpack.c.b16 %v7732, %v7722
          %v8333 = vpack.c.b16 %v7733, %v7723
          %v8334 = vpack.c.b16 %v7734, %v7724
          %v8335 = vpack.c.b16 %v7735, %v7725
          %v8336 = vpack.c.b16 %v7736, %v7726
          %v8337 = vpack.c.b16 %v7737, %v7727
          %v8338 = vpack.c.b16 %v7738, %v7728
          %v8339 = vpack.c.b16 %v7739, %v7729
          %v8340 = vpack.c.b16 %v7750, %v7740
          %v8341 = vpack.c.b16 %v7751, %v7741
          %v8342 = vpack.c.b16 %v7752, %v7742
          %v8343 = vpack.c.b16 %v7753, %v7743
          %v8344 = vpack.c.b16 %v7754, %v7744
          %v8345 = vpack.c.b16 %v7755, %v7745
          %v8346 = vpack.c.b16 %v7756, %v7746
          %v8347 = vpack.c.b16 %v7757, %v7747
          %v8348 = vpack.c.b16 %v7758, %v7748
          %v8349 = vpack.c.b16 %v7759, %v7749
          %v8350 = vpack.c.b16 %v7770, %v7760
          %v8351 = vpack.c.b16 %v7771, %v7761
          %v8352 = vpack.c.b16 %v7772, %v7762
          %v8353 = vpack.c.b16 %v7773, %v7763
          %v8354 = vpack.c.b16 %v7774, %v7764
          %v8355 = vpack.c.b16 %v7775, %v7765
          %v8356 = vpack.c.b16 %v7776, %v7766
          %v8357 = vpack.c.b16 %v7777, %v7767
          %v8358 = vpack.c.b16 %v7778, %v7768
          %v8359 = vpack.c.b16 %v7779, %v7769
          %v8360 = vpack.c.b16 %v7790, %v7780
          %v8361 = vpack.c.b16 %v7791, %v7781
          %v8362 = vpack.c.b16 %v7792, %v7782
          %v8363 = vpack.c.b16 %v7793, %v7783
          %v8364 = vpack.c.b16 %v7794, %v7784
          %v8365 = vpack.c.b16 %v7795, %v7785
          %v8366 = vpack.c.b16 %v7796, %v7786
          %v8367 = vpack.c.b16 %v7797, %v7787
          %v8368 = vpack.c.b16 %v7798, %v7788
          %v8369 = vpack.c.b16 %v7799, %v7789
          %v8370 = vpack.c.b16 %v7810, %v7800
          %v8371 = vpack.c.b16 %v7811, %v7801
          %v8372 = vpack.c.b16 %v7812, %v7802
          %v8373 = vpack.c.b16 %v7813, %v7803
          %v8374 = vpack.c.b16 %v7814, %v7804
          %v8375 = vpack.c.b16 %v7815, %v7805
          %v8376 = vpack.c.b16 %v7816, %v7806
          %v8377 = vpack.c.b16 %v7817, %v7807
          %v8378 = vpack.c.b16 %v7818, %v7808
          %v8379 = vpack.c.b16 %v7819, %v7809
          %v8380 = vpack.c.b16 %v7830, %v7820
          %v8381 = vpack.c.b16 %v7831, %v7821
          %v8382 = vpack.c.b16 %v7832, %v7822
          %v8383 = vpack.c.b16 %v7833, %v7823
          %v8384 = vpack.c.b16 %v7834, %v7824
          %v8385 = vpack.c.b16 %v7835, %v7825
          %v8386 = vpack.c.b16 %v7836, %v7826
          %v8387 = vpack.c.b16 %v7837, %v7827
          %v8388 = vpack.c.b16 %v7838, %v7828
          %v8389 = vpack.c.b16 %v7839, %v7829
          %v8390 = vpack.c.b16 %v7850, %v7840
          %v8391 = vpack.c.b16 %v7851, %v7841
          %v8392 = vpack.c.b16 %v7852, %v7842
          %v8393 = vpack.c.b16 %v7853, %v7843
          %v8394 = vpack.c.b16 %v7854, %v7844
          %v8395 = vpack.c.b16 %v7855, %v7845
          %v8396 = vpack.c.b16 %v7856, %v7846
          %v8397 = vpack.c.b16 %v7857, %v7847
          %v8398 = vpack.c.b16 %v7858, %v7848
          %v8399 = vpack.c.b16 %v7859, %v7849
          %v8400 = vpack.c.b16 %v7870, %v7860
          %v8401 = vpack.c.b16 %v7871, %v7861
          %v8402 = vpack.c.b16 %v7872, %v7862
          %v8403 = vpack.c.b16 %v7873, %v7863
          %v8404 = vpack.c.b16 %v7874, %v7864
          %v8405 = vpack.c.b16 %v7875, %v7865
          %v8406 = vpack.c.b16 %v7876, %v7866
          %v8407 = vpack.c.b16 %v7877, %v7867
          %v8408 = vpack.c.b16 %v7878, %v7868
          %v8409 = vpack.c.b16 %v7879, %v7869
          %v8410 = vpack.c.b16 %v7890, %v7880
          %v8411 = vpack.c.b16 %v7891, %v7881
          %v8412 = vpack.c.b16 %v7892, %v7882
          %v8413 = vpack.c.b16 %v7893, %v7883
          %v8414 = vpack.c.b16 %v7894, %v7884
          %v8415 = vpack.c.b16 %v7895, %v7885
          %v8416 = vpack.c.b16 %v7896, %v7886
          %v8417 = vpack.c.b16 %v7897, %v7887
          %v8418 = vpack.c.b16 %v7898, %v7888
          %v8419 = vpack.c.b16 %v7899, %v7889
          %v8420 = vpack.c.b16 %v7910, %v7900
          %v8421 = vpack.c.b16 %v7911, %v7901
          %v8422 = vpack.c.b16 %v7912, %v7902
          %v8423 = vpack.c.b16 %v7913, %v7903
          %v8424 = vpack.c.b16 %v7914, %v7904
          %v8425 = vpack.c.b16 %v7915, %v7905
          %v8426 = vpack.c.b16 %v7916, %v7906
          %v8427 = vpack.c.b16 %v7917, %v7907
          %v8428 = vpack.c.b16 %v7918, %v7908
          %v8429 = vpack.c.b16 %v7919, %v7909
          %v8430 = vpack.c.b16 %v7930, %v7920
          %v8431 = vpack.c.b16 %v7931, %v7921
          %v8432 = vpack.c.b16 %v7932, %v7922
          %v8433 = vpack.c.b16 %v7933, %v7923
          %v8434 = vpack.c.b16 %v7934, %v7924
          %v8435 = vpack.c.b16 %v7935, %v7925
          %v8436 = vpack.c.b16 %v7936, %v7926
          %v8437 = vpack.c.b16 %v7937, %v7927
          %v8438 = vpack.c.b16 %v7938, %v7928
          %v8439 = vpack.c.b16 %v7939, %v7929
          %v8440 = vpack.c.b16 %v7950, %v7940
          %v8441 = vpack.c.b16 %v7951, %v7941
          %v8442 = vpack.c.b16 %v7952, %v7942
          %v8443 = vpack.c.b16 %v7953, %v7943
          %v8444 = vpack.c.b16 %v7954, %v7944
          %v8445 = vpack.c.b16 %v7955, %v7945
          %v8446 = vpack.c.b16 %v7956, %v7946
          %v8447 = vpack.c.b16 %v7957, %v7947
          %v8448 = vpack.c.b16 %v7958, %v7948
          %v8449 = vpack.c.b16 %v7959, %v7949
          %v8450 = vpack.c.b16 %v7970, %v7960
          %v8451 = vpack.c.b16 %v7971, %v7961
          %v8452 = vpack.c.b16 %v7972, %v7962
          %v8453 = vpack.c.b16 %v7973, %v7963
          %v8454 = vpack.c.b16 %v7974, %v7964
          %v8455 = vpack.c.b16 %v7975, %v7965
          %v8456 = vpack.c.b16 %v7976, %v7966
          %v8457 = vpack.c.b16 %v7977, %v7967
          %v8458 = vpack.c.b16 %v7978, %v7968
          %v8459 = vpack.c.b16 %v7979, %v7969
          %v8460 = vpack.c.b16 %v7990, %v7980
          %v8461 = vpack.c.b16 %v7991, %v7981
          %v8462 = vpack.c.b16 %v7992, %v7982
          %v8463 = vpack.c.b16 %v7993, %v7983
          %v8464 = vpack.c.b16 %v7994, %v7984
          %v8465 = vpack.c.b16 %v7995, %v7985
          %v8466 = vpack.c.b16 %v7996, %v7986
          %v8467 = vpack.c.b16 %v7997, %v7987
          %v8468 = vpack.c.b16 %v7998, %v7988
          %v8469 = vpack.c.b16 %v7999, %v7989
          %v8470 = vpack.c.b16 %v8010, %v8000
          %v8471 = vpack.c.b16 %v8011, %v8001
          %v8472 = vpack.c.b16 %v8012, %v8002
          %v8473 = vpack.c.b16 %v8013, %v8003
          %v8474 = vpack.c.b16 %v8014, %v8004
          %v8475 = vpack.c.b16 %v8015, %v8005
          %v8476 = vpack.c.b16 %v8016, %v8006
          %v8477 = vpack.c.b16 %v8017, %v8007
          %v8478 = vpack.c.b16 %v8018, %v8008
          %v8479 = vpack.c.b16 %v8019, %v8009
          %v8480 = vpack.c.b16 %v8030, %v8020
          %v8481 = vpack.c.b16 %v8031, %v8021
          %v8482 = vpack.c.b16 %v8032, %v8022
          %v8483 = vpack.c.b16 %v8033, %v8023
          %v8484 = vpack.c.b16 %v8034, %v8024
          %v8485 = vpack.c.b16 %v8035, %v8025
          %v8486 = vpack.c.b16 %v8036, %v8026
          %v8487 = vpack.c.b16 %v8037, %v8027
          %v8488 = vpack.c.b16 %v8038, %v8028
          %v8489 = vpack.c.b16 %v8039, %v8029
          %v8490 = vpack.c.b16 %v8050, %v8040
          %v8491 = vpack.c.b16 %v8051, %v8041
          %v8492 = vpack.c.b16 %v8052, %v8042
          %v8493 = vpack.c.b16 %v8053, %v8043
          %v8494 = vpack.c.b16 %v8054, %v8044
          %v8495 = vpack.c.b16 %v8055, %v8045
          %v8496 = vpack.c.b16 %v8056, %v8046
          %v8497 = vpack.c.b16 %v8057, %v8047
          %v8498 = vpack.c.b16 %v8058, %v8048
          %v8499 = vpack.c.b16 %v8059, %v8049
          %v8500 = vpack.c.b16 %v8070, %v8060
          %v8501 = vpack.c.b16 %v8071, %v8061
          %v8502 = vpack.c.b16 %v8072, %v8062
          %v8503 = vpack.c.b16 %v8073, %v8063
          %v8504 = vpack.c.b16 %v8074, %v8064
          %v8505 = vpack.c.b16 %v8075, %v8065
          %v8506 = vpack.c.b16 %v8076, %v8066
          %v8507 = vpack.c.b16 %v8077, %v8067
          %v8508 = vpack.c.b16 %v8078, %v8068
          %v8509 = vpack.c.b16 %v8079, %v8069
          %v8510 = vpack.c.b16 %v8090, %v8080
          %v8511 = vpack.c.b16 %v8091, %v8081
          %v8512 = vpack.c.b16 %v8092, %v8082
          %v8513 = vpack.c.b16 %v8093, %v8083
          %v8514 = vpack.c.b16 %v8094, %v8084
          %v8515 = vpack.c.b16 %v8095, %v8085
          %v8516 = vpack.c.b16 %v8096, %v8086
          %v8517 = vpack.c.b16 %v8097, %v8087
          %v8518 = vpack.c.b16 %v8098, %v8088
          %v8519 = vpack.c.b16 %v8099, %v8089
          %v8520 = vpack.c.b16 %v8110, %v8100
          %v8521 = vpack.c.b16 %v8111, %v8101
          %v8522 = vpack.c.b16 %v8112, %v8102
          %v8523 = vpack.c.b16 %v8113, %v8103
          %v8524 = vpack.c.b16 %v8114, %v8104
          %v8525 = vpack.c.b16 %v8115, %v8105
          %v8526 = vpack.c.b16 %v8116, %v8106
          %v8527 = vpack.c.b16 %v8117, %v8107
          %v8528 = vpack.c.b16 %v8118, %v8108
          %v8529 = vpack.c.b16 %v8119, %v8109
          %v8530 = vpack.c.b16 %v8130, %v8120
          %v8531 = vpack.c.b16 %v8131, %v8121
          %v8532 = vpack.c.b16 %v8132, %v8122
          %v8533 = vpack.c.b16 %v8133, %v8123
          %v8534 = vpack.c.b16 %v8134, %v8124
          %v8535 = vpack.c.b16 %v8135, %v8125
          %v8536 = vpack.c.b16 %v8136, %v8126
          %v8537 = vpack.c.b16 %v8137, %v8127
          %v8538 = vpack.c.b16 %v8138, %v8128
          %v8539 = vpack.c.b16 %v8139, %v8129
          %v8540 = vpack.c.b16 %v8150, %v8140
          %v8541 = vpack.c.b16 %v8151, %v8141
          %v8542 = vpack.c.b16 %v8152, %v8142
          %v8543 = vpack.c.b16 %v8153, %v8143
          %v8544 = vpack.c.b16 %v8154, %v8144
          %v8545 = vpack.c.b16 %v8155, %v8145
          %v8546 = vpack.c.b16 %v8156, %v8146
          %v8547 = vpack.c.b16 %v8157, %v8147
          %v8548 = vpack.c.b16 %v8158, %v8148
          %v8549 = vpack.c.b16 %v8159, %v8149
          %v8550 = vpack.c.b16 %v8170, %v8160
          %v8551 = vpack.c.b16 %v8171, %v8161
          %v8552 = vpack.c.b16 %v8172, %v8162
          %v8553 = vpack.c.b16 %v8173, %v8163
          %v8554 = vpack.c.b16 %v8174, %v8164
          %v8555 = vpack.c.b16 %v8175, %v8165
          %v8556 = vpack.c.b16 %v8176, %v8166
          %v8557 = vpack.c.b16 %v8177, %v8167
          %v8558 = vpack.c.b16 %v8178, %v8168
          %v8559 = vpack.c.b16 %v8179, %v8169
          %v8560 = vpack.c.b16 %v8190, %v8180
          %v8561 = vpack.c.b16 %v8191, %v8181
          %v8562 = vpack.c.b16 %v8192, %v8182
          %v8563 = vpack.c.b16 %v8193, %v8183
          %v8564 = vpack.c.b16 %v8194, %v8184
          %v8565 = vpack.c.b16 %v8195, %v8185
          %v8566 = vpack.c.b16 %v8196, %v8186
          %v8567 = vpack.c.b16 %v8197, %v8187
          %v8568 = vpack.c.b16 %v8198, %v8188
          %v8569 = vpack.c.b16 %v8199, %v8189
          %v8570 = vpack.c.b16 %v8210, %v8200
          %v8571 = vpack.c.b16 %v8211, %v8201
          %v8572 = vpack.c.b16 %v8212, %v8202
          %v8573 = vpack.c.b16 %v8213, %v8203
          %v8574 = vpack.c.b16 %v8214, %v8204
          %v8575 = vpack.c.b16 %v8215, %v8205
          %v8576 = vpack.c.b16 %v8216, %v8206
          %v8577 = vpack.c.b16 %v8217, %v8207
          %v8578 = vpack.c.b16 %v8218, %v8208
          %v8579 = vpack.c.b16 %v8219, %v8209
          %v8580 = vpack.c.b16 %v8230, %v8220
          %v8581 = vpack.c.b16 %v8231, %v8221
          %v8582 = vpack.c.b16 %v8232, %v8222
          %v8583 = vpack.c.b16 %v8233, %v8223
          %v8584 = vpack.c.b16 %v8234, %v8224
          %v8585 = vpack.c.b16 %v8235, %v8225
          %v8586 = vpack.c.b16 %v8236, %v8226
          %v8587 = vpack.c.b16 %v8237, %v8227
          %v8588 = vpack.c.b16 %v8238, %v8228
          %v8589 = vpack.c.b16 %v8239, %v8229
          %v8590 = vpack.c.b16 %v8250, %v8240
          %v8591 = vpack.c.b16 %v8251, %v8241
          %v8592 = vpack.c.b16 %v8252, %v8242
          %v8593 = vpack.c.b16 %v8253, %v8243
          %v8594 = vpack.c.b16 %v8254, %v8244
          %v8595 = vpack.c.b16 %v8255, %v8245
          %v8596 = vpack.c.b16 %v8256, %v8246
          %v8597 = vpack.c.b16 %v8257, %v8247
          %v8598 = vpack.c.b16 %v8258, %v8248
          %v8599 = vpack.c.b16 %v8259, %v8249
          %v8600 = vpack.c.b16 %v8270, %v8260
          %v8601 = vpack.c.b16 %v8271, %v8261
          %v8602 = vpack.c.b16 %v8272, %v8262
          %v8603 = vpack.c.b16 %v8273, %v8263
          %v8604 = vpack.c.b16 %v8274, %v8264
          %v8605 = vpack.c.b16 %v8275, %v8265
          %v8606 = vpack.c.b16 %v8276, %v8266
          %v8607 = vpack.c.b16 %v8277, %v8267
          %v8608 = vpack.c.b16 %v8278, %v8268
          %v8609 = vpack.c.b16 %v8279, %v8269
          %v8610 = vpack.c.b16 %v8290, %v8280
          %v8611 = vpack.c.b16 %v8291, %v8281
          %v8612 = vpack.c.b16 %v8292, %v8282
          %v8613 = vpack.c.b16 %v8293, %v8283
          %v8614 = vpack.c.b16 %v8294, %v8284
          %v8615 = vpack.c.b16 %v8295, %v8285
          %v8616 = vpack.c.b16 %v8296, %v8286
          %v8617 = vpack.c.b16 %v8297, %v8287
          %v8618 = vpack.c.b16 %v8298, %v8288
          %v8619 = vpack.c.b16 %v8299, %v8289
          %8940 = vmatprep.subr.bf16.mxu0 0
          %8941 = vmatpush1.bf16.msra.mxu0 %v6876
          %8942 = vmatprep.subr.bf16.mxu0 0
          %8943 = vmatpush1.bf16.msra.mxu0 %v6877
          %8944 = vmatprep.subr.bf16.mxu0 0
          %8945 = vmatpush1.bf16.msra.mxu0 %v6878
          %8946 = vmatprep.subr.bf16.mxu0 0
          %8947 = vmatpush1.bf16.msra.mxu0 %v6879
          %8948 = vmatprep.subr.bf16.mxu0 0
          %8949 = vmatpush1.bf16.msra.mxu0 %v6880
          %8950 = vmatprep.subr.bf16.mxu0 0
          %8951 = vmatpush1.bf16.msra.mxu0 %v6881
          %8952 = vmatprep.subr.bf16.mxu0 0
          %8953 = vmatpush1.bf16.msra.mxu0 %v6882
          %8954 = vmatprep.subr.bf16.mxu0 0
          %8955 = vmatpush1.bf16.msra.mxu0 %v6883
          %8956 = vmatprep.subr.bf16.mxu0 0
          %8957 = vmatpush1.bf16.msra.mxu0 %v6884
          %8958 = vmatprep.subr.bf16.mxu0 0
          %8959 = vmatpush1.bf16.msra.mxu0 %v6885
          %8960 = vmatprep.subr.bf16.mxu0 0
          %8961 = vmatpush1.bf16.msra.mxu0 %v6886
          %8962 = vmatprep.subr.bf16.mxu0 0
          %8963 = vmatpush1.bf16.msra.mxu0 %v6887
          %8964 = vmatprep.subr.bf16.mxu0 0
          %8965 = vmatpush1.bf16.msra.mxu0 %v6888
          %8966 = vmatprep.subr.bf16.mxu0 0
          %8967 = vmatpush1.bf16.msra.mxu0 %v6889
          %8968 = vmatprep.subr.bf16.mxu0 0
          %8969 = vmatpush1.bf16.msra.mxu0 %v6890
          %8970 = vmatprep.subr.bf16.mxu0 0
          %8971 = vmatpush1.bf16.msra.mxu0 %v6891
          %8972 = vmatprep.mubr.bf16.mxu0 %v8301
          %8973 = vmatmul.mubr.bf16.gmra.mrb[0].mxu0 %v8300
          %v8974 = vpop.f32.mrb[0].mxu0
          %v8975 = vadd.f32 %v7276, %v8974
          %v8976 = vpop.f32.mrb[0].mxu0
          %v8977 = vpop.f32.mrb[0].mxu0
          %v8978 = vadd.f32 %v7277, %v8977
          %v8979 = vpop.f32.mrb[0].mxu0
          %8980 = vmatprep.mubr.bf16.mxu0 %v8311
          %8981 = vmatmul.mubr.bf16.gmra.mrb[0].mxu0 %v8310
          %v8982 = vpop.f32.mrb[0].mxu0
          %v8983 = vadd.f32 %v7278, %v8982
          %v8984 = vpop.f32.mrb[0].mxu0
          %v8985 = vpop.f32.mrb[0].mxu0
          %v8986 = vadd.f32 %v7279, %v8985
          %v8987 = vpop.f32.mrb[0].mxu0
          %8988 = vmatprep.mubr.bf16.mxu0 %v8321
          %8989 = vmatmul.mubr.bf16.gmra.mrb[0].mxu0 %v8320
          %v8990 = vpop.f32.mrb[0].mxu0
          %v8991 = vadd.f32 %v7280, %v8990
          %v8992 = vpop.f32.mrb[0].mxu0
          %v8993 = vpop.f32.mrb[0].mxu0
          %v8994 = vadd.f32 %v7281, %v8993
          %v8995 = vpop.f32.mrb[0].mxu0
          %8996 = vmatprep.mubr.bf16.mxu0 %v8331
          %8997 = vmatmul.mubr.bf16.gmra.mrb[0].mxu0 %v8330
          %v8998 = vpop.f32.mrb[0].mxu0
          %v8999 = vadd.f32 %v7282, %v8998
          %v9000 = vpop.f32.mrb[0].mxu0
          %v9001 = vpop.f32.mrb[0].mxu0
          %v9002 = vadd.f32 %v7283, %v9001
          %v9003 = vpop.f32.mrb[0].mxu0
          %9004 = vmatprep.mubr.bf16.mxu0 %v8341
          %9005 = vmatmul.mubr.bf16.gmra.mrb[0].mxu0 %v8340
          %v9006 = vpop.f32.mrb[0].mxu0
          %v9007 = vadd.f32 %v7284, %v9006
          %v9008 = vpop.f32.mrb[0].mxu0
          %v9009 = vpop.f32.mrb[0].mxu0
          %v9010 = vadd.f32 %v7285, %v9009
          %v9011 = vpop.f32.mrb[0].mxu0
          %9012 = vmatprep.mubr.bf16.mxu0 %v8351
          %9013 = vmatmul.mubr.bf16.gmra.mrb[0].mxu0 %v8350
          %v9014 = vpop.f32.mrb[0].mxu0
          %v9015 = vadd.f32 %v7286, %v9014
          %v9016 = vpop.f32.mrb[0].mxu0
          %v9017 = vpop.f32.mrb[0].mxu0
          %v9018 = vadd.f32 %v7287, %v9017
          %v9019 = vpop.f32.mrb[0].mxu0
          %9020 = vmatprep.mubr.bf16.mxu0 %v8361
          %9021 = vmatmul.mubr.bf16.gmra.mrb[0].mxu0 %v8360
          %v9022 = vpop.f32.mrb[0].mxu0
          %v9023 = vadd.f32 %v7288, %v9022
          %v9024 = vpop.f32.mrb[0].mxu0
          %v9025 = vpop.f32.mrb[0].mxu0
          %v9026 = vadd.f32 %v7289, %v9025
          %v9027 = vpop.f32.mrb[0].mxu0
          %9028 = vmatprep.mubr.bf16.mxu0 %v8371
          %9029 = vmatmul.mubr.bf16.gmra.mrb[0].mxu0 %v8370
          %v9030 = vpop.f32.mrb[0].mxu0
          %v9031 = vadd.f32 %v7290, %v9030
          %v9032 = vpop.f32.mrb[0].mxu0
          %v9033 = vpop.f32.mrb[0].mxu0
          %v9034 = vadd.f32 %v7291, %v9033
          %v9035 = vpop.f32.mrb[0].mxu0
          %9036 = vmatprep.mubr.bf16.mxu0 %v8381
          %9037 = vmatmul.mubr.bf16.gmra.mrb[0].mxu0 %v8380
          %v9038 = vpop.f32.mrb[0].mxu0
          %v9039 = vadd.f32 %v7292, %v9038
          %v9040 = vpop.f32.mrb[0].mxu0
          %v9041 = vpop.f32.mrb[0].mxu0
          %v9042 = vadd.f32 %v7293, %v9041
          %v9043 = vpop.f32.mrb[0].mxu0
          %9044 = vmatprep.mubr.bf16.mxu0 %v8391
          %9045 = vmatmul.mubr.bf16.gmra.mrb[0].mxu0 %v8390
          %v9046 = vpop.f32.mrb[0].mxu0
          %v9047 = vadd.f32 %v7294, %v9046
          %v9048 = vpop.f32.mrb[0].mxu0
          %v9049 = vpop.f32.mrb[0].mxu0
          %v9050 = vadd.f32 %v7295, %v9049
          %v9051 = vpop.f32.mrb[0].mxu0
          %9052 = vmatprep.mubr.bf16.mxu0 %v8401
          %9053 = vmatmul.mubr.bf16.gmra.mrb[0].mxu0 %v8400
          %v9054 = vpop.f32.mrb[0].mxu0
          %v9055 = vadd.f32 %v7296, %v9054
          %v9056 = vpop.f32.mrb[0].mxu0
          %v9057 = vpop.f32.mrb[0].mxu0
          %v9058 = vadd.f32 %v7297, %v9057
          %v9059 = vpop.f32.mrb[0].mxu0
          %9060 = vmatprep.mubr.bf16.mxu0 %v8411
          %9061 = vmatmul.mubr.bf16.gmra.mrb[0].mxu0 %v8410
          %v9062 = vpop.f32.mrb[0].mxu0
          %v9063 = vadd.f32 %v7298, %v9062
          %v9064 = vpop.f32.mrb[0].mxu0
          %v9065 = vpop.f32.mrb[0].mxu0
          %v9066 = vadd.f32 %v7299, %v9065
          %v9067 = vpop.f32.mrb[0].mxu0
          %9068 = vmatprep.mubr.bf16.mxu0 %v8421
          %9069 = vmatmul.mubr.bf16.gmra.mrb[0].mxu0 %v8420
          %v9070 = vpop.f32.mrb[0].mxu0
          %v9071 = vadd.f32 %v7300, %v9070
          %v9072 = vpop.f32.mrb[0].mxu0
          %v9073 = vpop.f32.mrb[0].mxu0
          %v9074 = vadd.f32 %v7301, %v9073
          %v9075 = vpop.f32.mrb[0].mxu0
          %9076 = vmatprep.mubr.bf16.mxu0 %v8431
          %9077 = vmatmul.mubr.bf16.gmra.mrb[0].mxu0 %v8430
          %v9078 = vpop.f32.mrb[0].mxu0
          %v9079 = vadd.f32 %v7302, %v9078
          %v9080 = vpop.f32.mrb[0].mxu0
          %v9081 = vpop.f32.mrb[0].mxu0
          %v9082 = vadd.f32 %v7303, %v9081
          %v9083 = vpop.f32.mrb[0].mxu0
          %9084 = vmatprep.mubr.bf16.mxu0 %v8441
          %9085 = vmatmul.mubr.bf16.gmra.mrb[0].mxu0 %v8440
          %v9086 = vpop.f32.mrb[0].mxu0
          %v9087 = vadd.f32 %v7304, %v9086
          %v9088 = vpop.f32.mrb[0].mxu0
          %v9089 = vpop.f32.mrb[0].mxu0
          %v9090 = vadd.f32 %v7305, %v9089
          %v9091 = vpop.f32.mrb[0].mxu0
          %9092 = vmatprep.mubr.bf16.mxu0 %v8451
          %9093 = vmatmul.mubr.bf16.gmra.mrb[0].mxu0 %v8450
          %v9094 = vpop.f32.mrb[0].mxu0
          %v9095 = vadd.f32 %v7306, %v9094
          %v9096 = vpop.f32.mrb[0].mxu0
          %v9097 = vpop.f32.mrb[0].mxu0
          %v9098 = vadd.f32 %v7307, %v9097
          %v9099 = vpop.f32.mrb[0].mxu0
          %9100 = vmatprep.mubr.bf16.mxu0 %v8461
          %9101 = vmatmul.mubr.bf16.gmra.mrb[0].mxu0 %v8460
          %v9102 = vpop.f32.mrb[0].mxu0
          %v9103 = vadd.f32 %v7308, %v9102
          %v9104 = vpop.f32.mrb[0].mxu0
          %v9105 = vpop.f32.mrb[0].mxu0
          %v9106 = vadd.f32 %v7309, %v9105
          %v9107 = vpop.f32.mrb[0].mxu0
          %9108 = vmatprep.mubr.bf16.mxu0 %v8471
          %9109 = vmatmul.mubr.bf16.gmra.mrb[0].mxu0 %v8470
          %v9110 = vpop.f32.mrb[0].mxu0
          %v9111 = vadd.f32 %v7310, %v9110
          %v9112 = vpop.f32.mrb[0].mxu0
          %v9113 = vpop.f32.mrb[0].mxu0
          %v9114 = vadd.f32 %v7311, %v9113
          %v9115 = vpop.f32.mrb[0].mxu0
          %9116 = vmatprep.mubr.bf16.mxu0 %v8481
          %9117 = vmatmul.mubr.bf16.gmra.mrb[0].mxu0 %v8480
          %v9118 = vpop.f32.mrb[0].mxu0
          %v9119 = vadd.f32 %v7312, %v9118
          %v9120 = vpop.f32.mrb[0].mxu0
          %v9121 = vpop.f32.mrb[0].mxu0
          %v9122 = vadd.f32 %v7313, %v9121
          %v9123 = vpop.f32.mrb[0].mxu0
          %9124 = vmatprep.mubr.bf16.mxu0 %v8491
          %9125 = vmatmul.mubr.bf16.gmra.mrb[0].mxu0 %v8490
          %v9126 = vpop.f32.mrb[0].mxu0
          %v9127 = vadd.f32 %v7314, %v9126
          %v9128 = vpop.f32.mrb[0].mxu0
          %v9129 = vpop.f32.mrb[0].mxu0
          %v9130 = vadd.f32 %v7315, %v9129
          %v9131 = vpop.f32.mrb[0].mxu0
          %9132 = vmatprep.mubr.bf16.mxu0 %v8501
          %9133 = vmatmul.mubr.bf16.gmra.mrb[0].mxu0 %v8500
          %v9134 = vpop.f32.mrb[0].mxu0
          %v9135 = vadd.f32 %v7316, %v9134
          %v9136 = vpop.f32.mrb[0].mxu0
          %v9137 = vpop.f32.mrb[0].mxu0
          %v9138 = vadd.f32 %v7317, %v9137
          %v9139 = vpop.f32.mrb[0].mxu0
          %9140 = vmatprep.mubr.bf16.mxu0 %v8511
          %9141 = vmatmul.mubr.bf16.gmra.mrb[0].mxu0 %v8510
          %v9142 = vpop.f32.mrb[0].mxu0
          %v9143 = vadd.f32 %v7318, %v9142
          %v9144 = vpop.f32.mrb[0].mxu0
          %v9145 = vpop.f32.mrb[0].mxu0
          %v9146 = vadd.f32 %v7319, %v9145
          %v9147 = vpop.f32.mrb[0].mxu0
          %9148 = vmatprep.mubr.bf16.mxu0 %v8521
          %9149 = vmatmul.mubr.bf16.gmra.mrb[0].mxu0 %v8520
          %v9150 = vpop.f32.mrb[0].mxu0
          %v9151 = vadd.f32 %v7320, %v9150
          %v9152 = vpop.f32.mrb[0].mxu0
          %v9153 = vpop.f32.mrb[0].mxu0
          %v9154 = vadd.f32 %v7321, %v9153
          %v9155 = vpop.f32.mrb[0].mxu0
          %9156 = vmatprep.mubr.bf16.mxu0 %v8531
          %9157 = vmatmul.mubr.bf16.gmra.mrb[0].mxu0 %v8530
          %v9158 = vpop.f32.mrb[0].mxu0
          %v9159 = vadd.f32 %v7322, %v9158
          %v9160 = vpop.f32.mrb[0].mxu0
          %v9161 = vpop.f32.mrb[0].mxu0
          %v9162 = vadd.f32 %v7323, %v9161
          %v9163 = vpop.f32.mrb[0].mxu0
          %9164 = vmatprep.mubr.bf16.mxu0 %v8541
          %9165 = vmatmul.mubr.bf16.gmra.mrb[0].mxu0 %v8540
          %v9166 = vpop.f32.mrb[0].mxu0
          %v9167 = vadd.f32 %v7324, %v9166
          %v9168 = vpop.f32.mrb[0].mxu0
          %v9169 = vpop.f32.mrb[0].mxu0
          %v9170 = vadd.f32 %v7325, %v9169
          %v9171 = vpop.f32.mrb[0].mxu0
          %9172 = vmatprep.mubr.bf16.mxu0 %v8551
          %9173 = vmatmul.mubr.bf16.gmra.mrb[0].mxu0 %v8550
          %v9174 = vpop.f32.mrb[0].mxu0
          %v9175 = vadd.f32 %v7326, %v9174
          %v9176 = vpop.f32.mrb[0].mxu0
          %v9177 = vpop.f32.mrb[0].mxu0
          %v9178 = vadd.f32 %v7327, %v9177
          %v9179 = vpop.f32.mrb[0].mxu0
          %9180 = vmatprep.mubr.bf16.mxu0 %v8561
          %9181 = vmatmul.mubr.bf16.gmra.mrb[0].mxu0 %v8560
          %v9182 = vpop.f32.mrb[0].mxu0
          %v9183 = vadd.f32 %v7328, %v9182
          %v9184 = vpop.f32.mrb[0].mxu0
          %v9185 = vpop.f32.mrb[0].mxu0
          %v9186 = vadd.f32 %v7329, %v9185
          %v9187 = vpop.f32.mrb[0].mxu0
          %9188 = vmatprep.mubr.bf16.mxu0 %v8571
          %9189 = vmatmul.mubr.bf16.gmra.mrb[0].mxu0 %v8570
          %v9190 = vpop.f32.mrb[0].mxu0
          %v9191 = vadd.f32 %v7330, %v9190
          %v9192 = vpop.f32.mrb[0].mxu0
          %v9193 = vpop.f32.mrb[0].mxu0
          %v9194 = vadd.f32 %v7331, %v9193
          %v9195 = vpop.f32.mrb[0].mxu0
          %9196 = vmatprep.mubr.bf16.mxu0 %v8581
          %9197 = vmatmul.mubr.bf16.gmra.mrb[0].mxu0 %v8580
          %v9198 = vpop.f32.mrb[0].mxu0
          %v9199 = vadd.f32 %v7332, %v9198
          %v9200 = vpop.f32.mrb[0].mxu0
          %v9201 = vpop.f32.mrb[0].mxu0
          %v9202 = vadd.f32 %v7333, %v9201
          %v9203 = vpop.f32.mrb[0].mxu0
          %9204 = vmatprep.mubr.bf16.mxu0 %v8591
          %9205 = vmatmul.mubr.bf16.gmra.mrb[0].mxu0 %v8590
          %v9206 = vpop.f32.mrb[0].mxu0
          %v9207 = vadd.f32 %v7334, %v9206
          %v9208 = vpop.f32.mrb[0].mxu0
          %v9209 = vpop.f32.mrb[0].mxu0
          %v9210 = vadd.f32 %v7335, %v9209
          %v9211 = vpop.f32.mrb[0].mxu0
          %9212 = vmatprep.mubr.bf16.mxu0 %v8601
          %9213 = vmatmul.mubr.bf16.gmra.mrb[0].mxu0 %v8600
          %v9214 = vpop.f32.mrb[0].mxu0
          %v9215 = vadd.f32 %v7336, %v9214
          %v9216 = vpop.f32.mrb[0].mxu0
          %v9217 = vpop.f32.mrb[0].mxu0
          %v9218 = vadd.f32 %v7337, %v9217
          %v9219 = vpop.f32.mrb[0].mxu0
          %9220 = vmatprep.mubr.bf16.mxu0 %v8611
          %9221 = vmatmul.mubr.bf16.gmra.mrb[0].mxu0 %v8610
          %v9222 = vpop.f32.mrb[0].mxu0
          %v9223 = vadd.f32 %v7338, %v9222
          %v9224 = vpop.f32.mrb[0].mxu0
          %v9225 = vpop.f32.mrb[0].mxu0
          %v9226 = vadd.f32 %v7339, %v9225
          %v9227 = vpop.f32.mrb[0].mxu0
          %9228 = vdwg.mxu0
          %9229 = vmatprep.subr.bf16.mxu0 0
          %9230 = vmatpush1.bf16.msra.mxu0 %v6892
          %9231 = vmatprep.subr.bf16.mxu0 0
          %9232 = vmatpush1.bf16.msra.mxu0 %v6893
          %9233 = vmatprep.subr.bf16.mxu0 0
          %9234 = vmatpush1.bf16.msra.mxu0 %v6894
          %9235 = vmatprep.subr.bf16.mxu0 0
          %9236 = vmatpush1.bf16.msra.mxu0 %v6895
          %9237 = vmatprep.subr.bf16.mxu0 0
          %9238 = vmatpush1.bf16.msra.mxu0 %v6896
          %9239 = vmatprep.subr.bf16.mxu0 0
          %9240 = vmatpush1.bf16.msra.mxu0 %v6897
          %9241 = vmatprep.subr.bf16.mxu0 0
          %9242 = vmatpush1.bf16.msra.mxu0 %v6898
          %9243 = vmatprep.subr.bf16.mxu0 0
          %9244 = vmatpush1.bf16.msra.mxu0 %v6899
          %9245 = vmatprep.subr.bf16.mxu0 0
          %9246 = vmatpush1.bf16.msra.mxu0 %v6900
          %9247 = vmatprep.subr.bf16.mxu0 0
          %9248 = vmatpush1.bf16.msra.mxu0 %v6901
          %9249 = vmatprep.subr.bf16.mxu0 0
          %9250 = vmatpush1.bf16.msra.mxu0 %v6902
          %9251 = vmatprep.subr.bf16.mxu0 0
          %9252 = vmatpush1.bf16.msra.mxu0 %v6903
          %9253 = vmatprep.subr.bf16.mxu0 0
          %9254 = vmatpush1.bf16.msra.mxu0 %v6904
          %9255 = vmatprep.subr.bf16.mxu0 0
          %9256 = vmatpush1.bf16.msra.mxu0 %v6905
          %9257 = vmatprep.subr.bf16.mxu0 0
          %9258 = vmatpush1.bf16.msra.mxu0 %v6906
          %9259 = vmatprep.subr.bf16.mxu0 0
          %9260 = vmatpush1.bf16.msra.mxu0 %v6907
          %9261 = vmatprep.mubr.bf16.mxu0 %v8303
          %9262 = vmatmul.mubr.bf16.gmra.mrb[0].mxu0 %v8302
          %v9263 = vpop.f32.mrb[0].mxu0
          %v9264 = vadd.f32 %v8975, %v9263
          %v9265 = vpop.f32.mrb[0].mxu0
          %v9266 = vpop.f32.mrb[0].mxu0
          %v9267 = vadd.f32 %v8978, %v9266
          %v9268 = vpop.f32.mrb[0].mxu0
          %9269 = vmatprep.mubr.bf16.mxu0 %v8313
          %9270 = vmatmul.mubr.bf16.gmra.mrb[0].mxu0 %v8312
          %v9271 = vpop.f32.mrb[0].mxu0
          %v9272 = vadd.f32 %v8983, %v9271
          %v9273 = vpop.f32.mrb[0].mxu0
          %v9274 = vpop.f32.mrb[0].mxu0
          %v9275 = vadd.f32 %v8986, %v9274
          %v9276 = vpop.f32.mrb[0].mxu0
          %9277 = vmatprep.mubr.bf16.mxu0 %v8323
          %9278 = vmatmul.mubr.bf16.gmra.mrb[0].mxu0 %v8322
          %v9279 = vpop.f32.mrb[0].mxu0
          %v9280 = vadd.f32 %v8991, %v9279
          %v9281 = vpop.f32.mrb[0].mxu0
          %v9282 = vpop.f32.mrb[0].mxu0
          %v9283 = vadd.f32 %v8994, %v9282
          %v9284 = vpop.f32.mrb[0].mxu0
          %9285 = vmatprep.mubr.bf16.mxu0 %v8333
          %9286 = vmatmul.mubr.bf16.gmra.mrb[0].mxu0 %v8332
          %v9287 = vpop.f32.mrb[0].mxu0
          %v9288 = vadd.f32 %v8999, %v9287
          %v9289 = vpop.f32.mrb[0].mxu0
          %v9290 = vpop.f32.mrb[0].mxu0
          %v9291 = vadd.f32 %v9002, %v9290
          %v9292 = vpop.f32.mrb[0].mxu0
          %9293 = vmatprep.mubr.bf16.mxu0 %v8343
          %9294 = vmatmul.mubr.bf16.gmra.mrb[0].mxu0 %v8342
          %v9295 = vpop.f32.mrb[0].mxu0
          %v9296 = vadd.f32 %v9007, %v9295
          %v9297 = vpop.f32.mrb[0].mxu0
          %v9298 = vpop.f32.mrb[0].mxu0
          %v9299 = vadd.f32 %v9010, %v9298
          %v9300 = vpop.f32.mrb[0].mxu0
          %9301 = vmatprep.mubr.bf16.mxu0 %v8353
          %9302 = vmatmul.mubr.bf16.gmra.mrb[0].mxu0 %v8352
          %v9303 = vpop.f32.mrb[0].mxu0
          %v9304 = vadd.f32 %v9015, %v9303
          %v9305 = vpop.f32.mrb[0].mxu0
          %v9306 = vpop.f32.mrb[0].mxu0
          %v9307 = vadd.f32 %v9018, %v9306
          %v9308 = vpop.f32.mrb[0].mxu0
          %9309 = vmatprep.mubr.bf16.mxu0 %v8363
          %9310 = vmatmul.mubr.bf16.gmra.mrb[0].mxu0 %v8362
          %v9311 = vpop.f32.mrb[0].mxu0
          %v9312 = vadd.f32 %v9023, %v9311
          %v9313 = vpop.f32.mrb[0].mxu0
          %v9314 = vpop.f32.mrb[0].mxu0
          %v9315 = vadd.f32 %v9026, %v9314
          %v9316 = vpop.f32.mrb[0].mxu0
          %9317 = vmatprep.mubr.bf16.mxu0 %v8373
          %9318 = vmatmul.mubr.bf16.gmra.mrb[0].mxu0 %v8372
          %v9319 = vpop.f32.mrb[0].mxu0
          %v9320 = vadd.f32 %v9031, %v9319
          %v9321 = vpop.f32.mrb[0].mxu0
          %v9322 = vpop.f32.mrb[0].mxu0
          %v9323 = vadd.f32 %v9034, %v9322
          %v9324 = vpop.f32.mrb[0].mxu0
          %9325 = vmatprep.mubr.bf16.mxu0 %v8383
          %9326 = vmatmul.mubr.bf16.gmra.mrb[0].mxu0 %v8382
          %v9327 = vpop.f32.mrb[0].mxu0
          %v9328 = vadd.f32 %v9039, %v9327
          %v9329 = vpop.f32.mrb[0].mxu0
          %v9330 = vpop.f32.mrb[0].mxu0
          %v9331 = vadd.f32 %v9042, %v9330
          %v9332 = vpop.f32.mrb[0].mxu0
          %9333 = vmatprep.mubr.bf16.mxu0 %v8393
          %9334 = vmatmul.mubr.bf16.gmra.mrb[0].mxu0 %v8392
          %v9335 = vpop.f32.mrb[0].mxu0
          %v9336 = vadd.f32 %v9047, %v9335
          %v9337 = vpop.f32.mrb[0].mxu0
          %v9338 = vpop.f32.mrb[0].mxu0
          %v9339 = vadd.f32 %v9050, %v9338
          %v9340 = vpop.f32.mrb[0].mxu0
          %9341 = vmatprep.mubr.bf16.mxu0 %v8403
          %9342 = vmatmul.mubr.bf16.gmra.mrb[0].mxu0 %v8402
          %v9343 = vpop.f32.mrb[0].mxu0
          %v9344 = vadd.f32 %v9055, %v9343
          %v9345 = vpop.f32.mrb[0].mxu0
          %v9346 = vpop.f32.mrb[0].mxu0
          %v9347 = vadd.f32 %v9058, %v9346
          %v9348 = vpop.f32.mrb[0].mxu0
          %9349 = vmatprep.mubr.bf16.mxu0 %v8413
          %9350 = vmatmul.mubr.bf16.gmra.mrb[0].mxu0 %v8412
          %v9351 = vpop.f32.mrb[0].mxu0
          %v9352 = vadd.f32 %v9063, %v9351
          %v9353 = vpop.f32.mrb[0].mxu0
          %v9354 = vpop.f32.mrb[0].mxu0
          %v9355 = vadd.f32 %v9066, %v9354
          %v9356 = vpop.f32.mrb[0].mxu0
          %9357 = vmatprep.mubr.bf16.mxu0 %v8423
          %9358 = vmatmul.mubr.bf16.gmra.mrb[0].mxu0 %v8422
          %v9359 = vpop.f32.mrb[0].mxu0
          %v9360 = vadd.f32 %v9071, %v9359
          %v9361 = vpop.f32.mrb[0].mxu0
          %v9362 = vpop.f32.mrb[0].mxu0
          %v9363 = vadd.f32 %v9074, %v9362
          %v9364 = vpop.f32.mrb[0].mxu0
          %9365 = vmatprep.mubr.bf16.mxu0 %v8433
          %9366 = vmatmul.mubr.bf16.gmra.mrb[0].mxu0 %v8432
          %v9367 = vpop.f32.mrb[0].mxu0
          %v9368 = vadd.f32 %v9079, %v9367
          %v9369 = vpop.f32.mrb[0].mxu0
          %v9370 = vpop.f32.mrb[0].mxu0
          %v9371 = vadd.f32 %v9082, %v9370
          %v9372 = vpop.f32.mrb[0].mxu0
          %9373 = vmatprep.mubr.bf16.mxu0 %v8443
          %9374 = vmatmul.mubr.bf16.gmra.mrb[0].mxu0 %v8442
          %v9375 = vpop.f32.mrb[0].mxu0
          %v9376 = vadd.f32 %v9087, %v9375
          %v9377 = vpop.f32.mrb[0].mxu0
          %v9378 = vpop.f32.mrb[0].mxu0
          %v9379 = vadd.f32 %v9090, %v9378
          %v9380 = vpop.f32.mrb[0].mxu0
          %9381 = vmatprep.mubr.bf16.mxu0 %v8453
          %9382 = vmatmul.mubr.bf16.gmra.mrb[0].mxu0 %v8452
          %v9383 = vpop.f32.mrb[0].mxu0
          %v9384 = vadd.f32 %v9095, %v9383
          %v9385 = vpop.f32.mrb[0].mxu0
          %v9386 = vpop.f32.mrb[0].mxu0
          %v9387 = vadd.f32 %v9098, %v9386
          %v9388 = vpop.f32.mrb[0].mxu0
          %9389 = vmatprep.mubr.bf16.mxu0 %v8463
          %9390 = vmatmul.mubr.bf16.gmra.mrb[0].mxu0 %v8462
          %v9391 = vpop.f32.mrb[0].mxu0
          %v9392 = vadd.f32 %v9103, %v9391
          %v9393 = vpop.f32.mrb[0].mxu0
          %v9394 = vpop.f32.mrb[0].mxu0
          %v9395 = vadd.f32 %v9106, %v9394
          %v9396 = vpop.f32.mrb[0].mxu0
          %9397 = vmatprep.mubr.bf16.mxu0 %v8473
          %9398 = vmatmul.mubr.bf16.gmra.mrb[0].mxu0 %v8472
          %v9399 = vpop.f32.mrb[0].mxu0
          %v9400 = vadd.f32 %v9111, %v9399
          %v9401 = vpop.f32.mrb[0].mxu0
          %v9402 = vpop.f32.mrb[0].mxu0
          %v9403 = vadd.f32 %v9114, %v9402
          %v9404 = vpop.f32.mrb[0].mxu0
          %9405 = vmatprep.mubr.bf16.mxu0 %v8483
          %9406 = vmatmul.mubr.bf16.gmra.mrb[0].mxu0 %v8482
          %v9407 = vpop.f32.mrb[0].mxu0
          %v9408 = vadd.f32 %v9119, %v9407
          %v9409 = vpop.f32.mrb[0].mxu0
          %v9410 = vpop.f32.mrb[0].mxu0
          %v9411 = vadd.f32 %v9122, %v9410
          %v9412 = vpop.f32.mrb[0].mxu0
          %9413 = vmatprep.mubr.bf16.mxu0 %v8493
          %9414 = vmatmul.mubr.bf16.gmra.mrb[0].mxu0 %v8492
          %v9415 = vpop.f32.mrb[0].mxu0
          %v9416 = vadd.f32 %v9127, %v9415
          %v9417 = vpop.f32.mrb[0].mxu0
          %v9418 = vpop.f32.mrb[0].mxu0
          %v9419 = vadd.f32 %v9130, %v9418
          %v9420 = vpop.f32.mrb[0].mxu0
          %9421 = vmatprep.mubr.bf16.mxu0 %v8503
          %9422 = vmatmul.mubr.bf16.gmra.mrb[0].mxu0 %v8502
          %v9423 = vpop.f32.mrb[0].mxu0
          %v9424 = vadd.f32 %v9135, %v9423
          %v9425 = vpop.f32.mrb[0].mxu0
          %v9426 = vpop.f32.mrb[0].mxu0
          %v9427 = vadd.f32 %v9138, %v9426
          %v9428 = vpop.f32.mrb[0].mxu0
          %9429 = vmatprep.mubr.bf16.mxu0 %v8513
          %9430 = vmatmul.mubr.bf16.gmra.mrb[0].mxu0 %v8512
          %v9431 = vpop.f32.mrb[0].mxu0
          %v9432 = vadd.f32 %v9143, %v9431
          %v9433 = vpop.f32.mrb[0].mxu0
          %v9434 = vpop.f32.mrb[0].mxu0
          %v9435 = vadd.f32 %v9146, %v9434
          %v9436 = vpop.f32.mrb[0].mxu0
          %9437 = vmatprep.mubr.bf16.mxu0 %v8523
          %9438 = vmatmul.mubr.bf16.gmra.mrb[0].mxu0 %v8522
          %v9439 = vpop.f32.mrb[0].mxu0
          %v9440 = vadd.f32 %v9151, %v9439
          %v9441 = vpop.f32.mrb[0].mxu0
          %v9442 = vpop.f32.mrb[0].mxu0
          %v9443 = vadd.f32 %v9154, %v9442
          %v9444 = vpop.f32.mrb[0].mxu0
          %9445 = vmatprep.mubr.bf16.mxu0 %v8533
          %9446 = vmatmul.mubr.bf16.gmra.mrb[0].mxu0 %v8532
          %v9447 = vpop.f32.mrb[0].mxu0
          %v9448 = vadd.f32 %v9159, %v9447
          %v9449 = vpop.f32.mrb[0].mxu0
          %v9450 = vpop.f32.mrb[0].mxu0
          %v9451 = vadd.f32 %v9162, %v9450
          %v9452 = vpop.f32.mrb[0].mxu0
          %9453 = vmatprep.mubr.bf16.mxu0 %v8543
          %9454 = vmatmul.mubr.bf16.gmra.mrb[0].mxu0 %v8542
          %v9455 = vpop.f32.mrb[0].mxu0
          %v9456 = vadd.f32 %v9167, %v9455
          %v9457 = vpop.f32.mrb[0].mxu0
          %v9458 = vpop.f32.mrb[0].mxu0
          %v9459 = vadd.f32 %v9170, %v9458
          %v9460 = vpop.f32.mrb[0].mxu0
          %9461 = vmatprep.mubr.bf16.mxu0 %v8553
          %9462 = vmatmul.mubr.bf16.gmra.mrb[0].mxu0 %v8552
          %v9463 = vpop.f32.mrb[0].mxu0
          %v9464 = vadd.f32 %v9175, %v9463
          %v9465 = vpop.f32.mrb[0].mxu0
          %v9466 = vpop.f32.mrb[0].mxu0
          %v9467 = vadd.f32 %v9178, %v9466
          %v9468 = vpop.f32.mrb[0].mxu0
          %9469 = vmatprep.mubr.bf16.mxu0 %v8563
          %9470 = vmatmul.mubr.bf16.gmra.mrb[0].mxu0 %v8562
          %v9471 = vpop.f32.mrb[0].mxu0
          %v9472 = vadd.f32 %v9183, %v9471
          %v9473 = vpop.f32.mrb[0].mxu0
          %v9474 = vpop.f32.mrb[0].mxu0
          %v9475 = vadd.f32 %v9186, %v9474
          %v9476 = vpop.f32.mrb[0].mxu0
          %9477 = vmatprep.mubr.bf16.mxu0 %v8573
          %9478 = vmatmul.mubr.bf16.gmra.mrb[0].mxu0 %v8572
          %v9479 = vpop.f32.mrb[0].mxu0
          %v9480 = vadd.f32 %v9191, %v9479
          %v9481 = vpop.f32.mrb[0].mxu0
          %v9482 = vpop.f32.mrb[0].mxu0
          %v9483 = vadd.f32 %v9194, %v9482
          %v9484 = vpop.f32.mrb[0].mxu0
          %9485 = vmatprep.mubr.bf16.mxu0 %v8583
          %9486 = vmatmul.mubr.bf16.gmra.mrb[0].mxu0 %v8582
          %v9487 = vpop.f32.mrb[0].mxu0
          %v9488 = vadd.f32 %v9199, %v9487
          %v9489 = vpop.f32.mrb[0].mxu0
          %v9490 = vpop.f32.mrb[0].mxu0
          %v9491 = vadd.f32 %v9202, %v9490
          %v9492 = vpop.f32.mrb[0].mxu0
          %9493 = vmatprep.mubr.bf16.mxu0 %v8593
          %9494 = vmatmul.mubr.bf16.gmra.mrb[0].mxu0 %v8592
          %v9495 = vpop.f32.mrb[0].mxu0
          %v9496 = vadd.f32 %v9207, %v9495
          %v9497 = vpop.f32.mrb[0].mxu0
          %v9498 = vpop.f32.mrb[0].mxu0
          %v9499 = vadd.f32 %v9210, %v9498
          %v9500 = vpop.f32.mrb[0].mxu0
          %9501 = vmatprep.mubr.bf16.mxu0 %v8603
          %9502 = vmatmul.mubr.bf16.gmra.mrb[0].mxu0 %v8602
          %v9503 = vpop.f32.mrb[0].mxu0
          %v9504 = vadd.f32 %v9215, %v9503
          %v9505 = vpop.f32.mrb[0].mxu0
          %v9506 = vpop.f32.mrb[0].mxu0
          %v9507 = vadd.f32 %v9218, %v9506
          %v9508 = vpop.f32.mrb[0].mxu0
          %9509 = vmatprep.mubr.bf16.mxu0 %v8613
          %9510 = vmatmul.mubr.bf16.gmra.mrb[0].mxu0 %v8612
          %v9511 = vpop.f32.mrb[0].mxu0
          %v9512 = vadd.f32 %v9223, %v9511
          %v9513 = vpop.f32.mrb[0].mxu0
          %v9514 = vpop.f32.mrb[0].mxu0
          %v9515 = vadd.f32 %v9226, %v9514
          %v9516 = vpop.f32.mrb[0].mxu0
          %9517 = vdwg.mxu0
          %9518 = vmatprep.subr.bf16.mxu0 0
          %9519 = vmatpush1.bf16.msra.mxu0 %v6908
          %9520 = vmatprep.subr.bf16.mxu0 0
          %9521 = vmatpush1.bf16.msra.mxu0 %v6909
          %9522 = vmatprep.subr.bf16.mxu0 0
          %9523 = vmatpush1.bf16.msra.mxu0 %v6910
          %9524 = vmatprep.subr.bf16.mxu0 0
          %9525 = vmatpush1.bf16.msra.mxu0 %v6911
          %9526 = vmatprep.subr.bf16.mxu0 0
          %9527 = vmatpush1.bf16.msra.mxu0 %v6912
          %9528 = vmatprep.subr.bf16.mxu0 0
          %9529 = vmatpush1.bf16.msra.mxu0 %v6913
          %9530 = vmatprep.subr.bf16.mxu0 0
          %9531 = vmatpush1.bf16.msra.mxu0 %v6914
          %9532 = vmatprep.subr.bf16.mxu0 0
          %9533 = vmatpush1.bf16.msra.mxu0 %v6915
          %9534 = vmatprep.subr.bf16.mxu0 0
          %9535 = vmatpush1.bf16.msra.mxu0 %v6916
          %9536 = vmatprep.subr.bf16.mxu0 0
          %9537 = vmatpush1.bf16.msra.mxu0 %v6917
          %9538 = vmatprep.subr.bf16.mxu0 0
          %9539 = vmatpush1.bf16.msra.mxu0 %v6918
          %9540 = vmatprep.subr.bf16.mxu0 0
          %9541 = vmatpush1.bf16.msra.mxu0 %v6919
          %9542 = vmatprep.subr.bf16.mxu0 0
          %9543 = vmatpush1.bf16.msra.mxu0 %v6920
          %9544 = vmatprep.subr.bf16.mxu0 0
          %9545 = vmatpush1.bf16.msra.mxu0 %v6921
          %9546 = vmatprep.subr.bf16.mxu0 0
          %9547 = vmatpush1.bf16.msra.mxu0 %v6922
          %9548 = vmatprep.subr.bf16.mxu0 0
          %9549 = vmatpush1.bf16.msra.mxu0 %v6923
          %9550 = vmatprep.mubr.bf16.mxu0 %v8305
          %9551 = vmatmul.mubr.bf16.gmra.mrb[0].mxu0 %v8304
          %v9552 = vpop.f32.mrb[0].mxu0
          %v9553 = vadd.f32 %v9264, %v9552
          %v9554 = vpop.f32.mrb[0].mxu0
          %v9555 = vpop.f32.mrb[0].mxu0
          %v9556 = vadd.f32 %v9267, %v9555
          %v9557 = vpop.f32.mrb[0].mxu0
          %9558 = vmatprep.mubr.bf16.mxu0 %v8315
          %9559 = vmatmul.mubr.bf16.gmra.mrb[0].mxu0 %v8314
          %v9560 = vpop.f32.mrb[0].mxu0
          %v9561 = vadd.f32 %v9272, %v9560
          %v9562 = vpop.f32.mrb[0].mxu0
          %v9563 = vpop.f32.mrb[0].mxu0
          %v9564 = vadd.f32 %v9275, %v9563
          %v9565 = vpop.f32.mrb[0].mxu0
          %9566 = vmatprep.mubr.bf16.mxu0 %v8325
          %9567 = vmatmul.mubr.bf16.gmra.mrb[0].mxu0 %v8324
          %v9568 = vpop.f32.mrb[0].mxu0
          %v9569 = vadd.f32 %v9280, %v9568
          %v9570 = vpop.f32.mrb[0].mxu0
          %v9571 = vpop.f32.mrb[0].mxu0
          %v9572 = vadd.f32 %v9283, %v9571
          %v9573 = vpop.f32.mrb[0].mxu0
          %9574 = vmatprep.mubr.bf16.mxu0 %v8335
          %9575 = vmatmul.mubr.bf16.gmra.mrb[0].mxu0 %v8334
          %v9576 = vpop.f32.mrb[0].mxu0
          %v9577 = vadd.f32 %v9288, %v9576
          %v9578 = vpop.f32.mrb[0].mxu0
          %v9579 = vpop.f32.mrb[0].mxu0
          %v9580 = vadd.f32 %v9291, %v9579
          %v9581 = vpop.f32.mrb[0].mxu0
          %9582 = vmatprep.mubr.bf16.mxu0 %v8345
          %9583 = vmatmul.mubr.bf16.gmra.mrb[0].mxu0 %v8344
          %v9584 = vpop.f32.mrb[0].mxu0
          %v9585 = vadd.f32 %v9296, %v9584
          %v9586 = vpop.f32.mrb[0].mxu0
          %v9587 = vpop.f32.mrb[0].mxu0
          %v9588 = vadd.f32 %v9299, %v9587
          %v9589 = vpop.f32.mrb[0].mxu0
          %9590 = vmatprep.mubr.bf16.mxu0 %v8355
          %9591 = vmatmul.mubr.bf16.gmra.mrb[0].mxu0 %v8354
          %v9592 = vpop.f32.mrb[0].mxu0
          %v9593 = vadd.f32 %v9304, %v9592
          %v9594 = vpop.f32.mrb[0].mxu0
          %v9595 = vpop.f32.mrb[0].mxu0
          %v9596 = vadd.f32 %v9307, %v9595
          %v9597 = vpop.f32.mrb[0].mxu0
          %9598 = vmatprep.mubr.bf16.mxu0 %v8365
          %9599 = vmatmul.mubr.bf16.gmra.mrb[0].mxu0 %v8364
          %v9600 = vpop.f32.mrb[0].mxu0
          %v9601 = vadd.f32 %v9312, %v9600
          %v9602 = vpop.f32.mrb[0].mxu0
          %v9603 = vpop.f32.mrb[0].mxu0
          %v9604 = vadd.f32 %v9315, %v9603
          %v9605 = vpop.f32.mrb[0].mxu0
          %9606 = vmatprep.mubr.bf16.mxu0 %v8375
          %9607 = vmatmul.mubr.bf16.gmra.mrb[0].mxu0 %v8374
          %v9608 = vpop.f32.mrb[0].mxu0
          %v9609 = vadd.f32 %v9320, %v9608
          %v9610 = vpop.f32.mrb[0].mxu0
          %v9611 = vpop.f32.mrb[0].mxu0
          %v9612 = vadd.f32 %v9323, %v9611
          %v9613 = vpop.f32.mrb[0].mxu0
          %9614 = vmatprep.mubr.bf16.mxu0 %v8385
          %9615 = vmatmul.mubr.bf16.gmra.mrb[0].mxu0 %v8384
          %v9616 = vpop.f32.mrb[0].mxu0
          %v9617 = vadd.f32 %v9328, %v9616
          %v9618 = vpop.f32.mrb[0].mxu0
          %v9619 = vpop.f32.mrb[0].mxu0
          %v9620 = vadd.f32 %v9331, %v9619
          %v9621 = vpop.f32.mrb[0].mxu0
          %9622 = vmatprep.mubr.bf16.mxu0 %v8395
          %9623 = vmatmul.mubr.bf16.gmra.mrb[0].mxu0 %v8394
          %v9624 = vpop.f32.mrb[0].mxu0
          %v9625 = vadd.f32 %v9336, %v9624
          %v9626 = vpop.f32.mrb[0].mxu0
          %v9627 = vpop.f32.mrb[0].mxu0
          %v9628 = vadd.f32 %v9339, %v9627
          %v9629 = vpop.f32.mrb[0].mxu0
          %9630 = vmatprep.mubr.bf16.mxu0 %v8405
          %9631 = vmatmul.mubr.bf16.gmra.mrb[0].mxu0 %v8404
          %v9632 = vpop.f32.mrb[0].mxu0
          %v9633 = vadd.f32 %v9344, %v9632
          %v9634 = vpop.f32.mrb[0].mxu0
          %v9635 = vpop.f32.mrb[0].mxu0
          %v9636 = vadd.f32 %v9347, %v9635
          %v9637 = vpop.f32.mrb[0].mxu0
          %9638 = vmatprep.mubr.bf16.mxu0 %v8415
          %9639 = vmatmul.mubr.bf16.gmra.mrb[0].mxu0 %v8414
          %v9640 = vpop.f32.mrb[0].mxu0
          %v9641 = vadd.f32 %v9352, %v9640
          %v9642 = vpop.f32.mrb[0].mxu0
          %v9643 = vpop.f32.mrb[0].mxu0
          %v9644 = vadd.f32 %v9355, %v9643
          %v9645 = vpop.f32.mrb[0].mxu0
          %9646 = vmatprep.mubr.bf16.mxu0 %v8425
          %9647 = vmatmul.mubr.bf16.gmra.mrb[0].mxu0 %v8424
          %v9648 = vpop.f32.mrb[0].mxu0
          %v9649 = vadd.f32 %v9360, %v9648
          %v9650 = vpop.f32.mrb[0].mxu0
          %v9651 = vpop.f32.mrb[0].mxu0
          %v9652 = vadd.f32 %v9363, %v9651
          %v9653 = vpop.f32.mrb[0].mxu0
          %9654 = vmatprep.mubr.bf16.mxu0 %v8435
          %9655 = vmatmul.mubr.bf16.gmra.mrb[0].mxu0 %v8434
          %v9656 = vpop.f32.mrb[0].mxu0
          %v9657 = vadd.f32 %v9368, %v9656
          %v9658 = vpop.f32.mrb[0].mxu0
          %v9659 = vpop.f32.mrb[0].mxu0
          %v9660 = vadd.f32 %v9371, %v9659
          %v9661 = vpop.f32.mrb[0].mxu0
          %9662 = vmatprep.mubr.bf16.mxu0 %v8445
          %9663 = vmatmul.mubr.bf16.gmra.mrb[0].mxu0 %v8444
          %v9664 = vpop.f32.mrb[0].mxu0
          %v9665 = vadd.f32 %v9376, %v9664
          %v9666 = vpop.f32.mrb[0].mxu0
          %v9667 = vpop.f32.mrb[0].mxu0
          %v9668 = vadd.f32 %v9379, %v9667
          %v9669 = vpop.f32.mrb[0].mxu0
          %9670 = vmatprep.mubr.bf16.mxu0 %v8455
          %9671 = vmatmul.mubr.bf16.gmra.mrb[0].mxu0 %v8454
          %v9672 = vpop.f32.mrb[0].mxu0
          %v9673 = vadd.f32 %v9384, %v9672
          %v9674 = vpop.f32.mrb[0].mxu0
          %v9675 = vpop.f32.mrb[0].mxu0
          %v9676 = vadd.f32 %v9387, %v9675
          %v9677 = vpop.f32.mrb[0].mxu0
          %9678 = vmatprep.mubr.bf16.mxu0 %v8465
          %9679 = vmatmul.mubr.bf16.gmra.mrb[0].mxu0 %v8464
          %v9680 = vpop.f32.mrb[0].mxu0
          %v9681 = vadd.f32 %v9392, %v9680
          %v9682 = vpop.f32.mrb[0].mxu0
          %v9683 = vpop.f32.mrb[0].mxu0
          %v9684 = vadd.f32 %v9395, %v9683
          %v9685 = vpop.f32.mrb[0].mxu0
          %9686 = vmatprep.mubr.bf16.mxu0 %v8475
          %9687 = vmatmul.mubr.bf16.gmra.mrb[0].mxu0 %v8474
          %v9688 = vpop.f32.mrb[0].mxu0
          %v9689 = vadd.f32 %v9400, %v9688
          %v9690 = vpop.f32.mrb[0].mxu0
          %v9691 = vpop.f32.mrb[0].mxu0
          %v9692 = vadd.f32 %v9403, %v9691
          %v9693 = vpop.f32.mrb[0].mxu0
          %9694 = vmatprep.mubr.bf16.mxu0 %v8485
          %9695 = vmatmul.mubr.bf16.gmra.mrb[0].mxu0 %v8484
          %v9696 = vpop.f32.mrb[0].mxu0
          %v9697 = vadd.f32 %v9408, %v9696
          %v9698 = vpop.f32.mrb[0].mxu0
          %v9699 = vpop.f32.mrb[0].mxu0
          %v9700 = vadd.f32 %v9411, %v9699
          %v9701 = vpop.f32.mrb[0].mxu0
          %9702 = vmatprep.mubr.bf16.mxu0 %v8495
          %9703 = vmatmul.mubr.bf16.gmra.mrb[0].mxu0 %v8494
          %v9704 = vpop.f32.mrb[0].mxu0
          %v9705 = vadd.f32 %v9416, %v9704
          %v9706 = vpop.f32.mrb[0].mxu0
          %v9707 = vpop.f32.mrb[0].mxu0
          %v9708 = vadd.f32 %v9419, %v9707
          %v9709 = vpop.f32.mrb[0].mxu0
          %9710 = vmatprep.mubr.bf16.mxu0 %v8505
          %9711 = vmatmul.mubr.bf16.gmra.mrb[0].mxu0 %v8504
          %v9712 = vpop.f32.mrb[0].mxu0
          %v9713 = vadd.f32 %v9424, %v9712
          %v9714 = vpop.f32.mrb[0].mxu0
          %v9715 = vpop.f32.mrb[0].mxu0
          %v9716 = vadd.f32 %v9427, %v9715
          %v9717 = vpop.f32.mrb[0].mxu0
          %9718 = vmatprep.mubr.bf16.mxu0 %v8515
          %9719 = vmatmul.mubr.bf16.gmra.mrb[0].mxu0 %v8514
          %v9720 = vpop.f32.mrb[0].mxu0
          %v9721 = vadd.f32 %v9432, %v9720
          %v9722 = vpop.f32.mrb[0].mxu0
          %v9723 = vpop.f32.mrb[0].mxu0
          %v9724 = vadd.f32 %v9435, %v9723
          %v9725 = vpop.f32.mrb[0].mxu0
          %9726 = vmatprep.mubr.bf16.mxu0 %v8525
          %9727 = vmatmul.mubr.bf16.gmra.mrb[0].mxu0 %v8524
          %v9728 = vpop.f32.mrb[0].mxu0
          %v9729 = vadd.f32 %v9440, %v9728
          %v9730 = vpop.f32.mrb[0].mxu0
          %v9731 = vpop.f32.mrb[0].mxu0
          %v9732 = vadd.f32 %v9443, %v9731
          %v9733 = vpop.f32.mrb[0].mxu0
          %9734 = vmatprep.mubr.bf16.mxu0 %v8535
          %9735 = vmatmul.mubr.bf16.gmra.mrb[0].mxu0 %v8534
          %v9736 = vpop.f32.mrb[0].mxu0
          %v9737 = vadd.f32 %v9448, %v9736
          %v9738 = vpop.f32.mrb[0].mxu0
          %v9739 = vpop.f32.mrb[0].mxu0
          %v9740 = vadd.f32 %v9451, %v9739
          %v9741 = vpop.f32.mrb[0].mxu0
          %9742 = vmatprep.mubr.bf16.mxu0 %v8545
          %9743 = vmatmul.mubr.bf16.gmra.mrb[0].mxu0 %v8544
          %v9744 = vpop.f32.mrb[0].mxu0
          %v9745 = vadd.f32 %v9456, %v9744
          %v9746 = vpop.f32.mrb[0].mxu0
          %v9747 = vpop.f32.mrb[0].mxu0
          %v9748 = vadd.f32 %v9459, %v9747
          %v9749 = vpop.f32.mrb[0].mxu0
          %9750 = vmatprep.mubr.bf16.mxu0 %v8555
          %9751 = vmatmul.mubr.bf16.gmra.mrb[0].mxu0 %v8554
          %v9752 = vpop.f32.mrb[0].mxu0
          %v9753 = vadd.f32 %v9464, %v9752
          %v9754 = vpop.f32.mrb[0].mxu0
          %v9755 = vpop.f32.mrb[0].mxu0
          %v9756 = vadd.f32 %v9467, %v9755
          %v9757 = vpop.f32.mrb[0].mxu0
          %9758 = vmatprep.mubr.bf16.mxu0 %v8565
          %9759 = vmatmul.mubr.bf16.gmra.mrb[0].mxu0 %v8564
          %v9760 = vpop.f32.mrb[0].mxu0
          %v9761 = vadd.f32 %v9472, %v9760
          %v9762 = vpop.f32.mrb[0].mxu0
          %v9763 = vpop.f32.mrb[0].mxu0
          %v9764 = vadd.f32 %v9475, %v9763
          %v9765 = vpop.f32.mrb[0].mxu0
          %9766 = vmatprep.mubr.bf16.mxu0 %v8575
          %9767 = vmatmul.mubr.bf16.gmra.mrb[0].mxu0 %v8574
          %v9768 = vpop.f32.mrb[0].mxu0
          %v9769 = vadd.f32 %v9480, %v9768
          %v9770 = vpop.f32.mrb[0].mxu0
          %v9771 = vpop.f32.mrb[0].mxu0
          %v9772 = vadd.f32 %v9483, %v9771
          %v9773 = vpop.f32.mrb[0].mxu0
          %9774 = vmatprep.mubr.bf16.mxu0 %v8585
          %9775 = vmatmul.mubr.bf16.gmra.mrb[0].mxu0 %v8584
          %v9776 = vpop.f32.mrb[0].mxu0
          %v9777 = vadd.f32 %v9488, %v9776
          %v9778 = vpop.f32.mrb[0].mxu0
          %v9779 = vpop.f32.mrb[0].mxu0
          %v9780 = vadd.f32 %v9491, %v9779
          %v9781 = vpop.f32.mrb[0].mxu0
          %9782 = vmatprep.mubr.bf16.mxu0 %v8595
          %9783 = vmatmul.mubr.bf16.gmra.mrb[0].mxu0 %v8594
          %v9784 = vpop.f32.mrb[0].mxu0
          %v9785 = vadd.f32 %v9496, %v9784
          %v9786 = vpop.f32.mrb[0].mxu0
          %v9787 = vpop.f32.mrb[0].mxu0
          %v9788 = vadd.f32 %v9499, %v9787
          %v9789 = vpop.f32.mrb[0].mxu0
          %9790 = vmatprep.mubr.bf16.mxu0 %v8605
          %9791 = vmatmul.mubr.bf16.gmra.mrb[0].mxu0 %v8604
          %v9792 = vpop.f32.mrb[0].mxu0
          %v9793 = vadd.f32 %v9504, %v9792
          %v9794 = vpop.f32.mrb[0].mxu0
          %v9795 = vpop.f32.mrb[0].mxu0
          %v9796 = vadd.f32 %v9507, %v9795
          %v9797 = vpop.f32.mrb[0].mxu0
          %9798 = vmatprep.mubr.bf16.mxu0 %v8615
          %9799 = vmatmul.mubr.bf16.gmra.mrb[0].mxu0 %v8614
          %v9800 = vpop.f32.mrb[0].mxu0
          %v9801 = vadd.f32 %v9512, %v9800
          %v9802 = vpop.f32.mrb[0].mxu0
          %v9803 = vpop.f32.mrb[0].mxu0
          %v9804 = vadd.f32 %v9515, %v9803
          %v9805 = vpop.f32.mrb[0].mxu0
          %9806 = vdwg.mxu0
          %9807 = vmatprep.subr.bf16.mxu0 0
          %9808 = vmatpush1.bf16.msra.mxu0 %v6924
          %9809 = vmatprep.subr.bf16.mxu0 0
          %9810 = vmatpush1.bf16.msra.mxu0 %v6925
          %9811 = vmatprep.subr.bf16.mxu0 0
          %9812 = vmatpush1.bf16.msra.mxu0 %v6926
          %9813 = vmatprep.subr.bf16.mxu0 0
          %9814 = vmatpush1.bf16.msra.mxu0 %v6927
          %9815 = vmatprep.subr.bf16.mxu0 0
          %9816 = vmatpush1.bf16.msra.mxu0 %v6928
          %9817 = vmatprep.subr.bf16.mxu0 0
          %9818 = vmatpush1.bf16.msra.mxu0 %v6929
          %9819 = vmatprep.subr.bf16.mxu0 0
          %9820 = vmatpush1.bf16.msra.mxu0 %v6930
          %9821 = vmatprep.subr.bf16.mxu0 0
          %9822 = vmatpush1.bf16.msra.mxu0 %v6931
          %9823 = vmatprep.subr.bf16.mxu0 0
          %9824 = vmatpush1.bf16.msra.mxu0 %v6932
          %9825 = vmatprep.subr.bf16.mxu0 0
          %9826 = vmatpush1.bf16.msra.mxu0 %v6933
          %9827 = vmatprep.subr.bf16.mxu0 0
          %9828 = vmatpush1.bf16.msra.mxu0 %v6934
          %9829 = vmatprep.subr.bf16.mxu0 0
          %9830 = vmatpush1.bf16.msra.mxu0 %v6935
          %9831 = vmatprep.subr.bf16.mxu0 0
          %9832 = vmatpush1.bf16.msra.mxu0 %v6936
          %9833 = vmatprep.subr.bf16.mxu0 0
          %9834 = vmatpush1.bf16.msra.mxu0 %v6937
          %9835 = vmatprep.subr.bf16.mxu0 0
          %9836 = vmatpush1.bf16.msra.mxu0 %v6938
          %9837 = vmatprep.subr.bf16.mxu0 0
          %9838 = vmatpush1.bf16.msra.mxu0 %v6939
          %9839 = vmatprep.mubr.bf16.mxu0 %v8307
          %9840 = vmatmul.mubr.bf16.gmra.mrb[0].mxu0 %v8306
          %v9841 = vpop.f32.mrb[0].mxu0
          %v9842 = vadd.f32 %v9553, %v9841
          %v9843 = vpop.f32.mrb[0].mxu0
          %v9844 = vpop.f32.mrb[0].mxu0
          %v9845 = vadd.f32 %v9556, %v9844
          %v9846 = vpop.f32.mrb[0].mxu0
          %9847 = vmatprep.mubr.bf16.mxu0 %v8317
          %9848 = vmatmul.mubr.bf16.gmra.mrb[0].mxu0 %v8316
          %v9849 = vpop.f32.mrb[0].mxu0
          %v9850 = vadd.f32 %v9561, %v9849
          %v9851 = vpop.f32.mrb[0].mxu0
          %v9852 = vpop.f32.mrb[0].mxu0
          %v9853 = vadd.f32 %v9564, %v9852
          %v9854 = vpop.f32.mrb[0].mxu0
          %9855 = vmatprep.mubr.bf16.mxu0 %v8327
          %9856 = vmatmul.mubr.bf16.gmra.mrb[0].mxu0 %v8326
          %v9857 = vpop.f32.mrb[0].mxu0
          %v9858 = vadd.f32 %v9569, %v9857
          %v9859 = vpop.f32.mrb[0].mxu0
          %v9860 = vpop.f32.mrb[0].mxu0
          %v9861 = vadd.f32 %v9572, %v9860
          %v9862 = vpop.f32.mrb[0].mxu0
          %9863 = vmatprep.mubr.bf16.mxu0 %v8337
          %9864 = vmatmul.mubr.bf16.gmra.mrb[0].mxu0 %v8336
          %v9865 = vpop.f32.mrb[0].mxu0
          %v9866 = vadd.f32 %v9577, %v9865
          %v9867 = vpop.f32.mrb[0].mxu0
          %v9868 = vpop.f32.mrb[0].mxu0
          %v9869 = vadd.f32 %v9580, %v9868
          %v9870 = vpop.f32.mrb[0].mxu0
          %9871 = vmatprep.mubr.bf16.mxu0 %v8347
          %9872 = vmatmul.mubr.bf16.gmra.mrb[0].mxu0 %v8346
          %v9873 = vpop.f32.mrb[0].mxu0
          %v9874 = vadd.f32 %v9585, %v9873
          %v9875 = vpop.f32.mrb[0].mxu0
          %v9876 = vpop.f32.mrb[0].mxu0
          %v9877 = vadd.f32 %v9588, %v9876
          %v9878 = vpop.f32.mrb[0].mxu0
          %9879 = vmatprep.mubr.bf16.mxu0 %v8357
          %9880 = vmatmul.mubr.bf16.gmra.mrb[0].mxu0 %v8356
          %v9881 = vpop.f32.mrb[0].mxu0
          %v9882 = vadd.f32 %v9593, %v9881
          %v9883 = vpop.f32.mrb[0].mxu0
          %v9884 = vpop.f32.mrb[0].mxu0
          %v9885 = vadd.f32 %v9596, %v9884
          %v9886 = vpop.f32.mrb[0].mxu0
          %9887 = vmatprep.mubr.bf16.mxu0 %v8367
          %9888 = vmatmul.mubr.bf16.gmra.mrb[0].mxu0 %v8366
          %v9889 = vpop.f32.mrb[0].mxu0
          %v9890 = vadd.f32 %v9601, %v9889
          %v9891 = vpop.f32.mrb[0].mxu0
          %v9892 = vpop.f32.mrb[0].mxu0
          %v9893 = vadd.f32 %v9604, %v9892
          %v9894 = vpop.f32.mrb[0].mxu0
          %9895 = vmatprep.mubr.bf16.mxu0 %v8377
          %9896 = vmatmul.mubr.bf16.gmra.mrb[0].mxu0 %v8376
          %v9897 = vpop.f32.mrb[0].mxu0
          %v9898 = vadd.f32 %v9609, %v9897
          %v9899 = vpop.f32.mrb[0].mxu0
          %v9900 = vpop.f32.mrb[0].mxu0
          %v9901 = vadd.f32 %v9612, %v9900
          %v9902 = vpop.f32.mrb[0].mxu0
          %9903 = vmatprep.mubr.bf16.mxu0 %v8387
          %9904 = vmatmul.mubr.bf16.gmra.mrb[0].mxu0 %v8386
          %v9905 = vpop.f32.mrb[0].mxu0
          %v9906 = vadd.f32 %v9617, %v9905
          %v9907 = vpop.f32.mrb[0].mxu0
          %v9908 = vpop.f32.mrb[0].mxu0
          %v9909 = vadd.f32 %v9620, %v9908
          %v9910 = vpop.f32.mrb[0].mxu0
          %9911 = vmatprep.mubr.bf16.mxu0 %v8397
          %9912 = vmatmul.mubr.bf16.gmra.mrb[0].mxu0 %v8396
          %v9913 = vpop.f32.mrb[0].mxu0
          %v9914 = vadd.f32 %v9625, %v9913
          %v9915 = vpop.f32.mrb[0].mxu0
          %v9916 = vpop.f32.mrb[0].mxu0
          %v9917 = vadd.f32 %v9628, %v9916
          %v9918 = vpop.f32.mrb[0].mxu0
          %9919 = vmatprep.mubr.bf16.mxu0 %v8407
          %9920 = vmatmul.mubr.bf16.gmra.mrb[0].mxu0 %v8406
          %v9921 = vpop.f32.mrb[0].mxu0
          %v9922 = vadd.f32 %v9633, %v9921
          %v9923 = vpop.f32.mrb[0].mxu0
          %v9924 = vpop.f32.mrb[0].mxu0
          %v9925 = vadd.f32 %v9636, %v9924
          %v9926 = vpop.f32.mrb[0].mxu0
          %9927 = vmatprep.mubr.bf16.mxu0 %v8417
          %9928 = vmatmul.mubr.bf16.gmra.mrb[0].mxu0 %v8416
          %v9929 = vpop.f32.mrb[0].mxu0
          %v9930 = vadd.f32 %v9641, %v9929
          %v9931 = vpop.f32.mrb[0].mxu0
          %v9932 = vpop.f32.mrb[0].mxu0
          %v9933 = vadd.f32 %v9644, %v9932
          %v9934 = vpop.f32.mrb[0].mxu0
          %9935 = vmatprep.mubr.bf16.mxu0 %v8427
          %9936 = vmatmul.mubr.bf16.gmra.mrb[0].mxu0 %v8426
          %v9937 = vpop.f32.mrb[0].mxu0
          %v9938 = vadd.f32 %v9649, %v9937
          %v9939 = vpop.f32.mrb[0].mxu0
          %v9940 = vpop.f32.mrb[0].mxu0
          %v9941 = vadd.f32 %v9652, %v9940
          %v9942 = vpop.f32.mrb[0].mxu0
          %9943 = vmatprep.mubr.bf16.mxu0 %v8437
          %9944 = vmatmul.mubr.bf16.gmra.mrb[0].mxu0 %v8436
          %v9945 = vpop.f32.mrb[0].mxu0
          %v9946 = vadd.f32 %v9657, %v9945
          %v9947 = vpop.f32.mrb[0].mxu0
          %v9948 = vpop.f32.mrb[0].mxu0
          %v9949 = vadd.f32 %v9660, %v9948
          %v9950 = vpop.f32.mrb[0].mxu0
          %9951 = vmatprep.mubr.bf16.mxu0 %v8447
          %9952 = vmatmul.mubr.bf16.gmra.mrb[0].mxu0 %v8446
          %v9953 = vpop.f32.mrb[0].mxu0
          %v9954 = vadd.f32 %v9665, %v9953
          %v9955 = vpop.f32.mrb[0].mxu0
          %v9956 = vpop.f32.mrb[0].mxu0
          %v9957 = vadd.f32 %v9668, %v9956
          %v9958 = vpop.f32.mrb[0].mxu0
          %9959 = vmatprep.mubr.bf16.mxu0 %v8457
          %9960 = vmatmul.mubr.bf16.gmra.mrb[0].mxu0 %v8456
          %v9961 = vpop.f32.mrb[0].mxu0
          %v9962 = vadd.f32 %v9673, %v9961
          %v9963 = vpop.f32.mrb[0].mxu0
          %v9964 = vpop.f32.mrb[0].mxu0
          %v9965 = vadd.f32 %v9676, %v9964
          %v9966 = vpop.f32.mrb[0].mxu0
          %9967 = vmatprep.mubr.bf16.mxu0 %v8467
          %9968 = vmatmul.mubr.bf16.gmra.mrb[0].mxu0 %v8466
          %v9969 = vpop.f32.mrb[0].mxu0
          %v9970 = vadd.f32 %v9681, %v9969
          %v9971 = vpop.f32.mrb[0].mxu0
          %v9972 = vpop.f32.mrb[0].mxu0
          %v9973 = vadd.f32 %v9684, %v9972
          %v9974 = vpop.f32.mrb[0].mxu0
          %9975 = vmatprep.mubr.bf16.mxu0 %v8477
          %9976 = vmatmul.mubr.bf16.gmra.mrb[0].mxu0 %v8476
          %v9977 = vpop.f32.mrb[0].mxu0
          %v9978 = vadd.f32 %v9689, %v9977
          %v9979 = vpop.f32.mrb[0].mxu0
          %v9980 = vpop.f32.mrb[0].mxu0
          %v9981 = vadd.f32 %v9692, %v9980
          %v9982 = vpop.f32.mrb[0].mxu0
          %9983 = vmatprep.mubr.bf16.mxu0 %v8487
          %9984 = vmatmul.mubr.bf16.gmra.mrb[0].mxu0 %v8486
          %v9985 = vpop.f32.mrb[0].mxu0
          %v9986 = vadd.f32 %v9697, %v9985
          %v9987 = vpop.f32.mrb[0].mxu0
          %v9988 = vpop.f32.mrb[0].mxu0
          %v9989 = vadd.f32 %v9700, %v9988
          %v9990 = vpop.f32.mrb[0].mxu0
          %9991 = vmatprep.mubr.bf16.mxu0 %v8497
          %9992 = vmatmul.mubr.bf16.gmra.mrb[0].mxu0 %v8496
          %v9993 = vpop.f32.mrb[0].mxu0
          %v9994 = vadd.f32 %v9705, %v9993
          %v9995 = vpop.f32.mrb[0].mxu0
          %v9996 = vpop.f32.mrb[0].mxu0
          %v9997 = vadd.f32 %v9708, %v9996
          %v9998 = vpop.f32.mrb[0].mxu0
          %9999 = vmatprep.mubr.bf16.mxu0 %v8507
          %10000 = vmatmul.mubr.bf16.gmra.mrb[0].mxu0 %v8506
          %v10001 = vpop.f32.mrb[0].mxu0
          %v10002 = vadd.f32 %v9713, %v10001
          %v10003 = vpop.f32.mrb[0].mxu0
          %v10004 = vpop.f32.mrb[0].mxu0
          %v10005 = vadd.f32 %v9716, %v10004
          %v10006 = vpop.f32.mrb[0].mxu0
          %10007 = vmatprep.mubr.bf16.mxu0 %v8517
          %10008 = vmatmul.mubr.bf16.gmra.mrb[0].mxu0 %v8516
          %v10009 = vpop.f32.mrb[0].mxu0
          %v10010 = vadd.f32 %v9721, %v10009
          %v10011 = vpop.f32.mrb[0].mxu0
          %v10012 = vpop.f32.mrb[0].mxu0
          %v10013 = vadd.f32 %v9724, %v10012
          %v10014 = vpop.f32.mrb[0].mxu0
          %10015 = vmatprep.mubr.bf16.mxu0 %v8527
          %10016 = vmatmul.mubr.bf16.gmra.mrb[0].mxu0 %v8526
          %v10017 = vpop.f32.mrb[0].mxu0
          %v10018 = vadd.f32 %v9729, %v10017
          %v10019 = vpop.f32.mrb[0].mxu0
          %v10020 = vpop.f32.mrb[0].mxu0
          %v10021 = vadd.f32 %v9732, %v10020
          %v10022 = vpop.f32.mrb[0].mxu0
          %10023 = vmatprep.mubr.bf16.mxu0 %v8537
          %10024 = vmatmul.mubr.bf16.gmra.mrb[0].mxu0 %v8536
          %v10025 = vpop.f32.mrb[0].mxu0
          %v10026 = vadd.f32 %v9737, %v10025
          %v10027 = vpop.f32.mrb[0].mxu0
          %v10028 = vpop.f32.mrb[0].mxu0
          %v10029 = vadd.f32 %v9740, %v10028
          %v10030 = vpop.f32.mrb[0].mxu0
          %10031 = vmatprep.mubr.bf16.mxu0 %v8547
          %10032 = vmatmul.mubr.bf16.gmra.mrb[0].mxu0 %v8546
          %v10033 = vpop.f32.mrb[0].mxu0
          %v10034 = vadd.f32 %v9745, %v10033
          %v10035 = vpop.f32.mrb[0].mxu0
          %v10036 = vpop.f32.mrb[0].mxu0
          %v10037 = vadd.f32 %v9748, %v10036
          %v10038 = vpop.f32.mrb[0].mxu0
          %10039 = vmatprep.mubr.bf16.mxu0 %v8557
          %10040 = vmatmul.mubr.bf16.gmra.mrb[0].mxu0 %v8556
          %v10041 = vpop.f32.mrb[0].mxu0
          %v10042 = vadd.f32 %v9753, %v10041
          %v10043 = vpop.f32.mrb[0].mxu0
          %v10044 = vpop.f32.mrb[0].mxu0
          %v10045 = vadd.f32 %v9756, %v10044
          %v10046 = vpop.f32.mrb[0].mxu0
          %10047 = vmatprep.mubr.bf16.mxu0 %v8567
          %10048 = vmatmul.mubr.bf16.gmra.mrb[0].mxu0 %v8566
          %v10049 = vpop.f32.mrb[0].mxu0
          %v10050 = vadd.f32 %v9761, %v10049
          %v10051 = vpop.f32.mrb[0].mxu0
          %v10052 = vpop.f32.mrb[0].mxu0
          %v10053 = vadd.f32 %v9764, %v10052
          %v10054 = vpop.f32.mrb[0].mxu0
          %10055 = vmatprep.mubr.bf16.mxu0 %v8577
          %10056 = vmatmul.mubr.bf16.gmra.mrb[0].mxu0 %v8576
          %v10057 = vpop.f32.mrb[0].mxu0
          %v10058 = vadd.f32 %v9769, %v10057
          %v10059 = vpop.f32.mrb[0].mxu0
          %v10060 = vpop.f32.mrb[0].mxu0
          %v10061 = vadd.f32 %v9772, %v10060
          %v10062 = vpop.f32.mrb[0].mxu0
          %10063 = vmatprep.mubr.bf16.mxu0 %v8587
          %10064 = vmatmul.mubr.bf16.gmra.mrb[0].mxu0 %v8586
          %v10065 = vpop.f32.mrb[0].mxu0
          %v10066 = vadd.f32 %v9777, %v10065
          %v10067 = vpop.f32.mrb[0].mxu0
          %v10068 = vpop.f32.mrb[0].mxu0
          %v10069 = vadd.f32 %v9780, %v10068
          %v10070 = vpop.f32.mrb[0].mxu0
          %10071 = vmatprep.mubr.bf16.mxu0 %v8597
          %10072 = vmatmul.mubr.bf16.gmra.mrb[0].mxu0 %v8596
          %v10073 = vpop.f32.mrb[0].mxu0
          %v10074 = vadd.f32 %v9785, %v10073
          %v10075 = vpop.f32.mrb[0].mxu0
          %v10076 = vpop.f32.mrb[0].mxu0
          %v10077 = vadd.f32 %v9788, %v10076
          %v10078 = vpop.f32.mrb[0].mxu0
          %10079 = vmatprep.mubr.bf16.mxu0 %v8607
          %10080 = vmatmul.mubr.bf16.gmra.mrb[0].mxu0 %v8606
          %v10081 = vpop.f32.mrb[0].mxu0
          %v10082 = vadd.f32 %v9793, %v10081
          %v10083 = vpop.f32.mrb[0].mxu0
          %v10084 = vpop.f32.mrb[0].mxu0
          %v10085 = vadd.f32 %v9796, %v10084
          %v10086 = vpop.f32.mrb[0].mxu0
          %10087 = vmatprep.mubr.bf16.mxu0 %v8617
          %10088 = vmatmul.mubr.bf16.gmra.mrb[0].mxu0 %v8616
          %v10089 = vpop.f32.mrb[0].mxu0
          %v10090 = vadd.f32 %v9801, %v10089
          %v10091 = vpop.f32.mrb[0].mxu0
          %v10092 = vpop.f32.mrb[0].mxu0
          %v10093 = vadd.f32 %v9804, %v10092
          %v10094 = vpop.f32.mrb[0].mxu0
          %10095 = vdwg.mxu0
          %10096 = vmatprep.subr.bf16.mxu0 0
          %10097 = vmatpush1.bf16.msra.mxu0 %v6940
          %10098 = vmatprep.subr.bf16.mxu0 0
          %10099 = vmatpush1.bf16.msra.mxu0 %v6941
          %10100 = vmatprep.subr.bf16.mxu0 0
          %10101 = vmatpush1.bf16.msra.mxu0 %v6942
          %10102 = vmatprep.subr.bf16.mxu0 0
          %10103 = vmatpush1.bf16.msra.mxu0 %v6943
          %10104 = vmatprep.subr.bf16.mxu0 0
          %10105 = vmatpush1.bf16.msra.mxu0 %v6944
          %10106 = vmatprep.subr.bf16.mxu0 0
          %10107 = vmatpush1.bf16.msra.mxu0 %v6945
          %10108 = vmatprep.subr.bf16.mxu0 0
          %10109 = vmatpush1.bf16.msra.mxu0 %v6946
          %10110 = vmatprep.subr.bf16.mxu0 0
          %10111 = vmatpush1.bf16.msra.mxu0 %v6947
          %10112 = vmatprep.subr.bf16.mxu0 0
          %10113 = vmatpush1.bf16.msra.mxu0 %v6948
          %10114 = vmatprep.subr.bf16.mxu0 0
          %10115 = vmatpush1.bf16.msra.mxu0 %v6949
          %10116 = vmatprep.subr.bf16.mxu0 0
          %10117 = vmatpush1.bf16.msra.mxu0 %v6950
          %10118 = vmatprep.subr.bf16.mxu0 0
          %10119 = vmatpush1.bf16.msra.mxu0 %v6951
          %10120 = vmatprep.subr.bf16.mxu0 0
          %10121 = vmatpush1.bf16.msra.mxu0 %v6952
          %10122 = vmatprep.subr.bf16.mxu0 0
          %10123 = vmatpush1.bf16.msra.mxu0 %v6953
          %10124 = vmatprep.subr.bf16.mxu0 0
          %10125 = vmatpush1.bf16.msra.mxu0 %v6954
          %10126 = vmatprep.subr.bf16.mxu0 0
          %10127 = vmatpush1.bf16.msra.mxu0 %v6955
          %10128 = vmatprep.mubr.bf16.mxu0 %v8309
          %10129 = vmatmul.mubr.bf16.gmra.mrb[0].mxu0 %v8308
          %v10130 = vpop.f32.mrb[0].mxu0
          %v10131 = vadd.f32 %v9842, %v10130
          %v10132 = vpop.f32.mrb[0].mxu0
          %v10133 = vpop.f32.mrb[0].mxu0
          %v10134 = vadd.f32 %v9845, %v10133
          %v10135 = vpop.f32.mrb[0].mxu0
          %10136 = vmatprep.mubr.bf16.mxu0 %v8319
          %10137 = vmatmul.mubr.bf16.gmra.mrb[0].mxu0 %v8318
          %v10138 = vpop.f32.mrb[0].mxu0
          %v10139 = vadd.f32 %v9850, %v10138
          %v10140 = vpop.f32.mrb[0].mxu0
          %v10141 = vpop.f32.mrb[0].mxu0
          %v10142 = vadd.f32 %v9853, %v10141
          %v10143 = vpop.f32.mrb[0].mxu0
          %10144 = vmatprep.mubr.bf16.mxu0 %v8329
          %10145 = vmatmul.mubr.bf16.gmra.mrb[0].mxu0 %v8328
          %v10146 = vpop.f32.mrb[0].mxu0
          %v10147 = vadd.f32 %v9858, %v10146
          %v10148 = vpop.f32.mrb[0].mxu0
          %v10149 = vpop.f32.mrb[0].mxu0
          %v10150 = vadd.f32 %v9861, %v10149
          %v10151 = vpop.f32.mrb[0].mxu0
          %10152 = vmatprep.mubr.bf16.mxu0 %v8339
          %10153 = vmatmul.mubr.bf16.gmra.mrb[0].mxu0 %v8338
          %v10154 = vpop.f32.mrb[0].mxu0
          %v10155 = vadd.f32 %v9866, %v10154
          %v10156 = vpop.f32.mrb[0].mxu0
          %v10157 = vpop.f32.mrb[0].mxu0
          %v10158 = vadd.f32 %v9869, %v10157
          %v10159 = vpop.f32.mrb[0].mxu0
          %10160 = vmatprep.mubr.bf16.mxu0 %v8349
          %10161 = vmatmul.mubr.bf16.gmra.mrb[0].mxu0 %v8348
          %v10162 = vpop.f32.mrb[0].mxu0
          %v10163 = vadd.f32 %v9874, %v10162
          %v10164 = vpop.f32.mrb[0].mxu0
          %v10165 = vpop.f32.mrb[0].mxu0
          %v10166 = vadd.f32 %v9877, %v10165
          %v10167 = vpop.f32.mrb[0].mxu0
          %10168 = vmatprep.mubr.bf16.mxu0 %v8359
          %10169 = vmatmul.mubr.bf16.gmra.mrb[0].mxu0 %v8358
          %v10170 = vpop.f32.mrb[0].mxu0
          %v10171 = vadd.f32 %v9882, %v10170
          %v10172 = vpop.f32.mrb[0].mxu0
          %v10173 = vpop.f32.mrb[0].mxu0
          %v10174 = vadd.f32 %v9885, %v10173
          %v10175 = vpop.f32.mrb[0].mxu0
          %10176 = vmatprep.mubr.bf16.mxu0 %v8369
          %10177 = vmatmul.mubr.bf16.gmra.mrb[0].mxu0 %v8368
          %v10178 = vpop.f32.mrb[0].mxu0
          %v10179 = vadd.f32 %v9890, %v10178
          %v10180 = vpop.f32.mrb[0].mxu0
          %v10181 = vpop.f32.mrb[0].mxu0
          %v10182 = vadd.f32 %v9893, %v10181
          %v10183 = vpop.f32.mrb[0].mxu0
          %10184 = vmatprep.mubr.bf16.mxu0 %v8379
          %10185 = vmatmul.mubr.bf16.gmra.mrb[0].mxu0 %v8378
          %v10186 = vpop.f32.mrb[0].mxu0
          %v10187 = vadd.f32 %v9898, %v10186
          %v10188 = vpop.f32.mrb[0].mxu0
          %v10189 = vpop.f32.mrb[0].mxu0
          %v10190 = vadd.f32 %v9901, %v10189
          %v10191 = vpop.f32.mrb[0].mxu0
          %10192 = vmatprep.mubr.bf16.mxu0 %v8389
          %10193 = vmatmul.mubr.bf16.gmra.mrb[0].mxu0 %v8388
          %v10194 = vpop.f32.mrb[0].mxu0
          %v10195 = vadd.f32 %v9906, %v10194
          %v10196 = vpop.f32.mrb[0].mxu0
          %v10197 = vpop.f32.mrb[0].mxu0
          %v10198 = vadd.f32 %v9909, %v10197
          %v10199 = vpop.f32.mrb[0].mxu0
          %10200 = vmatprep.mubr.bf16.mxu0 %v8399
          %10201 = vmatmul.mubr.bf16.gmra.mrb[0].mxu0 %v8398
          %v10202 = vpop.f32.mrb[0].mxu0
          %v10203 = vadd.f32 %v9914, %v10202
          %v10204 = vpop.f32.mrb[0].mxu0
          %v10205 = vpop.f32.mrb[0].mxu0
          %v10206 = vadd.f32 %v9917, %v10205
          %v10207 = vpop.f32.mrb[0].mxu0
          %10208 = vmatprep.mubr.bf16.mxu0 %v8409
          %10209 = vmatmul.mubr.bf16.gmra.mrb[0].mxu0 %v8408
          %v10210 = vpop.f32.mrb[0].mxu0
          %v10211 = vadd.f32 %v9922, %v10210
          %v10212 = vpop.f32.mrb[0].mxu0
          %v10213 = vpop.f32.mrb[0].mxu0
          %v10214 = vadd.f32 %v9925, %v10213
          %v10215 = vpop.f32.mrb[0].mxu0
          %10216 = vmatprep.mubr.bf16.mxu0 %v8419
          %10217 = vmatmul.mubr.bf16.gmra.mrb[0].mxu0 %v8418
          %v10218 = vpop.f32.mrb[0].mxu0
          %v10219 = vadd.f32 %v9930, %v10218
          %v10220 = vpop.f32.mrb[0].mxu0
          %v10221 = vpop.f32.mrb[0].mxu0
          %v10222 = vadd.f32 %v9933, %v10221
          %v10223 = vpop.f32.mrb[0].mxu0
          %10224 = vmatprep.mubr.bf16.mxu0 %v8429
          %10225 = vmatmul.mubr.bf16.gmra.mrb[0].mxu0 %v8428
          %v10226 = vpop.f32.mrb[0].mxu0
          %v10227 = vadd.f32 %v9938, %v10226
          %v10228 = vpop.f32.mrb[0].mxu0
          %v10229 = vpop.f32.mrb[0].mxu0
          %v10230 = vadd.f32 %v9941, %v10229
          %v10231 = vpop.f32.mrb[0].mxu0
          %10232 = vmatprep.mubr.bf16.mxu0 %v8439
          %10233 = vmatmul.mubr.bf16.gmra.mrb[0].mxu0 %v8438
          %v10234 = vpop.f32.mrb[0].mxu0
          %v10235 = vadd.f32 %v9946, %v10234
          %v10236 = vpop.f32.mrb[0].mxu0
          %v10237 = vpop.f32.mrb[0].mxu0
          %v10238 = vadd.f32 %v9949, %v10237
          %v10239 = vpop.f32.mrb[0].mxu0
          %10240 = vmatprep.mubr.bf16.mxu0 %v8449
          %10241 = vmatmul.mubr.bf16.gmra.mrb[0].mxu0 %v8448
          %v10242 = vpop.f32.mrb[0].mxu0
          %v10243 = vadd.f32 %v9954, %v10242
          %v10244 = vpop.f32.mrb[0].mxu0
          %v10245 = vpop.f32.mrb[0].mxu0
          %v10246 = vadd.f32 %v9957, %v10245
          %v10247 = vpop.f32.mrb[0].mxu0
          %10248 = vmatprep.mubr.bf16.mxu0 %v8459
          %10249 = vmatmul.mubr.bf16.gmra.mrb[0].mxu0 %v8458
          %v10250 = vpop.f32.mrb[0].mxu0
          %v10251 = vadd.f32 %v9962, %v10250
          %v10252 = vpop.f32.mrb[0].mxu0
          %v10253 = vpop.f32.mrb[0].mxu0
          %v10254 = vadd.f32 %v9965, %v10253
          %v10255 = vpop.f32.mrb[0].mxu0
          %10256 = vmatprep.mubr.bf16.mxu0 %v8469
          %10257 = vmatmul.mubr.bf16.gmra.mrb[0].mxu0 %v8468
          %v10258 = vpop.f32.mrb[0].mxu0
          %v10259 = vadd.f32 %v9970, %v10258
          %v10260 = vpop.f32.mrb[0].mxu0
          %v10261 = vpop.f32.mrb[0].mxu0
          %v10262 = vadd.f32 %v9973, %v10261
          %v10263 = vpop.f32.mrb[0].mxu0
          %10264 = vmatprep.mubr.bf16.mxu0 %v8479
          %10265 = vmatmul.mubr.bf16.gmra.mrb[0].mxu0 %v8478
          %v10266 = vpop.f32.mrb[0].mxu0
          %v10267 = vadd.f32 %v9978, %v10266
          %v10268 = vpop.f32.mrb[0].mxu0
          %v10269 = vpop.f32.mrb[0].mxu0
          %v10270 = vadd.f32 %v9981, %v10269
          %v10271 = vpop.f32.mrb[0].mxu0
          %10272 = vmatprep.mubr.bf16.mxu0 %v8489
          %10273 = vmatmul.mubr.bf16.gmra.mrb[0].mxu0 %v8488
          %v10274 = vpop.f32.mrb[0].mxu0
          %v10275 = vadd.f32 %v9986, %v10274
          %v10276 = vpop.f32.mrb[0].mxu0
          %v10277 = vpop.f32.mrb[0].mxu0
          %v10278 = vadd.f32 %v9989, %v10277
          %v10279 = vpop.f32.mrb[0].mxu0
          %10280 = vmatprep.mubr.bf16.mxu0 %v8499
          %10281 = vmatmul.mubr.bf16.gmra.mrb[0].mxu0 %v8498
          %v10282 = vpop.f32.mrb[0].mxu0
          %v10283 = vadd.f32 %v9994, %v10282
          %v10284 = vpop.f32.mrb[0].mxu0
          %v10285 = vpop.f32.mrb[0].mxu0
          %v10286 = vadd.f32 %v9997, %v10285
          %v10287 = vpop.f32.mrb[0].mxu0
          %10288 = vmatprep.mubr.bf16.mxu0 %v8509
          %10289 = vmatmul.mubr.bf16.gmra.mrb[0].mxu0 %v8508
          %v10290 = vpop.f32.mrb[0].mxu0
          %v10291 = vadd.f32 %v10002, %v10290
          %v10292 = vpop.f32.mrb[0].mxu0
          %v10293 = vpop.f32.mrb[0].mxu0
          %v10294 = vadd.f32 %v10005, %v10293
          %v10295 = vpop.f32.mrb[0].mxu0
          %10296 = vmatprep.mubr.bf16.mxu0 %v8519
          %10297 = vmatmul.mubr.bf16.gmra.mrb[0].mxu0 %v8518
          %v10298 = vpop.f32.mrb[0].mxu0
          %v10299 = vadd.f32 %v10010, %v10298
          %v10300 = vpop.f32.mrb[0].mxu0
          %v10301 = vpop.f32.mrb[0].mxu0
          %v10302 = vadd.f32 %v10013, %v10301
          %v10303 = vpop.f32.mrb[0].mxu0
          %10304 = vmatprep.mubr.bf16.mxu0 %v8529
          %10305 = vmatmul.mubr.bf16.gmra.mrb[0].mxu0 %v8528
          %v10306 = vpop.f32.mrb[0].mxu0
          %v10307 = vadd.f32 %v10018, %v10306
          %v10308 = vpop.f32.mrb[0].mxu0
          %v10309 = vpop.f32.mrb[0].mxu0
          %v10310 = vadd.f32 %v10021, %v10309
          %v10311 = vpop.f32.mrb[0].mxu0
          %10312 = vmatprep.mubr.bf16.mxu0 %v8539
          %10313 = vmatmul.mubr.bf16.gmra.mrb[0].mxu0 %v8538
          %v10314 = vpop.f32.mrb[0].mxu0
          %v10315 = vadd.f32 %v10026, %v10314
          %v10316 = vpop.f32.mrb[0].mxu0
          %v10317 = vpop.f32.mrb[0].mxu0
          %v10318 = vadd.f32 %v10029, %v10317
          %v10319 = vpop.f32.mrb[0].mxu0
          %10320 = vmatprep.mubr.bf16.mxu0 %v8549
          %10321 = vmatmul.mubr.bf16.gmra.mrb[0].mxu0 %v8548
          %v10322 = vpop.f32.mrb[0].mxu0
          %v10323 = vadd.f32 %v10034, %v10322
          %v10324 = vpop.f32.mrb[0].mxu0
          %v10325 = vpop.f32.mrb[0].mxu0
          %v10326 = vadd.f32 %v10037, %v10325
          %v10327 = vpop.f32.mrb[0].mxu0
          %10328 = vmatprep.mubr.bf16.mxu0 %v8559
          %10329 = vmatmul.mubr.bf16.gmra.mrb[0].mxu0 %v8558
          %v10330 = vpop.f32.mrb[0].mxu0
          %v10331 = vadd.f32 %v10042, %v10330
          %v10332 = vpop.f32.mrb[0].mxu0
          %v10333 = vpop.f32.mrb[0].mxu0
          %v10334 = vadd.f32 %v10045, %v10333
          %v10335 = vpop.f32.mrb[0].mxu0
          %10336 = vmatprep.mubr.bf16.mxu0 %v8569
          %10337 = vmatmul.mubr.bf16.gmra.mrb[0].mxu0 %v8568
          %v10338 = vpop.f32.mrb[0].mxu0
          %v10339 = vadd.f32 %v10050, %v10338
          %v10340 = vpop.f32.mrb[0].mxu0
          %v10341 = vpop.f32.mrb[0].mxu0
          %v10342 = vadd.f32 %v10053, %v10341
          %v10343 = vpop.f32.mrb[0].mxu0
          %10344 = vmatprep.mubr.bf16.mxu0 %v8579
          %10345 = vmatmul.mubr.bf16.gmra.mrb[0].mxu0 %v8578
          %v10346 = vpop.f32.mrb[0].mxu0
          %v10347 = vadd.f32 %v10058, %v10346
          %v10348 = vpop.f32.mrb[0].mxu0
          %v10349 = vpop.f32.mrb[0].mxu0
          %v10350 = vadd.f32 %v10061, %v10349
          %v10351 = vpop.f32.mrb[0].mxu0
          %10352 = vmatprep.mubr.bf16.mxu0 %v8589
          %10353 = vmatmul.mubr.bf16.gmra.mrb[0].mxu0 %v8588
          %v10354 = vpop.f32.mrb[0].mxu0
          %v10355 = vadd.f32 %v10066, %v10354
          %v10356 = vpop.f32.mrb[0].mxu0
          %v10357 = vpop.f32.mrb[0].mxu0
          %v10358 = vadd.f32 %v10069, %v10357
          %v10359 = vpop.f32.mrb[0].mxu0
          %10360 = vmatprep.mubr.bf16.mxu0 %v8599
          %10361 = vmatmul.mubr.bf16.gmra.mrb[0].mxu0 %v8598
          %v10362 = vpop.f32.mrb[0].mxu0
          %v10363 = vadd.f32 %v10074, %v10362
          %v10364 = vpop.f32.mrb[0].mxu0
          %v10365 = vpop.f32.mrb[0].mxu0
          %v10366 = vadd.f32 %v10077, %v10365
          %v10367 = vpop.f32.mrb[0].mxu0
          %10368 = vmatprep.mubr.bf16.mxu0 %v8609
          %10369 = vmatmul.mubr.bf16.gmra.mrb[0].mxu0 %v8608
          %v10370 = vpop.f32.mrb[0].mxu0
          %v10371 = vadd.f32 %v10082, %v10370
          %v10372 = vpop.f32.mrb[0].mxu0
          %v10373 = vpop.f32.mrb[0].mxu0
          %v10374 = vadd.f32 %v10085, %v10373
          %v10375 = vpop.f32.mrb[0].mxu0
          %10376 = vmatprep.mubr.bf16.mxu0 %v8619
          %10377 = vmatmul.mubr.bf16.gmra.mrb[0].mxu0 %v8618
          %v10378 = vpop.f32.mrb[0].mxu0
          %v10379 = vadd.f32 %v10090, %v10378
          %v10380 = vpop.f32.mrb[0].mxu0
          %v10381 = vpop.f32.mrb[0].mxu0
          %v10382 = vadd.f32 %v10093, %v10381
          %v10383 = vpop.f32.mrb[0].mxu0
          %10384 = vdwg.mxu0
          %v10385 = vmax.f32 %v10131, 0.0
          %v10386 = vmax.f32 %v10134, 0.0
          %v10387 = vmax.f32 %v10139, 0.0
          %v10388 = vmax.f32 %v10142, 0.0
          %v10389 = vmax.f32 %v10147, 0.0
          %v10390 = vmax.f32 %v10150, 0.0
          %v10391 = vmax.f32 %v10155, 0.0
          %v10392 = vmax.f32 %v10158, 0.0
          %v10393 = vmax.f32 %v10163, 0.0
          %v10394 = vmax.f32 %v10166, 0.0
          %v10395 = vmax.f32 %v10171, 0.0
          %v10396 = vmax.f32 %v10174, 0.0
          %v10397 = vmax.f32 %v10179, 0.0
          %v10398 = vmax.f32 %v10182, 0.0
          %v10399 = vmax.f32 %v10187, 0.0
          %v10400 = vmax.f32 %v10190, 0.0
          %v10401 = vmax.f32 %v10195, 0.0
          %v10402 = vmax.f32 %v10198, 0.0
          %v10403 = vmax.f32 %v10203, 0.0
          %v10404 = vmax.f32 %v10206, 0.0
          %v10405 = vmax.f32 %v10211, 0.0
          %v10406 = vmax.f32 %v10214, 0.0
          %v10407 = vmax.f32 %v10219, 0.0
          %v10408 = vmax.f32 %v10222, 0.0
          %v10409 = vmax.f32 %v10227, 0.0
          %v10410 = vmax.f32 %v10230, 0.0
          %v10411 = vmax.f32 %v10235, 0.0
          %v10412 = vmax.f32 %v10238, 0.0
          %v10413 = vmax.f32 %v10243, 0.0
          %v10414 = vmax.f32 %v10246, 0.0
          %v10415 = vmax.f32 %v10251, 0.0
          %v10416 = vmax.f32 %v10254, 0.0
          %v10417 = vmax.f32 %v10259, 0.0
          %v10418 = vmax.f32 %v10262, 0.0
          %v10419 = vmax.f32 %v10267, 0.0
          %v10420 = vmax.f32 %v10270, 0.0
          %v10421 = vmax.f32 %v10275, 0.0
          %v10422 = vmax.f32 %v10278, 0.0
          %v10423 = vmax.f32 %v10283, 0.0
          %v10424 = vmax.f32 %v10286, 0.0
          %v10425 = vmax.f32 %v10291, 0.0
          %v10426 = vmax.f32 %v10294, 0.0
          %v10427 = vmax.f32 %v10299, 0.0
          %v10428 = vmax.f32 %v10302, 0.0
          %v10429 = vmax.f32 %v10307, 0.0
          %v10430 = vmax.f32 %v10310, 0.0
          %v10431 = vmax.f32 %v10315, 0.0
          %v10432 = vmax.f32 %v10318, 0.0
          %v10433 = vmax.f32 %v10323, 0.0
          %v10434 = vmax.f32 %v10326, 0.0
          %v10435 = vmax.f32 %v10331, 0.0
          %v10436 = vmax.f32 %v10334, 0.0
          %v10437 = vmax.f32 %v10339, 0.0
          %v10438 = vmax.f32 %v10342, 0.0
          %v10439 = vmax.f32 %v10347, 0.0
          %v10440 = vmax.f32 %v10350, 0.0
          %v10441 = vmax.f32 %v10355, 0.0
          %v10442 = vmax.f32 %v10358, 0.0
          %v10443 = vmax.f32 %v10363, 0.0
          %v10444 = vmax.f32 %v10366, 0.0
          %v10445 = vmax.f32 %v10371, 0.0
          %v10446 = vmax.f32 %v10374, 0.0
          %v10447 = vmax.f32 %v10379, 0.0
          %v10448 = vmax.f32 %v10382, 0.0
          %v10449 = vpack.c.bf16 %v10386, %v10385
          %v10450 = vpack.c.bf16 %v10388, %v10387
          %v10451 = vpack.c.bf16 %v10390, %v10389
          %v10452 = vpack.c.bf16 %v10392, %v10391
          %v10453 = vpack.c.bf16 %v10394, %v10393
          %v10454 = vpack.c.bf16 %v10396, %v10395
          %v10455 = vpack.c.bf16 %v10398, %v10397
          %v10456 = vpack.c.bf16 %v10400, %v10399
          %v10457 = vpack.c.bf16 %v10402, %v10401
          %v10458 = vpack.c.bf16 %v10404, %v10403
          %v10459 = vpack.c.bf16 %v10406, %v10405
          %v10460 = vpack.c.bf16 %v10408, %v10407
          %v10461 = vpack.c.bf16 %v10410, %v10409
          %v10462 = vpack.c.bf16 %v10412, %v10411
          %v10463 = vpack.c.bf16 %v10414, %v10413
          %v10464 = vpack.c.bf16 %v10416, %v10415
          %v10465 = vpack.c.bf16 %v10418, %v10417
          %v10466 = vpack.c.bf16 %v10420, %v10419
          %v10467 = vpack.c.bf16 %v10422, %v10421
          %v10468 = vpack.c.bf16 %v10424, %v10423
          %v10469 = vpack.c.bf16 %v10426, %v10425
          %v10470 = vpack.c.bf16 %v10428, %v10427
          %v10471 = vpack.c.bf16 %v10430, %v10429
          %v10472 = vpack.c.bf16 %v10432, %v10431
          %v10473 = vpack.c.bf16 %v10434, %v10433
          %v10474 = vpack.c.bf16 %v10436, %v10435
          %v10475 = vpack.c.bf16 %v10438, %v10437
          %v10476 = vpack.c.bf16 %v10440, %v10439
          %v10477 = vpack.c.bf16 %v10442, %v10441
          %v10478 = vpack.c.bf16 %v10444, %v10443
          %v10479 = vpack.c.bf16 %v10446, %v10445
          %v10480 = vpack.c.bf16 %v10448, %v10447
          %v10481 = vld [vmem:[%s5] sm:$0xff]
          %v10482 = vld [vmem:[%s5 + $0x8] sm:$0xff]
          %v10483 = vld [vmem:[%s5 + $0x10] sm:$0xff]
          %v10484 = vld [vmem:[%s5 + $0x18] sm:$0xff]
          %v10485 = vld [vmem:[%s5 + $0x20] sm:$0xff]
          %v10486 = vld [vmem:[%s5 + $0x28] sm:$0xff]
          %v10487 = vld [vmem:[%s5 + $0x30] sm:$0xff]
          %v10488 = vld [vmem:[%s5 + $0x38] sm:$0xff]
          %v10489 = vld [vmem:[%s5 + $0x40] sm:$0xff]
          %v10490 = vld [vmem:[%s5 + $0x48] sm:$0xff]
          %v10491 = vld [vmem:[%s5 + $0x50] sm:$0xff]
          %v10492 = vld [vmem:[%s5 + $0x58] sm:$0xff]
          %v10493 = vld [vmem:[%s5 + $0x60] sm:$0xff]
          %v10494 = vld [vmem:[%s5 + $0x68] sm:$0xff]
          %v10495 = vld [vmem:[%s5 + $0x70] sm:$0xff]
          %v10496 = vld [vmem:[%s5 + $0x78] sm:$0xff]
          %v10497 = vld [vmem:[%s5 + $0x80] sm:$0xff]
          %v10498 = vld [vmem:[%s5 + $0x88] sm:$0xff]
          %v10499 = vld [vmem:[%s5 + $0x90] sm:$0xff]
          %v10500 = vld [vmem:[%s5 + $0x98] sm:$0xff]
          %v10501 = vld [vmem:[%s5 + $0xa0] sm:$0xff]
          %v10502 = vld [vmem:[%s5 + $0xa8] sm:$0xff]
          %v10503 = vld [vmem:[%s5 + $0xb0] sm:$0xff]
          %v10504 = vld [vmem:[%s5 + $0xb8] sm:$0xff]
          %v10505 = vld [vmem:[%s5 + $0xc0] sm:$0xff]
          %v10506 = vld [vmem:[%s5 + $0xc8] sm:$0xff]
          %v10507 = vld [vmem:[%s5 + $0xd0] sm:$0xff]
          %v10508 = vld [vmem:[%s5 + $0xd8] sm:$0xff]
          %v10509 = vld [vmem:[%s5 + $0xe0] sm:$0xff]
          %v10510 = vld [vmem:[%s5 + $0xe8] sm:$0xff]
          %v10511 = vld [vmem:[%s5 + $0xf0] sm:$0xff]
          %v10512 = vld [vmem:[%s5 + $0xf8] sm:$0xff]
          %v10513 = vld [vmem:[%s5 + $0x100] sm:$0xff]
          %v10514 = vld [vmem:[%s5 + $0x108] sm:$0xff]
          %v10515 = vld [vmem:[%s5 + $0x110] sm:$0xff]
          %v10516 = vld [vmem:[%s5 + $0x118] sm:$0xff]
          %v10517 = vld [vmem:[%s5 + $0x120] sm:$0xff]
          %v10518 = vld [vmem:[%s5 + $0x128] sm:$0xff]
          %v10519 = vld [vmem:[%s5 + $0x130] sm:$0xff]
          %v10520 = vld [vmem:[%s5 + $0x138] sm:$0xff]
          %v10521 = vld [vmem:[%s5 + $0x140] sm:$0xff]
          %v10522 = vld [vmem:[%s5 + $0x148] sm:$0xff]
          %v10523 = vld [vmem:[%s5 + $0x150] sm:$0xff]
          %v10524 = vld [vmem:[%s5 + $0x158] sm:$0xff]
          %v10525 = vld [vmem:[%s5 + $0x160] sm:$0xff]
          %v10526 = vld [vmem:[%s5 + $0x168] sm:$0xff]
          %v10527 = vld [vmem:[%s5 + $0x170] sm:$0xff]
          %v10528 = vld [vmem:[%s5 + $0x178] sm:$0xff]
          %v10529 = vld [vmem:[%s5 + $0x180] sm:$0xff]
          %v10530 = vld [vmem:[%s5 + $0x188] sm:$0xff]
          %v10531 = vld [vmem:[%s5 + $0x190] sm:$0xff]
          %v10532 = vld [vmem:[%s5 + $0x198] sm:$0xff]
          %v10533 = vld [vmem:[%s5 + $0x1a0] sm:$0xff]
          %v10534 = vld [vmem:[%s5 + $0x1a8] sm:$0xff]
          %v10535 = vld [vmem:[%s5 + $0x1b0] sm:$0xff]
          %v10536 = vld [vmem:[%s5 + $0x1b8] sm:$0xff]
          %v10537 = vld [vmem:[%s5 + $0x1c0] sm:$0xff]
          %v10538 = vld [vmem:[%s5 + $0x1c8] sm:$0xff]
          %v10539 = vld [vmem:[%s5 + $0x1d0] sm:$0xff]
          %v10540 = vld [vmem:[%s5 + $0x1d8] sm:$0xff]
          %v10541 = vld [vmem:[%s5 + $0x1e0] sm:$0xff]
          %v10542 = vld [vmem:[%s5 + $0x1e8] sm:$0xff]
          %v10543 = vld [vmem:[%s5 + $0x1f0] sm:$0xff]
          %v10544 = vld [vmem:[%s5 + $0x1f8] sm:$0xff]
          %v10545 = vld [vmem:[%s6] sm:$0xff]
          %v10546 = vld [vmem:[%s6 + $0x8] sm:$0xff]
          %v10547 = vld [vmem:[%s6 + $0x10] sm:$0xff]
          %v10548 = vld [vmem:[%s6 + $0x18] sm:$0xff]
          %v10549 = vld [vmem:[%s6 + $0x20] sm:$0xff]
          %v10550 = vld [vmem:[%s6 + $0x28] sm:$0xff]
          %v10551 = vld [vmem:[%s6 + $0x30] sm:$0xff]
          %v10552 = vld [vmem:[%s6 + $0x38] sm:$0xff]
          %v10553 = vld [vmem:[%s6 + $0x40] sm:$0xff]
          %v10554 = vld [vmem:[%s6 + $0x48] sm:$0xff]
          %v10555 = vld [vmem:[%s6 + $0x50] sm:$0xff]
          %v10556 = vld [vmem:[%s6 + $0x58] sm:$0xff]
          %v10557 = vld [vmem:[%s6 + $0x60] sm:$0xff]
          %v10558 = vld [vmem:[%s6 + $0x68] sm:$0xff]
          %v10559 = vld [vmem:[%s6 + $0x70] sm:$0xff]
          %v10560 = vld [vmem:[%s6 + $0x78] sm:$0xff]
          %v10561 = vld [vmem:[%s6 + $0x80] sm:$0xff]
          %v10562 = vld [vmem:[%s6 + $0x88] sm:$0xff]
          %v10563 = vld [vmem:[%s6 + $0x90] sm:$0xff]
          %v10564 = vld [vmem:[%s6 + $0x98] sm:$0xff]
          %v10565 = vld [vmem:[%s6 + $0xa0] sm:$0xff]
          %v10566 = vld [vmem:[%s6 + $0xa8] sm:$0xff]
          %v10567 = vld [vmem:[%s6 + $0xb0] sm:$0xff]
          %v10568 = vld [vmem:[%s6 + $0xb8] sm:$0xff]
          %v10569 = vld [vmem:[%s6 + $0xc0] sm:$0xff]
          %v10570 = vld [vmem:[%s6 + $0xc8] sm:$0xff]
          %v10571 = vld [vmem:[%s6 + $0xd0] sm:$0xff]
          %v10572 = vld [vmem:[%s6 + $0xd8] sm:$0xff]
          %v10573 = vld [vmem:[%s6 + $0xe0] sm:$0xff]
          %v10574 = vld [vmem:[%s6 + $0xe8] sm:$0xff]
          %v10575 = vld [vmem:[%s6 + $0xf0] sm:$0xff]
          %v10576 = vld [vmem:[%s6 + $0xf8] sm:$0xff]
          %v10641 = vunpack.c.l.b16 %v10481
          %v10642 = vunpack.c.h.b16 %v10481
          %v10643 = vunpack.c.l.b16 %v10482
          %v10644 = vunpack.c.h.b16 %v10482
          %v10645 = vunpack.c.l.b16 %v10483
          %v10646 = vunpack.c.h.b16 %v10483
          %v10647 = vunpack.c.l.b16 %v10484
          %v10648 = vunpack.c.h.b16 %v10484
          %v10649 = vunpack.c.l.b16 %v10485
          %v10650 = vunpack.c.h.b16 %v10485
          %v10651 = vunpack.c.l.b16 %v10486
          %v10652 = vunpack.c.h.b16 %v10486
          %v10653 = vunpack.c.l.b16 %v10487
          %v10654 = vunpack.c.h.b16 %v10487
          %v10655 = vunpack.c.l.b16 %v10488
          %v10656 = vunpack.c.h.b16 %v10488
          %v10657 = vunpack.c.l.b16 %v10489
          %v10658 = vunpack.c.h.b16 %v10489
          %v10659 = vunpack.c.l.b16 %v10490
          %v10660 = vunpack.c.h.b16 %v10490
          %v10661 = vunpack.c.l.b16 %v10491
          %v10662 = vunpack.c.h.b16 %v10491
          %v10663 = vunpack.c.l.b16 %v10492
          %v10664 = vunpack.c.h.b16 %v10492
          %v10665 = vunpack.c.l.b16 %v10493
          %v10666 = vunpack.c.h.b16 %v10493
          %v10667 = vunpack.c.l.b16 %v10494
          %v10668 = vunpack.c.h.b16 %v10494
          %v10669 = vunpack.c.l.b16 %v10495
          %v10670 = vunpack.c.h.b16 %v10495
          %v10671 = vunpack.c.l.b16 %v10496
          %v10672 = vunpack.c.h.b16 %v10496
          %v10673 = vunpack.c.l.b16 %v10497
          %v10674 = vunpack.c.h.b16 %v10497
          %v10675 = vunpack.c.l.b16 %v10498
          %v10676 = vunpack.c.h.b16 %v10498
          %v10677 = vunpack.c.l.b16 %v10499
          %v10678 = vunpack.c.h.b16 %v10499
          %v10679 = vunpack.c.l.b16 %v10500
          %v10680 = vunpack.c.h.b16 %v10500
          %v10681 = vunpack.c.l.b16 %v10501
          %v10682 = vunpack.c.h.b16 %v10501
          %v10683 = vunpack.c.l.b16 %v10502
          %v10684 = vunpack.c.h.b16 %v10502
          %v10685 = vunpack.c.l.b16 %v10503
          %v10686 = vunpack.c.h.b16 %v10503
          %v10687 = vunpack.c.l.b16 %v10504
          %v10688 = vunpack.c.h.b16 %v10504
          %v10689 = vunpack.c.l.b16 %v10505
          %v10690 = vunpack.c.h.b16 %v10505
          %v10691 = vunpack.c.l.b16 %v10506
          %v10692 = vunpack.c.h.b16 %v10506
          %v10693 = vunpack.c.l.b16 %v10507
          %v10694 = vunpack.c.h.b16 %v10507
          %v10695 = vunpack.c.l.b16 %v10508
          %v10696 = vunpack.c.h.b16 %v10508
          %v10697 = vunpack.c.l.b16 %v10509
          %v10698 = vunpack.c.h.b16 %v10509
          %v10699 = vunpack.c.l.b16 %v10510
          %v10700 = vunpack.c.h.b16 %v10510
          %v10701 = vunpack.c.l.b16 %v10511
          %v10702 = vunpack.c.h.b16 %v10511
          %v10703 = vunpack.c.l.b16 %v10512
          %v10704 = vunpack.c.h.b16 %v10512
          %v10705 = vunpack.c.l.b16 %v10513
          %v10706 = vunpack.c.h.b16 %v10513
          %v10707 = vunpack.c.l.b16 %v10514
          %v10708 = vunpack.c.h.b16 %v10514
          %v10709 = vunpack.c.l.b16 %v10515
          %v10710 = vunpack.c.h.b16 %v10515
          %v10711 = vunpack.c.l.b16 %v10516
          %v10712 = vunpack.c.h.b16 %v10516
          %v10713 = vunpack.c.l.b16 %v10517
          %v10714 = vunpack.c.h.b16 %v10517
          %v10715 = vunpack.c.l.b16 %v10518
          %v10716 = vunpack.c.h.b16 %v10518
          %v10717 = vunpack.c.l.b16 %v10519
          %v10718 = vunpack.c.h.b16 %v10519
          %v10719 = vunpack.c.l.b16 %v10520
          %v10720 = vunpack.c.h.b16 %v10520
          %v10721 = vunpack.c.l.b16 %v10521
          %v10722 = vunpack.c.h.b16 %v10521
          %v10723 = vunpack.c.l.b16 %v10522
          %v10724 = vunpack.c.h.b16 %v10522
          %v10725 = vunpack.c.l.b16 %v10523
          %v10726 = vunpack.c.h.b16 %v10523
          %v10727 = vunpack.c.l.b16 %v10524
          %v10728 = vunpack.c.h.b16 %v10524
          %v10729 = vunpack.c.l.b16 %v10525
          %v10730 = vunpack.c.h.b16 %v10525
          %v10731 = vunpack.c.l.b16 %v10526
          %v10732 = vunpack.c.h.b16 %v10526
          %v10733 = vunpack.c.l.b16 %v10527
          %v10734 = vunpack.c.h.b16 %v10527
          %v10735 = vunpack.c.l.b16 %v10528
          %v10736 = vunpack.c.h.b16 %v10528
          %v10737 = vunpack.c.l.b16 %v10529
          %v10738 = vunpack.c.h.b16 %v10529
          %v10739 = vunpack.c.l.b16 %v10530
          %v10740 = vunpack.c.h.b16 %v10530
          %v10741 = vunpack.c.l.b16 %v10531
          %v10742 = vunpack.c.h.b16 %v10531
          %v10743 = vunpack.c.l.b16 %v10532
          %v10744 = vunpack.c.h.b16 %v10532
          %v10745 = vunpack.c.l.b16 %v10533
          %v10746 = vunpack.c.h.b16 %v10533
          %v10747 = vunpack.c.l.b16 %v10534
          %v10748 = vunpack.c.h.b16 %v10534
          %v10749 = vunpack.c.l.b16 %v10535
          %v10750 = vunpack.c.h.b16 %v10535
          %v10751 = vunpack.c.l.b16 %v10536
          %v10752 = vunpack.c.h.b16 %v10536
          %v10753 = vunpack.c.l.b16 %v10537
          %v10754 = vunpack.c.h.b16 %v10537
          %v10755 = vunpack.c.l.b16 %v10538
          %v10756 = vunpack.c.h.b16 %v10538
          %v10757 = vunpack.c.l.b16 %v10539
          %v10758 = vunpack.c.h.b16 %v10539
          %v10759 = vunpack.c.l.b16 %v10540
          %v10760 = vunpack.c.h.b16 %v10540
          %v10761 = vunpack.c.l.b16 %v10541
          %v10762 = vunpack.c.h.b16 %v10541
          %v10763 = vunpack.c.l.b16 %v10542
          %v10764 = vunpack.c.h.b16 %v10542
          %v10765 = vunpack.c.l.b16 %v10543
          %v10766 = vunpack.c.h.b16 %v10543
          %v10767 = vunpack.c.l.b16 %v10544
          %v10768 = vunpack.c.h.b16 %v10544
          %v10769 = vpack.c.b16 %v10645, %v10641
          %v10770 = vpack.c.b16 %v10646, %v10642
          %v10771 = vpack.c.b16 %v10647, %v10643
          %v10772 = vpack.c.b16 %v10648, %v10644
          %v10773 = vpack.c.b16 %v10653, %v10649
          %v10774 = vpack.c.b16 %v10654, %v10650
          %v10775 = vpack.c.b16 %v10655, %v10651
          %v10776 = vpack.c.b16 %v10656, %v10652
          %v10777 = vpack.c.b16 %v10661, %v10657
          %v10778 = vpack.c.b16 %v10662, %v10658
          %v10779 = vpack.c.b16 %v10663, %v10659
          %v10780 = vpack.c.b16 %v10664, %v10660
          %v10781 = vpack.c.b16 %v10669, %v10665
          %v10782 = vpack.c.b16 %v10670, %v10666
          %v10783 = vpack.c.b16 %v10671, %v10667
          %v10784 = vpack.c.b16 %v10672, %v10668
          %v10785 = vpack.c.b16 %v10677, %v10673
          %v10786 = vpack.c.b16 %v10678, %v10674
          %v10787 = vpack.c.b16 %v10679, %v10675
          %v10788 = vpack.c.b16 %v10680, %v10676
          %v10789 = vpack.c.b16 %v10685, %v10681
          %v10790 = vpack.c.b16 %v10686, %v10682
          %v10791 = vpack.c.b16 %v10687, %v10683
          %v10792 = vpack.c.b16 %v10688, %v10684
          %v10793 = vpack.c.b16 %v10693, %v10689
          %v10794 = vpack.c.b16 %v10694, %v10690
          %v10795 = vpack.c.b16 %v10695, %v10691
          %v10796 = vpack.c.b16 %v10696, %v10692
          %v10797 = vpack.c.b16 %v10701, %v10697
          %v10798 = vpack.c.b16 %v10702, %v10698
          %v10799 = vpack.c.b16 %v10703, %v10699
          %v10800 = vpack.c.b16 %v10704, %v10700
          %v10801 = vpack.c.b16 %v10709, %v10705
          %v10802 = vpack.c.b16 %v10710, %v10706
          %v10803 = vpack.c.b16 %v10711, %v10707
          %v10804 = vpack.c.b16 %v10712, %v10708
          %v10805 = vpack.c.b16 %v10717, %v10713
          %v10806 = vpack.c.b16 %v10718, %v10714
          %v10807 = vpack.c.b16 %v10719, %v10715
          %v10808 = vpack.c.b16 %v10720, %v10716
          %v10809 = vpack.c.b16 %v10725, %v10721
          %v10810 = vpack.c.b16 %v10726, %v10722
          %v10811 = vpack.c.b16 %v10727, %v10723
          %v10812 = vpack.c.b16 %v10728, %v10724
          %v10813 = vpack.c.b16 %v10733, %v10729
          %v10814 = vpack.c.b16 %v10734, %v10730
          %v10815 = vpack.c.b16 %v10735, %v10731
          %v10816 = vpack.c.b16 %v10736, %v10732
          %v10817 = vpack.c.b16 %v10741, %v10737
          %v10818 = vpack.c.b16 %v10742, %v10738
          %v10819 = vpack.c.b16 %v10743, %v10739
          %v10820 = vpack.c.b16 %v10744, %v10740
          %v10821 = vpack.c.b16 %v10749, %v10745
          %v10822 = vpack.c.b16 %v10750, %v10746
          %v10823 = vpack.c.b16 %v10751, %v10747
          %v10824 = vpack.c.b16 %v10752, %v10748
          %v10825 = vpack.c.b16 %v10757, %v10753
          %v10826 = vpack.c.b16 %v10758, %v10754
          %v10827 = vpack.c.b16 %v10759, %v10755
          %v10828 = vpack.c.b16 %v10760, %v10756
          %v10829 = vpack.c.b16 %v10765, %v10761
          %v10830 = vpack.c.b16 %v10766, %v10762
          %v10831 = vpack.c.b16 %v10767, %v10763
          %v10832 = vpack.c.b16 %v10768, %v10764
          %10897 = vmatprep.subr.bf16.mxu0 0
          %10898 = vmatpush1.bf16.msra.mxu0 %v10449
          %10899 = vmatprep.subr.bf16.mxu0 0
          %10900 = vmatpush1.bf16.msra.mxu0 %v10450
          %10901 = vmatprep.subr.bf16.mxu0 0
          %10902 = vmatpush1.bf16.msra.mxu0 %v10451
          %10903 = vmatprep.subr.bf16.mxu0 0
          %10904 = vmatpush1.bf16.msra.mxu0 %v10452
          %10905 = vmatprep.subr.bf16.mxu0 0
          %10906 = vmatpush1.bf16.msra.mxu0 %v10453
          %10907 = vmatprep.subr.bf16.mxu0 0
          %10908 = vmatpush1.bf16.msra.mxu0 %v10454
          %10909 = vmatprep.subr.bf16.mxu0 0
          %10910 = vmatpush1.bf16.msra.mxu0 %v10455
          %10911 = vmatprep.subr.bf16.mxu0 0
          %10912 = vmatpush1.bf16.msra.mxu0 %v10456
          %10913 = vmatprep.subr.bf16.mxu0 0
          %10914 = vmatpush1.bf16.msra.mxu0 %v10457
          %10915 = vmatprep.subr.bf16.mxu0 0
          %10916 = vmatpush1.bf16.msra.mxu0 %v10458
          %10917 = vmatprep.subr.bf16.mxu0 0
          %10918 = vmatpush1.bf16.msra.mxu0 %v10459
          %10919 = vmatprep.subr.bf16.mxu0 0
          %10920 = vmatpush1.bf16.msra.mxu0 %v10460
          %10921 = vmatprep.subr.bf16.mxu0 0
          %10922 = vmatpush1.bf16.msra.mxu0 %v10461
          %10923 = vmatprep.subr.bf16.mxu0 0
          %10924 = vmatpush1.bf16.msra.mxu0 %v10462
          %10925 = vmatprep.subr.bf16.mxu0 0
          %10926 = vmatpush1.bf16.msra.mxu0 %v10463
          %10927 = vmatprep.subr.bf16.mxu0 0
          %10928 = vmatpush1.bf16.msra.mxu0 %v10464
          %10929 = vmatprep.mubr.bf16.mxu0 %v10770
          %10930 = vmatmul.mubr.bf16.gmra.mrb[0].mxu0 %v10769
          %v10931 = vpop.f32.mrb[0].mxu0
          %v10932 = vadd.f32 %v10545, %v10931
          %v10933 = vpop.f32.mrb[0].mxu0
          %v10934 = vpop.f32.mrb[0].mxu0
          %v10935 = vadd.f32 %v10546, %v10934
          %v10936 = vpop.f32.mrb[0].mxu0
          %10937 = vmatprep.mubr.bf16.mxu0 %v10774
          %10938 = vmatmul.mubr.bf16.gmra.mrb[0].mxu0 %v10773
          %v10939 = vpop.f32.mrb[0].mxu0
          %v10940 = vadd.f32 %v10547, %v10939
          %v10941 = vpop.f32.mrb[0].mxu0
          %v10942 = vpop.f32.mrb[0].mxu0
          %v10943 = vadd.f32 %v10548, %v10942
          %v10944 = vpop.f32.mrb[0].mxu0
          %10945 = vmatprep.mubr.bf16.mxu0 %v10778
          %10946 = vmatmul.mubr.bf16.gmra.mrb[0].mxu0 %v10777
          %v10947 = vpop.f32.mrb[0].mxu0
          %v10948 = vadd.f32 %v10549, %v10947
          %v10949 = vpop.f32.mrb[0].mxu0
          %v10950 = vpop.f32.mrb[0].mxu0
          %v10951 = vadd.f32 %v10550, %v10950
          %v10952 = vpop.f32.mrb[0].mxu0
          %10953 = vmatprep.mubr.bf16.mxu0 %v10782
          %10954 = vmatmul.mubr.bf16.gmra.mrb[0].mxu0 %v10781
          %v10955 = vpop.f32.mrb[0].mxu0
          %v10956 = vadd.f32 %v10551, %v10955
          %v10957 = vpop.f32.mrb[0].mxu0
          %v10958 = vpop.f32.mrb[0].mxu0
          %v10959 = vadd.f32 %v10552, %v10958
          %v10960 = vpop.f32.mrb[0].mxu0
          %10961 = vmatprep.mubr.bf16.mxu0 %v10786
          %10962 = vmatmul.mubr.bf16.gmra.mrb[0].mxu0 %v10785
          %v10963 = vpop.f32.mrb[0].mxu0
          %v10964 = vadd.f32 %v10553, %v10963
          %v10965 = vpop.f32.mrb[0].mxu0
          %v10966 = vpop.f32.mrb[0].mxu0
          %v10967 = vadd.f32 %v10554, %v10966
          %v10968 = vpop.f32.mrb[0].mxu0
          %10969 = vmatprep.mubr.bf16.mxu0 %v10790
          %10970 = vmatmul.mubr.bf16.gmra.mrb[0].mxu0 %v10789
          %v10971 = vpop.f32.mrb[0].mxu0
          %v10972 = vadd.f32 %v10555, %v10971
          %v10973 = vpop.f32.mrb[0].mxu0
          %v10974 = vpop.f32.mrb[0].mxu0
          %v10975 = vadd.f32 %v10556, %v10974
          %v10976 = vpop.f32.mrb[0].mxu0
          %10977 = vmatprep.mubr.bf16.mxu0 %v10794
          %10978 = vmatmul.mubr.bf16.gmra.mrb[0].mxu0 %v10793
          %v10979 = vpop.f32.mrb[0].mxu0
          %v10980 = vadd.f32 %v10557, %v10979
          %v10981 = vpop.f32.mrb[0].mxu0
          %v10982 = vpop.f32.mrb[0].mxu0
          %v10983 = vadd.f32 %v10558, %v10982
          %v10984 = vpop.f32.mrb[0].mxu0
          %10985 = vmatprep.mubr.bf16.mxu0 %v10798
          %10986 = vmatmul.mubr.bf16.gmra.mrb[0].mxu0 %v10797
          %v10987 = vpop.f32.mrb[0].mxu0
          %v10988 = vadd.f32 %v10559, %v10987
          %v10989 = vpop.f32.mrb[0].mxu0
          %v10990 = vpop.f32.mrb[0].mxu0
          %v10991 = vadd.f32 %v10560, %v10990
          %v10992 = vpop.f32.mrb[0].mxu0
          %10993 = vmatprep.mubr.bf16.mxu0 %v10802
          %10994 = vmatmul.mubr.bf16.gmra.mrb[0].mxu0 %v10801
          %v10995 = vpop.f32.mrb[0].mxu0
          %v10996 = vadd.f32 %v10561, %v10995
          %v10997 = vpop.f32.mrb[0].mxu0
          %v10998 = vpop.f32.mrb[0].mxu0
          %v10999 = vadd.f32 %v10562, %v10998
          %v11000 = vpop.f32.mrb[0].mxu0
          %11001 = vmatprep.mubr.bf16.mxu0 %v10806
          %11002 = vmatmul.mubr.bf16.gmra.mrb[0].mxu0 %v10805
          %v11003 = vpop.f32.mrb[0].mxu0
          %v11004 = vadd.f32 %v10563, %v11003
          %v11005 = vpop.f32.mrb[0].mxu0
          %v11006 = vpop.f32.mrb[0].mxu0
          %v11007 = vadd.f32 %v10564, %v11006
          %v11008 = vpop.f32.mrb[0].mxu0
          %11009 = vmatprep.mubr.bf16.mxu0 %v10810
          %11010 = vmatmul.mubr.bf16.gmra.mrb[0].mxu0 %v10809
          %v11011 = vpop.f32.mrb[0].mxu0
          %v11012 = vadd.f32 %v10565, %v11011
          %v11013 = vpop.f32.mrb[0].mxu0
          %v11014 = vpop.f32.mrb[0].mxu0
          %v11015 = vadd.f32 %v10566, %v11014
          %v11016 = vpop.f32.mrb[0].mxu0
          %11017 = vmatprep.mubr.bf16.mxu0 %v10814
          %11018 = vmatmul.mubr.bf16.gmra.mrb[0].mxu0 %v10813
          %v11019 = vpop.f32.mrb[0].mxu0
          %v11020 = vadd.f32 %v10567, %v11019
          %v11021 = vpop.f32.mrb[0].mxu0
          %v11022 = vpop.f32.mrb[0].mxu0
          %v11023 = vadd.f32 %v10568, %v11022
          %v11024 = vpop.f32.mrb[0].mxu0
          %11025 = vmatprep.mubr.bf16.mxu0 %v10818
          %11026 = vmatmul.mubr.bf16.gmra.mrb[0].mxu0 %v10817
          %v11027 = vpop.f32.mrb[0].mxu0
          %v11028 = vadd.f32 %v10569, %v11027
          %v11029 = vpop.f32.mrb[0].mxu0
          %v11030 = vpop.f32.mrb[0].mxu0
          %v11031 = vadd.f32 %v10570, %v11030
          %v11032 = vpop.f32.mrb[0].mxu0
          %11033 = vmatprep.mubr.bf16.mxu0 %v10822
          %11034 = vmatmul.mubr.bf16.gmra.mrb[0].mxu0 %v10821
          %v11035 = vpop.f32.mrb[0].mxu0
          %v11036 = vadd.f32 %v10571, %v11035
          %v11037 = vpop.f32.mrb[0].mxu0
          %v11038 = vpop.f32.mrb[0].mxu0
          %v11039 = vadd.f32 %v10572, %v11038
          %v11040 = vpop.f32.mrb[0].mxu0
          %11041 = vmatprep.mubr.bf16.mxu0 %v10826
          %11042 = vmatmul.mubr.bf16.gmra.mrb[0].mxu0 %v10825
          %v11043 = vpop.f32.mrb[0].mxu0
          %v11044 = vadd.f32 %v10573, %v11043
          %v11045 = vpop.f32.mrb[0].mxu0
          %v11046 = vpop.f32.mrb[0].mxu0
          %v11047 = vadd.f32 %v10574, %v11046
          %v11048 = vpop.f32.mrb[0].mxu0
          %11049 = vmatprep.mubr.bf16.mxu0 %v10830
          %11050 = vmatmul.mubr.bf16.gmra.mrb[0].mxu0 %v10829
          %v11051 = vpop.f32.mrb[0].mxu0
          %v11052 = vadd.f32 %v10575, %v11051
          %v11053 = vpop.f32.mrb[0].mxu0
          %v11054 = vpop.f32.mrb[0].mxu0
          %v11055 = vadd.f32 %v10576, %v11054
          %v11056 = vpop.f32.mrb[0].mxu0
          %11057 = vdwg.mxu0
          %11058 = vmatprep.subr.bf16.mxu0 0
          %11059 = vmatpush1.bf16.msra.mxu0 %v10465
          %11060 = vmatprep.subr.bf16.mxu0 0
          %11061 = vmatpush1.bf16.msra.mxu0 %v10466
          %11062 = vmatprep.subr.bf16.mxu0 0
          %11063 = vmatpush1.bf16.msra.mxu0 %v10467
          %11064 = vmatprep.subr.bf16.mxu0 0
          %11065 = vmatpush1.bf16.msra.mxu0 %v10468
          %11066 = vmatprep.subr.bf16.mxu0 0
          %11067 = vmatpush1.bf16.msra.mxu0 %v10469
          %11068 = vmatprep.subr.bf16.mxu0 0
          %11069 = vmatpush1.bf16.msra.mxu0 %v10470
          %11070 = vmatprep.subr.bf16.mxu0 0
          %11071 = vmatpush1.bf16.msra.mxu0 %v10471
          %11072 = vmatprep.subr.bf16.mxu0 0
          %11073 = vmatpush1.bf16.msra.mxu0 %v10472
          %11074 = vmatprep.subr.bf16.mxu0 0
          %11075 = vmatpush1.bf16.msra.mxu0 %v10473
          %11076 = vmatprep.subr.bf16.mxu0 0
          %11077 = vmatpush1.bf16.msra.mxu0 %v10474
          %11078 = vmatprep.subr.bf16.mxu0 0
          %11079 = vmatpush1.bf16.msra.mxu0 %v10475
          %11080 = vmatprep.subr.bf16.mxu0 0
          %11081 = vmatpush1.bf16.msra.mxu0 %v10476
          %11082 = vmatprep.subr.bf16.mxu0 0
          %11083 = vmatpush1.bf16.msra.mxu0 %v10477
          %11084 = vmatprep.subr.bf16.mxu0 0
          %11085 = vmatpush1.bf16.msra.mxu0 %v10478
          %11086 = vmatprep.subr.bf16.mxu0 0
          %11087 = vmatpush1.bf16.msra.mxu0 %v10479
          %11088 = vmatprep.subr.bf16.mxu0 0
          %11089 = vmatpush1.bf16.msra.mxu0 %v10480
          %11090 = vmatprep.mubr.bf16.mxu0 %v10772
          %11091 = vmatmul.mubr.bf16.gmra.mrb[0].mxu0 %v10771
          %v11092 = vpop.f32.mrb[0].mxu0
          %v11093 = vadd.f32 %v10932, %v11092
          %v11094 = vpop.f32.mrb[0].mxu0
          %v11095 = vpop.f32.mrb[0].mxu0
          %v11096 = vadd.f32 %v10935, %v11095
          %v11097 = vpop.f32.mrb[0].mxu0
          %11098 = vmatprep.mubr.bf16.mxu0 %v10776
          %11099 = vmatmul.mubr.bf16.gmra.mrb[0].mxu0 %v10775
          %v11100 = vpop.f32.mrb[0].mxu0
          %v11101 = vadd.f32 %v10940, %v11100
          %v11102 = vpop.f32.mrb[0].mxu0
          %v11103 = vpop.f32.mrb[0].mxu0
          %v11104 = vadd.f32 %v10943, %v11103
          %v11105 = vpop.f32.mrb[0].mxu0
          %11106 = vmatprep.mubr.bf16.mxu0 %v10780
          %11107 = vmatmul.mubr.bf16.gmra.mrb[0].mxu0 %v10779
          %v11108 = vpop.f32.mrb[0].mxu0
          %v11109 = vadd.f32 %v10948, %v11108
          %v11110 = vpop.f32.mrb[0].mxu0
          %v11111 = vpop.f32.mrb[0].mxu0
          %v11112 = vadd.f32 %v10951, %v11111
          %v11113 = vpop.f32.mrb[0].mxu0
          %11114 = vmatprep.mubr.bf16.mxu0 %v10784
          %11115 = vmatmul.mubr.bf16.gmra.mrb[0].mxu0 %v10783
          %v11116 = vpop.f32.mrb[0].mxu0
          %v11117 = vadd.f32 %v10956, %v11116
          %v11118 = vpop.f32.mrb[0].mxu0
          %v11119 = vpop.f32.mrb[0].mxu0
          %v11120 = vadd.f32 %v10959, %v11119
          %v11121 = vpop.f32.mrb[0].mxu0
          %11122 = vmatprep.mubr.bf16.mxu0 %v10788
          %11123 = vmatmul.mubr.bf16.gmra.mrb[0].mxu0 %v10787
          %v11124 = vpop.f32.mrb[0].mxu0
          %v11125 = vadd.f32 %v10964, %v11124
          %v11126 = vpop.f32.mrb[0].mxu0
          %v11127 = vpop.f32.mrb[0].mxu0
          %v11128 = vadd.f32 %v10967, %v11127
          %v11129 = vpop.f32.mrb[0].mxu0
          %11130 = vmatprep.mubr.bf16.mxu0 %v10792
          %11131 = vmatmul.mubr.bf16.gmra.mrb[0].mxu0 %v10791
          %v11132 = vpop.f32.mrb[0].mxu0
          %v11133 = vadd.f32 %v10972, %v11132
          %v11134 = vpop.f32.mrb[0].mxu0
          %v11135 = vpop.f32.mrb[0].mxu0
          %v11136 = vadd.f32 %v10975, %v11135
          %v11137 = vpop.f32.mrb[0].mxu0
          %11138 = vmatprep.mubr.bf16.mxu0 %v10796
          %11139 = vmatmul.mubr.bf16.gmra.mrb[0].mxu0 %v10795
          %v11140 = vpop.f32.mrb[0].mxu0
          %v11141 = vadd.f32 %v10980, %v11140
          %v11142 = vpop.f32.mrb[0].mxu0
          %v11143 = vpop.f32.mrb[0].mxu0
          %v11144 = vadd.f32 %v10983, %v11143
          %v11145 = vpop.f32.mrb[0].mxu0
          %11146 = vmatprep.mubr.bf16.mxu0 %v10800
          %11147 = vmatmul.mubr.bf16.gmra.mrb[0].mxu0 %v10799
          %v11148 = vpop.f32.mrb[0].mxu0
          %v11149 = vadd.f32 %v10988, %v11148
          %v11150 = vpop.f32.mrb[0].mxu0
          %v11151 = vpop.f32.mrb[0].mxu0
          %v11152 = vadd.f32 %v10991, %v11151
          %v11153 = vpop.f32.mrb[0].mxu0
          %11154 = vmatprep.mubr.bf16.mxu0 %v10804
          %11155 = vmatmul.mubr.bf16.gmra.mrb[0].mxu0 %v10803
          %v11156 = vpop.f32.mrb[0].mxu0
          %v11157 = vadd.f32 %v10996, %v11156
          %v11158 = vpop.f32.mrb[0].mxu0
          %v11159 = vpop.f32.mrb[0].mxu0
          %v11160 = vadd.f32 %v10999, %v11159
          %v11161 = vpop.f32.mrb[0].mxu0
          %11162 = vmatprep.mubr.bf16.mxu0 %v10808
          %11163 = vmatmul.mubr.bf16.gmra.mrb[0].mxu0 %v10807
          %v11164 = vpop.f32.mrb[0].mxu0
          %v11165 = vadd.f32 %v11004, %v11164
          %v11166 = vpop.f32.mrb[0].mxu0
          %v11167 = vpop.f32.mrb[0].mxu0
          %v11168 = vadd.f32 %v11007, %v11167
          %v11169 = vpop.f32.mrb[0].mxu0
          %11170 = vmatprep.mubr.bf16.mxu0 %v10812
          %11171 = vmatmul.mubr.bf16.gmra.mrb[0].mxu0 %v10811
          %v11172 = vpop.f32.mrb[0].mxu0
          %v11173 = vadd.f32 %v11012, %v11172
          %v11174 = vpop.f32.mrb[0].mxu0
          %v11175 = vpop.f32.mrb[0].mxu0
          %v11176 = vadd.f32 %v11015, %v11175
          %v11177 = vpop.f32.mrb[0].mxu0
          %11178 = vmatprep.mubr.bf16.mxu0 %v10816
          %11179 = vmatmul.mubr.bf16.gmra.mrb[0].mxu0 %v10815
          %v11180 = vpop.f32.mrb[0].mxu0
          %v11181 = vadd.f32 %v11020, %v11180
          %v11182 = vpop.f32.mrb[0].mxu0
          %v11183 = vpop.f32.mrb[0].mxu0
          %v11184 = vadd.f32 %v11023, %v11183
          %v11185 = vpop.f32.mrb[0].mxu0
          %11186 = vmatprep.mubr.bf16.mxu0 %v10820
          %11187 = vmatmul.mubr.bf16.gmra.mrb[0].mxu0 %v10819
          %v11188 = vpop.f32.mrb[0].mxu0
          %v11189 = vadd.f32 %v11028, %v11188
          %v11190 = vpop.f32.mrb[0].mxu0
          %v11191 = vpop.f32.mrb[0].mxu0
          %v11192 = vadd.f32 %v11031, %v11191
          %v11193 = vpop.f32.mrb[0].mxu0
          %11194 = vmatprep.mubr.bf16.mxu0 %v10824
          %11195 = vmatmul.mubr.bf16.gmra.mrb[0].mxu0 %v10823
          %v11196 = vpop.f32.mrb[0].mxu0
          %v11197 = vadd.f32 %v11036, %v11196
          %v11198 = vpop.f32.mrb[0].mxu0
          %v11199 = vpop.f32.mrb[0].mxu0
          %v11200 = vadd.f32 %v11039, %v11199
          %v11201 = vpop.f32.mrb[0].mxu0
          %11202 = vmatprep.mubr.bf16.mxu0 %v10828
          %11203 = vmatmul.mubr.bf16.gmra.mrb[0].mxu0 %v10827
          %v11204 = vpop.f32.mrb[0].mxu0
          %v11205 = vadd.f32 %v11044, %v11204
          %v11206 = vpop.f32.mrb[0].mxu0
          %v11207 = vpop.f32.mrb[0].mxu0
          %v11208 = vadd.f32 %v11047, %v11207
          %v11209 = vpop.f32.mrb[0].mxu0
          %11210 = vmatprep.mubr.bf16.mxu0 %v10832
          %11211 = vmatmul.mubr.bf16.gmra.mrb[0].mxu0 %v10831
          %v11212 = vpop.f32.mrb[0].mxu0
          %v11213 = vadd.f32 %v11052, %v11212
          %v11214 = vpop.f32.mrb[0].mxu0
          %v11215 = vpop.f32.mrb[0].mxu0
          %v11216 = vadd.f32 %v11055, %v11215
          %v11217 = vpop.f32.mrb[0].mxu0
          %11218 = vdwg.mxu0
          %v11219 = vmax.f32 %v11093, 0.0
          %v11220 = vmax.f32 %v11096, 0.0
          %v11221 = vmax.f32 %v11101, 0.0
          %v11222 = vmax.f32 %v11104, 0.0
          %v11223 = vmax.f32 %v11109, 0.0
          %v11224 = vmax.f32 %v11112, 0.0
          %v11225 = vmax.f32 %v11117, 0.0
          %v11226 = vmax.f32 %v11120, 0.0
          %v11227 = vmax.f32 %v11125, 0.0
          %v11228 = vmax.f32 %v11128, 0.0
          %v11229 = vmax.f32 %v11133, 0.0
          %v11230 = vmax.f32 %v11136, 0.0
          %v11231 = vmax.f32 %v11141, 0.0
          %v11232 = vmax.f32 %v11144, 0.0
          %v11233 = vmax.f32 %v11149, 0.0
          %v11234 = vmax.f32 %v11152, 0.0
          %v11235 = vmax.f32 %v11157, 0.0
          %v11236 = vmax.f32 %v11160, 0.0
          %v11237 = vmax.f32 %v11165, 0.0
          %v11238 = vmax.f32 %v11168, 0.0
          %v11239 = vmax.f32 %v11173, 0.0
          %v11240 = vmax.f32 %v11176, 0.0
          %v11241 = vmax.f32 %v11181, 0.0
          %v11242 = vmax.f32 %v11184, 0.0
          %v11243 = vmax.f32 %v11189, 0.0
          %v11244 = vmax.f32 %v11192, 0.0
          %v11245 = vmax.f32 %v11197, 0.0
          %v11246 = vmax.f32 %v11200, 0.0
          %v11247 = vmax.f32 %v11205, 0.0
          %v11248 = vmax.f32 %v11208, 0.0
          %v11249 = vmax.f32 %v11213, 0.0
          %v11250 = vmax.f32 %v11216, 0.0
          %v11251 = vpack.c.bf16 %v11220, %v11219
          %v11252 = vpack.c.bf16 %v11222, %v11221
          %v11253 = vpack.c.bf16 %v11224, %v11223
          %v11254 = vpack.c.bf16 %v11226, %v11225
          %v11255 = vpack.c.bf16 %v11228, %v11227
          %v11256 = vpack.c.bf16 %v11230, %v11229
          %v11257 = vpack.c.bf16 %v11232, %v11231
          %v11258 = vpack.c.bf16 %v11234, %v11233
          %v11259 = vpack.c.bf16 %v11236, %v11235
          %v11260 = vpack.c.bf16 %v11238, %v11237
          %v11261 = vpack.c.bf16 %v11240, %v11239
          %v11262 = vpack.c.bf16 %v11242, %v11241
          %v11263 = vpack.c.bf16 %v11244, %v11243
          %v11264 = vpack.c.bf16 %v11246, %v11245
          %v11265 = vpack.c.bf16 %v11248, %v11247
          %v11266 = vpack.c.bf16 %v11250, %v11249
          %v11267 = vld [vmem:[%s7] sm:$0xff]
          %v11268 = vld [vmem:[%s7 + $0x8] sm:$0xff]
          %v11269 = vld [vmem:[%s7 + $0x10] sm:$0xff]
          %v11270 = vld [vmem:[%s7 + $0x18] sm:$0xff]
          %v11271 = vld [vmem:[%s7 + $0x20] sm:$0xff]
          %v11272 = vld [vmem:[%s7 + $0x28] sm:$0xff]
          %v11273 = vld [vmem:[%s7 + $0x30] sm:$0xff]
          %v11274 = vld [vmem:[%s7 + $0x38] sm:$0xff]
          %v11275 = vld [vmem:[%s7 + $0x40] sm:$0xff]
          %v11276 = vld [vmem:[%s7 + $0x48] sm:$0xff]
          %v11277 = vld [vmem:[%s7 + $0x50] sm:$0xff]
          %v11278 = vld [vmem:[%s7 + $0x58] sm:$0xff]
          %v11279 = vld [vmem:[%s7 + $0x60] sm:$0xff]
          %v11280 = vld [vmem:[%s7 + $0x68] sm:$0xff]
          %v11281 = vld [vmem:[%s7 + $0x70] sm:$0xff]
          %v11282 = vld [vmem:[%s7 + $0x78] sm:$0xff]
          %v11283 = vld [vmem:[%s8] sm:$0xff]
          %v11284 = vld [vmem:[%s8 + $0x8] sm:$0xff]
          %v11285 = vld [vmem:[%s8 + $0x10] sm:$0xff]
          %v11286 = vld [vmem:[%s8 + $0x18] sm:$0xff]
          %v11287 = vld [vmem:[%s8 + $0x20] sm:$0xff]
          %v11288 = vld [vmem:[%s8 + $0x28] sm:$0xff]
          %v11289 = vld [vmem:[%s8 + $0x30] sm:$0xff]
          %v11290 = vld [vmem:[%s8 + $0x38] sm:$0xff]
          %v11291 = vld [vmem:[%s8 + $0x40] sm:$0xff]
          %v11292 = vld [vmem:[%s8 + $0x48] sm:$0xff]
          %v11293 = vld [vmem:[%s8 + $0x50] sm:$0xff]
          %v11294 = vld [vmem:[%s8 + $0x58] sm:$0xff]
          %v11295 = vld [vmem:[%s8 + $0x60] sm:$0xff]
          %v11296 = vld [vmem:[%s8 + $0x68] sm:$0xff]
          %v11297 = vld [vmem:[%s8 + $0x70] sm:$0xff]
          %v11298 = vld [vmem:[%s8 + $0x78] sm:$0xff]
          %v11315 = vunpack.c.l.b16 %v11267
          %v11316 = vunpack.c.h.b16 %v11267
          %v11317 = vunpack.c.l.b16 %v11268
          %v11318 = vunpack.c.h.b16 %v11268
          %v11319 = vunpack.c.l.b16 %v11269
          %v11320 = vunpack.c.h.b16 %v11269
          %v11321 = vunpack.c.l.b16 %v11270
          %v11322 = vunpack.c.h.b16 %v11270
          %v11323 = vunpack.c.l.b16 %v11271
          %v11324 = vunpack.c.h.b16 %v11271
          %v11325 = vunpack.c.l.b16 %v11272
          %v11326 = vunpack.c.h.b16 %v11272
          %v11327 = vunpack.c.l.b16 %v11273
          %v11328 = vunpack.c.h.b16 %v11273
          %v11329 = vunpack.c.l.b16 %v11274
          %v11330 = vunpack.c.h.b16 %v11274
          %v11331 = vunpack.c.l.b16 %v11275
          %v11332 = vunpack.c.h.b16 %v11275
          %v11333 = vunpack.c.l.b16 %v11276
          %v11334 = vunpack.c.h.b16 %v11276
          %v11335 = vunpack.c.l.b16 %v11277
          %v11336 = vunpack.c.h.b16 %v11277
          %v11337 = vunpack.c.l.b16 %v11278
          %v11338 = vunpack.c.h.b16 %v11278
          %v11339 = vunpack.c.l.b16 %v11279
          %v11340 = vunpack.c.h.b16 %v11279
          %v11341 = vunpack.c.l.b16 %v11280
          %v11342 = vunpack.c.h.b16 %v11280
          %v11343 = vunpack.c.l.b16 %v11281
          %v11344 = vunpack.c.h.b16 %v11281
          %v11345 = vunpack.c.l.b16 %v11282
          %v11346 = vunpack.c.h.b16 %v11282
          %v11347 = vpack.c.b16 %v11317, %v11315
          %v11348 = vpack.c.b16 %v11318, %v11316
          %v11349 = vpack.c.b16 %v11321, %v11319
          %v11350 = vpack.c.b16 %v11322, %v11320
          %v11351 = vpack.c.b16 %v11325, %v11323
          %v11352 = vpack.c.b16 %v11326, %v11324
          %v11353 = vpack.c.b16 %v11329, %v11327
          %v11354 = vpack.c.b16 %v11330, %v11328
          %v11355 = vpack.c.b16 %v11333, %v11331
          %v11356 = vpack.c.b16 %v11334, %v11332
          %v11357 = vpack.c.b16 %v11337, %v11335
          %v11358 = vpack.c.b16 %v11338, %v11336
          %v11359 = vpack.c.b16 %v11341, %v11339
          %v11360 = vpack.c.b16 %v11342, %v11340
          %v11361 = vpack.c.b16 %v11345, %v11343
          %v11362 = vpack.c.b16 %v11346, %v11344
          %11379 = vmatprep.subr.bf16.mxu0 0
          %11380 = vmatpush1.bf16.msra.mxu0 %v11251
          %11381 = vmatprep.subr.bf16.mxu0 0
          %11382 = vmatpush1.bf16.msra.mxu0 %v11252
          %11383 = vmatprep.subr.bf16.mxu0 0
          %11384 = vmatpush1.bf16.msra.mxu0 %v11253
          %11385 = vmatprep.subr.bf16.mxu0 0
          %11386 = vmatpush1.bf16.msra.mxu0 %v11254
          %11387 = vmatprep.subr.bf16.mxu0 0
          %11388 = vmatpush1.bf16.msra.mxu0 %v11255
          %11389 = vmatprep.subr.bf16.mxu0 0
          %11390 = vmatpush1.bf16.msra.mxu0 %v11256
          %11391 = vmatprep.subr.bf16.mxu0 0
          %11392 = vmatpush1.bf16.msra.mxu0 %v11257
          %11393 = vmatprep.subr.bf16.mxu0 0
          %11394 = vmatpush1.bf16.msra.mxu0 %v11258
          %11395 = vmatprep.subr.bf16.mxu0 0
          %11396 = vmatpush1.bf16.msra.mxu0 %v11259
          %11397 = vmatprep.subr.bf16.mxu0 0
          %11398 = vmatpush1.bf16.msra.mxu0 %v11260
          %11399 = vmatprep.subr.bf16.mxu0 0
          %11400 = vmatpush1.bf16.msra.mxu0 %v11261
          %11401 = vmatprep.subr.bf16.mxu0 0
          %11402 = vmatpush1.bf16.msra.mxu0 %v11262
          %11403 = vmatprep.subr.bf16.mxu0 0
          %11404 = vmatpush1.bf16.msra.mxu0 %v11263
          %11405 = vmatprep.subr.bf16.mxu0 0
          %11406 = vmatpush1.bf16.msra.mxu0 %v11264
          %11407 = vmatprep.subr.bf16.mxu0 0
          %11408 = vmatpush1.bf16.msra.mxu0 %v11265
          %11409 = vmatprep.subr.bf16.mxu0 0
          %11410 = vmatpush1.bf16.msra.mxu0 %v11266
          %11411 = vmatprep.mubr.bf16.mxu0 %v11348
          %11412 = vmatmul.mubr.bf16.gmra.mrb[0].mxu0 %v11347
          %v11413 = vpop.f32.mrb[0].mxu0
          %v11414 = vadd.f32 %v11283, %v11413
          %v11415 = vpop.f32.mrb[0].mxu0
          %v11416 = vpop.f32.mrb[0].mxu0
          %v11417 = vadd.f32 %v11284, %v11416
          %v11418 = vpop.f32.mrb[0].mxu0
          %11419 = vmatprep.mubr.bf16.mxu0 %v11350
          %11420 = vmatmul.mubr.bf16.gmra.mrb[0].mxu0 %v11349
          %v11421 = vpop.f32.mrb[0].mxu0
          %v11422 = vadd.f32 %v11285, %v11421
          %v11423 = vpop.f32.mrb[0].mxu0
          %v11424 = vpop.f32.mrb[0].mxu0
          %v11425 = vadd.f32 %v11286, %v11424
          %v11426 = vpop.f32.mrb[0].mxu0
          %11427 = vmatprep.mubr.bf16.mxu0 %v11352
          %11428 = vmatmul.mubr.bf16.gmra.mrb[0].mxu0 %v11351
          %v11429 = vpop.f32.mrb[0].mxu0
          %v11430 = vadd.f32 %v11287, %v11429
          %v11431 = vpop.f32.mrb[0].mxu0
          %v11432 = vpop.f32.mrb[0].mxu0
          %v11433 = vadd.f32 %v11288, %v11432
          %v11434 = vpop.f32.mrb[0].mxu0
          %11435 = vmatprep.mubr.bf16.mxu0 %v11354
          %11436 = vmatmul.mubr.bf16.gmra.mrb[0].mxu0 %v11353
          %v11437 = vpop.f32.mrb[0].mxu0
          %v11438 = vadd.f32 %v11289, %v11437
          %v11439 = vpop.f32.mrb[0].mxu0
          %v11440 = vpop.f32.mrb[0].mxu0
          %v11441 = vadd.f32 %v11290, %v11440
          %v11442 = vpop.f32.mrb[0].mxu0
          %11443 = vmatprep.mubr.bf16.mxu0 %v11356
          %11444 = vmatmul.mubr.bf16.gmra.mrb[0].mxu0 %v11355
          %v11445 = vpop.f32.mrb[0].mxu0
          %v11446 = vadd.f32 %v11291, %v11445
          %v11447 = vpop.f32.mrb[0].mxu0
          %v11448 = vpop.f32.mrb[0].mxu0
          %v11449 = vadd.f32 %v11292, %v11448
          %v11450 = vpop.f32.mrb[0].mxu0
          %11451 = vmatprep.mubr.bf16.mxu0 %v11358
          %11452 = vmatmul.mubr.bf16.gmra.mrb[0].mxu0 %v11357
          %v11453 = vpop.f32.mrb[0].mxu0
          %v11454 = vadd.f32 %v11293, %v11453
          %v11455 = vpop.f32.mrb[0].mxu0
          %v11456 = vpop.f32.mrb[0].mxu0
          %v11457 = vadd.f32 %v11294, %v11456
          %v11458 = vpop.f32.mrb[0].mxu0
          %11459 = vmatprep.mubr.bf16.mxu0 %v11360
          %11460 = vmatmul.mubr.bf16.gmra.mrb[0].mxu0 %v11359
          %v11461 = vpop.f32.mrb[0].mxu0
          %v11462 = vadd.f32 %v11295, %v11461
          %v11463 = vpop.f32.mrb[0].mxu0
          %v11464 = vpop.f32.mrb[0].mxu0
          %v11465 = vadd.f32 %v11296, %v11464
          %v11466 = vpop.f32.mrb[0].mxu0
          %11467 = vmatprep.mubr.bf16.mxu0 %v11362
          %11468 = vmatmul.mubr.bf16.gmra.mrb[0].mxu0 %v11361
          %v11469 = vpop.f32.mrb[0].mxu0
          %v11470 = vadd.f32 %v11297, %v11469
          %v11471 = vpop.f32.mrb[0].mxu0
          %v11472 = vpop.f32.mrb[0].mxu0
          %v11473 = vadd.f32 %v11298, %v11472
          %v11474 = vpop.f32.mrb[0].mxu0
          %11475 = vdwg.mxu0
          %v11476 = vmax.f32 %v11414, 0.0
          %v11477 = vmax.f32 %v11417, 0.0
          %v11478 = vmax.f32 %v11422, 0.0
          %v11479 = vmax.f32 %v11425, 0.0
          %v11480 = vmax.f32 %v11430, 0.0
          %v11481 = vmax.f32 %v11433, 0.0
          %v11482 = vmax.f32 %v11438, 0.0
          %v11483 = vmax.f32 %v11441, 0.0
          %v11484 = vmax.f32 %v11446, 0.0
          %v11485 = vmax.f32 %v11449, 0.0
          %v11486 = vmax.f32 %v11454, 0.0
          %v11487 = vmax.f32 %v11457, 0.0
          %v11488 = vmax.f32 %v11462, 0.0
          %v11489 = vmax.f32 %v11465, 0.0
          %v11490 = vmax.f32 %v11470, 0.0
          %v11491 = vmax.f32 %v11473, 0.0
          %v11492 = vpack.c.bf16 %v11477, %v11476
          %v11493 = vpack.c.bf16 %v11479, %v11478
          %v11494 = vpack.c.bf16 %v11481, %v11480
          %v11495 = vpack.c.bf16 %v11483, %v11482
          %v11496 = vpack.c.bf16 %v11485, %v11484
          %v11497 = vpack.c.bf16 %v11487, %v11486
          %v11498 = vpack.c.bf16 %v11489, %v11488
          %v11499 = vpack.c.bf16 %v11491, %v11490
          %v11500 = vld [vmem:[#allocation3] sm:$0xf]
          %v11501 = vld [vmem:[#allocation3 + $0x4] sm:$0xf]
          %v11502 = vld [vmem:[#allocation3 + $0x8] sm:$0xf]
          %v11503 = vld [vmem:[#allocation3 + $0xc] sm:$0xf]
          %v11504 = vld [vmem:[#allocation3 + $0x10] sm:$0xf]
          %v11505 = vld [vmem:[#allocation3 + $0x14] sm:$0xf]
          %v11506 = vld [vmem:[#allocation3 + $0x18] sm:$0xf]
          %v11507 = vld [vmem:[#allocation3 + $0x1c] sm:$0xf]
          %v11508 = vld [vmem:[#allocation3 + $0x20] sm:$0xf]
          %v11509 = vld [vmem:[#allocation3 + $0x24] sm:$0xf]
          %v11510 = vld [vmem:[#allocation3 + $0x28] sm:$0xf]
          %v11511 = vld [vmem:[#allocation3 + $0x2c] sm:$0xf]
          %v11512 = vld [vmem:[#allocation3 + $0x30] sm:$0xf]
          %v11513 = vld [vmem:[#allocation3 + $0x34] sm:$0xf]
          %v11514 = vld [vmem:[#allocation3 + $0x38] sm:$0xf]
          %v11515 = vld [vmem:[#allocation3 + $0x3c] sm:$0xf]
          %v11516 = vld [vmem:[%s10] sm:$0xff]
          %v11517 = vld [vmem:[%s10 + $0x8] sm:$0xff]
          %v11518 = vld [vmem:[%s10 + $0x10] sm:$0xff]
          %v11519 = vld [vmem:[%s10 + $0x18] sm:$0xff]
          %v11520 = vld [vmem:[%s10 + $0x20] sm:$0xff]
          %v11521 = vld [vmem:[%s10 + $0x28] sm:$0xff]
          %v11522 = vld [vmem:[%s10 + $0x30] sm:$0xff]
          %v11523 = vld [vmem:[%s10 + $0x38] sm:$0xff]
          %v11524 = vld [vmem:[%s10 + $0x40] sm:$0xff]
          %v11525 = vld [vmem:[%s10 + $0x48] sm:$0xff]
          %v11526 = vld [vmem:[%s10 + $0x50] sm:$0xff]
          %v11527 = vld [vmem:[%s10 + $0x58] sm:$0xff]
          %v11528 = vld [vmem:[%s10 + $0x60] sm:$0xff]
          %v11529 = vld [vmem:[%s10 + $0x68] sm:$0xff]
          %v11530 = vld [vmem:[%s10 + $0x70] sm:$0xff]
          %v11531 = vld [vmem:[%s10 + $0x78] sm:$0xff]
          %v11548 = vunpack.c.l.b16 %v11500
          %v11549 = vunpack.c.l.b16 %v11501
          %v11550 = vunpack.c.l.b16 %v11502
          %v11551 = vunpack.c.l.b16 %v11503
          %v11552 = vunpack.c.l.b16 %v11504
          %v11553 = vunpack.c.l.b16 %v11505
          %v11554 = vunpack.c.l.b16 %v11506
          %v11555 = vunpack.c.l.b16 %v11507
          %v11556 = vunpack.c.l.b16 %v11508
          %v11557 = vunpack.c.l.b16 %v11509
          %v11558 = vunpack.c.l.b16 %v11510
          %v11559 = vunpack.c.l.b16 %v11511
          %v11560 = vunpack.c.l.b16 %v11512
          %v11561 = vunpack.c.l.b16 %v11513
          %v11562 = vunpack.c.l.b16 %v11514
          %v11563 = vunpack.c.l.b16 %v11515
          %v11564 = vpack.c.b16 %v11549, %v11548
          %v11565 = vpack.c.b16 %v11551, %v11550
          %v11566 = vpack.c.b16 %v11553, %v11552
          %v11567 = vpack.c.b16 %v11555, %v11554
          %v11568 = vpack.c.b16 %v11557, %v11556
          %v11569 = vpack.c.b16 %v11559, %v11558
          %v11570 = vpack.c.b16 %v11561, %v11560
          %v11571 = vpack.c.b16 %v11563, %v11562
          %11580 = vmatprep.subr.bf16.mxu0 0
          %11581 = vmatpush1.bf16.msra.mxu0 %v11492
          %11582 = vmatprep.subr.bf16.mxu0 0
          %11583 = vmatpush1.bf16.msra.mxu0 %v11493
          %11584 = vmatprep.subr.bf16.mxu0 0
          %11585 = vmatpush1.bf16.msra.mxu0 %v11494
          %11586 = vmatprep.subr.bf16.mxu0 0
          %11587 = vmatpush1.bf16.msra.mxu0 %v11495
          %11588 = vmatprep.subr.bf16.mxu0 0
          %11589 = vmatpush1.bf16.msra.mxu0 %v11496
          %11590 = vmatprep.subr.bf16.mxu0 0
          %11591 = vmatpush1.bf16.msra.mxu0 %v11497
          %11592 = vmatprep.subr.bf16.mxu0 0
          %11593 = vmatpush1.bf16.msra.mxu0 %v11498
          %11594 = vmatprep.subr.bf16.mxu0 0
          %11595 = vmatpush1.bf16.msra.mxu0 %v11499
          %11596 = vmatprep.subr.bf16.mxu0 0
          %11597 = vmatpush1.bf16.msra.mxu0 0
          %11598 = vmatprep.subr.bf16.mxu0 0
          %11599 = vmatpush1.bf16.msra.mxu0 0
          %11600 = vmatprep.subr.bf16.mxu0 0
          %11601 = vmatpush1.bf16.msra.mxu0 0
          %11602 = vmatprep.subr.bf16.mxu0 0
          %11603 = vmatpush1.bf16.msra.mxu0 0
          %11604 = vmatprep.subr.bf16.mxu0 0
          %11605 = vmatpush1.bf16.msra.mxu0 0
          %11606 = vmatprep.subr.bf16.mxu0 0
          %11607 = vmatpush1.bf16.msra.mxu0 0
          %11608 = vmatprep.subr.bf16.mxu0 0
          %11609 = vmatpush1.bf16.msra.mxu0 0
          %11610 = vmatprep.subr.bf16.mxu0 0
          %11611 = vmatpush1.bf16.msra.mxu0 0
          %11612 = vmatprep.mubr.bf16.mxu0 0
          %11613 = vmatmul.mubr.bf16.gmra.mrb[0].mxu0 %v11564
          %v11614 = vpop.f32.mrb[0].mxu0
          %v11615 = vadd.f32 %v11516, %v11614
          %v11616 = vpop.f32.mrb[0].mxu0
          %v11617 = vpop.f32.mrb[0].mxu0
          %v11618 = vadd.f32 %v11517, %v11617
          %v11619 = vpop.f32.mrb[0].mxu0
          %11620 = vmatprep.mubr.bf16.mxu0 0
          %11621 = vmatmul.mubr.bf16.gmra.mrb[0].mxu0 %v11565
          %v11622 = vpop.f32.mrb[0].mxu0
          %v11623 = vadd.f32 %v11518, %v11622
          %v11624 = vpop.f32.mrb[0].mxu0
          %v11625 = vpop.f32.mrb[0].mxu0
          %v11626 = vadd.f32 %v11519, %v11625
          %v11627 = vpop.f32.mrb[0].mxu0
          %11628 = vmatprep.mubr.bf16.mxu0 0
          %11629 = vmatmul.mubr.bf16.gmra.mrb[0].mxu0 %v11566
          %v11630 = vpop.f32.mrb[0].mxu0
          %v11631 = vadd.f32 %v11520, %v11630
          %v11632 = vpop.f32.mrb[0].mxu0
          %v11633 = vpop.f32.mrb[0].mxu0
          %v11634 = vadd.f32 %v11521, %v11633
          %v11635 = vpop.f32.mrb[0].mxu0
          %11636 = vmatprep.mubr.bf16.mxu0 0
          %11637 = vmatmul.mubr.bf16.gmra.mrb[0].mxu0 %v11567
          %v11638 = vpop.f32.mrb[0].mxu0
          %v11639 = vadd.f32 %v11522, %v11638
          %v11640 = vpop.f32.mrb[0].mxu0
          %v11641 = vpop.f32.mrb[0].mxu0
          %v11642 = vadd.f32 %v11523, %v11641
          %v11643 = vpop.f32.mrb[0].mxu0
          %11644 = vmatprep.mubr.bf16.mxu0 0
          %11645 = vmatmul.mubr.bf16.gmra.mrb[0].mxu0 %v11568
          %v11646 = vpop.f32.mrb[0].mxu0
          %v11647 = vadd.f32 %v11524, %v11646
          %v11648 = vpop.f32.mrb[0].mxu0
          %v11649 = vpop.f32.mrb[0].mxu0
          %v11650 = vadd.f32 %v11525, %v11649
          %v11651 = vpop.f32.mrb[0].mxu0
          %11652 = vmatprep.mubr.bf16.mxu0 0
          %11653 = vmatmul.mubr.bf16.gmra.mrb[0].mxu0 %v11569
          %v11654 = vpop.f32.mrb[0].mxu0
          %v11655 = vadd.f32 %v11526, %v11654
          %v11656 = vpop.f32.mrb[0].mxu0
          %v11657 = vpop.f32.mrb[0].mxu0
          %v11658 = vadd.f32 %v11527, %v11657
          %v11659 = vpop.f32.mrb[0].mxu0
          %11660 = vmatprep.mubr.bf16.mxu0 0
          %11661 = vmatmul.mubr.bf16.gmra.mrb[0].mxu0 %v11570
          %v11662 = vpop.f32.mrb[0].mxu0
          %v11663 = vadd.f32 %v11528, %v11662
          %v11664 = vpop.f32.mrb[0].mxu0
          %v11665 = vpop.f32.mrb[0].mxu0
          %v11666 = vadd.f32 %v11529, %v11665
          %v11667 = vpop.f32.mrb[0].mxu0
          %11668 = vmatprep.mubr.bf16.mxu0 0
          %11669 = vmatmul.mubr.bf16.gmra.mrb[0].mxu0 %v11571
          %v11670 = vpop.f32.mrb[0].mxu0
          %v11671 = vadd.f32 %v11530, %v11670
          %v11672 = vpop.f32.mrb[0].mxu0
          %v11673 = vpop.f32.mrb[0].mxu0
          %v11674 = vadd.f32 %v11531, %v11673
          %v11675 = vpop.f32.mrb[0].mxu0
          %11676 = vdwg.mxu0
          %vm11677 = vcmask 7168
          %11678 = vst.msk [vmem:[%s429] sm:$0xff] %vm11677, %v11615
          %11679 = vst.msk [vmem:[%s429 + $0x8] sm:$0xff] %vm11677, %v11618
          %11680 = vst.msk [vmem:[%s429 + $0x10] sm:$0xff] %vm11677, %v11623
          %11681 = vst.msk [vmem:[%s429 + $0x18] sm:$0xff] %vm11677, %v11626
          %11682 = vst.msk [vmem:[%s429 + $0x20] sm:$0xff] %vm11677, %v11631
          %11683 = vst.msk [vmem:[%s429 + $0x28] sm:$0xff] %vm11677, %v11634
          %11684 = vst.msk [vmem:[%s429 + $0x30] sm:$0xff] %vm11677, %v11639
          %11685 = vst.msk [vmem:[%s429 + $0x38] sm:$0xff] %vm11677, %v11642
          %11686 = vst.msk [vmem:[%s429 + $0x40] sm:$0xff] %vm11677, %v11647
          %11687 = vst.msk [vmem:[%s429 + $0x48] sm:$0xff] %vm11677, %v11650
          %11688 = vst.msk [vmem:[%s429 + $0x50] sm:$0xff] %vm11677, %v11655
          %11689 = vst.msk [vmem:[%s429 + $0x58] sm:$0xff] %vm11677, %v11658
          %11690 = vst.msk [vmem:[%s429 + $0x60] sm:$0xff] %vm11677, %v11663
          %11691 = vst.msk [vmem:[%s429 + $0x68] sm:$0xff] %vm11677, %v11666
          %11692 = vst.msk [vmem:[%s429 + $0x70] sm:$0xff] %vm11677, %v11671
          %11693 = vst.msk [vmem:[%s429 + $0x78] sm:$0xff] %vm11677, %v11674
        $region76: #{angle_predictor_forward.1} parent=63 // pred_fallthru
          _
        %p11694 = scmp.lt.s32.totalorder %s27, 1
        %s11695 = scalar_select %p11694, %s27, 1
        %s11696 = smul.addr %s11695, 16
        %s11697 = smul.addr %s11696, 8
        %s11698 = scalar_lea.vmem %s11, %s11697
        // Predicated region
        $region77: #{angle_predictor_forward.1} parent=63 // pred_check
          %p11699 = pneg %p291
        $region78: #{angle_predictor_forward.1} parent=63 // pred_check_branch
          %11701 = sbr.rel (%p11699) target = $region80
        $region79: #{angle_predictor_forward.1} parent=63 // pred_region
          _
        $region80: #{angle_predictor_forward.1} parent=63 // pred_fallthru
          _
      $region64: #{angle_predictor_forward.1} parent=5 // pred_fallthru
        _
      %p11702 = scmp.le.s32.totalorder 2, %s18
      // Predicated region
      $region81: #{angle_predictor_forward.1} parent=5 // pred_check
        %p11703 = pneg %p11702
      $region82: #{angle_predictor_forward.1} parent=5 // pred_check_branch
        %11705 = sbr.rel (%p11703) target = $region84
      $region83: #{angle_predictor_forward.1} parent=5 // pred_region
        %s11706 = ssub.s32 %s18, 2
        // Predicated region
        $region85: #{angle_predictor_forward.1} parent=83 // pred_check
          %p11707 = pneg %p297
        $region86: #{angle_predictor_forward.1} parent=83 // pred_check_branch
          %11709 = sbr.rel (%p11707) target = $region88
        $region87: #{angle_predictor_forward.1} parent=83 // pred_region
          %p11710 = scmp.lt.s32.totalorder %s29, 1
          %s11711 = scalar_select %p11710, %s29, 1
          %s11712 = smul.addr %s11711, 16
          %s11713 = smul.addr %s11712, 8
          %s11714 = scalar_lea.vmem %s11, %s11713
        $region88: #{angle_predictor_forward.1} parent=83 // pred_fallthru
          _
      $region84: #{angle_predictor_forward.1} parent=5 // pred_fallthru
        _
    $region6: #{angle_predictor_forward.1} parent=1 // loop_footer
      %s22 = sadd.s32 1, %s18
    $region7: #{angle_predictor_forward.1} parent=1 // loop_footer_branch
      %17 = sbr.rel target = $region3
    $region8: #{angle_predictor_forward.1} parent=1 // loop_exit
      _
    %11715 = vsyncpa [#allocation4], 1
    %s11716 = scalar_lea.sflag [#allocation4], 1
    %11717 = vsyncpa %s11716, 1

</llo_original>
